<compile_context>
chip_gen: v5e
topology: v5e:2x2
jax: 0.10.0
libtpu: 0.0.40
codegen_flags: <defaults>
</compile_context>

<pallas_src>
import jax
import jax.numpy as jnp
import numpy as np
from jax.experimental import pallas as pl
from jax.experimental.pallas import tpu as pltpu

VIS = 3
D_IN = VIS * 2 + 1            # 7
K = 3
FM1, FM2 = 30, 60
RED1 = D_IN - (K - 1)         # 5  (after conv1)
RED2 = RED1 - (K - 1)         # 3  (after conv2)
P1 = RED1 * RED1              # 25 conv1 output positions
P2 = RED2 * RED2              # 9  conv2 output positions
C1_OUT = P1 * FM1             # 750
CONV_OUT = FM2 * P2           # 540
H1, H2, D_OUT = 12, 96, 4
N_PIX = D_IN * D_IN           # 49


# ----------------------------- kernel ---------------------------------------

def brain_kernel(x_ref, wc1_ref, bc1_ref, wc2_ref, bc2_ref,
                 wf1_ref, bf1_ref, wf2_ref, bf2_ref, wf3_ref, bf3_ref,
                 out_ref):
    x = x_ref[...]                                                  # (Bt, 49)

    # conv1 (fused dense matmul) + ReLU : (Bt, 750), col = pos*30 + ch
    h1 = jnp.maximum(
        jnp.dot(x, wc1_ref[...], preferred_element_type=jnp.float32)
        + bc1_ref[...], 0.0)

    # conv2 (fused dense matmul) + ReLU : (Bt, 540), col = pos*60 + ch
    h2 = jnp.maximum(
        jnp.dot(h1, wc2_ref[...], preferred_element_type=jnp.float32)
        + bc2_ref[...], 0.0)

    # fc1 + ReLU : (Bt, 12)   (weight rows pre-permuted to pos*60+ch order)
    h3 = jnp.maximum(
        jnp.dot(h2, wf1_ref[...], preferred_element_type=jnp.float32)
        + bf1_ref[...], 0.0)

    # fc2 + ReLU : (Bt, 96)
    h4 = jnp.maximum(
        jnp.dot(h3, wf2_ref[...], preferred_element_type=jnp.float32)
        + bf2_ref[...], 0.0)

    # fc3 : (Bt, 4), then store lane-dense as (4, Bt)
    q = (jnp.dot(h4, wf3_ref[...], preferred_element_type=jnp.float32)
         + bf3_ref[...])
    out_ref[...] = q.T


# ----------------------------- wrapper ---------------------------------------

def brain_forward(boards, kparams, *, b_tile=256):
    """boards: (B, 7, 7) float32 -> q_values (B, 4); row b == Brain.forward(boards[b])."""
    B = boards.shape[0]
    b_pad = ((B + b_tile - 1) // b_tile) * b_tile
    x = boards.reshape(B, N_PIX).astype(jnp.float32)
    if b_pad != B:
        x = jnp.pad(x, ((0, b_pad - B), (0, 0)))
    n_tiles = b_pad // b_tile

    def full(shape):
        # whole-array block, constant index map -> loaded into VMEM once
        return pl.BlockSpec(shape, lambda i: (0, 0))

    wc1, bc1, wc2, bc2, wf1, bf1, wf2, bf2, wf3, bf3 = kparams

    out_t = pl.pallas_call(
        brain_kernel,
        out_shape=jax.ShapeDtypeStruct((D_OUT, b_pad), jnp.float32),
        grid_spec=pltpu.PrefetchScalarGridSpec(
            num_scalar_prefetch=0,
            grid=(n_tiles,),
            in_specs=[
                pl.BlockSpec((b_tile, N_PIX), lambda i: (i, 0)),   # boards
                full((N_PIX, C1_OUT)),    full((1, C1_OUT)),       # conv1
                full((C1_OUT, CONV_OUT)), full((1, CONV_OUT)),     # conv2
                full((CONV_OUT, H1)),     full((1, H1)),           # fc1
                full((H1, H2)),           full((1, H2)),           # fc2
                full((H2, D_OUT)),        full((1, D_OUT)),        # fc3
            ],
            out_specs=pl.BlockSpec((D_OUT, b_tile), lambda i: (0, i)),
        ),
        compiler_params=pltpu.CompilerParams(
            dimension_semantics=("parallel",)),
    )(x, wc1, bc1, wc2, bc2, wf1, bf1, wf2, bf2, wf3, bf3)

    return out_t.T[:B]


# ---------------- parameter setup (PyTorch-style shapes) ---------------------

def init_params(key):
    """Params in PyTorch layouts: conv (O,I,kh,kw), linear (out,in)."""
    def uni(k, shape, fan_in):
        bound = 1.0 / np.sqrt(fan_in)
        return jax.random.uniform(k, shape, jnp.float32, -bound, bound)

    ks = jax.random.split(key, 10)
    W1 = uni(ks[0], (FM1, 1, K, K), 1 * K * K)
    b1 = uni(ks[1], (FM1,), 1 * K * K)
    W2 = uni(ks[2], (FM2, FM1, K, K), FM1 * K * K)
    b2 = uni(ks[3], (FM2,), FM1 * K * K)
    Wf1 = uni(ks[4], (H1, CONV_OUT), CONV_OUT)
    bf1 = uni(ks[5], (H1,), CONV_OUT)
    Wf2 = uni(ks[6], (H2, H1), H1)
    bf2 = uni(ks[7], (H2,), H1)
    Wf3 = uni(ks[8], (D_OUT, H2), H2)
    bf3 = uni(ks[9], (D_OUT,), H2)
    return (W1, b1, W2, b2, Wf1, bf1, Wf2, bf2, Wf3, bf3)


def to_kernel_params(pt):
    """Host-side fusion/permutation of PyTorch weights into flat 2-D MXU operands."""
    W1, b1, W2, b2, Wf1, bf1, Wf2, bf2, Wf3, bf3 = [np.asarray(p) for p in pt]

    # conv1 as dense matmul on the flat board (row = ii*7 + jj):
    #   Wc1[(i+di)*7 + (j+dj), (i*5+j)*30 + c] = W1[c, 0, di, dj]
    Wc1 = np.zeros((N_PIX, C1_OUT), np.float32)
    for i in range(RED1):
        for j in range(RED1):
            col0 = (i * RED1 + j) * FM1
            for di in range(K):
                for dj in range(K):
                    Wc1[(i + di) * D_IN + (j + dj), col0:col0 + FM1] += W1[:, 0, di, dj]
    bc1 = np.tile(b1, P1).reshape(1, C1_OUT)

    # conv2 as dense matmul on the (pos1*30 + c) activation layout:
    #   Wc2[p1*30 + c, (oi*3+oj)*60 + o] = W2[o, c, di, dj], p1 = (oi+di)*5 + (oj+dj)
    Wc2 = np.zeros((C1_OUT, CONV_OUT), np.float32)
    for oi in range(RED2):
        for oj in range(RED2):
            col0 = (oi * RED2 + oj) * FM2
            for di in range(K):
                for dj in range(K):
                    p1 = (oi + di) * RED1 + (oj + dj)
                    Wc2[p1 * FM1:(p1 + 1) * FM1, col0:col0 + FM2] += W2[:, :, di, dj].T
    bc2 = np.tile(b2, P2).reshape(1, CONV_OUT)

    # fc1: PyTorch flatten index = c*9 + pos ; our activation layout = pos*60 + c
    Wf1k = Wf1.reshape(H1, FM2, P2).transpose(2, 1, 0).reshape(CONV_OUT, H1)

    packed = (Wc1, bc1,
              Wc2, bc2,
              Wf1k, bf1.reshape(1, H1),
              Wf2.T, bf2.reshape(1, H2),
              Wf3.T, bf3.reshape(1, D_OUT))
    return tuple(jnp.asarray(a, jnp.float32) for a in packed)


# ---------------- pure-JAX reference (mirrors the PyTorch forward) -----------

def ref_forward(boards, pt):
    W1, b1, W2, b2, Wf1, bf1, Wf2, bf2, Wf3, bf3 = pt
    y = boards[:, None, :, :]
    y = jax.lax.conv_general_dilated(
        y, W1, (1, 1), 'VALID',
        dimension_numbers=('NCHW', 'OIHW', 'NCHW')) + b1[None, :, None, None]
    y = jnp.maximum(y, 0.0)
    y = jax.lax.conv_general_dilated(
        y, W2, (1, 1), 'VALID',
        dimension_numbers=('NCHW', 'OIHW', 'NCHW')) + b2[None, :, None, None]
    y = jnp.maximum(y, 0.0)
    y = y.reshape(y.shape[0], -1)
    y = jnp.maximum(y @ Wf1.T + bf1, 0.0)
    y = jnp.maximum(y @ Wf2.T + bf2, 0.0)
    return y @ Wf3.T + bf3


# TODO(synk): Brain.optim_step (SGD training step) is not part of forward() and
# is intentionally not implemented as a Pallas kernel.

if __name__ == "__main__":
    key = jax.random.PRNGKey(0)
    k_x, k_p = jax.random.split(key)

    B = 512                                                # 2 batch tiles of 256
    boards = jax.random.uniform(k_x, (B, D_IN, D_IN), jnp.float32)
    pt_params = init_params(k_p)
    k_params = to_kernel_params(pt_params)

    q_values = brain_forward(boards, k_params, b_tile=256)
    q_values = jax.block_until_ready(q_values)

    q_ref = ref_forward(boards, pt_params)
    assert q_values.shape == (B, D_OUT)
    max_err = float(jnp.max(jnp.abs(q_values - q_ref)))
    assert jnp.allclose(q_values, q_ref, rtol=1e-4, atol=1e-4), ("max abs err", max_err)

    print("KERNEL_OK")
</pallas_src>

<mosaic_0001>
module attributes {stable_mosaic.version = 11 : i64} {
  func.func @brain_kernel(%arg0: i32, %arg1: memref<256x49xf32, #tpu.memory_space<vmem>>, %arg2: memref<49x750xf32, #tpu.memory_space<vmem>>, %arg3: memref<1x750xf32, #tpu.memory_space<vmem>>, %arg4: memref<750x540xf32, #tpu.memory_space<vmem>>, %arg5: memref<1x540xf32, #tpu.memory_space<vmem>>, %arg6: memref<540x12xf32, #tpu.memory_space<vmem>>, %arg7: memref<1x12xf32, #tpu.memory_space<vmem>>, %arg8: memref<12x96xf32, #tpu.memory_space<vmem>>, %arg9: memref<1x96xf32, #tpu.memory_space<vmem>>, %arg10: memref<96x4xf32, #tpu.memory_space<vmem>>, %arg11: memref<1x4xf32, #tpu.memory_space<vmem>>, %arg12: memref<4x256xf32, #tpu.memory_space<vmem>>) attributes {dimension_semantics = [#tpu.dimension_semantics<parallel>], iteration_bounds = array<i64: 2>, scalar_prefetch = 0 : i64, scratch_operands = 0 : i64, tpu.core_type = #tpu.core_type<tc>, window_params = [{transform_indices = @transform_0, window_bounds = array<i64: 256, 49>}, {pipeline_mode = #tpu.pipeline_mode<synchronous>, transform_indices = @transform_1, window_bounds = array<i64: 49, 750>}, {pipeline_mode = #tpu.pipeline_mode<synchronous>, transform_indices = @transform_2, window_bounds = array<i64: 1, 750>}, {pipeline_mode = #tpu.pipeline_mode<synchronous>, transform_indices = @transform_3, window_bounds = array<i64: 750, 540>}, {pipeline_mode = #tpu.pipeline_mode<synchronous>, transform_indices = @transform_4, window_bounds = array<i64: 1, 540>}, {pipeline_mode = #tpu.pipeline_mode<synchronous>, transform_indices = @transform_5, window_bounds = array<i64: 540, 12>}, {pipeline_mode = #tpu.pipeline_mode<synchronous>, transform_indices = @transform_6, window_bounds = array<i64: 1, 12>}, {pipeline_mode = #tpu.pipeline_mode<synchronous>, transform_indices = @transform_7, window_bounds = array<i64: 12, 96>}, {pipeline_mode = #tpu.pipeline_mode<synchronous>, transform_indices = @transform_8, window_bounds = array<i64: 1, 96>}, {pipeline_mode = #tpu.pipeline_mode<synchronous>, transform_indices = @transform_9, window_bounds = array<i64: 96, 4>}, {pipeline_mode = #tpu.pipeline_mode<synchronous>, transform_indices = @transform_10, window_bounds = array<i64: 1, 4>}, {transform_indices = @transform_11, window_bounds = array<i64: 4, 256>}]} {
    %c0 = arith.constant 0 : index
    %c0_0 = arith.constant 0 : index
    %0 = vector.load %arg1[%c0, %c0_0] : memref<256x49xf32, #tpu.memory_space<vmem>>, vector<256x49xf32>
    %c0_1 = arith.constant 0 : index
    %c0_2 = arith.constant 0 : index
    %1 = vector.load %arg2[%c0_1, %c0_2] : memref<49x750xf32, #tpu.memory_space<vmem>>, vector<49x750xf32>
    %cst = arith.constant dense<0.000000e+00> : vector<256x750xf32>
    %2 = tpu.matmul %0, %1, %cst {dimension_numbers = #tpu.dot_dimension_numbers<[1], [0], [0], [1], [0, 0, 1, 1], [], []>} : vector<256x49xf32>, vector<49x750xf32>, vector<256x750xf32> -> vector<256x750xf32>
    %c0_3 = arith.constant 0 : index
    %c0_4 = arith.constant 0 : index
    %3 = vector.load %arg3[%c0_3, %c0_4] : memref<1x750xf32, #tpu.memory_space<vmem>>, vector<1x750xf32>
    %4 = vector.broadcast %3 : vector<1x750xf32> to vector<256x750xf32>
    %5 = arith.addf %2, %4 : vector<256x750xf32>
    %cst_5 = arith.constant 0.000000e+00 : f32
    %6 = vector.broadcast %cst_5 : f32 to vector<256x750xf32>
    %7 = arith.maximumf %5, %6 : vector<256x750xf32>
    %c0_6 = arith.constant 0 : index
    %c0_7 = arith.constant 0 : index
    %8 = vector.load %arg4[%c0_6, %c0_7] : memref<750x540xf32, #tpu.memory_space<vmem>>, vector<750x540xf32>
    %cst_8 = arith.constant dense<0.000000e+00> : vector<256x540xf32>
    %9 = tpu.matmul %7, %8, %cst_8 {dimension_numbers = #tpu.dot_dimension_numbers<[1], [0], [0], [1], [0, 0, 1, 1], [], []>} : vector<256x750xf32>, vector<750x540xf32>, vector<256x540xf32> -> vector<256x540xf32>
    %c0_9 = arith.constant 0 : index
    %c0_10 = arith.constant 0 : index
    %10 = vector.load %arg5[%c0_9, %c0_10] : memref<1x540xf32, #tpu.memory_space<vmem>>, vector<1x540xf32>
    %11 = vector.broadcast %10 : vector<1x540xf32> to vector<256x540xf32>
    %12 = arith.addf %9, %11 : vector<256x540xf32>
    %cst_11 = arith.constant 0.000000e+00 : f32
    %13 = vector.broadcast %cst_11 : f32 to vector<256x540xf32>
    %14 = arith.maximumf %12, %13 : vector<256x540xf32>
    %c0_12 = arith.constant 0 : index
    %c0_13 = arith.constant 0 : index
    %15 = vector.load %arg6[%c0_12, %c0_13] : memref<540x12xf32, #tpu.memory_space<vmem>>, vector<540x12xf32>
    %cst_14 = arith.constant dense<0.000000e+00> : vector<256x12xf32>
    %16 = tpu.matmul %14, %15, %cst_14 {dimension_numbers = #tpu.dot_dimension_numbers<[1], [0], [0], [1], [0, 0, 1, 1], [], []>} : vector<256x540xf32>, vector<540x12xf32>, vector<256x12xf32> -> vector<256x12xf32>
    %c0_15 = arith.constant 0 : index
    %c0_16 = arith.constant 0 : index
    %17 = vector.load %arg7[%c0_15, %c0_16] : memref<1x12xf32, #tpu.memory_space<vmem>>, vector<1x12xf32>
    %18 = vector.broadcast %17 : vector<1x12xf32> to vector<256x12xf32>
    %19 = arith.addf %16, %18 : vector<256x12xf32>
    %cst_17 = arith.constant 0.000000e+00 : f32
    %20 = vector.broadcast %cst_17 : f32 to vector<256x12xf32>
    %21 = arith.maximumf %19, %20 : vector<256x12xf32>
    %c0_18 = arith.constant 0 : index
    %c0_19 = arith.constant 0 : index
    %22 = vector.load %arg8[%c0_18, %c0_19] : memref<12x96xf32, #tpu.memory_space<vmem>>, vector<12x96xf32>
    %cst_20 = arith.constant dense<0.000000e+00> : vector<256x96xf32>
    %23 = tpu.matmul %21, %22, %cst_20 {dimension_numbers = #tpu.dot_dimension_numbers<[1], [0], [0], [1], [0, 0, 1, 1], [], []>} : vector<256x12xf32>, vector<12x96xf32>, vector<256x96xf32> -> vector<256x96xf32>
    %c0_21 = arith.constant 0 : index
    %c0_22 = arith.constant 0 : index
    %24 = vector.load %arg9[%c0_21, %c0_22] : memref<1x96xf32, #tpu.memory_space<vmem>>, vector<1x96xf32>
    %25 = vector.broadcast %24 : vector<1x96xf32> to vector<256x96xf32>
    %26 = arith.addf %23, %25 : vector<256x96xf32>
    %cst_23 = arith.constant 0.000000e+00 : f32
    %27 = vector.broadcast %cst_23 : f32 to vector<256x96xf32>
    %28 = arith.maximumf %26, %27 : vector<256x96xf32>
    %c0_24 = arith.constant 0 : index
    %c0_25 = arith.constant 0 : index
    %29 = vector.load %arg10[%c0_24, %c0_25] : memref<96x4xf32, #tpu.memory_space<vmem>>, vector<96x4xf32>
    %cst_26 = arith.constant dense<0.000000e+00> : vector<256x4xf32>
    %30 = tpu.matmul %28, %29, %cst_26 {dimension_numbers = #tpu.dot_dimension_numbers<[1], [0], [0], [1], [0, 0, 1, 1], [], []>} : vector<256x96xf32>, vector<96x4xf32>, vector<256x4xf32> -> vector<256x4xf32>
    %c0_27 = arith.constant 0 : index
    %c0_28 = arith.constant 0 : index
    %31 = vector.load %arg11[%c0_27, %c0_28] : memref<1x4xf32, #tpu.memory_space<vmem>>, vector<1x4xf32>
    %32 = vector.broadcast %31 : vector<1x4xf32> to vector<256x4xf32>
    %33 = arith.addf %30, %32 : vector<256x4xf32>
    %34 = tpu.transpose %33, [1, 0] : vector<256x4xf32> -> vector<4x256xf32>
    %c0_29 = arith.constant 0 : index
    %c0_30 = arith.constant 0 : index
    %35 = vector.load %arg12[%c0_29, %c0_30] : memref<4x256xf32, #tpu.memory_space<vmem>>, vector<4x256xf32>
    tpu.vector_store %arg12[%c0_29, %c0_30], %34 {strides = array<i32>} : memref<4x256xf32, #tpu.memory_space<vmem>>, vector<4x256xf32>,
    return
  }
  func.func @transform_0(%arg0: i32) -> (i32, i32) {
    %c0_i32 = arith.constant 0 : i32
    %c0_i32_0 = arith.constant 0 : i32
    return %arg0, %c0_i32 : i32, i32
  }
  func.func @transform_1(%arg0: i32) -> (i32, i32) {
    %c0_i32 = arith.constant 0 : i32
    %c0_i32_0 = arith.constant 0 : i32
    %c0_i32_1 = arith.constant 0 : i32
    return %c0_i32, %c0_i32_0 : i32, i32
  }
  func.func @transform_2(%arg0: i32) -> (i32, i32) {
    %c0_i32 = arith.constant 0 : i32
    %c0_i32_0 = arith.constant 0 : i32
    %c0_i32_1 = arith.constant 0 : i32
    return %c0_i32, %c0_i32_0 : i32, i32
  }
  func.func @transform_3(%arg0: i32) -> (i32, i32) {
    %c0_i32 = arith.constant 0 : i32
    %c0_i32_0 = arith.constant 0 : i32
    %c0_i32_1 = arith.constant 0 : i32
    return %c0_i32, %c0_i32_0 : i32, i32
  }
  func.func @transform_4(%arg0: i32) -> (i32, i32) {
    %c0_i32 = arith.constant 0 : i32
    %c0_i32_0 = arith.constant 0 : i32
    %c0_i32_1 = arith.constant 0 : i32
    return %c0_i32, %c0_i32_0 : i32, i32
  }
  func.func @transform_5(%arg0: i32) -> (i32, i32) {
    %c0_i32 = arith.constant 0 : i32
    %c0_i32_0 = arith.constant 0 : i32
    %c0_i32_1 = arith.constant 0 : i32
    return %c0_i32, %c0_i32_0 : i32, i32
  }
  func.func @transform_6(%arg0: i32) -> (i32, i32) {
    %c0_i32 = arith.constant 0 : i32
    %c0_i32_0 = arith.constant 0 : i32
    %c0_i32_1 = arith.constant 0 : i32
    return %c0_i32, %c0_i32_0 : i32, i32
  }
  func.func @transform_7(%arg0: i32) -> (i32, i32) {
    %c0_i32 = arith.constant 0 : i32
    %c0_i32_0 = arith.constant 0 : i32
    %c0_i32_1 = arith.constant 0 : i32
    return %c0_i32, %c0_i32_0 : i32, i32
  }
  func.func @transform_8(%arg0: i32) -> (i32, i32) {
    %c0_i32 = arith.constant 0 : i32
    %c0_i32_0 = arith.constant 0 : i32
    %c0_i32_1 = arith.constant 0 : i32
    return %c0_i32, %c0_i32_0 : i32, i32
  }
  func.func @transform_9(%arg0: i32) -> (i32, i32) {
    %c0_i32 = arith.constant 0 : i32
    %c0_i32_0 = arith.constant 0 : i32
    %c0_i32_1 = arith.constant 0 : i32
    return %c0_i32, %c0_i32_0 : i32, i32
  }
  func.func @transform_10(%arg0: i32) -> (i32, i32) {
    %c0_i32 = arith.constant 0 : i32
    %c0_i32_0 = arith.constant 0 : i32
    %c0_i32_1 = arith.constant 0 : i32
    return %c0_i32, %c0_i32_0 : i32, i32
  }
  func.func @transform_11(%arg0: i32) -> (i32, i32) {
    %c0_i32 = arith.constant 0 : i32
    %c0_i32_0 = arith.constant 0 : i32
    return %c0_i32, %arg0 : i32, i32
  }
}

</mosaic_0001>

<llo_original>
// kernel: tpu_custom_call.1
$region0: #{tpu_custom_call.1}
  #allocation0 [shape = 'u32[]', space=smem, size = 0x4, offset = 0x4, fixed_abs, tag = 'smem constant byte address 0x4 - core index']
  #allocation1 [shape = 'u32[72,128]{1,0:T(1,128)}', space=vmem, size = 0x9000, scoped, tag = 'internal scratch']
  %s0 = inlined_call_operand.vmem [shape: f32[512,49], index: 0, kind: input, shape index: {}]
  %s1 = inlined_call_operand.vmem [shape: f32[49,750], index: 1, kind: input, shape index: {}]
  %s2 = inlined_call_operand.vmem [shape: f32[1,750], index: 2, kind: input, shape index: {}]
  %s3 = inlined_call_operand.vmem [shape: f32[750,540], index: 3, kind: input, shape index: {}]
  %s4 = inlined_call_operand.vmem [shape: f32[1,540], index: 4, kind: input, shape index: {}]
  %s5 = inlined_call_operand.vmem [shape: f32[540,12], index: 5, kind: input, shape index: {}]
  %s6 = inlined_call_operand.vmem [shape: f32[1,12], index: 6, kind: input, shape index: {}]
  %s7 = inlined_call_operand.vmem [shape: f32[12,96], index: 7, kind: input, shape index: {}]
  %s8 = inlined_call_operand.vmem [shape: f32[1,96], index: 8, kind: input, shape index: {}]
  %s9 = inlined_call_operand.vmem [shape: f32[96,4], index: 9, kind: input, shape index: {}]
  %s10 = inlined_call_operand.vmem [shape: f32[1,4], index: 10, kind: input, shape index: {}]
  %s11 = inlined_call_operand.hbm [shape: f32[4,512], index: 11, kind: output, shape index: {}]
  %s12 = sld [smem:[#allocation0]]
  $region77: #{tpu_custom_call.1} parent=0
    _
  %s14 = ssub.s32 1, %s12
  %s15 = scalar_select 0, %s14, %s12
  $region1: #{tpu_custom_call.1} parent=0
    #allocation2 [shape = 'u8[8192]{0}', space=vmem, size = 0x2000, scoped, tag = 'output window, operand 0']
    #allocation3 [shape = 's32[2]{0}', space=sflag, size = 0x8, scoped, tag = 'scoped memory for tpu_custom_call.1']
    %16 = vsyncpa [#allocation3], 0
    %s17 = scalar_lea.sflag [#allocation3], 1
    %18 = vsyncpa %s17, 0
    loop: start=0, step=1, limit=4
    $region2: #{tpu_custom_call.1} parent=1 // loop_pre_header
      _
    $region3: #{tpu_custom_call.1} parent=1 // loop_header
      %s20 = sphi 0, %s24
      %p21 = scmp.ge.s32.totalorder %s20, 4
      %s30 = sphi 0, %s32
      %s33 = sphi 0, %s30
      %s34 = sphi 0, %s33
      %s50 = sphi 0, %s34
      %s54 = sphi 0, %s54
      %s56 = sphi 0, %s54
      %s57 = sphi 0, %s56
      %s71 = sphi 0, %s57
      %s75 = sphi 0, %s75
      %s77 = sphi 0, %s75
      %s78 = sphi 0, %s77
      %s92 = sphi 0, %s78
      %s96 = sphi 0, %s96
      %s98 = sphi 0, %s96
      %s99 = sphi 0, %s98
      %s113 = sphi 0, %s99
      %s117 = sphi 0, %s117
      %s119 = sphi 0, %s117
      %s120 = sphi 0, %s119
      %s134 = sphi 0, %s120
      %s138 = sphi 0, %s138
      %s140 = sphi 0, %s138
      %s141 = sphi 0, %s140
      %s155 = sphi 0, %s141
      %s159 = sphi 0, %s159
      %s161 = sphi 0, %s159
      %s162 = sphi 0, %s161
      %s176 = sphi 0, %s162
      %s180 = sphi 0, %s180
      %s182 = sphi 0, %s180
      %s183 = sphi 0, %s182
      %s197 = sphi 0, %s183
      %s201 = sphi 0, %s201
      %s203 = sphi 0, %s201
      %s204 = sphi 0, %s203
      %s218 = sphi 0, %s204
      %s222 = sphi 0, %s222
      %s224 = sphi 0, %s222
      %s225 = sphi 0, %s224
      %s239 = sphi 0, %s225
      %s243 = sphi 0, %s243
      %s245 = sphi 0, %s243
      %s246 = sphi 0, %s245
      %s260 = sphi 0, %s246
      %s266 = sphi 0, %s268
      %s269 = sphi 0, %s266
      %s270 = sphi 0, %s269
      %s286 = sphi 0, %s270
    $region4: #{tpu_custom_call.1} parent=1 // loop_header_branch
      %23 = sbr.rel (%p21) target = $region8
    $region5: #{tpu_custom_call.1} parent=1 // loop_body
      %s25 = ssub.s32 %s20, 1
      %s26 = ssub.s32 %s20, 2
      %s27 = sadd.s32 %s20, 1
      %s28 = ssub.s32 %s20, %s27
      %p29 = scmp.eq.s32.totalorder %s28, 0
      %s31 = sadd.s32 %s30, 1
      %s32 = scalar_select %p29, %s30, %s31
      %p35 = pneg %p29
      %p36 = scmp.eq.s32.totalorder %s20, 1
      %p37 = por %p35, %p36
      %p38 = scmp.ne.s32.totalorder %s30, %s33
      %p39 = scmp.eq.s32.totalorder %s20, 0
      %p40 = por %p38, %p39
      %p41 = scmp.ne.s32.totalorder %s30, %s33
      %p42 = scmp.eq.s32.totalorder %s25, 1
      %p43 = por %p41, %p42
      %p44 = scmp.ne.s32.totalorder %s33, %s34
      %p45 = scmp.eq.s32.totalorder %s25, 0
      %p46 = por %p44, %p45
      %p47 = scmp.ne.s32.totalorder %s33, %s34
      %p48 = scmp.eq.s32.totalorder %s26, 1
      %p49 = por %p47, %p48
      %p51 = scmp.ne.s32.totalorder %s34, %s50
      %p52 = scmp.eq.s32.totalorder %s26, 0
      %p53 = por %p51, %p52
      %s55 = sadd.s32 %s54, 1
      %p58 = scmp.eq.s32.totalorder %s20, 1
      %p59 = scmp.ne.s32.totalorder %s54, %s56
      %p60 = scmp.eq.s32.totalorder %s20, 0
      %p61 = por %p59, %p60
      %p62 = scmp.ne.s32.totalorder %s54, %s56
      %p63 = scmp.eq.s32.totalorder %s25, 1
      %p64 = por %p62, %p63
      %p65 = scmp.ne.s32.totalorder %s56, %s57
      %p66 = scmp.eq.s32.totalorder %s25, 0
      %p67 = por %p65, %p66
      %p68 = scmp.ne.s32.totalorder %s56, %s57
      %p69 = scmp.eq.s32.totalorder %s26, 1
      %p70 = por %p68, %p69
      %p72 = scmp.ne.s32.totalorder %s57, %s71
      %p73 = scmp.eq.s32.totalorder %s26, 0
      %p74 = por %p72, %p73
      %s76 = sadd.s32 %s75, 1
      %p79 = scmp.eq.s32.totalorder %s20, 1
      %p80 = scmp.ne.s32.totalorder %s75, %s77
      %p81 = scmp.eq.s32.totalorder %s20, 0
      %p82 = por %p80, %p81
      %p83 = scmp.ne.s32.totalorder %s75, %s77
      %p84 = scmp.eq.s32.totalorder %s25, 1
      %p85 = por %p83, %p84
      %p86 = scmp.ne.s32.totalorder %s77, %s78
      %p87 = scmp.eq.s32.totalorder %s25, 0
      %p88 = por %p86, %p87
      %p89 = scmp.ne.s32.totalorder %s77, %s78
      %p90 = scmp.eq.s32.totalorder %s26, 1
      %p91 = por %p89, %p90
      %p93 = scmp.ne.s32.totalorder %s78, %s92
      %p94 = scmp.eq.s32.totalorder %s26, 0
      %p95 = por %p93, %p94
      %s97 = sadd.s32 %s96, 1
      %p100 = scmp.eq.s32.totalorder %s20, 1
      %p101 = scmp.ne.s32.totalorder %s96, %s98
      %p102 = scmp.eq.s32.totalorder %s20, 0
      %p103 = por %p101, %p102
      %p104 = scmp.ne.s32.totalorder %s96, %s98
      %p105 = scmp.eq.s32.totalorder %s25, 1
      %p106 = por %p104, %p105
      %p107 = scmp.ne.s32.totalorder %s98, %s99
      %p108 = scmp.eq.s32.totalorder %s25, 0
      %p109 = por %p107, %p108
      %p110 = scmp.ne.s32.totalorder %s98, %s99
      %p111 = scmp.eq.s32.totalorder %s26, 1
      %p112 = por %p110, %p111
      %p114 = scmp.ne.s32.totalorder %s99, %s113
      %p115 = scmp.eq.s32.totalorder %s26, 0
      %p116 = por %p114, %p115
      %s118 = sadd.s32 %s117, 1
      %p121 = scmp.eq.s32.totalorder %s20, 1
      %p122 = scmp.ne.s32.totalorder %s117, %s119
      %p123 = scmp.eq.s32.totalorder %s20, 0
      %p124 = por %p122, %p123
      %p125 = scmp.ne.s32.totalorder %s117, %s119
      %p126 = scmp.eq.s32.totalorder %s25, 1
      %p127 = por %p125, %p126
      %p128 = scmp.ne.s32.totalorder %s119, %s120
      %p129 = scmp.eq.s32.totalorder %s25, 0
      %p130 = por %p128, %p129
      %p131 = scmp.ne.s32.totalorder %s119, %s120
      %p132 = scmp.eq.s32.totalorder %s26, 1
      %p133 = por %p131, %p132
      %p135 = scmp.ne.s32.totalorder %s120, %s134
      %p136 = scmp.eq.s32.totalorder %s26, 0
      %p137 = por %p135, %p136
      %s139 = sadd.s32 %s138, 1
      %p142 = scmp.eq.s32.totalorder %s20, 1
      %p143 = scmp.ne.s32.totalorder %s138, %s140
      %p144 = scmp.eq.s32.totalorder %s20, 0
      %p145 = por %p143, %p144
      %p146 = scmp.ne.s32.totalorder %s138, %s140
      %p147 = scmp.eq.s32.totalorder %s25, 1
      %p148 = por %p146, %p147
      %p149 = scmp.ne.s32.totalorder %s140, %s141
      %p150 = scmp.eq.s32.totalorder %s25, 0
      %p151 = por %p149, %p150
      %p152 = scmp.ne.s32.totalorder %s140, %s141
      %p153 = scmp.eq.s32.totalorder %s26, 1
      %p154 = por %p152, %p153
      %p156 = scmp.ne.s32.totalorder %s141, %s155
      %p157 = scmp.eq.s32.totalorder %s26, 0
      %p158 = por %p156, %p157
      %s160 = sadd.s32 %s159, 1
      %p163 = scmp.eq.s32.totalorder %s20, 1
      %p164 = scmp.ne.s32.totalorder %s159, %s161
      %p165 = scmp.eq.s32.totalorder %s20, 0
      %p166 = por %p164, %p165
      %p167 = scmp.ne.s32.totalorder %s159, %s161
      %p168 = scmp.eq.s32.totalorder %s25, 1
      %p169 = por %p167, %p168
      %p170 = scmp.ne.s32.totalorder %s161, %s162
      %p171 = scmp.eq.s32.totalorder %s25, 0
      %p172 = por %p170, %p171
      %p173 = scmp.ne.s32.totalorder %s161, %s162
      %p174 = scmp.eq.s32.totalorder %s26, 1
      %p175 = por %p173, %p174
      %p177 = scmp.ne.s32.totalorder %s162, %s176
      %p178 = scmp.eq.s32.totalorder %s26, 0
      %p179 = por %p177, %p178
      %s181 = sadd.s32 %s180, 1
      %p184 = scmp.eq.s32.totalorder %s20, 1
      %p185 = scmp.ne.s32.totalorder %s180, %s182
      %p186 = scmp.eq.s32.totalorder %s20, 0
      %p187 = por %p185, %p186
      %p188 = scmp.ne.s32.totalorder %s180, %s182
      %p189 = scmp.eq.s32.totalorder %s25, 1
      %p190 = por %p188, %p189
      %p191 = scmp.ne.s32.totalorder %s182, %s183
      %p192 = scmp.eq.s32.totalorder %s25, 0
      %p193 = por %p191, %p192
      %p194 = scmp.ne.s32.totalorder %s182, %s183
      %p195 = scmp.eq.s32.totalorder %s26, 1
      %p196 = por %p194, %p195
      %p198 = scmp.ne.s32.totalorder %s183, %s197
      %p199 = scmp.eq.s32.totalorder %s26, 0
      %p200 = por %p198, %p199
      %s202 = sadd.s32 %s201, 1
      %p205 = scmp.eq.s32.totalorder %s20, 1
      %p206 = scmp.ne.s32.totalorder %s201, %s203
      %p207 = scmp.eq.s32.totalorder %s20, 0
      %p208 = por %p206, %p207
      %p209 = scmp.ne.s32.totalorder %s201, %s203
      %p210 = scmp.eq.s32.totalorder %s25, 1
      %p211 = por %p209, %p210
      %p212 = scmp.ne.s32.totalorder %s203, %s204
      %p213 = scmp.eq.s32.totalorder %s25, 0
      %p214 = por %p212, %p213
      %p215 = scmp.ne.s32.totalorder %s203, %s204
      %p216 = scmp.eq.s32.totalorder %s26, 1
      %p217 = por %p215, %p216
      %p219 = scmp.ne.s32.totalorder %s204, %s218
      %p220 = scmp.eq.s32.totalorder %s26, 0
      %p221 = por %p219, %p220
      %s223 = sadd.s32 %s222, 1
      %p226 = scmp.eq.s32.totalorder %s20, 1
      %p227 = scmp.ne.s32.totalorder %s222, %s224
      %p228 = scmp.eq.s32.totalorder %s20, 0
      %p229 = por %p227, %p228
      %p230 = scmp.ne.s32.totalorder %s222, %s224
      %p231 = scmp.eq.s32.totalorder %s25, 1
      %p232 = por %p230, %p231
      %p233 = scmp.ne.s32.totalorder %s224, %s225
      %p234 = scmp.eq.s32.totalorder %s25, 0
      %p235 = por %p233, %p234
      %p236 = scmp.ne.s32.totalorder %s224, %s225
      %p237 = scmp.eq.s32.totalorder %s26, 1
      %p238 = por %p236, %p237
      %p240 = scmp.ne.s32.totalorder %s225, %s239
      %p241 = scmp.eq.s32.totalorder %s26, 0
      %p242 = por %p240, %p241
      %s244 = sadd.s32 %s243, 1
      %p247 = scmp.eq.s32.totalorder %s20, 1
      %p248 = scmp.ne.s32.totalorder %s243, %s245
      %p249 = scmp.eq.s32.totalorder %s20, 0
      %p250 = por %p248, %p249
      %p251 = scmp.ne.s32.totalorder %s243, %s245
      %p252 = scmp.eq.s32.totalorder %s25, 1
      %p253 = por %p251, %p252
      %p254 = scmp.ne.s32.totalorder %s245, %s246
      %p255 = scmp.eq.s32.totalorder %s25, 0
      %p256 = por %p254, %p255
      %p257 = scmp.ne.s32.totalorder %s245, %s246
      %p258 = scmp.eq.s32.totalorder %s26, 1
      %p259 = por %p257, %p258
      %p261 = scmp.ne.s32.totalorder %s246, %s260
      %p262 = scmp.eq.s32.totalorder %s26, 0
      %p263 = por %p261, %p262
      %s264 = ssub.s32 %s20, %s27
      %p265 = scmp.eq.s32.totalorder %s264, 0
      %s267 = sadd.s32 %s266, 1
      %s268 = scalar_select %p265, %s266, %s267
      %p271 = pneg %p265
      %p272 = scmp.eq.s32.totalorder %s20, 1
      %p273 = por %p271, %p272
      %p274 = scmp.ne.s32.totalorder %s266, %s269
      %p275 = scmp.eq.s32.totalorder %s20, 0
      %p276 = por %p274, %p275
      %p277 = scmp.ne.s32.totalorder %s266, %s269
      %p278 = scmp.eq.s32.totalorder %s25, 1
      %p279 = por %p277, %p278
      %p280 = scmp.ne.s32.totalorder %s269, %s270
      %p281 = scmp.eq.s32.totalorder %s25, 0
      %p282 = por %p280, %p281
      %p283 = scmp.ne.s32.totalorder %s269, %s270
      %p284 = scmp.eq.s32.totalorder %s26, 1
      %p285 = por %p283, %p284
      %p287 = scmp.ne.s32.totalorder %s270, %s286
      %p288 = scmp.eq.s32.totalorder %s26, 0
      %p289 = por %p287, %p288
      %p290 = scmp.le.s32.totalorder 1, %s20
      %p291 = scmp.lt.s32.totalorder %s20, 3
      %p292 = pnand %p290, %p291
      %p293 = pneg %p292
      // Predicated region
      $region9: #{tpu_custom_call.1} parent=5 // pred_check
        _
      $region10: #{tpu_custom_call.1} parent=5 // pred_check_branch
        %295 = sbr.rel (%p292) target = $region12
      $region11: #{tpu_custom_call.1} parent=5 // pred_region
        %s296 = ssub.s32 %s20, 1
        // Predicated region
        $region13: #{tpu_custom_call.1} parent=11 // pred_check
          %p297 = pneg %p67
        $region14: #{tpu_custom_call.1} parent=11 // pred_check_branch
          %299 = sbr.rel (%p297) target = $region16
        $region15: #{tpu_custom_call.1} parent=11 // pred_region
          _
        $region16: #{tpu_custom_call.1} parent=11 // pred_fallthru
          _
        // Predicated region
        $region17: #{tpu_custom_call.1} parent=11 // pred_check
          %p300 = pneg %p88
        $region18: #{tpu_custom_call.1} parent=11 // pred_check_branch
          %302 = sbr.rel (%p300) target = $region20
        $region19: #{tpu_custom_call.1} parent=11 // pred_region
          _
        $region20: #{tpu_custom_call.1} parent=11 // pred_fallthru
          _
        // Predicated region
        $region21: #{tpu_custom_call.1} parent=11 // pred_check
          %p303 = pneg %p109
        $region22: #{tpu_custom_call.1} parent=11 // pred_check_branch
          %305 = sbr.rel (%p303) target = $region24
        $region23: #{tpu_custom_call.1} parent=11 // pred_region
          _
        $region24: #{tpu_custom_call.1} parent=11 // pred_fallthru
          _
        // Predicated region
        $region25: #{tpu_custom_call.1} parent=11 // pred_check
          %p306 = pneg %p130
        $region26: #{tpu_custom_call.1} parent=11 // pred_check_branch
          %308 = sbr.rel (%p306) target = $region28
        $region27: #{tpu_custom_call.1} parent=11 // pred_region
          _
        $region28: #{tpu_custom_call.1} parent=11 // pred_fallthru
          _
        // Predicated region
        $region29: #{tpu_custom_call.1} parent=11 // pred_check
          %p309 = pneg %p151
        $region30: #{tpu_custom_call.1} parent=11 // pred_check_branch
          %311 = sbr.rel (%p309) target = $region32
        $region31: #{tpu_custom_call.1} parent=11 // pred_region
          _
        $region32: #{tpu_custom_call.1} parent=11 // pred_fallthru
          _
        // Predicated region
        $region33: #{tpu_custom_call.1} parent=11 // pred_check
          %p312 = pneg %p172
        $region34: #{tpu_custom_call.1} parent=11 // pred_check_branch
          %314 = sbr.rel (%p312) target = $region36
        $region35: #{tpu_custom_call.1} parent=11 // pred_region
          _
        $region36: #{tpu_custom_call.1} parent=11 // pred_fallthru
          _
        // Predicated region
        $region37: #{tpu_custom_call.1} parent=11 // pred_check
          %p315 = pneg %p193
        $region38: #{tpu_custom_call.1} parent=11 // pred_check_branch
          %317 = sbr.rel (%p315) target = $region40
        $region39: #{tpu_custom_call.1} parent=11 // pred_region
          _
        $region40: #{tpu_custom_call.1} parent=11 // pred_fallthru
          _
        // Predicated region
        $region41: #{tpu_custom_call.1} parent=11 // pred_check
          %p318 = pneg %p214
        $region42: #{tpu_custom_call.1} parent=11 // pred_check_branch
          %320 = sbr.rel (%p318) target = $region44
        $region43: #{tpu_custom_call.1} parent=11 // pred_region
          _
        $region44: #{tpu_custom_call.1} parent=11 // pred_fallthru
          _
        // Predicated region
        $region45: #{tpu_custom_call.1} parent=11 // pred_check
          %p321 = pneg %p235
        $region46: #{tpu_custom_call.1} parent=11 // pred_check_branch
          %323 = sbr.rel (%p321) target = $region48
        $region47: #{tpu_custom_call.1} parent=11 // pred_region
          _
        $region48: #{tpu_custom_call.1} parent=11 // pred_fallthru
          _
        // Predicated region
        $region49: #{tpu_custom_call.1} parent=11 // pred_check
          %p324 = pneg %p256
        $region50: #{tpu_custom_call.1} parent=11 // pred_check_branch
          %326 = sbr.rel (%p324) target = $region52
        $region51: #{tpu_custom_call.1} parent=11 // pred_region
          _
        $region52: #{tpu_custom_call.1} parent=11 // pred_fallthru
          _
      $region12: #{tpu_custom_call.1} parent=5 // pred_fallthru
        _
      %p327 = scmp.lt.s32.totalorder %s20, 2
      // Predicated region
      $region53: #{tpu_custom_call.1} parent=5 // pred_check
        %p328 = pneg %p327
      $region54: #{tpu_custom_call.1} parent=5 // pred_check_branch
        %330 = sbr.rel (%p328) target = $region56
      $region55: #{tpu_custom_call.1} parent=5 // pred_region
        // Predicated region
        $region57: #{tpu_custom_call.1} parent=55 // pred_check
          %p331 = pneg %p40
        $region58: #{tpu_custom_call.1} parent=55 // pred_check_branch
          %333 = sbr.rel (%p331) target = $region60
        $region59: #{tpu_custom_call.1} parent=55 // pred_region
          %s334 = smul.u32 32, %s20
          %p335 = scmp.lt.s32.totalorder %s334, 63
          %s336 = scalar_select %p335, %s334, 63
          %s337 = smul.addr %s336, 8
          %s338 = scalar_lea.vmem %s0, %s337
          %s339 = smul.u32 32, %s20
        $region60: #{tpu_custom_call.1} parent=55 // pred_fallthru
          _
      $region56: #{tpu_custom_call.1} parent=5 // pred_fallthru
        _
      %p340 = scmp.le.s32.totalorder 1, %s20
      %p341 = scmp.lt.s32.totalorder %s20, 3
      %p342 = pnand %p340, %p341
      %p343 = pneg %p342
      // Predicated region
      $region61: #{tpu_custom_call.1} parent=5 // pred_check
        _
      $region62: #{tpu_custom_call.1} parent=5 // pred_check_branch
        %345 = sbr.rel (%p342) target = $region64
      $region63: #{tpu_custom_call.1} parent=5 // pred_region
        %s346 = ssub.s32 %s20, 1
        %s347 = smul.u32 32, %s25
        %p348 = scmp.lt.s32.totalorder %s347, 63
        %s349 = scalar_select %p348, %s347, 63
        %s350 = smul.addr %s349, 8
        %s351 = scalar_lea.vmem %s0, %s350
        %p352 = pneg %p46
        %p353 = pneg %p43
        %p354 = pneg %p67
        %p355 = pneg %p64
        %p356 = pneg %p88
        %p357 = pneg %p85
        %p358 = pneg %p109
        %p359 = pneg %p106
        %p360 = pneg %p130
        %p361 = pneg %p127
        %p362 = pneg %p151
        %p363 = pneg %p148
        %p364 = pneg %p172
        %p365 = pneg %p169
        %p366 = pneg %p193
        %p367 = pneg %p190
        %p368 = pneg %p214
        %p369 = pneg %p211
        %p370 = pneg %p235
        %p371 = pneg %p232
        %p372 = pneg %p256
        %p373 = pneg %p253
        %p374 = pneg %p282
        %p375 = pneg %p279
        %s376 = sand.u32 %s269, 1
        %s377 = scalar_lea.sflag [#allocation3], %s376
        %s378 = sand.u32 %s269, 1
        %s379 = smul.addr %s378, 8
        %s380 = scalar_lea.vmem [#allocation2], %s379
        %s381 = smul.u32 32, %s25
        %p382 = scmp.lt.s32.totalorder %s381, 63
        %s383 = scalar_select %p382, %s381, 63
        %s384 = smul.addr %s383, 8
        %s385 = scalar_lea.vmem %s0, %s384
        %s386 = smul.u32 32, %s25
        %s387 = smul.u32 2, %s25
        %v388 = vld [vmem:[%s385] sm:$0xff]
        %v389 = vld [vmem:[%s385 + $0x8] sm:$0xff]
        %v390 = vld [vmem:[%s385 + $0x10] sm:$0xff]
        %v391 = vld [vmem:[%s385 + $0x18] sm:$0xff]
        %v392 = vld [vmem:[%s385 + $0x20] sm:$0xff]
        %v393 = vld [vmem:[%s385 + $0x28] sm:$0xff]
        %v394 = vld [vmem:[%s385 + $0x30] sm:$0xff]
        %v395 = vld [vmem:[%s385 + $0x38] sm:$0xff]
        %v396 = vld [vmem:[%s385 + $0x40] sm:$0xff]
        %v397 = vld [vmem:[%s385 + $0x48] sm:$0xff]
        %v398 = vld [vmem:[%s385 + $0x50] sm:$0xff]
        %v399 = vld [vmem:[%s385 + $0x58] sm:$0xff]
        %v400 = vld [vmem:[%s385 + $0x60] sm:$0xff]
        %v401 = vld [vmem:[%s385 + $0x68] sm:$0xff]
        %v402 = vld [vmem:[%s385 + $0x70] sm:$0xff]
        %v403 = vld [vmem:[%s385 + $0x78] sm:$0xff]
        %v404 = vld [vmem:[%s385 + $0x80] sm:$0xff]
        %v405 = vld [vmem:[%s385 + $0x88] sm:$0xff]
        %v406 = vld [vmem:[%s385 + $0x90] sm:$0xff]
        %v407 = vld [vmem:[%s385 + $0x98] sm:$0xff]
        %v408 = vld [vmem:[%s385 + $0xa0] sm:$0xff]
        %v409 = vld [vmem:[%s385 + $0xa8] sm:$0xff]
        %v410 = vld [vmem:[%s385 + $0xb0] sm:$0xff]
        %v411 = vld [vmem:[%s385 + $0xb8] sm:$0xff]
        %v412 = vld [vmem:[%s385 + $0xc0] sm:$0xff]
        %v413 = vld [vmem:[%s385 + $0xc8] sm:$0xff]
        %v414 = vld [vmem:[%s385 + $0xd0] sm:$0xff]
        %v415 = vld [vmem:[%s385 + $0xd8] sm:$0xff]
        %v416 = vld [vmem:[%s385 + $0xe0] sm:$0xff]
        %v417 = vld [vmem:[%s385 + $0xe8] sm:$0xff]
        %v418 = vld [vmem:[%s385 + $0xf0] sm:$0xff]
        %v419 = vld [vmem:[%s385 + $0xf8] sm:$0xff]
        %v420 = vld [vmem:[%s1] sm:$0xff]
        %v421 = vld [vmem:[%s1 + $0x8] sm:$0xff]
        %v422 = vld [vmem:[%s1 + $0x10] sm:$0xff]
        %v423 = vld [vmem:[%s1 + $0x18] sm:$0xff]
        %v424 = vld [vmem:[%s1 + $0x20] sm:$0xff]
        %v425 = vld [vmem:[%s1 + $0x28] sm:$0xff]
        %v426 = vld [vmem:[%s1 + $0x30] sm:$0xff]
        %v427 = vld [vmem:[%s1 + $0x38] sm:$0xff]
        %v428 = vld [vmem:[%s1 + $0x40] sm:$0xff]
        %v429 = vld [vmem:[%s1 + $0x48] sm:$0xff]
        %v430 = vld [vmem:[%s1 + $0x50] sm:$0xff]
        %v431 = vld [vmem:[%s1 + $0x58] sm:$0xff]
        %v432 = vld [vmem:[%s1 + $0x60] sm:$0xff]
        %v433 = vld [vmem:[%s1 + $0x68] sm:$0xff]
        %v434 = vld [vmem:[%s1 + $0x70] sm:$0xff]
        %v435 = vld [vmem:[%s1 + $0x78] sm:$0xff]
        %v436 = vld [vmem:[%s1 + $0x80] sm:$0xff]
        %v437 = vld [vmem:[%s1 + $0x88] sm:$0xff]
        %v438 = vld [vmem:[%s1 + $0x90] sm:$0xff]
        %v439 = vld [vmem:[%s1 + $0x98] sm:$0xff]
        %v440 = vld [vmem:[%s1 + $0xa0] sm:$0xff]
        %v441 = vld [vmem:[%s1 + $0xa8] sm:$0xff]
        %v442 = vld [vmem:[%s1 + $0xb0] sm:$0xff]
        %v443 = vld [vmem:[%s1 + $0xb8] sm:$0xff]
        %v444 = vld [vmem:[%s1 + $0xc0] sm:$0xff]
        %v445 = vld [vmem:[%s1 + $0xc8] sm:$0xff]
        %v446 = vld [vmem:[%s1 + $0xd0] sm:$0xff]
        %v447 = vld [vmem:[%s1 + $0xd8] sm:$0xff]
        %v448 = vld [vmem:[%s1 + $0xe0] sm:$0xff]
        %v449 = vld [vmem:[%s1 + $0xe8] sm:$0xff]
        %v450 = vld [vmem:[%s1 + $0xf0] sm:$0xff]
        %v451 = vld [vmem:[%s1 + $0xf8] sm:$0xff]
        %v452 = vld [vmem:[%s1 + $0x100] sm:$0xff]
        %v453 = vld [vmem:[%s1 + $0x108] sm:$0xff]
        %v454 = vld [vmem:[%s1 + $0x110] sm:$0xff]
        %v455 = vld [vmem:[%s1 + $0x118] sm:$0xff]
        %v456 = vld [vmem:[%s1 + $0x120] sm:$0x1]
        %v457 = vld [vmem:[%s1 + $0x128] sm:$0x1]
        %v458 = vld [vmem:[%s1 + $0x130] sm:$0x1]
        %v459 = vld [vmem:[%s1 + $0x138] sm:$0x1]
        %v460 = vld [vmem:[%s1 + $0x140] sm:$0x1]
        %v461 = vld [vmem:[%s1 + $0x148] sm:$0x1]
        %v462 = vld [vmem:[%s2] sm:$0x3f]
        %v464 = vperm.slane %v462, 0
        %v465 = vperm.slane %v462, 1
        %v466 = vperm.slane %v462, 2
        %v467 = vperm.slane %v462, 3
        %v468 = vperm.slane %v462, 4
        %v469 = vperm.slane %v462, 5
        %vm476 = vcmask 400384
        %v478 = vsel %vm476, %v388, 0
        %v481 = vsel %vm476, %v389, 0
        %v484 = vsel %vm476, %v390, 0
        %v487 = vsel %vm476, %v391, 0
        %v490 = vsel %vm476, %v392, 0
        %v493 = vsel %vm476, %v393, 0
        %v496 = vsel %vm476, %v394, 0
        %v499 = vsel %vm476, %v395, 0
        %v502 = vsel %vm476, %v396, 0
        %v505 = vsel %vm476, %v397, 0
        %v508 = vsel %vm476, %v398, 0
        %v511 = vsel %vm476, %v399, 0
        %v514 = vsel %vm476, %v400, 0
        %v517 = vsel %vm476, %v401, 0
        %v520 = vsel %vm476, %v402, 0
        %v523 = vsel %vm476, %v403, 0
        %v526 = vsel %vm476, %v404, 0
        %v529 = vsel %vm476, %v405, 0
        %v532 = vsel %vm476, %v406, 0
        %v535 = vsel %vm476, %v407, 0
        %v538 = vsel %vm476, %v408, 0
        %v541 = vsel %vm476, %v409, 0
        %v544 = vsel %vm476, %v410, 0
        %v547 = vsel %vm476, %v411, 0
        %v550 = vsel %vm476, %v412, 0
        %v553 = vsel %vm476, %v413, 0
        %v556 = vsel %vm476, %v414, 0
        %v559 = vsel %vm476, %v415, 0
        %v562 = vsel %vm476, %v416, 0
        %v565 = vsel %vm476, %v417, 0
        %v568 = vsel %vm476, %v418, 0
        %v571 = vsel %vm476, %v419, 0
        %vm573 = vcmask 1040384
        %v575 = vsel %vm573, %v456, 0
        %v578 = vsel %vm573, %v457, 0
        %v581 = vsel %vm573, %v458, 0
        %v584 = vsel %vm573, %v459, 0
        %v587 = vsel %vm573, %v460, 0
        %v590 = vsel %vm573, %v461, 0
        %592 = vmatpush.msra.mxu0 0.0
        %593 = vmatpush.msra.mxu0 0.0
        %594 = vmatpush.msra.mxu0 0.0
        %595 = vmatpush.msra.mxu0 0.0
        %596 = vmatpush.msra.mxu0 0.0
        %597 = vmatpush.msra.mxu0 0.0
        %598 = vmatpush.msra.mxu0 0.0
        %599 = vmatpush.msra.mxu0 0.0
        %600 = vmatpush.msra.mxu0 0.0
        %601 = vmatpush.msra.mxu0 %v575
        %602 = vmatpush.msra.mxu0 %v450
        %603 = vmatpush.msra.mxu0 %v444
        %604 = vmatpush.msra.mxu0 %v438
        %605 = vmatpush.msra.mxu0 %v432
        %606 = vmatpush.msra.mxu0 %v426
        %607 = vmatpush.msra.mxu0 %v420
        %608 = vmatmul.f32.gmra.mxu0 %v478
        %v609 = vpop.f32.mrf.mxu0
        %v610 = vadd.f32 %v464, %v609
        %611 = vmatmul.f32.gmra.mxu0 %v481
        %v612 = vpop.f32.mrf.mxu0
        %v613 = vadd.f32 %v464, %v612
        %614 = vmatmul.f32.gmra.mxu0 %v484
        %v615 = vpop.f32.mrf.mxu0
        %v616 = vadd.f32 %v464, %v615
        %617 = vmatmul.f32.gmra.mxu0 %v487
        %v618 = vpop.f32.mrf.mxu0
        %v619 = vadd.f32 %v464, %v618
        %620 = vmatmul.f32.gmra.mxu0 %v490
        %v621 = vpop.f32.mrf.mxu0
        %v622 = vadd.f32 %v464, %v621
        %623 = vmatmul.f32.gmra.mxu0 %v493
        %v624 = vpop.f32.mrf.mxu0
        %v625 = vadd.f32 %v464, %v624
        %626 = vmatmul.f32.gmra.mxu0 %v496
        %v627 = vpop.f32.mrf.mxu0
        %v628 = vadd.f32 %v464, %v627
        %629 = vmatmul.f32.gmra.mxu0 %v499
        %v630 = vpop.f32.mrf.mxu0
        %v631 = vadd.f32 %v464, %v630
        %632 = vmatmul.f32.gmra.mxu0 %v502
        %v633 = vpop.f32.mrf.mxu0
        %v634 = vadd.f32 %v464, %v633
        %635 = vmatmul.f32.gmra.mxu0 %v505
        %v636 = vpop.f32.mrf.mxu0
        %v637 = vadd.f32 %v464, %v636
        %638 = vmatmul.f32.gmra.mxu0 %v508
        %v639 = vpop.f32.mrf.mxu0
        %v640 = vadd.f32 %v464, %v639
        %641 = vmatmul.f32.gmra.mxu0 %v511
        %v642 = vpop.f32.mrf.mxu0
        %v643 = vadd.f32 %v464, %v642
        %644 = vmatmul.f32.gmra.mxu0 %v514
        %v645 = vpop.f32.mrf.mxu0
        %v646 = vadd.f32 %v464, %v645
        %647 = vmatmul.f32.gmra.mxu0 %v517
        %v648 = vpop.f32.mrf.mxu0
        %v649 = vadd.f32 %v464, %v648
        %650 = vmatmul.f32.gmra.mxu0 %v520
        %v651 = vpop.f32.mrf.mxu0
        %v652 = vadd.f32 %v464, %v651
        %653 = vmatmul.f32.gmra.mxu0 %v523
        %v654 = vpop.f32.mrf.mxu0
        %v655 = vadd.f32 %v464, %v654
        %656 = vmatmul.f32.gmra.mxu0 %v526
        %v657 = vpop.f32.mrf.mxu0
        %v658 = vadd.f32 %v464, %v657
        %659 = vmatmul.f32.gmra.mxu0 %v529
        %v660 = vpop.f32.mrf.mxu0
        %v661 = vadd.f32 %v464, %v660
        %662 = vmatmul.f32.gmra.mxu0 %v532
        %v663 = vpop.f32.mrf.mxu0
        %v664 = vadd.f32 %v464, %v663
        %665 = vmatmul.f32.gmra.mxu0 %v535
        %v666 = vpop.f32.mrf.mxu0
        %v667 = vadd.f32 %v464, %v666
        %668 = vmatmul.f32.gmra.mxu0 %v538
        %v669 = vpop.f32.mrf.mxu0
        %v670 = vadd.f32 %v464, %v669
        %671 = vmatmul.f32.gmra.mxu0 %v541
        %v672 = vpop.f32.mrf.mxu0
        %v673 = vadd.f32 %v464, %v672
        %674 = vmatmul.f32.gmra.mxu0 %v544
        %v675 = vpop.f32.mrf.mxu0
        %v676 = vadd.f32 %v464, %v675
        %677 = vmatmul.f32.gmra.mxu0 %v547
        %v678 = vpop.f32.mrf.mxu0
        %v679 = vadd.f32 %v464, %v678
        %680 = vmatmul.f32.gmra.mxu0 %v550
        %v681 = vpop.f32.mrf.mxu0
        %v682 = vadd.f32 %v464, %v681
        %683 = vmatmul.f32.gmra.mxu0 %v553
        %v684 = vpop.f32.mrf.mxu0
        %v685 = vadd.f32 %v464, %v684
        %686 = vmatmul.f32.gmra.mxu0 %v556
        %v687 = vpop.f32.mrf.mxu0
        %v688 = vadd.f32 %v464, %v687
        %689 = vmatmul.f32.gmra.mxu0 %v559
        %v690 = vpop.f32.mrf.mxu0
        %v691 = vadd.f32 %v464, %v690
        %692 = vmatmul.f32.gmra.mxu0 %v562
        %v693 = vpop.f32.mrf.mxu0
        %v694 = vadd.f32 %v464, %v693
        %695 = vmatmul.f32.gmra.mxu0 %v565
        %v696 = vpop.f32.mrf.mxu0
        %v697 = vadd.f32 %v464, %v696
        %698 = vmatmul.f32.gmra.mxu0 %v568
        %v699 = vpop.f32.mrf.mxu0
        %v700 = vadd.f32 %v464, %v699
        %701 = vmatmul.f32.gmra.mxu0 %v571
        %v702 = vpop.f32.mrf.mxu0
        %v703 = vadd.f32 %v464, %v702
        %704 = vdwg.mxu0
        %705 = vmatpush.msra.mxu0 0.0
        %706 = vmatpush.msra.mxu0 0.0
        %707 = vmatpush.msra.mxu0 0.0
        %708 = vmatpush.msra.mxu0 0.0
        %709 = vmatpush.msra.mxu0 0.0
        %710 = vmatpush.msra.mxu0 0.0
        %711 = vmatpush.msra.mxu0 0.0
        %712 = vmatpush.msra.mxu0 0.0
        %713 = vmatpush.msra.mxu0 0.0
        %714 = vmatpush.msra.mxu0 %v578
        %715 = vmatpush.msra.mxu0 %v451
        %716 = vmatpush.msra.mxu0 %v445
        %717 = vmatpush.msra.mxu0 %v439
        %718 = vmatpush.msra.mxu0 %v433
        %719 = vmatpush.msra.mxu0 %v427
        %720 = vmatpush.msra.mxu0 %v421
        %721 = vmatmul.f32.gmra.mxu0 %v478
        %v722 = vpop.f32.mrf.mxu0
        %v723 = vadd.f32 %v465, %v722
        %724 = vmatmul.f32.gmra.mxu0 %v481
        %v725 = vpop.f32.mrf.mxu0
        %v726 = vadd.f32 %v465, %v725
        %727 = vmatmul.f32.gmra.mxu0 %v484
        %v728 = vpop.f32.mrf.mxu0
        %v729 = vadd.f32 %v465, %v728
        %730 = vmatmul.f32.gmra.mxu0 %v487
        %v731 = vpop.f32.mrf.mxu0
        %v732 = vadd.f32 %v465, %v731
        %733 = vmatmul.f32.gmra.mxu0 %v490
        %v734 = vpop.f32.mrf.mxu0
        %v735 = vadd.f32 %v465, %v734
        %736 = vmatmul.f32.gmra.mxu0 %v493
        %v737 = vpop.f32.mrf.mxu0
        %v738 = vadd.f32 %v465, %v737
        %739 = vmatmul.f32.gmra.mxu0 %v496
        %v740 = vpop.f32.mrf.mxu0
        %v741 = vadd.f32 %v465, %v740
        %742 = vmatmul.f32.gmra.mxu0 %v499
        %v743 = vpop.f32.mrf.mxu0
        %v744 = vadd.f32 %v465, %v743
        %745 = vmatmul.f32.gmra.mxu0 %v502
        %v746 = vpop.f32.mrf.mxu0
        %v747 = vadd.f32 %v465, %v746
        %748 = vmatmul.f32.gmra.mxu0 %v505
        %v749 = vpop.f32.mrf.mxu0
        %v750 = vadd.f32 %v465, %v749
        %751 = vmatmul.f32.gmra.mxu0 %v508
        %v752 = vpop.f32.mrf.mxu0
        %v753 = vadd.f32 %v465, %v752
        %754 = vmatmul.f32.gmra.mxu0 %v511
        %v755 = vpop.f32.mrf.mxu0
        %v756 = vadd.f32 %v465, %v755
        %757 = vmatmul.f32.gmra.mxu0 %v514
        %v758 = vpop.f32.mrf.mxu0
        %v759 = vadd.f32 %v465, %v758
        %760 = vmatmul.f32.gmra.mxu0 %v517
        %v761 = vpop.f32.mrf.mxu0
        %v762 = vadd.f32 %v465, %v761
        %763 = vmatmul.f32.gmra.mxu0 %v520
        %v764 = vpop.f32.mrf.mxu0
        %v765 = vadd.f32 %v465, %v764
        %766 = vmatmul.f32.gmra.mxu0 %v523
        %v767 = vpop.f32.mrf.mxu0
        %v768 = vadd.f32 %v465, %v767
        %769 = vmatmul.f32.gmra.mxu0 %v526
        %v770 = vpop.f32.mrf.mxu0
        %v771 = vadd.f32 %v465, %v770
        %772 = vmatmul.f32.gmra.mxu0 %v529
        %v773 = vpop.f32.mrf.mxu0
        %v774 = vadd.f32 %v465, %v773
        %775 = vmatmul.f32.gmra.mxu0 %v532
        %v776 = vpop.f32.mrf.mxu0
        %v777 = vadd.f32 %v465, %v776
        %778 = vmatmul.f32.gmra.mxu0 %v535
        %v779 = vpop.f32.mrf.mxu0
        %v780 = vadd.f32 %v465, %v779
        %781 = vmatmul.f32.gmra.mxu0 %v538
        %v782 = vpop.f32.mrf.mxu0
        %v783 = vadd.f32 %v465, %v782
        %784 = vmatmul.f32.gmra.mxu0 %v541
        %v785 = vpop.f32.mrf.mxu0
        %v786 = vadd.f32 %v465, %v785
        %787 = vmatmul.f32.gmra.mxu0 %v544
        %v788 = vpop.f32.mrf.mxu0
        %v789 = vadd.f32 %v465, %v788
        %790 = vmatmul.f32.gmra.mxu0 %v547
        %v791 = vpop.f32.mrf.mxu0
        %v792 = vadd.f32 %v465, %v791
        %793 = vmatmul.f32.gmra.mxu0 %v550
        %v794 = vpop.f32.mrf.mxu0
        %v795 = vadd.f32 %v465, %v794
        %796 = vmatmul.f32.gmra.mxu0 %v553
        %v797 = vpop.f32.mrf.mxu0
        %v798 = vadd.f32 %v465, %v797
        %799 = vmatmul.f32.gmra.mxu0 %v556
        %v800 = vpop.f32.mrf.mxu0
        %v801 = vadd.f32 %v465, %v800
        %802 = vmatmul.f32.gmra.mxu0 %v559
        %v803 = vpop.f32.mrf.mxu0
        %v804 = vadd.f32 %v465, %v803
        %805 = vmatmul.f32.gmra.mxu0 %v562
        %v806 = vpop.f32.mrf.mxu0
        %v807 = vadd.f32 %v465, %v806
        %808 = vmatmul.f32.gmra.mxu0 %v565
        %v809 = vpop.f32.mrf.mxu0
        %v810 = vadd.f32 %v465, %v809
        %811 = vmatmul.f32.gmra.mxu0 %v568
        %v812 = vpop.f32.mrf.mxu0
        %v813 = vadd.f32 %v465, %v812
        %814 = vmatmul.f32.gmra.mxu0 %v571
        %v815 = vpop.f32.mrf.mxu0
        %v816 = vadd.f32 %v465, %v815
        %817 = vdwg.mxu0
        %818 = vmatpush.msra.mxu0 0.0
        %819 = vmatpush.msra.mxu0 0.0
        %820 = vmatpush.msra.mxu0 0.0
        %821 = vmatpush.msra.mxu0 0.0
        %822 = vmatpush.msra.mxu0 0.0
        %823 = vmatpush.msra.mxu0 0.0
        %824 = vmatpush.msra.mxu0 0.0
        %825 = vmatpush.msra.mxu0 0.0
        %826 = vmatpush.msra.mxu0 0.0
        %827 = vmatpush.msra.mxu0 %v581
        %828 = vmatpush.msra.mxu0 %v452
        %829 = vmatpush.msra.mxu0 %v446
        %830 = vmatpush.msra.mxu0 %v440
        %831 = vmatpush.msra.mxu0 %v434
        %832 = vmatpush.msra.mxu0 %v428
        %833 = vmatpush.msra.mxu0 %v422
        %834 = vmatmul.f32.gmra.mxu0 %v478
        %v835 = vpop.f32.mrf.mxu0
        %v836 = vadd.f32 %v466, %v835
        %837 = vmatmul.f32.gmra.mxu0 %v481
        %v838 = vpop.f32.mrf.mxu0
        %v839 = vadd.f32 %v466, %v838
        %840 = vmatmul.f32.gmra.mxu0 %v484
        %v841 = vpop.f32.mrf.mxu0
        %v842 = vadd.f32 %v466, %v841
        %843 = vmatmul.f32.gmra.mxu0 %v487
        %v844 = vpop.f32.mrf.mxu0
        %v845 = vadd.f32 %v466, %v844
        %846 = vmatmul.f32.gmra.mxu0 %v490
        %v847 = vpop.f32.mrf.mxu0
        %v848 = vadd.f32 %v466, %v847
        %849 = vmatmul.f32.gmra.mxu0 %v493
        %v850 = vpop.f32.mrf.mxu0
        %v851 = vadd.f32 %v466, %v850
        %852 = vmatmul.f32.gmra.mxu0 %v496
        %v853 = vpop.f32.mrf.mxu0
        %v854 = vadd.f32 %v466, %v853
        %855 = vmatmul.f32.gmra.mxu0 %v499
        %v856 = vpop.f32.mrf.mxu0
        %v857 = vadd.f32 %v466, %v856
        %858 = vmatmul.f32.gmra.mxu0 %v502
        %v859 = vpop.f32.mrf.mxu0
        %v860 = vadd.f32 %v466, %v859
        %861 = vmatmul.f32.gmra.mxu0 %v505
        %v862 = vpop.f32.mrf.mxu0
        %v863 = vadd.f32 %v466, %v862
        %864 = vmatmul.f32.gmra.mxu0 %v508
        %v865 = vpop.f32.mrf.mxu0
        %v866 = vadd.f32 %v466, %v865
        %867 = vmatmul.f32.gmra.mxu0 %v511
        %v868 = vpop.f32.mrf.mxu0
        %v869 = vadd.f32 %v466, %v868
        %870 = vmatmul.f32.gmra.mxu0 %v514
        %v871 = vpop.f32.mrf.mxu0
        %v872 = vadd.f32 %v466, %v871
        %873 = vmatmul.f32.gmra.mxu0 %v517
        %v874 = vpop.f32.mrf.mxu0
        %v875 = vadd.f32 %v466, %v874
        %876 = vmatmul.f32.gmra.mxu0 %v520
        %v877 = vpop.f32.mrf.mxu0
        %v878 = vadd.f32 %v466, %v877
        %879 = vmatmul.f32.gmra.mxu0 %v523
        %v880 = vpop.f32.mrf.mxu0
        %v881 = vadd.f32 %v466, %v880
        %882 = vmatmul.f32.gmra.mxu0 %v526
        %v883 = vpop.f32.mrf.mxu0
        %v884 = vadd.f32 %v466, %v883
        %885 = vmatmul.f32.gmra.mxu0 %v529
        %v886 = vpop.f32.mrf.mxu0
        %v887 = vadd.f32 %v466, %v886
        %888 = vmatmul.f32.gmra.mxu0 %v532
        %v889 = vpop.f32.mrf.mxu0
        %v890 = vadd.f32 %v466, %v889
        %891 = vmatmul.f32.gmra.mxu0 %v535
        %v892 = vpop.f32.mrf.mxu0
        %v893 = vadd.f32 %v466, %v892
        %894 = vmatmul.f32.gmra.mxu0 %v538
        %v895 = vpop.f32.mrf.mxu0
        %v896 = vadd.f32 %v466, %v895
        %897 = vmatmul.f32.gmra.mxu0 %v541
        %v898 = vpop.f32.mrf.mxu0
        %v899 = vadd.f32 %v466, %v898
        %900 = vmatmul.f32.gmra.mxu0 %v544
        %v901 = vpop.f32.mrf.mxu0
        %v902 = vadd.f32 %v466, %v901
        %903 = vmatmul.f32.gmra.mxu0 %v547
        %v904 = vpop.f32.mrf.mxu0
        %v905 = vadd.f32 %v466, %v904
        %906 = vmatmul.f32.gmra.mxu0 %v550
        %v907 = vpop.f32.mrf.mxu0
        %v908 = vadd.f32 %v466, %v907
        %909 = vmatmul.f32.gmra.mxu0 %v553
        %v910 = vpop.f32.mrf.mxu0
        %v911 = vadd.f32 %v466, %v910
        %912 = vmatmul.f32.gmra.mxu0 %v556
        %v913 = vpop.f32.mrf.mxu0
        %v914 = vadd.f32 %v466, %v913
        %915 = vmatmul.f32.gmra.mxu0 %v559
        %v916 = vpop.f32.mrf.mxu0
        %v917 = vadd.f32 %v466, %v916
        %918 = vmatmul.f32.gmra.mxu0 %v562
        %v919 = vpop.f32.mrf.mxu0
        %v920 = vadd.f32 %v466, %v919
        %921 = vmatmul.f32.gmra.mxu0 %v565
        %v922 = vpop.f32.mrf.mxu0
        %v923 = vadd.f32 %v466, %v922
        %924 = vmatmul.f32.gmra.mxu0 %v568
        %v925 = vpop.f32.mrf.mxu0
        %v926 = vadd.f32 %v466, %v925
        %927 = vmatmul.f32.gmra.mxu0 %v571
        %v928 = vpop.f32.mrf.mxu0
        %v929 = vadd.f32 %v466, %v928
        %930 = vdwg.mxu0
        %931 = vmatpush.msra.mxu0 0.0
        %932 = vmatpush.msra.mxu0 0.0
        %933 = vmatpush.msra.mxu0 0.0
        %934 = vmatpush.msra.mxu0 0.0
        %935 = vmatpush.msra.mxu0 0.0
        %936 = vmatpush.msra.mxu0 0.0
        %937 = vmatpush.msra.mxu0 0.0
        %938 = vmatpush.msra.mxu0 0.0
        %939 = vmatpush.msra.mxu0 0.0
        %940 = vmatpush.msra.mxu0 %v584
        %941 = vmatpush.msra.mxu0 %v453
        %942 = vmatpush.msra.mxu0 %v447
        %943 = vmatpush.msra.mxu0 %v441
        %944 = vmatpush.msra.mxu0 %v435
        %945 = vmatpush.msra.mxu0 %v429
        %946 = vmatpush.msra.mxu0 %v423
        %947 = vmatmul.f32.gmra.mxu0 %v478
        %v948 = vpop.f32.mrf.mxu0
        %v949 = vadd.f32 %v467, %v948
        %950 = vmatmul.f32.gmra.mxu0 %v481
        %v951 = vpop.f32.mrf.mxu0
        %v952 = vadd.f32 %v467, %v951
        %953 = vmatmul.f32.gmra.mxu0 %v484
        %v954 = vpop.f32.mrf.mxu0
        %v955 = vadd.f32 %v467, %v954
        %956 = vmatmul.f32.gmra.mxu0 %v487
        %v957 = vpop.f32.mrf.mxu0
        %v958 = vadd.f32 %v467, %v957
        %959 = vmatmul.f32.gmra.mxu0 %v490
        %v960 = vpop.f32.mrf.mxu0
        %v961 = vadd.f32 %v467, %v960
        %962 = vmatmul.f32.gmra.mxu0 %v493
        %v963 = vpop.f32.mrf.mxu0
        %v964 = vadd.f32 %v467, %v963
        %965 = vmatmul.f32.gmra.mxu0 %v496
        %v966 = vpop.f32.mrf.mxu0
        %v967 = vadd.f32 %v467, %v966
        %968 = vmatmul.f32.gmra.mxu0 %v499
        %v969 = vpop.f32.mrf.mxu0
        %v970 = vadd.f32 %v467, %v969
        %971 = vmatmul.f32.gmra.mxu0 %v502
        %v972 = vpop.f32.mrf.mxu0
        %v973 = vadd.f32 %v467, %v972
        %974 = vmatmul.f32.gmra.mxu0 %v505
        %v975 = vpop.f32.mrf.mxu0
        %v976 = vadd.f32 %v467, %v975
        %977 = vmatmul.f32.gmra.mxu0 %v508
        %v978 = vpop.f32.mrf.mxu0
        %v979 = vadd.f32 %v467, %v978
        %980 = vmatmul.f32.gmra.mxu0 %v511
        %v981 = vpop.f32.mrf.mxu0
        %v982 = vadd.f32 %v467, %v981
        %983 = vmatmul.f32.gmra.mxu0 %v514
        %v984 = vpop.f32.mrf.mxu0
        %v985 = vadd.f32 %v467, %v984
        %986 = vmatmul.f32.gmra.mxu0 %v517
        %v987 = vpop.f32.mrf.mxu0
        %v988 = vadd.f32 %v467, %v987
        %989 = vmatmul.f32.gmra.mxu0 %v520
        %v990 = vpop.f32.mrf.mxu0
        %v991 = vadd.f32 %v467, %v990
        %992 = vmatmul.f32.gmra.mxu0 %v523
        %v993 = vpop.f32.mrf.mxu0
        %v994 = vadd.f32 %v467, %v993
        %995 = vmatmul.f32.gmra.mxu0 %v526
        %v996 = vpop.f32.mrf.mxu0
        %v997 = vadd.f32 %v467, %v996
        %998 = vmatmul.f32.gmra.mxu0 %v529
        %v999 = vpop.f32.mrf.mxu0
        %v1000 = vadd.f32 %v467, %v999
        %1001 = vmatmul.f32.gmra.mxu0 %v532
        %v1002 = vpop.f32.mrf.mxu0
        %v1003 = vadd.f32 %v467, %v1002
        %1004 = vmatmul.f32.gmra.mxu0 %v535
        %v1005 = vpop.f32.mrf.mxu0
        %v1006 = vadd.f32 %v467, %v1005
        %1007 = vmatmul.f32.gmra.mxu0 %v538
        %v1008 = vpop.f32.mrf.mxu0
        %v1009 = vadd.f32 %v467, %v1008
        %1010 = vmatmul.f32.gmra.mxu0 %v541
        %v1011 = vpop.f32.mrf.mxu0
        %v1012 = vadd.f32 %v467, %v1011
        %1013 = vmatmul.f32.gmra.mxu0 %v544
        %v1014 = vpop.f32.mrf.mxu0
        %v1015 = vadd.f32 %v467, %v1014
        %1016 = vmatmul.f32.gmra.mxu0 %v547
        %v1017 = vpop.f32.mrf.mxu0
        %v1018 = vadd.f32 %v467, %v1017
        %1019 = vmatmul.f32.gmra.mxu0 %v550
        %v1020 = vpop.f32.mrf.mxu0
        %v1021 = vadd.f32 %v467, %v1020
        %1022 = vmatmul.f32.gmra.mxu0 %v553
        %v1023 = vpop.f32.mrf.mxu0
        %v1024 = vadd.f32 %v467, %v1023
        %1025 = vmatmul.f32.gmra.mxu0 %v556
        %v1026 = vpop.f32.mrf.mxu0
        %v1027 = vadd.f32 %v467, %v1026
        %1028 = vmatmul.f32.gmra.mxu0 %v559
        %v1029 = vpop.f32.mrf.mxu0
        %v1030 = vadd.f32 %v467, %v1029
        %1031 = vmatmul.f32.gmra.mxu0 %v562
        %v1032 = vpop.f32.mrf.mxu0
        %v1033 = vadd.f32 %v467, %v1032
        %1034 = vmatmul.f32.gmra.mxu0 %v565
        %v1035 = vpop.f32.mrf.mxu0
        %v1036 = vadd.f32 %v467, %v1035
        %1037 = vmatmul.f32.gmra.mxu0 %v568
        %v1038 = vpop.f32.mrf.mxu0
        %v1039 = vadd.f32 %v467, %v1038
        %1040 = vmatmul.f32.gmra.mxu0 %v571
        %v1041 = vpop.f32.mrf.mxu0
        %v1042 = vadd.f32 %v467, %v1041
        %1043 = vdwg.mxu0
        %1044 = vmatpush.msra.mxu0 0.0
        %1045 = vmatpush.msra.mxu0 0.0
        %1046 = vmatpush.msra.mxu0 0.0
        %1047 = vmatpush.msra.mxu0 0.0
        %1048 = vmatpush.msra.mxu0 0.0
        %1049 = vmatpush.msra.mxu0 0.0
        %1050 = vmatpush.msra.mxu0 0.0
        %1051 = vmatpush.msra.mxu0 0.0
        %1052 = vmatpush.msra.mxu0 0.0
        %1053 = vmatpush.msra.mxu0 %v587
        %1054 = vmatpush.msra.mxu0 %v454
        %1055 = vmatpush.msra.mxu0 %v448
        %1056 = vmatpush.msra.mxu0 %v442
        %1057 = vmatpush.msra.mxu0 %v436
        %1058 = vmatpush.msra.mxu0 %v430
        %1059 = vmatpush.msra.mxu0 %v424
        %1060 = vmatmul.f32.gmra.mxu0 %v478
        %v1061 = vpop.f32.mrf.mxu0
        %v1062 = vadd.f32 %v468, %v1061
        %1063 = vmatmul.f32.gmra.mxu0 %v481
        %v1064 = vpop.f32.mrf.mxu0
        %v1065 = vadd.f32 %v468, %v1064
        %1066 = vmatmul.f32.gmra.mxu0 %v484
        %v1067 = vpop.f32.mrf.mxu0
        %v1068 = vadd.f32 %v468, %v1067
        %1069 = vmatmul.f32.gmra.mxu0 %v487
        %v1070 = vpop.f32.mrf.mxu0
        %v1071 = vadd.f32 %v468, %v1070
        %1072 = vmatmul.f32.gmra.mxu0 %v490
        %v1073 = vpop.f32.mrf.mxu0
        %v1074 = vadd.f32 %v468, %v1073
        %1075 = vmatmul.f32.gmra.mxu0 %v493
        %v1076 = vpop.f32.mrf.mxu0
        %v1077 = vadd.f32 %v468, %v1076
        %1078 = vmatmul.f32.gmra.mxu0 %v496
        %v1079 = vpop.f32.mrf.mxu0
        %v1080 = vadd.f32 %v468, %v1079
        %1081 = vmatmul.f32.gmra.mxu0 %v499
        %v1082 = vpop.f32.mrf.mxu0
        %v1083 = vadd.f32 %v468, %v1082
        %1084 = vmatmul.f32.gmra.mxu0 %v502
        %v1085 = vpop.f32.mrf.mxu0
        %v1086 = vadd.f32 %v468, %v1085
        %1087 = vmatmul.f32.gmra.mxu0 %v505
        %v1088 = vpop.f32.mrf.mxu0
        %v1089 = vadd.f32 %v468, %v1088
        %1090 = vmatmul.f32.gmra.mxu0 %v508
        %v1091 = vpop.f32.mrf.mxu0
        %v1092 = vadd.f32 %v468, %v1091
        %1093 = vmatmul.f32.gmra.mxu0 %v511
        %v1094 = vpop.f32.mrf.mxu0
        %v1095 = vadd.f32 %v468, %v1094
        %1096 = vmatmul.f32.gmra.mxu0 %v514
        %v1097 = vpop.f32.mrf.mxu0
        %v1098 = vadd.f32 %v468, %v1097
        %1099 = vmatmul.f32.gmra.mxu0 %v517
        %v1100 = vpop.f32.mrf.mxu0
        %v1101 = vadd.f32 %v468, %v1100
        %1102 = vmatmul.f32.gmra.mxu0 %v520
        %v1103 = vpop.f32.mrf.mxu0
        %v1104 = vadd.f32 %v468, %v1103
        %1105 = vmatmul.f32.gmra.mxu0 %v523
        %v1106 = vpop.f32.mrf.mxu0
        %v1107 = vadd.f32 %v468, %v1106
        %1108 = vmatmul.f32.gmra.mxu0 %v526
        %v1109 = vpop.f32.mrf.mxu0
        %v1110 = vadd.f32 %v468, %v1109
        %1111 = vmatmul.f32.gmra.mxu0 %v529
        %v1112 = vpop.f32.mrf.mxu0
        %v1113 = vadd.f32 %v468, %v1112
        %1114 = vmatmul.f32.gmra.mxu0 %v532
        %v1115 = vpop.f32.mrf.mxu0
        %v1116 = vadd.f32 %v468, %v1115
        %1117 = vmatmul.f32.gmra.mxu0 %v535
        %v1118 = vpop.f32.mrf.mxu0
        %v1119 = vadd.f32 %v468, %v1118
        %1120 = vmatmul.f32.gmra.mxu0 %v538
        %v1121 = vpop.f32.mrf.mxu0
        %v1122 = vadd.f32 %v468, %v1121
        %1123 = vmatmul.f32.gmra.mxu0 %v541
        %v1124 = vpop.f32.mrf.mxu0
        %v1125 = vadd.f32 %v468, %v1124
        %1126 = vmatmul.f32.gmra.mxu0 %v544
        %v1127 = vpop.f32.mrf.mxu0
        %v1128 = vadd.f32 %v468, %v1127
        %1129 = vmatmul.f32.gmra.mxu0 %v547
        %v1130 = vpop.f32.mrf.mxu0
        %v1131 = vadd.f32 %v468, %v1130
        %1132 = vmatmul.f32.gmra.mxu0 %v550
        %v1133 = vpop.f32.mrf.mxu0
        %v1134 = vadd.f32 %v468, %v1133
        %1135 = vmatmul.f32.gmra.mxu0 %v553
        %v1136 = vpop.f32.mrf.mxu0
        %v1137 = vadd.f32 %v468, %v1136
        %1138 = vmatmul.f32.gmra.mxu0 %v556
        %v1139 = vpop.f32.mrf.mxu0
        %v1140 = vadd.f32 %v468, %v1139
        %1141 = vmatmul.f32.gmra.mxu0 %v559
        %v1142 = vpop.f32.mrf.mxu0
        %v1143 = vadd.f32 %v468, %v1142
        %1144 = vmatmul.f32.gmra.mxu0 %v562
        %v1145 = vpop.f32.mrf.mxu0
        %v1146 = vadd.f32 %v468, %v1145
        %1147 = vmatmul.f32.gmra.mxu0 %v565
        %v1148 = vpop.f32.mrf.mxu0
        %v1149 = vadd.f32 %v468, %v1148
        %1150 = vmatmul.f32.gmra.mxu0 %v568
        %v1151 = vpop.f32.mrf.mxu0
        %v1152 = vadd.f32 %v468, %v1151
        %1153 = vmatmul.f32.gmra.mxu0 %v571
        %v1154 = vpop.f32.mrf.mxu0
        %v1155 = vadd.f32 %v468, %v1154
        %1156 = vdwg.mxu0
        %1157 = vmatpush.msra.mxu0 0.0
        %1158 = vmatpush.msra.mxu0 0.0
        %1159 = vmatpush.msra.mxu0 0.0
        %1160 = vmatpush.msra.mxu0 0.0
        %1161 = vmatpush.msra.mxu0 0.0
        %1162 = vmatpush.msra.mxu0 0.0
        %1163 = vmatpush.msra.mxu0 0.0
        %1164 = vmatpush.msra.mxu0 0.0
        %1165 = vmatpush.msra.mxu0 0.0
        %1166 = vmatpush.msra.mxu0 %v590
        %1167 = vmatpush.msra.mxu0 %v455
        %1168 = vmatpush.msra.mxu0 %v449
        %1169 = vmatpush.msra.mxu0 %v443
        %1170 = vmatpush.msra.mxu0 %v437
        %1171 = vmatpush.msra.mxu0 %v431
        %1172 = vmatpush.msra.mxu0 %v425
        %1173 = vmatmul.f32.gmra.mxu0 %v478
        %v1174 = vpop.f32.mrf.mxu0
        %v1175 = vadd.f32 %v469, %v1174
        %1176 = vmatmul.f32.gmra.mxu0 %v481
        %v1177 = vpop.f32.mrf.mxu0
        %v1178 = vadd.f32 %v469, %v1177
        %1179 = vmatmul.f32.gmra.mxu0 %v484
        %v1180 = vpop.f32.mrf.mxu0
        %v1181 = vadd.f32 %v469, %v1180
        %1182 = vmatmul.f32.gmra.mxu0 %v487
        %v1183 = vpop.f32.mrf.mxu0
        %v1184 = vadd.f32 %v469, %v1183
        %1185 = vmatmul.f32.gmra.mxu0 %v490
        %v1186 = vpop.f32.mrf.mxu0
        %v1187 = vadd.f32 %v469, %v1186
        %1188 = vmatmul.f32.gmra.mxu0 %v493
        %v1189 = vpop.f32.mrf.mxu0
        %v1190 = vadd.f32 %v469, %v1189
        %1191 = vmatmul.f32.gmra.mxu0 %v496
        %v1192 = vpop.f32.mrf.mxu0
        %v1193 = vadd.f32 %v469, %v1192
        %1194 = vmatmul.f32.gmra.mxu0 %v499
        %v1195 = vpop.f32.mrf.mxu0
        %v1196 = vadd.f32 %v469, %v1195
        %1197 = vmatmul.f32.gmra.mxu0 %v502
        %v1198 = vpop.f32.mrf.mxu0
        %v1199 = vadd.f32 %v469, %v1198
        %1200 = vmatmul.f32.gmra.mxu0 %v505
        %v1201 = vpop.f32.mrf.mxu0
        %v1202 = vadd.f32 %v469, %v1201
        %1203 = vmatmul.f32.gmra.mxu0 %v508
        %v1204 = vpop.f32.mrf.mxu0
        %v1205 = vadd.f32 %v469, %v1204
        %1206 = vmatmul.f32.gmra.mxu0 %v511
        %v1207 = vpop.f32.mrf.mxu0
        %v1208 = vadd.f32 %v469, %v1207
        %1209 = vmatmul.f32.gmra.mxu0 %v514
        %v1210 = vpop.f32.mrf.mxu0
        %v1211 = vadd.f32 %v469, %v1210
        %1212 = vmatmul.f32.gmra.mxu0 %v517
        %v1213 = vpop.f32.mrf.mxu0
        %v1214 = vadd.f32 %v469, %v1213
        %1215 = vmatmul.f32.gmra.mxu0 %v520
        %v1216 = vpop.f32.mrf.mxu0
        %v1217 = vadd.f32 %v469, %v1216
        %1218 = vmatmul.f32.gmra.mxu0 %v523
        %v1219 = vpop.f32.mrf.mxu0
        %v1220 = vadd.f32 %v469, %v1219
        %1221 = vmatmul.f32.gmra.mxu0 %v526
        %v1222 = vpop.f32.mrf.mxu0
        %v1223 = vadd.f32 %v469, %v1222
        %1224 = vmatmul.f32.gmra.mxu0 %v529
        %v1225 = vpop.f32.mrf.mxu0
        %v1226 = vadd.f32 %v469, %v1225
        %1227 = vmatmul.f32.gmra.mxu0 %v532
        %v1228 = vpop.f32.mrf.mxu0
        %v1229 = vadd.f32 %v469, %v1228
        %1230 = vmatmul.f32.gmra.mxu0 %v535
        %v1231 = vpop.f32.mrf.mxu0
        %v1232 = vadd.f32 %v469, %v1231
        %1233 = vmatmul.f32.gmra.mxu0 %v538
        %v1234 = vpop.f32.mrf.mxu0
        %v1235 = vadd.f32 %v469, %v1234
        %1236 = vmatmul.f32.gmra.mxu0 %v541
        %v1237 = vpop.f32.mrf.mxu0
        %v1238 = vadd.f32 %v469, %v1237
        %1239 = vmatmul.f32.gmra.mxu0 %v544
        %v1240 = vpop.f32.mrf.mxu0
        %v1241 = vadd.f32 %v469, %v1240
        %1242 = vmatmul.f32.gmra.mxu0 %v547
        %v1243 = vpop.f32.mrf.mxu0
        %v1244 = vadd.f32 %v469, %v1243
        %1245 = vmatmul.f32.gmra.mxu0 %v550
        %v1246 = vpop.f32.mrf.mxu0
        %v1247 = vadd.f32 %v469, %v1246
        %1248 = vmatmul.f32.gmra.mxu0 %v553
        %v1249 = vpop.f32.mrf.mxu0
        %v1250 = vadd.f32 %v469, %v1249
        %1251 = vmatmul.f32.gmra.mxu0 %v556
        %v1252 = vpop.f32.mrf.mxu0
        %v1253 = vadd.f32 %v469, %v1252
        %1254 = vmatmul.f32.gmra.mxu0 %v559
        %v1255 = vpop.f32.mrf.mxu0
        %v1256 = vadd.f32 %v469, %v1255
        %1257 = vmatmul.f32.gmra.mxu0 %v562
        %v1258 = vpop.f32.mrf.mxu0
        %v1259 = vadd.f32 %v469, %v1258
        %1260 = vmatmul.f32.gmra.mxu0 %v565
        %v1261 = vpop.f32.mrf.mxu0
        %v1262 = vadd.f32 %v469, %v1261
        %1263 = vmatmul.f32.gmra.mxu0 %v568
        %v1264 = vpop.f32.mrf.mxu0
        %v1265 = vadd.f32 %v469, %v1264
        %1266 = vmatmul.f32.gmra.mxu0 %v571
        %v1267 = vpop.f32.mrf.mxu0
        %v1268 = vadd.f32 %v469, %v1267
        %1269 = vdwg.mxu0
        %v1270 = vmax.f32 %v610, 0.0
        %v1271 = vmax.f32 %v723, 0.0
        %v1272 = vmax.f32 %v836, 0.0
        %v1273 = vmax.f32 %v949, 0.0
        %v1274 = vmax.f32 %v1062, 0.0
        %v1275 = vmax.f32 %v1175, 0.0
        %v1276 = vmax.f32 %v613, 0.0
        %v1277 = vmax.f32 %v726, 0.0
        %v1278 = vmax.f32 %v839, 0.0
        %v1279 = vmax.f32 %v952, 0.0
        %v1280 = vmax.f32 %v1065, 0.0
        %v1281 = vmax.f32 %v1178, 0.0
        %v1282 = vmax.f32 %v616, 0.0
        %v1283 = vmax.f32 %v729, 0.0
        %v1284 = vmax.f32 %v842, 0.0
        %v1285 = vmax.f32 %v955, 0.0
        %v1286 = vmax.f32 %v1068, 0.0
        %v1287 = vmax.f32 %v1181, 0.0
        %v1288 = vmax.f32 %v619, 0.0
        %v1289 = vmax.f32 %v732, 0.0
        %v1290 = vmax.f32 %v845, 0.0
        %v1291 = vmax.f32 %v958, 0.0
        %v1292 = vmax.f32 %v1071, 0.0
        %v1293 = vmax.f32 %v1184, 0.0
        %v1294 = vmax.f32 %v622, 0.0
        %v1295 = vmax.f32 %v735, 0.0
        %v1296 = vmax.f32 %v848, 0.0
        %v1297 = vmax.f32 %v961, 0.0
        %v1298 = vmax.f32 %v1074, 0.0
        %v1299 = vmax.f32 %v1187, 0.0
        %v1300 = vmax.f32 %v625, 0.0
        %v1301 = vmax.f32 %v738, 0.0
        %v1302 = vmax.f32 %v851, 0.0
        %v1303 = vmax.f32 %v964, 0.0
        %v1304 = vmax.f32 %v1077, 0.0
        %v1305 = vmax.f32 %v1190, 0.0
        %v1306 = vmax.f32 %v628, 0.0
        %v1307 = vmax.f32 %v741, 0.0
        %v1308 = vmax.f32 %v854, 0.0
        %v1309 = vmax.f32 %v967, 0.0
        %v1310 = vmax.f32 %v1080, 0.0
        %v1311 = vmax.f32 %v1193, 0.0
        %v1312 = vmax.f32 %v631, 0.0
        %v1313 = vmax.f32 %v744, 0.0
        %v1314 = vmax.f32 %v857, 0.0
        %v1315 = vmax.f32 %v970, 0.0
        %v1316 = vmax.f32 %v1083, 0.0
        %v1317 = vmax.f32 %v1196, 0.0
        %v1318 = vmax.f32 %v634, 0.0
        %v1319 = vmax.f32 %v747, 0.0
        %v1320 = vmax.f32 %v860, 0.0
        %v1321 = vmax.f32 %v973, 0.0
        %v1322 = vmax.f32 %v1086, 0.0
        %v1323 = vmax.f32 %v1199, 0.0
        %v1324 = vmax.f32 %v637, 0.0
        %v1325 = vmax.f32 %v750, 0.0
        %v1326 = vmax.f32 %v863, 0.0
        %v1327 = vmax.f32 %v976, 0.0
        %v1328 = vmax.f32 %v1089, 0.0
        %v1329 = vmax.f32 %v1202, 0.0
        %v1330 = vmax.f32 %v640, 0.0
        %v1331 = vmax.f32 %v753, 0.0
        %v1332 = vmax.f32 %v866, 0.0
        %v1333 = vmax.f32 %v979, 0.0
        %v1334 = vmax.f32 %v1092, 0.0
        %v1335 = vmax.f32 %v1205, 0.0
        %v1336 = vmax.f32 %v643, 0.0
        %v1337 = vmax.f32 %v756, 0.0
        %v1338 = vmax.f32 %v869, 0.0
        %v1339 = vmax.f32 %v982, 0.0
        %v1340 = vmax.f32 %v1095, 0.0
        %v1341 = vmax.f32 %v1208, 0.0
        %v1342 = vmax.f32 %v646, 0.0
        %v1343 = vmax.f32 %v759, 0.0
        %v1344 = vmax.f32 %v872, 0.0
        %v1345 = vmax.f32 %v985, 0.0
        %v1346 = vmax.f32 %v1098, 0.0
        %v1347 = vmax.f32 %v1211, 0.0
        %v1348 = vmax.f32 %v649, 0.0
        %v1349 = vmax.f32 %v762, 0.0
        %v1350 = vmax.f32 %v875, 0.0
        %v1351 = vmax.f32 %v988, 0.0
        %v1352 = vmax.f32 %v1101, 0.0
        %v1353 = vmax.f32 %v1214, 0.0
        %v1354 = vmax.f32 %v652, 0.0
        %v1355 = vmax.f32 %v765, 0.0
        %v1356 = vmax.f32 %v878, 0.0
        %v1357 = vmax.f32 %v991, 0.0
        %v1358 = vmax.f32 %v1104, 0.0
        %v1359 = vmax.f32 %v1217, 0.0
        %v1360 = vmax.f32 %v655, 0.0
        %v1361 = vmax.f32 %v768, 0.0
        %v1362 = vmax.f32 %v881, 0.0
        %v1363 = vmax.f32 %v994, 0.0
        %v1364 = vmax.f32 %v1107, 0.0
        %v1365 = vmax.f32 %v1220, 0.0
        %v1366 = vmax.f32 %v658, 0.0
        %v1367 = vmax.f32 %v771, 0.0
        %v1368 = vmax.f32 %v884, 0.0
        %v1369 = vmax.f32 %v997, 0.0
        %v1370 = vmax.f32 %v1110, 0.0
        %v1371 = vmax.f32 %v1223, 0.0
        %v1372 = vmax.f32 %v661, 0.0
        %v1373 = vmax.f32 %v774, 0.0
        %v1374 = vmax.f32 %v887, 0.0
        %v1375 = vmax.f32 %v1000, 0.0
        %v1376 = vmax.f32 %v1113, 0.0
        %v1377 = vmax.f32 %v1226, 0.0
        %v1378 = vmax.f32 %v664, 0.0
        %v1379 = vmax.f32 %v777, 0.0
        %v1380 = vmax.f32 %v890, 0.0
        %v1381 = vmax.f32 %v1003, 0.0
        %v1382 = vmax.f32 %v1116, 0.0
        %v1383 = vmax.f32 %v1229, 0.0
        %v1384 = vmax.f32 %v667, 0.0
        %v1385 = vmax.f32 %v780, 0.0
        %v1386 = vmax.f32 %v893, 0.0
        %v1387 = vmax.f32 %v1006, 0.0
        %v1388 = vmax.f32 %v1119, 0.0
        %v1389 = vmax.f32 %v1232, 0.0
        %v1390 = vmax.f32 %v670, 0.0
        %v1391 = vmax.f32 %v783, 0.0
        %v1392 = vmax.f32 %v896, 0.0
        %v1393 = vmax.f32 %v1009, 0.0
        %v1394 = vmax.f32 %v1122, 0.0
        %v1395 = vmax.f32 %v1235, 0.0
        %v1396 = vmax.f32 %v673, 0.0
        %v1397 = vmax.f32 %v786, 0.0
        %v1398 = vmax.f32 %v899, 0.0
        %v1399 = vmax.f32 %v1012, 0.0
        %v1400 = vmax.f32 %v1125, 0.0
        %v1401 = vmax.f32 %v1238, 0.0
        %v1402 = vmax.f32 %v676, 0.0
        %v1403 = vmax.f32 %v789, 0.0
        %v1404 = vmax.f32 %v902, 0.0
        %v1405 = vmax.f32 %v1015, 0.0
        %v1406 = vmax.f32 %v1128, 0.0
        %v1407 = vmax.f32 %v1241, 0.0
        %v1408 = vmax.f32 %v679, 0.0
        %v1409 = vmax.f32 %v792, 0.0
        %v1410 = vmax.f32 %v905, 0.0
        %v1411 = vmax.f32 %v1018, 0.0
        %v1412 = vmax.f32 %v1131, 0.0
        %v1413 = vmax.f32 %v1244, 0.0
        %v1414 = vmax.f32 %v682, 0.0
        %v1415 = vmax.f32 %v795, 0.0
        %v1416 = vmax.f32 %v908, 0.0
        %v1417 = vmax.f32 %v1021, 0.0
        %v1418 = vmax.f32 %v1134, 0.0
        %v1419 = vmax.f32 %v1247, 0.0
        %v1420 = vmax.f32 %v685, 0.0
        %v1421 = vmax.f32 %v798, 0.0
        %v1422 = vmax.f32 %v911, 0.0
        %v1423 = vmax.f32 %v1024, 0.0
        %v1424 = vmax.f32 %v1137, 0.0
        %v1425 = vmax.f32 %v1250, 0.0
        %v1426 = vmax.f32 %v688, 0.0
        %v1427 = vmax.f32 %v801, 0.0
        %v1428 = vmax.f32 %v914, 0.0
        %v1429 = vmax.f32 %v1027, 0.0
        %v1430 = vmax.f32 %v1140, 0.0
        %v1431 = vmax.f32 %v1253, 0.0
        %v1432 = vmax.f32 %v691, 0.0
        %v1433 = vmax.f32 %v804, 0.0
        %v1434 = vmax.f32 %v917, 0.0
        %v1435 = vmax.f32 %v1030, 0.0
        %v1436 = vmax.f32 %v1143, 0.0
        %v1437 = vmax.f32 %v1256, 0.0
        %v1438 = vmax.f32 %v694, 0.0
        %v1439 = vmax.f32 %v807, 0.0
        %v1440 = vmax.f32 %v920, 0.0
        %v1441 = vmax.f32 %v1033, 0.0
        %v1442 = vmax.f32 %v1146, 0.0
        %v1443 = vmax.f32 %v1259, 0.0
        %v1444 = vmax.f32 %v697, 0.0
        %v1445 = vmax.f32 %v810, 0.0
        %v1446 = vmax.f32 %v923, 0.0
        %v1447 = vmax.f32 %v1036, 0.0
        %v1448 = vmax.f32 %v1149, 0.0
        %v1449 = vmax.f32 %v1262, 0.0
        %v1450 = vmax.f32 %v700, 0.0
        %v1451 = vmax.f32 %v813, 0.0
        %v1452 = vmax.f32 %v926, 0.0
        %v1453 = vmax.f32 %v1039, 0.0
        %v1454 = vmax.f32 %v1152, 0.0
        %v1455 = vmax.f32 %v1265, 0.0
        %v1456 = vmax.f32 %v703, 0.0
        %v1457 = vmax.f32 %v816, 0.0
        %v1458 = vmax.f32 %v929, 0.0
        %v1459 = vmax.f32 %v1042, 0.0
        %v1460 = vmax.f32 %v1155, 0.0
        %v1461 = vmax.f32 %v1268, 0.0
        %v1462 = vld [vmem:[%s3] sm:$0xff]
        %v1463 = vld [vmem:[%s3 + $0x8] sm:$0xff]
        %v1464 = vld [vmem:[%s3 + $0x10] sm:$0xff]
        %v1465 = vld [vmem:[%s3 + $0x18] sm:$0xff]
        %v1466 = vld [vmem:[%s3 + $0x20] sm:$0xff]
        %v1467 = vld [vmem:[%s3 + $0x28] sm:$0xff]
        %v1468 = vld [vmem:[%s3 + $0x30] sm:$0xff]
        %v1469 = vld [vmem:[%s3 + $0x38] sm:$0xff]
        %v1470 = vld [vmem:[%s3 + $0x40] sm:$0xff]
        %v1471 = vld [vmem:[%s3 + $0x48] sm:$0xff]
        %v1472 = vld [vmem:[%s3 + $0x50] sm:$0xff]
        %v1473 = vld [vmem:[%s3 + $0x58] sm:$0xff]
        %v1474 = vld [vmem:[%s3 + $0x60] sm:$0xff]
        %v1475 = vld [vmem:[%s3 + $0x68] sm:$0xff]
        %v1476 = vld [vmem:[%s3 + $0x70] sm:$0xff]
        %v1477 = vld [vmem:[%s3 + $0x78] sm:$0xff]
        %v1478 = vld [vmem:[%s3 + $0x80] sm:$0xff]
        %v1479 = vld [vmem:[%s3 + $0x88] sm:$0xff]
        %v1480 = vld [vmem:[%s3 + $0x90] sm:$0xff]
        %v1481 = vld [vmem:[%s3 + $0x98] sm:$0xff]
        %v1482 = vld [vmem:[%s3 + $0xa0] sm:$0xff]
        %v1483 = vld [vmem:[%s3 + $0xa8] sm:$0xff]
        %v1484 = vld [vmem:[%s3 + $0xb0] sm:$0xff]
        %v1485 = vld [vmem:[%s3 + $0xb8] sm:$0xff]
        %v1486 = vld [vmem:[%s3 + $0xc0] sm:$0xff]
        %v1487 = vld [vmem:[%s3 + $0xc8] sm:$0xff]
        %v1488 = vld [vmem:[%s3 + $0xd0] sm:$0xff]
        %v1489 = vld [vmem:[%s3 + $0xd8] sm:$0xff]
        %v1490 = vld [vmem:[%s3 + $0xe0] sm:$0xff]
        %v1491 = vld [vmem:[%s3 + $0xe8] sm:$0xff]
        %v1492 = vld [vmem:[%s3 + $0xf0] sm:$0xff]
        %v1493 = vld [vmem:[%s3 + $0xf8] sm:$0xff]
        %v1494 = vld [vmem:[%s3 + $0x100] sm:$0xff]
        %v1495 = vld [vmem:[%s3 + $0x108] sm:$0xff]
        %v1496 = vld [vmem:[%s3 + $0x110] sm:$0xff]
        %v1497 = vld [vmem:[%s3 + $0x118] sm:$0xff]
        %v1498 = vld [vmem:[%s3 + $0x120] sm:$0xff]
        %v1499 = vld [vmem:[%s3 + $0x128] sm:$0xff]
        %v1500 = vld [vmem:[%s3 + $0x130] sm:$0xff]
        %v1501 = vld [vmem:[%s3 + $0x138] sm:$0xff]
        %v1502 = vld [vmem:[%s3 + $0x140] sm:$0xff]
        %v1503 = vld [vmem:[%s3 + $0x148] sm:$0xff]
        %v1504 = vld [vmem:[%s3 + $0x150] sm:$0xff]
        %v1505 = vld [vmem:[%s3 + $0x158] sm:$0xff]
        %v1506 = vld [vmem:[%s3 + $0x160] sm:$0xff]
        %v1507 = vld [vmem:[%s3 + $0x168] sm:$0xff]
        %v1508 = vld [vmem:[%s3 + $0x170] sm:$0xff]
        %v1509 = vld [vmem:[%s3 + $0x178] sm:$0xff]
        %v1510 = vld [vmem:[%s3 + $0x180] sm:$0xff]
        %v1511 = vld [vmem:[%s3 + $0x188] sm:$0xff]
        %v1512 = vld [vmem:[%s3 + $0x190] sm:$0xff]
        %v1513 = vld [vmem:[%s3 + $0x198] sm:$0xff]
        %v1514 = vld [vmem:[%s3 + $0x1a0] sm:$0xff]
        %v1515 = vld [vmem:[%s3 + $0x1a8] sm:$0xff]
        %v1516 = vld [vmem:[%s3 + $0x1b0] sm:$0xff]
        %v1517 = vld [vmem:[%s3 + $0x1b8] sm:$0xff]
        %v1518 = vld [vmem:[%s3 + $0x1c0] sm:$0xff]
        %v1519 = vld [vmem:[%s3 + $0x1c8] sm:$0xff]
        %v1520 = vld [vmem:[%s3 + $0x1d0] sm:$0xff]
        %v1521 = vld [vmem:[%s3 + $0x1d8] sm:$0xff]
        %v1522 = vld [vmem:[%s3 + $0x1e0] sm:$0xff]
        %v1523 = vld [vmem:[%s3 + $0x1e8] sm:$0xff]
        %v1524 = vld [vmem:[%s3 + $0x1f0] sm:$0xff]
        %v1525 = vld [vmem:[%s3 + $0x1f8] sm:$0xff]
        %v1526 = vld [vmem:[%s3 + $0x200] sm:$0xff]
        %v1527 = vld [vmem:[%s3 + $0x208] sm:$0xff]
        %v1528 = vld [vmem:[%s3 + $0x210] sm:$0xff]
        %v1529 = vld [vmem:[%s3 + $0x218] sm:$0xff]
        %v1530 = vld [vmem:[%s3 + $0x220] sm:$0xff]
        %v1531 = vld [vmem:[%s3 + $0x228] sm:$0xff]
        %v1532 = vld [vmem:[%s3 + $0x230] sm:$0xff]
        %v1533 = vld [vmem:[%s3 + $0x238] sm:$0xff]
        %v1534 = vld [vmem:[%s3 + $0x240] sm:$0xff]
        %v1535 = vld [vmem:[%s3 + $0x248] sm:$0xff]
        %v1536 = vld [vmem:[%s3 + $0x250] sm:$0xff]
        %v1537 = vld [vmem:[%s3 + $0x258] sm:$0xff]
        %v1538 = vld [vmem:[%s3 + $0x260] sm:$0xff]
        %v1539 = vld [vmem:[%s3 + $0x268] sm:$0xff]
        %v1540 = vld [vmem:[%s3 + $0x270] sm:$0xff]
        %v1541 = vld [vmem:[%s3 + $0x278] sm:$0xff]
        %v1542 = vld [vmem:[%s3 + $0x280] sm:$0xff]
        %v1543 = vld [vmem:[%s3 + $0x288] sm:$0xff]
        %v1544 = vld [vmem:[%s3 + $0x290] sm:$0xff]
        %v1545 = vld [vmem:[%s3 + $0x298] sm:$0xff]
        %v1546 = vld [vmem:[%s3 + $0x2a0] sm:$0xff]
        %v1547 = vld [vmem:[%s3 + $0x2a8] sm:$0xff]
        %v1548 = vld [vmem:[%s3 + $0x2b0] sm:$0xff]
        %v1549 = vld [vmem:[%s3 + $0x2b8] sm:$0xff]
        %v1550 = vld [vmem:[%s3 + $0x2c0] sm:$0xff]
        %v1551 = vld [vmem:[%s3 + $0x2c8] sm:$0xff]
        %v1552 = vld [vmem:[%s3 + $0x2d0] sm:$0xff]
        %v1553 = vld [vmem:[%s3 + $0x2d8] sm:$0xff]
        %v1554 = vld [vmem:[%s3 + $0x2e0] sm:$0xff]
        %v1555 = vld [vmem:[%s3 + $0x2e8] sm:$0xff]
        %v1556 = vld [vmem:[%s3 + $0x2f0] sm:$0xff]
        %v1557 = vld [vmem:[%s3 + $0x2f8] sm:$0xff]
        %v1558 = vld [vmem:[%s3 + $0x300] sm:$0xff]
        %v1559 = vld [vmem:[%s3 + $0x308] sm:$0xff]
        %v1560 = vld [vmem:[%s3 + $0x310] sm:$0xff]
        %v1561 = vld [vmem:[%s3 + $0x318] sm:$0xff]
        %v1562 = vld [vmem:[%s3 + $0x320] sm:$0xff]
        %v1563 = vld [vmem:[%s3 + $0x328] sm:$0xff]
        %v1564 = vld [vmem:[%s3 + $0x330] sm:$0xff]
        %v1565 = vld [vmem:[%s3 + $0x338] sm:$0xff]
        %v1566 = vld [vmem:[%s3 + $0x340] sm:$0xff]
        %v1567 = vld [vmem:[%s3 + $0x348] sm:$0xff]
        %v1568 = vld [vmem:[%s3 + $0x350] sm:$0xff]
        %v1569 = vld [vmem:[%s3 + $0x358] sm:$0xff]
        %v1570 = vld [vmem:[%s3 + $0x360] sm:$0xff]
        %v1571 = vld [vmem:[%s3 + $0x368] sm:$0xff]
        %v1572 = vld [vmem:[%s3 + $0x370] sm:$0xff]
        %v1573 = vld [vmem:[%s3 + $0x378] sm:$0xff]
        %v1574 = vld [vmem:[%s3 + $0x380] sm:$0xff]
        %v1575 = vld [vmem:[%s3 + $0x388] sm:$0xff]
        %v1576 = vld [vmem:[%s3 + $0x390] sm:$0xff]
        %v1577 = vld [vmem:[%s3 + $0x398] sm:$0xff]
        %v1578 = vld [vmem:[%s3 + $0x3a0] sm:$0xff]
        %v1579 = vld [vmem:[%s3 + $0x3a8] sm:$0xff]
        %v1580 = vld [vmem:[%s3 + $0x3b0] sm:$0xff]
        %v1581 = vld [vmem:[%s3 + $0x3b8] sm:$0xff]
        %v1582 = vld [vmem:[%s3 + $0x3c0] sm:$0xff]
        %v1583 = vld [vmem:[%s3 + $0x3c8] sm:$0xff]
        %v1584 = vld [vmem:[%s3 + $0x3d0] sm:$0xff]
        %v1585 = vld [vmem:[%s3 + $0x3d8] sm:$0xff]
        %v1586 = vld [vmem:[%s3 + $0x3e0] sm:$0xff]
        %v1587 = vld [vmem:[%s3 + $0x3e8] sm:$0xff]
        %v1588 = vld [vmem:[%s3 + $0x3f0] sm:$0xff]
        %v1589 = vld [vmem:[%s3 + $0x3f8] sm:$0xff]
        %v1590 = vld [vmem:[%s3 + $0x400] sm:$0xff]
        %v1591 = vld [vmem:[%s3 + $0x408] sm:$0xff]
        %v1592 = vld [vmem:[%s3 + $0x410] sm:$0xff]
        %v1593 = vld [vmem:[%s3 + $0x418] sm:$0xff]
        %v1594 = vld [vmem:[%s3 + $0x420] sm:$0xff]
        %v1595 = vld [vmem:[%s3 + $0x428] sm:$0xff]
        %v1596 = vld [vmem:[%s3 + $0x430] sm:$0xff]
        %v1597 = vld [vmem:[%s3 + $0x438] sm:$0xff]
        %v1598 = vld [vmem:[%s3 + $0x440] sm:$0xff]
        %v1599 = vld [vmem:[%s3 + $0x448] sm:$0xff]
        %v1600 = vld [vmem:[%s3 + $0x450] sm:$0xff]
        %v1601 = vld [vmem:[%s3 + $0x458] sm:$0xff]
        %v1602 = vld [vmem:[%s3 + $0x460] sm:$0xff]
        %v1603 = vld [vmem:[%s3 + $0x468] sm:$0xff]
        %v1604 = vld [vmem:[%s3 + $0x470] sm:$0xff]
        %v1605 = vld [vmem:[%s3 + $0x478] sm:$0xff]
        %v1606 = vld [vmem:[%s3 + $0x480] sm:$0xff]
        %v1607 = vld [vmem:[%s3 + $0x488] sm:$0xff]
        %v1608 = vld [vmem:[%s3 + $0x490] sm:$0xff]
        %v1609 = vld [vmem:[%s3 + $0x498] sm:$0xff]
        %v1610 = vld [vmem:[%s3 + $0x4a0] sm:$0xff]
        %v1611 = vld [vmem:[%s3 + $0x4a8] sm:$0xff]
        %v1612 = vld [vmem:[%s3 + $0x4b0] sm:$0xff]
        %v1613 = vld [vmem:[%s3 + $0x4b8] sm:$0xff]
        %v1614 = vld [vmem:[%s3 + $0x4c0] sm:$0xff]
        %v1615 = vld [vmem:[%s3 + $0x4c8] sm:$0xff]
        %v1616 = vld [vmem:[%s3 + $0x4d0] sm:$0xff]
        %v1617 = vld [vmem:[%s3 + $0x4d8] sm:$0xff]
        %v1618 = vld [vmem:[%s3 + $0x4e0] sm:$0xff]
        %v1619 = vld [vmem:[%s3 + $0x4e8] sm:$0xff]
        %v1620 = vld [vmem:[%s3 + $0x4f0] sm:$0xff]
        %v1621 = vld [vmem:[%s3 + $0x4f8] sm:$0xff]
        %v1622 = vld [vmem:[%s3 + $0x500] sm:$0xff]
        %v1623 = vld [vmem:[%s3 + $0x508] sm:$0xff]
        %v1624 = vld [vmem:[%s3 + $0x510] sm:$0xff]
        %v1625 = vld [vmem:[%s3 + $0x518] sm:$0xff]
        %v1626 = vld [vmem:[%s3 + $0x520] sm:$0xff]
        %v1627 = vld [vmem:[%s3 + $0x528] sm:$0xff]
        %v1628 = vld [vmem:[%s3 + $0x530] sm:$0xff]
        %v1629 = vld [vmem:[%s3 + $0x538] sm:$0xff]
        %v1630 = vld [vmem:[%s3 + $0x540] sm:$0xff]
        %v1631 = vld [vmem:[%s3 + $0x548] sm:$0xff]
        %v1632 = vld [vmem:[%s3 + $0x550] sm:$0xff]
        %v1633 = vld [vmem:[%s3 + $0x558] sm:$0xff]
        %v1634 = vld [vmem:[%s3 + $0x560] sm:$0xff]
        %v1635 = vld [vmem:[%s3 + $0x568] sm:$0xff]
        %v1636 = vld [vmem:[%s3 + $0x570] sm:$0xff]
        %v1637 = vld [vmem:[%s3 + $0x578] sm:$0xff]
        %v1638 = vld [vmem:[%s3 + $0x580] sm:$0xff]
        %v1639 = vld [vmem:[%s3 + $0x588] sm:$0xff]
        %v1640 = vld [vmem:[%s3 + $0x590] sm:$0xff]
        %v1641 = vld [vmem:[%s3 + $0x598] sm:$0xff]
        %v1642 = vld [vmem:[%s3 + $0x5a0] sm:$0xff]
        %v1643 = vld [vmem:[%s3 + $0x5a8] sm:$0xff]
        %v1644 = vld [vmem:[%s3 + $0x5b0] sm:$0xff]
        %v1645 = vld [vmem:[%s3 + $0x5b8] sm:$0xff]
        %v1646 = vld [vmem:[%s3 + $0x5c0] sm:$0xff]
        %v1647 = vld [vmem:[%s3 + $0x5c8] sm:$0xff]
        %v1648 = vld [vmem:[%s3 + $0x5d0] sm:$0xff]
        %v1649 = vld [vmem:[%s3 + $0x5d8] sm:$0xff]
        %v1650 = vld [vmem:[%s3 + $0x5e0] sm:$0xff]
        %v1651 = vld [vmem:[%s3 + $0x5e8] sm:$0xff]
        %v1652 = vld [vmem:[%s3 + $0x5f0] sm:$0xff]
        %v1653 = vld [vmem:[%s3 + $0x5f8] sm:$0xff]
        %v1654 = vld [vmem:[%s3 + $0x600] sm:$0xff]
        %v1655 = vld [vmem:[%s3 + $0x608] sm:$0xff]
        %v1656 = vld [vmem:[%s3 + $0x610] sm:$0xff]
        %v1657 = vld [vmem:[%s3 + $0x618] sm:$0xff]
        %v1658 = vld [vmem:[%s3 + $0x620] sm:$0xff]
        %v1659 = vld [vmem:[%s3 + $0x628] sm:$0xff]
        %v1660 = vld [vmem:[%s3 + $0x630] sm:$0xff]
        %v1661 = vld [vmem:[%s3 + $0x638] sm:$0xff]
        %v1662 = vld [vmem:[%s3 + $0x640] sm:$0xff]
        %v1663 = vld [vmem:[%s3 + $0x648] sm:$0xff]
        %v1664 = vld [vmem:[%s3 + $0x650] sm:$0xff]
        %v1665 = vld [vmem:[%s3 + $0x658] sm:$0xff]
        %v1666 = vld [vmem:[%s3 + $0x660] sm:$0xff]
        %v1667 = vld [vmem:[%s3 + $0x668] sm:$0xff]
        %v1668 = vld [vmem:[%s3 + $0x670] sm:$0xff]
        %v1669 = vld [vmem:[%s3 + $0x678] sm:$0xff]
        %v1670 = vld [vmem:[%s3 + $0x680] sm:$0xff]
        %v1671 = vld [vmem:[%s3 + $0x688] sm:$0xff]
        %v1672 = vld [vmem:[%s3 + $0x690] sm:$0xff]
        %v1673 = vld [vmem:[%s3 + $0x698] sm:$0xff]
        %v1674 = vld [vmem:[%s3 + $0x6a0] sm:$0xff]
        %v1675 = vld [vmem:[%s3 + $0x6a8] sm:$0xff]
        %v1676 = vld [vmem:[%s3 + $0x6b0] sm:$0xff]
        %v1677 = vld [vmem:[%s3 + $0x6b8] sm:$0xff]
        %v1678 = vld [vmem:[%s3 + $0x6c0] sm:$0xff]
        %v1679 = vld [vmem:[%s3 + $0x6c8] sm:$0xff]
        %v1680 = vld [vmem:[%s3 + $0x6d0] sm:$0xff]
        %v1681 = vld [vmem:[%s3 + $0x6d8] sm:$0xff]
        %v1682 = vld [vmem:[%s3 + $0x6e0] sm:$0xff]
        %v1683 = vld [vmem:[%s3 + $0x6e8] sm:$0xff]
        %v1684 = vld [vmem:[%s3 + $0x6f0] sm:$0xff]
        %v1685 = vld [vmem:[%s3 + $0x6f8] sm:$0xff]
        %v1686 = vld [vmem:[%s3 + $0x700] sm:$0xff]
        %v1687 = vld [vmem:[%s3 + $0x708] sm:$0xff]
        %v1688 = vld [vmem:[%s3 + $0x710] sm:$0xff]
        %v1689 = vld [vmem:[%s3 + $0x718] sm:$0xff]
        %v1690 = vld [vmem:[%s3 + $0x720] sm:$0xff]
        %v1691 = vld [vmem:[%s3 + $0x728] sm:$0xff]
        %v1692 = vld [vmem:[%s3 + $0x730] sm:$0xff]
        %v1693 = vld [vmem:[%s3 + $0x738] sm:$0xff]
        %v1694 = vld [vmem:[%s3 + $0x740] sm:$0xff]
        %v1695 = vld [vmem:[%s3 + $0x748] sm:$0xff]
        %v1696 = vld [vmem:[%s3 + $0x750] sm:$0xff]
        %v1697 = vld [vmem:[%s3 + $0x758] sm:$0xff]
        %v1698 = vld [vmem:[%s3 + $0x760] sm:$0xff]
        %v1699 = vld [vmem:[%s3 + $0x768] sm:$0xff]
        %v1700 = vld [vmem:[%s3 + $0x770] sm:$0xff]
        %v1701 = vld [vmem:[%s3 + $0x778] sm:$0xff]
        %v1702 = vld [vmem:[%s3 + $0x780] sm:$0xff]
        %v1703 = vld [vmem:[%s3 + $0x788] sm:$0xff]
        %v1704 = vld [vmem:[%s3 + $0x790] sm:$0xff]
        %v1705 = vld [vmem:[%s3 + $0x798] sm:$0xff]
        %v1706 = vld [vmem:[%s3 + $0x7a0] sm:$0xff]
        %v1707 = vld [vmem:[%s3 + $0x7a8] sm:$0xff]
        %v1708 = vld [vmem:[%s3 + $0x7b0] sm:$0xff]
        %v1709 = vld [vmem:[%s3 + $0x7b8] sm:$0xff]
        %v1710 = vld [vmem:[%s3 + $0x7c0] sm:$0xff]
        %v1711 = vld [vmem:[%s3 + $0x7c8] sm:$0xff]
        %v1712 = vld [vmem:[%s3 + $0x7d0] sm:$0xff]
        %v1713 = vld [vmem:[%s3 + $0x7d8] sm:$0xff]
        %v1714 = vld [vmem:[%s3 + $0x7e0] sm:$0xff]
        %v1715 = vld [vmem:[%s3 + $0x7e8] sm:$0xff]
        %v1716 = vld [vmem:[%s3 + $0x7f0] sm:$0xff]
        %v1717 = vld [vmem:[%s3 + $0x7f8] sm:$0xff]
        %v1718 = vld [vmem:[%s3 + $0x800] sm:$0xff]
        %v1719 = vld [vmem:[%s3 + $0x808] sm:$0xff]
        %v1720 = vld [vmem:[%s3 + $0x810] sm:$0xff]
        %v1721 = vld [vmem:[%s3 + $0x818] sm:$0xff]
        %v1722 = vld [vmem:[%s3 + $0x820] sm:$0xff]
        %v1723 = vld [vmem:[%s3 + $0x828] sm:$0xff]
        %v1724 = vld [vmem:[%s3 + $0x830] sm:$0xff]
        %v1725 = vld [vmem:[%s3 + $0x838] sm:$0xff]
        %v1726 = vld [vmem:[%s3 + $0x840] sm:$0xff]
        %v1727 = vld [vmem:[%s3 + $0x848] sm:$0xff]
        %v1728 = vld [vmem:[%s3 + $0x850] sm:$0xff]
        %v1729 = vld [vmem:[%s3 + $0x858] sm:$0xff]
        %v1730 = vld [vmem:[%s3 + $0x860] sm:$0xff]
        %v1731 = vld [vmem:[%s3 + $0x868] sm:$0xff]
        %v1732 = vld [vmem:[%s3 + $0x870] sm:$0xff]
        %v1733 = vld [vmem:[%s3 + $0x878] sm:$0xff]
        %v1734 = vld [vmem:[%s3 + $0x880] sm:$0xff]
        %v1735 = vld [vmem:[%s3 + $0x888] sm:$0xff]
        %v1736 = vld [vmem:[%s3 + $0x890] sm:$0xff]
        %v1737 = vld [vmem:[%s3 + $0x898] sm:$0xff]
        %v1738 = vld [vmem:[%s3 + $0x8a0] sm:$0xff]
        %v1739 = vld [vmem:[%s3 + $0x8a8] sm:$0xff]
        %v1740 = vld [vmem:[%s3 + $0x8b0] sm:$0xff]
        %v1741 = vld [vmem:[%s3 + $0x8b8] sm:$0xff]
        %v1742 = vld [vmem:[%s3 + $0x8c0] sm:$0xff]
        %v1743 = vld [vmem:[%s3 + $0x8c8] sm:$0xff]
        %v1744 = vld [vmem:[%s3 + $0x8d0] sm:$0xff]
        %v1745 = vld [vmem:[%s3 + $0x8d8] sm:$0xff]
        %v1746 = vld [vmem:[%s3 + $0x8e0] sm:$0xff]
        %v1747 = vld [vmem:[%s3 + $0x8e8] sm:$0xff]
        %v1748 = vld [vmem:[%s3 + $0x8f0] sm:$0xff]
        %v1749 = vld [vmem:[%s3 + $0x8f8] sm:$0xff]
        %v1750 = vld [vmem:[%s3 + $0x900] sm:$0xff]
        %v1751 = vld [vmem:[%s3 + $0x908] sm:$0xff]
        %v1752 = vld [vmem:[%s3 + $0x910] sm:$0xff]
        %v1753 = vld [vmem:[%s3 + $0x918] sm:$0xff]
        %v1754 = vld [vmem:[%s3 + $0x920] sm:$0xff]
        %v1755 = vld [vmem:[%s3 + $0x928] sm:$0xff]
        %v1756 = vld [vmem:[%s3 + $0x930] sm:$0xff]
        %v1757 = vld [vmem:[%s3 + $0x938] sm:$0xff]
        %v1758 = vld [vmem:[%s3 + $0x940] sm:$0xff]
        %v1759 = vld [vmem:[%s3 + $0x948] sm:$0xff]
        %v1760 = vld [vmem:[%s3 + $0x950] sm:$0xff]
        %v1761 = vld [vmem:[%s3 + $0x958] sm:$0xff]
        %v1762 = vld [vmem:[%s3 + $0x960] sm:$0xff]
        %v1763 = vld [vmem:[%s3 + $0x968] sm:$0xff]
        %v1764 = vld [vmem:[%s3 + $0x970] sm:$0xff]
        %v1765 = vld [vmem:[%s3 + $0x978] sm:$0xff]
        %v1766 = vld [vmem:[%s3 + $0x980] sm:$0xff]
        %v1767 = vld [vmem:[%s3 + $0x988] sm:$0xff]
        %v1768 = vld [vmem:[%s3 + $0x990] sm:$0xff]
        %v1769 = vld [vmem:[%s3 + $0x998] sm:$0xff]
        %v1770 = vld [vmem:[%s3 + $0x9a0] sm:$0xff]
        %v1771 = vld [vmem:[%s3 + $0x9a8] sm:$0xff]
        %v1772 = vld [vmem:[%s3 + $0x9b0] sm:$0xff]
        %v1773 = vld [vmem:[%s3 + $0x9b8] sm:$0xff]
        %v1774 = vld [vmem:[%s3 + $0x9c0] sm:$0xff]
        %v1775 = vld [vmem:[%s3 + $0x9c8] sm:$0xff]
        %v1776 = vld [vmem:[%s3 + $0x9d0] sm:$0xff]
        %v1777 = vld [vmem:[%s3 + $0x9d8] sm:$0xff]
        %v1778 = vld [vmem:[%s3 + $0x9e0] sm:$0xff]
        %v1779 = vld [vmem:[%s3 + $0x9e8] sm:$0xff]
        %v1780 = vld [vmem:[%s3 + $0x9f0] sm:$0xff]
        %v1781 = vld [vmem:[%s3 + $0x9f8] sm:$0xff]
        %v1782 = vld [vmem:[%s3 + $0xa00] sm:$0xff]
        %v1783 = vld [vmem:[%s3 + $0xa08] sm:$0xff]
        %v1784 = vld [vmem:[%s3 + $0xa10] sm:$0xff]
        %v1785 = vld [vmem:[%s3 + $0xa18] sm:$0xff]
        %v1786 = vld [vmem:[%s3 + $0xa20] sm:$0xff]
        %v1787 = vld [vmem:[%s3 + $0xa28] sm:$0xff]
        %v1788 = vld [vmem:[%s3 + $0xa30] sm:$0xff]
        %v1789 = vld [vmem:[%s3 + $0xa38] sm:$0xff]
        %v1790 = vld [vmem:[%s3 + $0xa40] sm:$0xff]
        %v1791 = vld [vmem:[%s3 + $0xa48] sm:$0xff]
        %v1792 = vld [vmem:[%s3 + $0xa50] sm:$0xff]
        %v1793 = vld [vmem:[%s3 + $0xa58] sm:$0xff]
        %v1794 = vld [vmem:[%s3 + $0xa60] sm:$0xff]
        %v1795 = vld [vmem:[%s3 + $0xa68] sm:$0xff]
        %v1796 = vld [vmem:[%s3 + $0xa70] sm:$0xff]
        %v1797 = vld [vmem:[%s3 + $0xa78] sm:$0xff]
        %v1798 = vld [vmem:[%s3 + $0xa80] sm:$0xff]
        %v1799 = vld [vmem:[%s3 + $0xa88] sm:$0xff]
        %v1800 = vld [vmem:[%s3 + $0xa90] sm:$0xff]
        %v1801 = vld [vmem:[%s3 + $0xa98] sm:$0xff]
        %v1802 = vld [vmem:[%s3 + $0xaa0] sm:$0xff]
        %v1803 = vld [vmem:[%s3 + $0xaa8] sm:$0xff]
        %v1804 = vld [vmem:[%s3 + $0xab0] sm:$0xff]
        %v1805 = vld [vmem:[%s3 + $0xab8] sm:$0xff]
        %v1806 = vld [vmem:[%s3 + $0xac0] sm:$0xff]
        %v1807 = vld [vmem:[%s3 + $0xac8] sm:$0xff]
        %v1808 = vld [vmem:[%s3 + $0xad0] sm:$0xff]
        %v1809 = vld [vmem:[%s3 + $0xad8] sm:$0xff]
        %v1810 = vld [vmem:[%s3 + $0xae0] sm:$0xff]
        %v1811 = vld [vmem:[%s3 + $0xae8] sm:$0xff]
        %v1812 = vld [vmem:[%s3 + $0xaf0] sm:$0xff]
        %v1813 = vld [vmem:[%s3 + $0xaf8] sm:$0xff]
        %v1814 = vld [vmem:[%s3 + $0xb00] sm:$0xff]
        %v1815 = vld [vmem:[%s3 + $0xb08] sm:$0xff]
        %v1816 = vld [vmem:[%s3 + $0xb10] sm:$0xff]
        %v1817 = vld [vmem:[%s3 + $0xb18] sm:$0xff]
        %v1818 = vld [vmem:[%s3 + $0xb20] sm:$0xff]
        %v1819 = vld [vmem:[%s3 + $0xb28] sm:$0xff]
        %v1820 = vld [vmem:[%s3 + $0xb30] sm:$0xff]
        %v1821 = vld [vmem:[%s3 + $0xb38] sm:$0xff]
        %v1822 = vld [vmem:[%s3 + $0xb40] sm:$0xff]
        %v1823 = vld [vmem:[%s3 + $0xb48] sm:$0xff]
        %v1824 = vld [vmem:[%s3 + $0xb50] sm:$0xff]
        %v1825 = vld [vmem:[%s3 + $0xb58] sm:$0xff]
        %v1826 = vld [vmem:[%s3 + $0xb60] sm:$0xff]
        %v1827 = vld [vmem:[%s3 + $0xb68] sm:$0xff]
        %v1828 = vld [vmem:[%s3 + $0xb70] sm:$0xff]
        %v1829 = vld [vmem:[%s3 + $0xb78] sm:$0xff]
        %v1830 = vld [vmem:[%s3 + $0xb80] sm:$0xff]
        %v1831 = vld [vmem:[%s3 + $0xb88] sm:$0xff]
        %v1832 = vld [vmem:[%s3 + $0xb90] sm:$0xff]
        %v1833 = vld [vmem:[%s3 + $0xb98] sm:$0xff]
        %v1834 = vld [vmem:[%s3 + $0xba0] sm:$0xff]
        %v1835 = vld [vmem:[%s3 + $0xba8] sm:$0xff]
        %v1836 = vld [vmem:[%s3 + $0xbb0] sm:$0xff]
        %v1837 = vld [vmem:[%s3 + $0xbb8] sm:$0xff]
        %v1838 = vld [vmem:[%s3 + $0xbc0] sm:$0xff]
        %v1839 = vld [vmem:[%s3 + $0xbc8] sm:$0xff]
        %v1840 = vld [vmem:[%s3 + $0xbd0] sm:$0xff]
        %v1841 = vld [vmem:[%s3 + $0xbd8] sm:$0xff]
        %v1842 = vld [vmem:[%s3 + $0xbe0] sm:$0xff]
        %v1843 = vld [vmem:[%s3 + $0xbe8] sm:$0xff]
        %v1844 = vld [vmem:[%s3 + $0xbf0] sm:$0xff]
        %v1845 = vld [vmem:[%s3 + $0xbf8] sm:$0xff]
        %v1846 = vld [vmem:[%s3 + $0xc00] sm:$0xff]
        %v1847 = vld [vmem:[%s3 + $0xc08] sm:$0xff]
        %v1848 = vld [vmem:[%s3 + $0xc10] sm:$0xff]
        %v1849 = vld [vmem:[%s3 + $0xc18] sm:$0xff]
        %v1850 = vld [vmem:[%s3 + $0xc20] sm:$0xff]
        %v1851 = vld [vmem:[%s3 + $0xc28] sm:$0xff]
        %v1852 = vld [vmem:[%s3 + $0xc30] sm:$0xff]
        %v1853 = vld [vmem:[%s3 + $0xc38] sm:$0xff]
        %v1854 = vld [vmem:[%s3 + $0xc40] sm:$0xff]
        %v1855 = vld [vmem:[%s3 + $0xc48] sm:$0xff]
        %v1856 = vld [vmem:[%s3 + $0xc50] sm:$0xff]
        %v1857 = vld [vmem:[%s3 + $0xc58] sm:$0xff]
        %v1858 = vld [vmem:[%s3 + $0xc60] sm:$0xff]
        %v1859 = vld [vmem:[%s3 + $0xc68] sm:$0xff]
        %v1860 = vld [vmem:[%s3 + $0xc70] sm:$0xff]
        %v1861 = vld [vmem:[%s3 + $0xc78] sm:$0xff]
        %v1862 = vld [vmem:[%s3 + $0xc80] sm:$0xff]
        %v1863 = vld [vmem:[%s3 + $0xc88] sm:$0xff]
        %v1864 = vld [vmem:[%s3 + $0xc90] sm:$0xff]
        %v1865 = vld [vmem:[%s3 + $0xc98] sm:$0xff]
        %v1866 = vld [vmem:[%s3 + $0xca0] sm:$0xff]
        %v1867 = vld [vmem:[%s3 + $0xca8] sm:$0xff]
        %v1868 = vld [vmem:[%s3 + $0xcb0] sm:$0xff]
        %v1869 = vld [vmem:[%s3 + $0xcb8] sm:$0xff]
        %v1870 = vld [vmem:[%s3 + $0xcc0] sm:$0xff]
        %v1871 = vld [vmem:[%s3 + $0xcc8] sm:$0xff]
        %v1872 = vld [vmem:[%s3 + $0xcd0] sm:$0xff]
        %v1873 = vld [vmem:[%s3 + $0xcd8] sm:$0xff]
        %v1874 = vld [vmem:[%s3 + $0xce0] sm:$0xff]
        %v1875 = vld [vmem:[%s3 + $0xce8] sm:$0xff]
        %v1876 = vld [vmem:[%s3 + $0xcf0] sm:$0xff]
        %v1877 = vld [vmem:[%s3 + $0xcf8] sm:$0xff]
        %v1878 = vld [vmem:[%s3 + $0xd00] sm:$0xff]
        %v1879 = vld [vmem:[%s3 + $0xd08] sm:$0xff]
        %v1880 = vld [vmem:[%s3 + $0xd10] sm:$0xff]
        %v1881 = vld [vmem:[%s3 + $0xd18] sm:$0xff]
        %v1882 = vld [vmem:[%s3 + $0xd20] sm:$0xff]
        %v1883 = vld [vmem:[%s3 + $0xd28] sm:$0xff]
        %v1884 = vld [vmem:[%s3 + $0xd30] sm:$0xff]
        %v1885 = vld [vmem:[%s3 + $0xd38] sm:$0xff]
        %v1886 = vld [vmem:[%s3 + $0xd40] sm:$0xff]
        %v1887 = vld [vmem:[%s3 + $0xd48] sm:$0xff]
        %v1888 = vld [vmem:[%s3 + $0xd50] sm:$0xff]
        %v1889 = vld [vmem:[%s3 + $0xd58] sm:$0xff]
        %v1890 = vld [vmem:[%s3 + $0xd60] sm:$0xff]
        %v1891 = vld [vmem:[%s3 + $0xd68] sm:$0xff]
        %v1892 = vld [vmem:[%s3 + $0xd70] sm:$0xff]
        %v1893 = vld [vmem:[%s3 + $0xd78] sm:$0xff]
        %v1894 = vld [vmem:[%s3 + $0xd80] sm:$0xff]
        %v1895 = vld [vmem:[%s3 + $0xd88] sm:$0xff]
        %v1896 = vld [vmem:[%s3 + $0xd90] sm:$0xff]
        %v1897 = vld [vmem:[%s3 + $0xd98] sm:$0xff]
        %v1898 = vld [vmem:[%s3 + $0xda0] sm:$0xff]
        %v1899 = vld [vmem:[%s3 + $0xda8] sm:$0xff]
        %v1900 = vld [vmem:[%s3 + $0xdb0] sm:$0xff]
        %v1901 = vld [vmem:[%s3 + $0xdb8] sm:$0xff]
        %v1902 = vld [vmem:[%s3 + $0xdc0] sm:$0xff]
        %v1903 = vld [vmem:[%s3 + $0xdc8] sm:$0xff]
        %v1904 = vld [vmem:[%s3 + $0xdd0] sm:$0xff]
        %v1905 = vld [vmem:[%s3 + $0xdd8] sm:$0xff]
        %v1906 = vld [vmem:[%s3 + $0xde0] sm:$0xff]
        %v1907 = vld [vmem:[%s3 + $0xde8] sm:$0xff]
        %v1908 = vld [vmem:[%s3 + $0xdf0] sm:$0xff]
        %v1909 = vld [vmem:[%s3 + $0xdf8] sm:$0xff]
        %v1910 = vld [vmem:[%s3 + $0xe00] sm:$0xff]
        %v1911 = vld [vmem:[%s3 + $0xe08] sm:$0xff]
        %v1912 = vld [vmem:[%s3 + $0xe10] sm:$0xff]
        %v1913 = vld [vmem:[%s3 + $0xe18] sm:$0xff]
        %v1914 = vld [vmem:[%s3 + $0xe20] sm:$0xff]
        %v1915 = vld [vmem:[%s3 + $0xe28] sm:$0xff]
        %v1916 = vld [vmem:[%s3 + $0xe30] sm:$0xff]
        %v1917 = vld [vmem:[%s3 + $0xe38] sm:$0xff]
        %v1918 = vld [vmem:[%s3 + $0xe40] sm:$0xff]
        %v1919 = vld [vmem:[%s3 + $0xe48] sm:$0xff]
        %v1920 = vld [vmem:[%s3 + $0xe50] sm:$0xff]
        %v1921 = vld [vmem:[%s3 + $0xe58] sm:$0xff]
        %v1922 = vld [vmem:[%s3 + $0xe60] sm:$0xff]
        %v1923 = vld [vmem:[%s3 + $0xe68] sm:$0xff]
        %v1924 = vld [vmem:[%s3 + $0xe70] sm:$0xff]
        %v1925 = vld [vmem:[%s3 + $0xe78] sm:$0xff]
        %v1926 = vld [vmem:[%s3 + $0xe80] sm:$0xff]
        %v1927 = vld [vmem:[%s3 + $0xe88] sm:$0x3f]
        %v1928 = vld [vmem:[%s3 + $0xe90] sm:$0x3f]
        %v1929 = vld [vmem:[%s3 + $0xe98] sm:$0x3f]
        %v1930 = vld [vmem:[%s3 + $0xea0] sm:$0x3f]
        %v1931 = vld [vmem:[%s3 + $0xea8] sm:$0x3f]
        %v1932 = vld [vmem:[%s4] sm:$0x1f]
        %v1934 = vperm.slane %v1932, 0
        %v1935 = vperm.slane %v1932, 1
        %v1936 = vperm.slane %v1932, 2
        %v1937 = vperm.slane %v1932, 3
        %v1938 = vperm.slane %v1932, 4
        %vm1944 = vcmask 900096
        %v1946 = vsel %vm1944, %v1275, 0
        %v1949 = vsel %vm1944, %v1281, 0
        %v1952 = vsel %vm1944, %v1287, 0
        %v1955 = vsel %vm1944, %v1293, 0
        %v1958 = vsel %vm1944, %v1299, 0
        %v1961 = vsel %vm1944, %v1305, 0
        %v1964 = vsel %vm1944, %v1311, 0
        %v1967 = vsel %vm1944, %v1317, 0
        %v1970 = vsel %vm1944, %v1323, 0
        %v1973 = vsel %vm1944, %v1329, 0
        %v1976 = vsel %vm1944, %v1335, 0
        %v1979 = vsel %vm1944, %v1341, 0
        %v1982 = vsel %vm1944, %v1347, 0
        %v1985 = vsel %vm1944, %v1353, 0
        %v1988 = vsel %vm1944, %v1359, 0
        %v1991 = vsel %vm1944, %v1365, 0
        %v1994 = vsel %vm1944, %v1371, 0
        %v1997 = vsel %vm1944, %v1377, 0
        %v2000 = vsel %vm1944, %v1383, 0
        %v2003 = vsel %vm1944, %v1389, 0
        %v2006 = vsel %vm1944, %v1395, 0
        %v2009 = vsel %vm1944, %v1401, 0
        %v2012 = vsel %vm1944, %v1407, 0
        %v2015 = vsel %vm1944, %v1413, 0
        %v2018 = vsel %vm1944, %v1419, 0
        %v2021 = vsel %vm1944, %v1425, 0
        %v2024 = vsel %vm1944, %v1431, 0
        %v2027 = vsel %vm1944, %v1437, 0
        %v2030 = vsel %vm1944, %v1443, 0
        %v2033 = vsel %vm1944, %v1449, 0
        %v2036 = vsel %vm1944, %v1455, 0
        %v2039 = vsel %vm1944, %v1461, 0
        %vm2041 = vcmask 1045504
        %v2043 = vsel %vm2041, %v1927, 0
        %v2046 = vsel %vm2041, %v1928, 0
        %v2049 = vsel %vm2041, %v1929, 0
        %v2052 = vsel %vm2041, %v1930, 0
        %v2055 = vsel %vm2041, %v1931, 0
        %2057 = vmatpush.msra.mxu0 %v1537
        %2058 = vmatpush.msra.mxu0 %v1532
        %2059 = vmatpush.msra.mxu0 %v1527
        %2060 = vmatpush.msra.mxu0 %v1522
        %2061 = vmatpush.msra.mxu0 %v1517
        %2062 = vmatpush.msra.mxu0 %v1512
        %2063 = vmatpush.msra.mxu0 %v1507
        %2064 = vmatpush.msra.mxu0 %v1502
        %2065 = vmatpush.msra.mxu0 %v1497
        %2066 = vmatpush.msra.mxu0 %v1492
        %2067 = vmatpush.msra.mxu0 %v1487
        %2068 = vmatpush.msra.mxu0 %v1482
        %2069 = vmatpush.msra.mxu0 %v1477
        %2070 = vmatpush.msra.mxu0 %v1472
        %2071 = vmatpush.msra.mxu0 %v1467
        %2072 = vmatpush.msra.mxu0 %v1462
        %2073 = vmatmul.f32.gmra.mxu0 %v1270
        %v2074 = vpop.f32.mrf.mxu0
        %v2075 = vadd.f32 %v1934, %v2074
        %2076 = vmatmul.f32.gmra.mxu0 %v1276
        %v2077 = vpop.f32.mrf.mxu0
        %v2078 = vadd.f32 %v1934, %v2077
        %2079 = vmatmul.f32.gmra.mxu0 %v1282
        %v2080 = vpop.f32.mrf.mxu0
        %v2081 = vadd.f32 %v1934, %v2080
        %2082 = vmatmul.f32.gmra.mxu0 %v1288
        %v2083 = vpop.f32.mrf.mxu0
        %v2084 = vadd.f32 %v1934, %v2083
        %2085 = vmatmul.f32.gmra.mxu0 %v1294
        %v2086 = vpop.f32.mrf.mxu0
        %v2087 = vadd.f32 %v1934, %v2086
        %2088 = vmatmul.f32.gmra.mxu0 %v1300
        %v2089 = vpop.f32.mrf.mxu0
        %v2090 = vadd.f32 %v1934, %v2089
        %2091 = vmatmul.f32.gmra.mxu0 %v1306
        %v2092 = vpop.f32.mrf.mxu0
        %v2093 = vadd.f32 %v1934, %v2092
        %2094 = vmatmul.f32.gmra.mxu0 %v1312
        %v2095 = vpop.f32.mrf.mxu0
        %v2096 = vadd.f32 %v1934, %v2095
        %2097 = vmatmul.f32.gmra.mxu0 %v1318
        %v2098 = vpop.f32.mrf.mxu0
        %v2099 = vadd.f32 %v1934, %v2098
        %2100 = vmatmul.f32.gmra.mxu0 %v1324
        %v2101 = vpop.f32.mrf.mxu0
        %v2102 = vadd.f32 %v1934, %v2101
        %2103 = vmatmul.f32.gmra.mxu0 %v1330
        %v2104 = vpop.f32.mrf.mxu0
        %v2105 = vadd.f32 %v1934, %v2104
        %2106 = vmatmul.f32.gmra.mxu0 %v1336
        %v2107 = vpop.f32.mrf.mxu0
        %v2108 = vadd.f32 %v1934, %v2107
        %2109 = vmatmul.f32.gmra.mxu0 %v1342
        %v2110 = vpop.f32.mrf.mxu0
        %v2111 = vadd.f32 %v1934, %v2110
        %2112 = vmatmul.f32.gmra.mxu0 %v1348
        %v2113 = vpop.f32.mrf.mxu0
        %v2114 = vadd.f32 %v1934, %v2113
        %2115 = vmatmul.f32.gmra.mxu0 %v1354
        %v2116 = vpop.f32.mrf.mxu0
        %v2117 = vadd.f32 %v1934, %v2116
        %2118 = vmatmul.f32.gmra.mxu0 %v1360
        %v2119 = vpop.f32.mrf.mxu0
        %v2120 = vadd.f32 %v1934, %v2119
        %2121 = vmatmul.f32.gmra.mxu0 %v1366
        %v2122 = vpop.f32.mrf.mxu0
        %v2123 = vadd.f32 %v1934, %v2122
        %2124 = vmatmul.f32.gmra.mxu0 %v1372
        %v2125 = vpop.f32.mrf.mxu0
        %v2126 = vadd.f32 %v1934, %v2125
        %2127 = vmatmul.f32.gmra.mxu0 %v1378
        %v2128 = vpop.f32.mrf.mxu0
        %v2129 = vadd.f32 %v1934, %v2128
        %2130 = vmatmul.f32.gmra.mxu0 %v1384
        %v2131 = vpop.f32.mrf.mxu0
        %v2132 = vadd.f32 %v1934, %v2131
        %2133 = vmatmul.f32.gmra.mxu0 %v1390
        %v2134 = vpop.f32.mrf.mxu0
        %v2135 = vadd.f32 %v1934, %v2134
        %2136 = vmatmul.f32.gmra.mxu0 %v1396
        %v2137 = vpop.f32.mrf.mxu0
        %v2138 = vadd.f32 %v1934, %v2137
        %2139 = vmatmul.f32.gmra.mxu0 %v1402
        %v2140 = vpop.f32.mrf.mxu0
        %v2141 = vadd.f32 %v1934, %v2140
        %2142 = vmatmul.f32.gmra.mxu0 %v1408
        %v2143 = vpop.f32.mrf.mxu0
        %v2144 = vadd.f32 %v1934, %v2143
        %2145 = vmatmul.f32.gmra.mxu0 %v1414
        %v2146 = vpop.f32.mrf.mxu0
        %v2147 = vadd.f32 %v1934, %v2146
        %2148 = vmatmul.f32.gmra.mxu0 %v1420
        %v2149 = vpop.f32.mrf.mxu0
        %v2150 = vadd.f32 %v1934, %v2149
        %2151 = vmatmul.f32.gmra.mxu0 %v1426
        %v2152 = vpop.f32.mrf.mxu0
        %v2153 = vadd.f32 %v1934, %v2152
        %2154 = vmatmul.f32.gmra.mxu0 %v1432
        %v2155 = vpop.f32.mrf.mxu0
        %v2156 = vadd.f32 %v1934, %v2155
        %2157 = vmatmul.f32.gmra.mxu0 %v1438
        %v2158 = vpop.f32.mrf.mxu0
        %v2159 = vadd.f32 %v1934, %v2158
        %2160 = vmatmul.f32.gmra.mxu0 %v1444
        %v2161 = vpop.f32.mrf.mxu0
        %v2162 = vadd.f32 %v1934, %v2161
        %2163 = vmatmul.f32.gmra.mxu0 %v1450
        %v2164 = vpop.f32.mrf.mxu0
        %v2165 = vadd.f32 %v1934, %v2164
        %2166 = vmatmul.f32.gmra.mxu0 %v1456
        %v2167 = vpop.f32.mrf.mxu0
        %v2168 = vadd.f32 %v1934, %v2167
        %2169 = vdwg.mxu0
        %2170 = vmatpush.msra.mxu0 %v1617
        %2171 = vmatpush.msra.mxu0 %v1612
        %2172 = vmatpush.msra.mxu0 %v1607
        %2173 = vmatpush.msra.mxu0 %v1602
        %2174 = vmatpush.msra.mxu0 %v1597
        %2175 = vmatpush.msra.mxu0 %v1592
        %2176 = vmatpush.msra.mxu0 %v1587
        %2177 = vmatpush.msra.mxu0 %v1582
        %2178 = vmatpush.msra.mxu0 %v1577
        %2179 = vmatpush.msra.mxu0 %v1572
        %2180 = vmatpush.msra.mxu0 %v1567
        %2181 = vmatpush.msra.mxu0 %v1562
        %2182 = vmatpush.msra.mxu0 %v1557
        %2183 = vmatpush.msra.mxu0 %v1552
        %2184 = vmatpush.msra.mxu0 %v1547
        %2185 = vmatpush.msra.mxu0 %v1542
        %2186 = vmatmul.f32.gmra.mxu0 %v1271
        %v2187 = vpop.f32.mrf.mxu0
        %v2188 = vadd.f32 %v2075, %v2187
        %2189 = vmatmul.f32.gmra.mxu0 %v1277
        %v2190 = vpop.f32.mrf.mxu0
        %v2191 = vadd.f32 %v2078, %v2190
        %2192 = vmatmul.f32.gmra.mxu0 %v1283
        %v2193 = vpop.f32.mrf.mxu0
        %v2194 = vadd.f32 %v2081, %v2193
        %2195 = vmatmul.f32.gmra.mxu0 %v1289
        %v2196 = vpop.f32.mrf.mxu0
        %v2197 = vadd.f32 %v2084, %v2196
        %2198 = vmatmul.f32.gmra.mxu0 %v1295
        %v2199 = vpop.f32.mrf.mxu0
        %v2200 = vadd.f32 %v2087, %v2199
        %2201 = vmatmul.f32.gmra.mxu0 %v1301
        %v2202 = vpop.f32.mrf.mxu0
        %v2203 = vadd.f32 %v2090, %v2202
        %2204 = vmatmul.f32.gmra.mxu0 %v1307
        %v2205 = vpop.f32.mrf.mxu0
        %v2206 = vadd.f32 %v2093, %v2205
        %2207 = vmatmul.f32.gmra.mxu0 %v1313
        %v2208 = vpop.f32.mrf.mxu0
        %v2209 = vadd.f32 %v2096, %v2208
        %2210 = vmatmul.f32.gmra.mxu0 %v1319
        %v2211 = vpop.f32.mrf.mxu0
        %v2212 = vadd.f32 %v2099, %v2211
        %2213 = vmatmul.f32.gmra.mxu0 %v1325
        %v2214 = vpop.f32.mrf.mxu0
        %v2215 = vadd.f32 %v2102, %v2214
        %2216 = vmatmul.f32.gmra.mxu0 %v1331
        %v2217 = vpop.f32.mrf.mxu0
        %v2218 = vadd.f32 %v2105, %v2217
        %2219 = vmatmul.f32.gmra.mxu0 %v1337
        %v2220 = vpop.f32.mrf.mxu0
        %v2221 = vadd.f32 %v2108, %v2220
        %2222 = vmatmul.f32.gmra.mxu0 %v1343
        %v2223 = vpop.f32.mrf.mxu0
        %v2224 = vadd.f32 %v2111, %v2223
        %2225 = vmatmul.f32.gmra.mxu0 %v1349
        %v2226 = vpop.f32.mrf.mxu0
        %v2227 = vadd.f32 %v2114, %v2226
        %2228 = vmatmul.f32.gmra.mxu0 %v1355
        %v2229 = vpop.f32.mrf.mxu0
        %v2230 = vadd.f32 %v2117, %v2229
        %2231 = vmatmul.f32.gmra.mxu0 %v1361
        %v2232 = vpop.f32.mrf.mxu0
        %v2233 = vadd.f32 %v2120, %v2232
        %2234 = vmatmul.f32.gmra.mxu0 %v1367
        %v2235 = vpop.f32.mrf.mxu0
        %v2236 = vadd.f32 %v2123, %v2235
        %2237 = vmatmul.f32.gmra.mxu0 %v1373
        %v2238 = vpop.f32.mrf.mxu0
        %v2239 = vadd.f32 %v2126, %v2238
        %2240 = vmatmul.f32.gmra.mxu0 %v1379
        %v2241 = vpop.f32.mrf.mxu0
        %v2242 = vadd.f32 %v2129, %v2241
        %2243 = vmatmul.f32.gmra.mxu0 %v1385
        %v2244 = vpop.f32.mrf.mxu0
        %v2245 = vadd.f32 %v2132, %v2244
        %2246 = vmatmul.f32.gmra.mxu0 %v1391
        %v2247 = vpop.f32.mrf.mxu0
        %v2248 = vadd.f32 %v2135, %v2247
        %2249 = vmatmul.f32.gmra.mxu0 %v1397
        %v2250 = vpop.f32.mrf.mxu0
        %v2251 = vadd.f32 %v2138, %v2250
        %2252 = vmatmul.f32.gmra.mxu0 %v1403
        %v2253 = vpop.f32.mrf.mxu0
        %v2254 = vadd.f32 %v2141, %v2253
        %2255 = vmatmul.f32.gmra.mxu0 %v1409
        %v2256 = vpop.f32.mrf.mxu0
        %v2257 = vadd.f32 %v2144, %v2256
        %2258 = vmatmul.f32.gmra.mxu0 %v1415
        %v2259 = vpop.f32.mrf.mxu0
        %v2260 = vadd.f32 %v2147, %v2259
        %2261 = vmatmul.f32.gmra.mxu0 %v1421
        %v2262 = vpop.f32.mrf.mxu0
        %v2263 = vadd.f32 %v2150, %v2262
        %2264 = vmatmul.f32.gmra.mxu0 %v1427
        %v2265 = vpop.f32.mrf.mxu0
        %v2266 = vadd.f32 %v2153, %v2265
        %2267 = vmatmul.f32.gmra.mxu0 %v1433
        %v2268 = vpop.f32.mrf.mxu0
        %v2269 = vadd.f32 %v2156, %v2268
        %2270 = vmatmul.f32.gmra.mxu0 %v1439
        %v2271 = vpop.f32.mrf.mxu0
        %v2272 = vadd.f32 %v2159, %v2271
        %2273 = vmatmul.f32.gmra.mxu0 %v1445
        %v2274 = vpop.f32.mrf.mxu0
        %v2275 = vadd.f32 %v2162, %v2274
        %2276 = vmatmul.f32.gmra.mxu0 %v1451
        %v2277 = vpop.f32.mrf.mxu0
        %v2278 = vadd.f32 %v2165, %v2277
        %2279 = vmatmul.f32.gmra.mxu0 %v1457
        %v2280 = vpop.f32.mrf.mxu0
        %v2281 = vadd.f32 %v2168, %v2280
        %2282 = vdwg.mxu0
        %2283 = vmatpush.msra.mxu0 %v1697
        %2284 = vmatpush.msra.mxu0 %v1692
        %2285 = vmatpush.msra.mxu0 %v1687
        %2286 = vmatpush.msra.mxu0 %v1682
        %2287 = vmatpush.msra.mxu0 %v1677
        %2288 = vmatpush.msra.mxu0 %v1672
        %2289 = vmatpush.msra.mxu0 %v1667
        %2290 = vmatpush.msra.mxu0 %v1662
        %2291 = vmatpush.msra.mxu0 %v1657
        %2292 = vmatpush.msra.mxu0 %v1652
        %2293 = vmatpush.msra.mxu0 %v1647
        %2294 = vmatpush.msra.mxu0 %v1642
        %2295 = vmatpush.msra.mxu0 %v1637
        %2296 = vmatpush.msra.mxu0 %v1632
        %2297 = vmatpush.msra.mxu0 %v1627
        %2298 = vmatpush.msra.mxu0 %v1622
        %2299 = vmatmul.f32.gmra.mxu0 %v1272
        %v2300 = vpop.f32.mrf.mxu0
        %v2301 = vadd.f32 %v2188, %v2300
        %2302 = vmatmul.f32.gmra.mxu0 %v1278
        %v2303 = vpop.f32.mrf.mxu0
        %v2304 = vadd.f32 %v2191, %v2303
        %2305 = vmatmul.f32.gmra.mxu0 %v1284
        %v2306 = vpop.f32.mrf.mxu0
        %v2307 = vadd.f32 %v2194, %v2306
        %2308 = vmatmul.f32.gmra.mxu0 %v1290
        %v2309 = vpop.f32.mrf.mxu0
        %v2310 = vadd.f32 %v2197, %v2309
        %2311 = vmatmul.f32.gmra.mxu0 %v1296
        %v2312 = vpop.f32.mrf.mxu0
        %v2313 = vadd.f32 %v2200, %v2312
        %2314 = vmatmul.f32.gmra.mxu0 %v1302
        %v2315 = vpop.f32.mrf.mxu0
        %v2316 = vadd.f32 %v2203, %v2315
        %2317 = vmatmul.f32.gmra.mxu0 %v1308
        %v2318 = vpop.f32.mrf.mxu0
        %v2319 = vadd.f32 %v2206, %v2318
        %2320 = vmatmul.f32.gmra.mxu0 %v1314
        %v2321 = vpop.f32.mrf.mxu0
        %v2322 = vadd.f32 %v2209, %v2321
        %2323 = vmatmul.f32.gmra.mxu0 %v1320
        %v2324 = vpop.f32.mrf.mxu0
        %v2325 = vadd.f32 %v2212, %v2324
        %2326 = vmatmul.f32.gmra.mxu0 %v1326
        %v2327 = vpop.f32.mrf.mxu0
        %v2328 = vadd.f32 %v2215, %v2327
        %2329 = vmatmul.f32.gmra.mxu0 %v1332
        %v2330 = vpop.f32.mrf.mxu0
        %v2331 = vadd.f32 %v2218, %v2330
        %2332 = vmatmul.f32.gmra.mxu0 %v1338
        %v2333 = vpop.f32.mrf.mxu0
        %v2334 = vadd.f32 %v2221, %v2333
        %2335 = vmatmul.f32.gmra.mxu0 %v1344
        %v2336 = vpop.f32.mrf.mxu0
        %v2337 = vadd.f32 %v2224, %v2336
        %2338 = vmatmul.f32.gmra.mxu0 %v1350
        %v2339 = vpop.f32.mrf.mxu0
        %v2340 = vadd.f32 %v2227, %v2339
        %2341 = vmatmul.f32.gmra.mxu0 %v1356
        %v2342 = vpop.f32.mrf.mxu0
        %v2343 = vadd.f32 %v2230, %v2342
        %2344 = vmatmul.f32.gmra.mxu0 %v1362
        %v2345 = vpop.f32.mrf.mxu0
        %v2346 = vadd.f32 %v2233, %v2345
        %2347 = vmatmul.f32.gmra.mxu0 %v1368
        %v2348 = vpop.f32.mrf.mxu0
        %v2349 = vadd.f32 %v2236, %v2348
        %2350 = vmatmul.f32.gmra.mxu0 %v1374
        %v2351 = vpop.f32.mrf.mxu0
        %v2352 = vadd.f32 %v2239, %v2351
        %2353 = vmatmul.f32.gmra.mxu0 %v1380
        %v2354 = vpop.f32.mrf.mxu0
        %v2355 = vadd.f32 %v2242, %v2354
        %2356 = vmatmul.f32.gmra.mxu0 %v1386
        %v2357 = vpop.f32.mrf.mxu0
        %v2358 = vadd.f32 %v2245, %v2357
        %2359 = vmatmul.f32.gmra.mxu0 %v1392
        %v2360 = vpop.f32.mrf.mxu0
        %v2361 = vadd.f32 %v2248, %v2360
        %2362 = vmatmul.f32.gmra.mxu0 %v1398
        %v2363 = vpop.f32.mrf.mxu0
        %v2364 = vadd.f32 %v2251, %v2363
        %2365 = vmatmul.f32.gmra.mxu0 %v1404
        %v2366 = vpop.f32.mrf.mxu0
        %v2367 = vadd.f32 %v2254, %v2366
        %2368 = vmatmul.f32.gmra.mxu0 %v1410
        %v2369 = vpop.f32.mrf.mxu0
        %v2370 = vadd.f32 %v2257, %v2369
        %2371 = vmatmul.f32.gmra.mxu0 %v1416
        %v2372 = vpop.f32.mrf.mxu0
        %v2373 = vadd.f32 %v2260, %v2372
        %2374 = vmatmul.f32.gmra.mxu0 %v1422
        %v2375 = vpop.f32.mrf.mxu0
        %v2376 = vadd.f32 %v2263, %v2375
        %2377 = vmatmul.f32.gmra.mxu0 %v1428
        %v2378 = vpop.f32.mrf.mxu0
        %v2379 = vadd.f32 %v2266, %v2378
        %2380 = vmatmul.f32.gmra.mxu0 %v1434
        %v2381 = vpop.f32.mrf.mxu0
        %v2382 = vadd.f32 %v2269, %v2381
        %2383 = vmatmul.f32.gmra.mxu0 %v1440
        %v2384 = vpop.f32.mrf.mxu0
        %v2385 = vadd.f32 %v2272, %v2384
        %2386 = vmatmul.f32.gmra.mxu0 %v1446
        %v2387 = vpop.f32.mrf.mxu0
        %v2388 = vadd.f32 %v2275, %v2387
        %2389 = vmatmul.f32.gmra.mxu0 %v1452
        %v2390 = vpop.f32.mrf.mxu0
        %v2391 = vadd.f32 %v2278, %v2390
        %2392 = vmatmul.f32.gmra.mxu0 %v1458
        %v2393 = vpop.f32.mrf.mxu0
        %v2394 = vadd.f32 %v2281, %v2393
        %2395 = vdwg.mxu0
        %2396 = vmatpush.msra.mxu0 %v1777
        %2397 = vmatpush.msra.mxu0 %v1772
        %2398 = vmatpush.msra.mxu0 %v1767
        %2399 = vmatpush.msra.mxu0 %v1762
        %2400 = vmatpush.msra.mxu0 %v1757
        %2401 = vmatpush.msra.mxu0 %v1752
        %2402 = vmatpush.msra.mxu0 %v1747
        %2403 = vmatpush.msra.mxu0 %v1742
        %2404 = vmatpush.msra.mxu0 %v1737
        %2405 = vmatpush.msra.mxu0 %v1732
        %2406 = vmatpush.msra.mxu0 %v1727
        %2407 = vmatpush.msra.mxu0 %v1722
        %2408 = vmatpush.msra.mxu0 %v1717
        %2409 = vmatpush.msra.mxu0 %v1712
        %2410 = vmatpush.msra.mxu0 %v1707
        %2411 = vmatpush.msra.mxu0 %v1702
        %2412 = vmatmul.f32.gmra.mxu0 %v1273
        %v2413 = vpop.f32.mrf.mxu0
        %v2414 = vadd.f32 %v2301, %v2413
        %2415 = vmatmul.f32.gmra.mxu0 %v1279
        %v2416 = vpop.f32.mrf.mxu0
        %v2417 = vadd.f32 %v2304, %v2416
        %2418 = vmatmul.f32.gmra.mxu0 %v1285
        %v2419 = vpop.f32.mrf.mxu0
        %v2420 = vadd.f32 %v2307, %v2419
        %2421 = vmatmul.f32.gmra.mxu0 %v1291
        %v2422 = vpop.f32.mrf.mxu0
        %v2423 = vadd.f32 %v2310, %v2422
        %2424 = vmatmul.f32.gmra.mxu0 %v1297
        %v2425 = vpop.f32.mrf.mxu0
        %v2426 = vadd.f32 %v2313, %v2425
        %2427 = vmatmul.f32.gmra.mxu0 %v1303
        %v2428 = vpop.f32.mrf.mxu0
        %v2429 = vadd.f32 %v2316, %v2428
        %2430 = vmatmul.f32.gmra.mxu0 %v1309
        %v2431 = vpop.f32.mrf.mxu0
        %v2432 = vadd.f32 %v2319, %v2431
        %2433 = vmatmul.f32.gmra.mxu0 %v1315
        %v2434 = vpop.f32.mrf.mxu0
        %v2435 = vadd.f32 %v2322, %v2434
        %2436 = vmatmul.f32.gmra.mxu0 %v1321
        %v2437 = vpop.f32.mrf.mxu0
        %v2438 = vadd.f32 %v2325, %v2437
        %2439 = vmatmul.f32.gmra.mxu0 %v1327
        %v2440 = vpop.f32.mrf.mxu0
        %v2441 = vadd.f32 %v2328, %v2440
        %2442 = vmatmul.f32.gmra.mxu0 %v1333
        %v2443 = vpop.f32.mrf.mxu0
        %v2444 = vadd.f32 %v2331, %v2443
        %2445 = vmatmul.f32.gmra.mxu0 %v1339
        %v2446 = vpop.f32.mrf.mxu0
        %v2447 = vadd.f32 %v2334, %v2446
        %2448 = vmatmul.f32.gmra.mxu0 %v1345
        %v2449 = vpop.f32.mrf.mxu0
        %v2450 = vadd.f32 %v2337, %v2449
        %2451 = vmatmul.f32.gmra.mxu0 %v1351
        %v2452 = vpop.f32.mrf.mxu0
        %v2453 = vadd.f32 %v2340, %v2452
        %2454 = vmatmul.f32.gmra.mxu0 %v1357
        %v2455 = vpop.f32.mrf.mxu0
        %v2456 = vadd.f32 %v2343, %v2455
        %2457 = vmatmul.f32.gmra.mxu0 %v1363
        %v2458 = vpop.f32.mrf.mxu0
        %v2459 = vadd.f32 %v2346, %v2458
        %2460 = vmatmul.f32.gmra.mxu0 %v1369
        %v2461 = vpop.f32.mrf.mxu0
        %v2462 = vadd.f32 %v2349, %v2461
        %2463 = vmatmul.f32.gmra.mxu0 %v1375
        %v2464 = vpop.f32.mrf.mxu0
        %v2465 = vadd.f32 %v2352, %v2464
        %2466 = vmatmul.f32.gmra.mxu0 %v1381
        %v2467 = vpop.f32.mrf.mxu0
        %v2468 = vadd.f32 %v2355, %v2467
        %2469 = vmatmul.f32.gmra.mxu0 %v1387
        %v2470 = vpop.f32.mrf.mxu0
        %v2471 = vadd.f32 %v2358, %v2470
        %2472 = vmatmul.f32.gmra.mxu0 %v1393
        %v2473 = vpop.f32.mrf.mxu0
        %v2474 = vadd.f32 %v2361, %v2473
        %2475 = vmatmul.f32.gmra.mxu0 %v1399
        %v2476 = vpop.f32.mrf.mxu0
        %v2477 = vadd.f32 %v2364, %v2476
        %2478 = vmatmul.f32.gmra.mxu0 %v1405
        %v2479 = vpop.f32.mrf.mxu0
        %v2480 = vadd.f32 %v2367, %v2479
        %2481 = vmatmul.f32.gmra.mxu0 %v1411
        %v2482 = vpop.f32.mrf.mxu0
        %v2483 = vadd.f32 %v2370, %v2482
        %2484 = vmatmul.f32.gmra.mxu0 %v1417
        %v2485 = vpop.f32.mrf.mxu0
        %v2486 = vadd.f32 %v2373, %v2485
        %2487 = vmatmul.f32.gmra.mxu0 %v1423
        %v2488 = vpop.f32.mrf.mxu0
        %v2489 = vadd.f32 %v2376, %v2488
        %2490 = vmatmul.f32.gmra.mxu0 %v1429
        %v2491 = vpop.f32.mrf.mxu0
        %v2492 = vadd.f32 %v2379, %v2491
        %2493 = vmatmul.f32.gmra.mxu0 %v1435
        %v2494 = vpop.f32.mrf.mxu0
        %v2495 = vadd.f32 %v2382, %v2494
        %2496 = vmatmul.f32.gmra.mxu0 %v1441
        %v2497 = vpop.f32.mrf.mxu0
        %v2498 = vadd.f32 %v2385, %v2497
        %2499 = vmatmul.f32.gmra.mxu0 %v1447
        %v2500 = vpop.f32.mrf.mxu0
        %v2501 = vadd.f32 %v2388, %v2500
        %2502 = vmatmul.f32.gmra.mxu0 %v1453
        %v2503 = vpop.f32.mrf.mxu0
        %v2504 = vadd.f32 %v2391, %v2503
        %2505 = vmatmul.f32.gmra.mxu0 %v1459
        %v2506 = vpop.f32.mrf.mxu0
        %v2507 = vadd.f32 %v2394, %v2506
        %2508 = vdwg.mxu0
        %2509 = vmatpush.msra.mxu0 %v1857
        %2510 = vmatpush.msra.mxu0 %v1852
        %2511 = vmatpush.msra.mxu0 %v1847
        %2512 = vmatpush.msra.mxu0 %v1842
        %2513 = vmatpush.msra.mxu0 %v1837
        %2514 = vmatpush.msra.mxu0 %v1832
        %2515 = vmatpush.msra.mxu0 %v1827
        %2516 = vmatpush.msra.mxu0 %v1822
        %2517 = vmatpush.msra.mxu0 %v1817
        %2518 = vmatpush.msra.mxu0 %v1812
        %2519 = vmatpush.msra.mxu0 %v1807
        %2520 = vmatpush.msra.mxu0 %v1802
        %2521 = vmatpush.msra.mxu0 %v1797
        %2522 = vmatpush.msra.mxu0 %v1792
        %2523 = vmatpush.msra.mxu0 %v1787
        %2524 = vmatpush.msra.mxu0 %v1782
        %2525 = vmatmul.f32.gmra.mxu0 %v1274
        %v2526 = vpop.f32.mrf.mxu0
        %v2527 = vadd.f32 %v2414, %v2526
        %2528 = vmatmul.f32.gmra.mxu0 %v1280
        %v2529 = vpop.f32.mrf.mxu0
        %v2530 = vadd.f32 %v2417, %v2529
        %2531 = vmatmul.f32.gmra.mxu0 %v1286
        %v2532 = vpop.f32.mrf.mxu0
        %v2533 = vadd.f32 %v2420, %v2532
        %2534 = vmatmul.f32.gmra.mxu0 %v1292
        %v2535 = vpop.f32.mrf.mxu0
        %v2536 = vadd.f32 %v2423, %v2535
        %2537 = vmatmul.f32.gmra.mxu0 %v1298
        %v2538 = vpop.f32.mrf.mxu0
        %v2539 = vadd.f32 %v2426, %v2538
        %2540 = vmatmul.f32.gmra.mxu0 %v1304
        %v2541 = vpop.f32.mrf.mxu0
        %v2542 = vadd.f32 %v2429, %v2541
        %2543 = vmatmul.f32.gmra.mxu0 %v1310
        %v2544 = vpop.f32.mrf.mxu0
        %v2545 = vadd.f32 %v2432, %v2544
        %2546 = vmatmul.f32.gmra.mxu0 %v1316
        %v2547 = vpop.f32.mrf.mxu0
        %v2548 = vadd.f32 %v2435, %v2547
        %2549 = vmatmul.f32.gmra.mxu0 %v1322
        %v2550 = vpop.f32.mrf.mxu0
        %v2551 = vadd.f32 %v2438, %v2550
        %2552 = vmatmul.f32.gmra.mxu0 %v1328
        %v2553 = vpop.f32.mrf.mxu0
        %v2554 = vadd.f32 %v2441, %v2553
        %2555 = vmatmul.f32.gmra.mxu0 %v1334
        %v2556 = vpop.f32.mrf.mxu0
        %v2557 = vadd.f32 %v2444, %v2556
        %2558 = vmatmul.f32.gmra.mxu0 %v1340
        %v2559 = vpop.f32.mrf.mxu0
        %v2560 = vadd.f32 %v2447, %v2559
        %2561 = vmatmul.f32.gmra.mxu0 %v1346
        %v2562 = vpop.f32.mrf.mxu0
        %v2563 = vadd.f32 %v2450, %v2562
        %2564 = vmatmul.f32.gmra.mxu0 %v1352
        %v2565 = vpop.f32.mrf.mxu0
        %v2566 = vadd.f32 %v2453, %v2565
        %2567 = vmatmul.f32.gmra.mxu0 %v1358
        %v2568 = vpop.f32.mrf.mxu0
        %v2569 = vadd.f32 %v2456, %v2568
        %2570 = vmatmul.f32.gmra.mxu0 %v1364
        %v2571 = vpop.f32.mrf.mxu0
        %v2572 = vadd.f32 %v2459, %v2571
        %2573 = vmatmul.f32.gmra.mxu0 %v1370
        %v2574 = vpop.f32.mrf.mxu0
        %v2575 = vadd.f32 %v2462, %v2574
        %2576 = vmatmul.f32.gmra.mxu0 %v1376
        %v2577 = vpop.f32.mrf.mxu0
        %v2578 = vadd.f32 %v2465, %v2577
        %2579 = vmatmul.f32.gmra.mxu0 %v1382
        %v2580 = vpop.f32.mrf.mxu0
        %v2581 = vadd.f32 %v2468, %v2580
        %2582 = vmatmul.f32.gmra.mxu0 %v1388
        %v2583 = vpop.f32.mrf.mxu0
        %v2584 = vadd.f32 %v2471, %v2583
        %2585 = vmatmul.f32.gmra.mxu0 %v1394
        %v2586 = vpop.f32.mrf.mxu0
        %v2587 = vadd.f32 %v2474, %v2586
        %2588 = vmatmul.f32.gmra.mxu0 %v1400
        %v2589 = vpop.f32.mrf.mxu0
        %v2590 = vadd.f32 %v2477, %v2589
        %2591 = vmatmul.f32.gmra.mxu0 %v1406
        %v2592 = vpop.f32.mrf.mxu0
        %v2593 = vadd.f32 %v2480, %v2592
        %2594 = vmatmul.f32.gmra.mxu0 %v1412
        %v2595 = vpop.f32.mrf.mxu0
        %v2596 = vadd.f32 %v2483, %v2595
        %2597 = vmatmul.f32.gmra.mxu0 %v1418
        %v2598 = vpop.f32.mrf.mxu0
        %v2599 = vadd.f32 %v2486, %v2598
        %2600 = vmatmul.f32.gmra.mxu0 %v1424
        %v2601 = vpop.f32.mrf.mxu0
        %v2602 = vadd.f32 %v2489, %v2601
        %2603 = vmatmul.f32.gmra.mxu0 %v1430
        %v2604 = vpop.f32.mrf.mxu0
        %v2605 = vadd.f32 %v2492, %v2604
        %2606 = vmatmul.f32.gmra.mxu0 %v1436
        %v2607 = vpop.f32.mrf.mxu0
        %v2608 = vadd.f32 %v2495, %v2607
        %2609 = vmatmul.f32.gmra.mxu0 %v1442
        %v2610 = vpop.f32.mrf.mxu0
        %v2611 = vadd.f32 %v2498, %v2610
        %2612 = vmatmul.f32.gmra.mxu0 %v1448
        %v2613 = vpop.f32.mrf.mxu0
        %v2614 = vadd.f32 %v2501, %v2613
        %2615 = vmatmul.f32.gmra.mxu0 %v1454
        %v2616 = vpop.f32.mrf.mxu0
        %v2617 = vadd.f32 %v2504, %v2616
        %2618 = vmatmul.f32.gmra.mxu0 %v1460
        %v2619 = vpop.f32.mrf.mxu0
        %v2620 = vadd.f32 %v2507, %v2619
        %2621 = vdwg.mxu0
        %2622 = vmatpush.msra.mxu0 0.0
        %2623 = vmatpush.msra.mxu0 0.0
        %2624 = vmatpush.msra.mxu0 %v2043
        %2625 = vmatpush.msra.mxu0 %v1922
        %2626 = vmatpush.msra.mxu0 %v1917
        %2627 = vmatpush.msra.mxu0 %v1912
        %2628 = vmatpush.msra.mxu0 %v1907
        %2629 = vmatpush.msra.mxu0 %v1902
        %2630 = vmatpush.msra.mxu0 %v1897
        %2631 = vmatpush.msra.mxu0 %v1892
        %2632 = vmatpush.msra.mxu0 %v1887
        %2633 = vmatpush.msra.mxu0 %v1882
        %2634 = vmatpush.msra.mxu0 %v1877
        %2635 = vmatpush.msra.mxu0 %v1872
        %2636 = vmatpush.msra.mxu0 %v1867
        %2637 = vmatpush.msra.mxu0 %v1862
        %2638 = vmatmul.f32.gmra.mxu0 %v1946
        %v2639 = vpop.f32.mrf.mxu0
        %v2640 = vadd.f32 %v2527, %v2639
        %2641 = vmatmul.f32.gmra.mxu0 %v1949
        %v2642 = vpop.f32.mrf.mxu0
        %v2643 = vadd.f32 %v2530, %v2642
        %2644 = vmatmul.f32.gmra.mxu0 %v1952
        %v2645 = vpop.f32.mrf.mxu0
        %v2646 = vadd.f32 %v2533, %v2645
        %2647 = vmatmul.f32.gmra.mxu0 %v1955
        %v2648 = vpop.f32.mrf.mxu0
        %v2649 = vadd.f32 %v2536, %v2648
        %2650 = vmatmul.f32.gmra.mxu0 %v1958
        %v2651 = vpop.f32.mrf.mxu0
        %v2652 = vadd.f32 %v2539, %v2651
        %2653 = vmatmul.f32.gmra.mxu0 %v1961
        %v2654 = vpop.f32.mrf.mxu0
        %v2655 = vadd.f32 %v2542, %v2654
        %2656 = vmatmul.f32.gmra.mxu0 %v1964
        %v2657 = vpop.f32.mrf.mxu0
        %v2658 = vadd.f32 %v2545, %v2657
        %2659 = vmatmul.f32.gmra.mxu0 %v1967
        %v2660 = vpop.f32.mrf.mxu0
        %v2661 = vadd.f32 %v2548, %v2660
        %2662 = vmatmul.f32.gmra.mxu0 %v1970
        %v2663 = vpop.f32.mrf.mxu0
        %v2664 = vadd.f32 %v2551, %v2663
        %2665 = vmatmul.f32.gmra.mxu0 %v1973
        %v2666 = vpop.f32.mrf.mxu0
        %v2667 = vadd.f32 %v2554, %v2666
        %2668 = vmatmul.f32.gmra.mxu0 %v1976
        %v2669 = vpop.f32.mrf.mxu0
        %v2670 = vadd.f32 %v2557, %v2669
        %2671 = vmatmul.f32.gmra.mxu0 %v1979
        %v2672 = vpop.f32.mrf.mxu0
        %v2673 = vadd.f32 %v2560, %v2672
        %2674 = vmatmul.f32.gmra.mxu0 %v1982
        %v2675 = vpop.f32.mrf.mxu0
        %v2676 = vadd.f32 %v2563, %v2675
        %2677 = vmatmul.f32.gmra.mxu0 %v1985
        %v2678 = vpop.f32.mrf.mxu0
        %v2679 = vadd.f32 %v2566, %v2678
        %2680 = vmatmul.f32.gmra.mxu0 %v1988
        %v2681 = vpop.f32.mrf.mxu0
        %v2682 = vadd.f32 %v2569, %v2681
        %2683 = vmatmul.f32.gmra.mxu0 %v1991
        %v2684 = vpop.f32.mrf.mxu0
        %v2685 = vadd.f32 %v2572, %v2684
        %2686 = vmatmul.f32.gmra.mxu0 %v1994
        %v2687 = vpop.f32.mrf.mxu0
        %v2688 = vadd.f32 %v2575, %v2687
        %2689 = vmatmul.f32.gmra.mxu0 %v1997
        %v2690 = vpop.f32.mrf.mxu0
        %v2691 = vadd.f32 %v2578, %v2690
        %2692 = vmatmul.f32.gmra.mxu0 %v2000
        %v2693 = vpop.f32.mrf.mxu0
        %v2694 = vadd.f32 %v2581, %v2693
        %2695 = vmatmul.f32.gmra.mxu0 %v2003
        %v2696 = vpop.f32.mrf.mxu0
        %v2697 = vadd.f32 %v2584, %v2696
        %2698 = vmatmul.f32.gmra.mxu0 %v2006
        %v2699 = vpop.f32.mrf.mxu0
        %v2700 = vadd.f32 %v2587, %v2699
        %2701 = vmatmul.f32.gmra.mxu0 %v2009
        %v2702 = vpop.f32.mrf.mxu0
        %v2703 = vadd.f32 %v2590, %v2702
        %2704 = vmatmul.f32.gmra.mxu0 %v2012
        %v2705 = vpop.f32.mrf.mxu0
        %v2706 = vadd.f32 %v2593, %v2705
        %2707 = vmatmul.f32.gmra.mxu0 %v2015
        %v2708 = vpop.f32.mrf.mxu0
        %v2709 = vadd.f32 %v2596, %v2708
        %2710 = vmatmul.f32.gmra.mxu0 %v2018
        %v2711 = vpop.f32.mrf.mxu0
        %v2712 = vadd.f32 %v2599, %v2711
        %2713 = vmatmul.f32.gmra.mxu0 %v2021
        %v2714 = vpop.f32.mrf.mxu0
        %v2715 = vadd.f32 %v2602, %v2714
        %2716 = vmatmul.f32.gmra.mxu0 %v2024
        %v2717 = vpop.f32.mrf.mxu0
        %v2718 = vadd.f32 %v2605, %v2717
        %2719 = vmatmul.f32.gmra.mxu0 %v2027
        %v2720 = vpop.f32.mrf.mxu0
        %v2721 = vadd.f32 %v2608, %v2720
        %2722 = vmatmul.f32.gmra.mxu0 %v2030
        %v2723 = vpop.f32.mrf.mxu0
        %v2724 = vadd.f32 %v2611, %v2723
        %2725 = vmatmul.f32.gmra.mxu0 %v2033
        %v2726 = vpop.f32.mrf.mxu0
        %v2727 = vadd.f32 %v2614, %v2726
        %2728 = vmatmul.f32.gmra.mxu0 %v2036
        %v2729 = vpop.f32.mrf.mxu0
        %v2730 = vadd.f32 %v2617, %v2729
        %2731 = vmatmul.f32.gmra.mxu0 %v2039
        %v2732 = vpop.f32.mrf.mxu0
        %v2733 = vadd.f32 %v2620, %v2732
        %2734 = vdwg.mxu0
        %2735 = vmatpush.msra.mxu0 %v1538
        %2736 = vmatpush.msra.mxu0 %v1533
        %2737 = vmatpush.msra.mxu0 %v1528
        %2738 = vmatpush.msra.mxu0 %v1523
        %2739 = vmatpush.msra.mxu0 %v1518
        %2740 = vmatpush.msra.mxu0 %v1513
        %2741 = vmatpush.msra.mxu0 %v1508
        %2742 = vmatpush.msra.mxu0 %v1503
        %2743 = vmatpush.msra.mxu0 %v1498
        %2744 = vmatpush.msra.mxu0 %v1493
        %2745 = vmatpush.msra.mxu0 %v1488
        %2746 = vmatpush.msra.mxu0 %v1483
        %2747 = vmatpush.msra.mxu0 %v1478
        %2748 = vmatpush.msra.mxu0 %v1473
        %2749 = vmatpush.msra.mxu0 %v1468
        %2750 = vmatpush.msra.mxu0 %v1463
        %2751 = vmatmul.f32.gmra.mxu0 %v1270
        %v2752 = vpop.f32.mrf.mxu0
        %v2753 = vadd.f32 %v1935, %v2752
        %2754 = vmatmul.f32.gmra.mxu0 %v1276
        %v2755 = vpop.f32.mrf.mxu0
        %v2756 = vadd.f32 %v1935, %v2755
        %2757 = vmatmul.f32.gmra.mxu0 %v1282
        %v2758 = vpop.f32.mrf.mxu0
        %v2759 = vadd.f32 %v1935, %v2758
        %2760 = vmatmul.f32.gmra.mxu0 %v1288
        %v2761 = vpop.f32.mrf.mxu0
        %v2762 = vadd.f32 %v1935, %v2761
        %2763 = vmatmul.f32.gmra.mxu0 %v1294
        %v2764 = vpop.f32.mrf.mxu0
        %v2765 = vadd.f32 %v1935, %v2764
        %2766 = vmatmul.f32.gmra.mxu0 %v1300
        %v2767 = vpop.f32.mrf.mxu0
        %v2768 = vadd.f32 %v1935, %v2767
        %2769 = vmatmul.f32.gmra.mxu0 %v1306
        %v2770 = vpop.f32.mrf.mxu0
        %v2771 = vadd.f32 %v1935, %v2770
        %2772 = vmatmul.f32.gmra.mxu0 %v1312
        %v2773 = vpop.f32.mrf.mxu0
        %v2774 = vadd.f32 %v1935, %v2773
        %2775 = vmatmul.f32.gmra.mxu0 %v1318
        %v2776 = vpop.f32.mrf.mxu0
        %v2777 = vadd.f32 %v1935, %v2776
        %2778 = vmatmul.f32.gmra.mxu0 %v1324
        %v2779 = vpop.f32.mrf.mxu0
        %v2780 = vadd.f32 %v1935, %v2779
        %2781 = vmatmul.f32.gmra.mxu0 %v1330
        %v2782 = vpop.f32.mrf.mxu0
        %v2783 = vadd.f32 %v1935, %v2782
        %2784 = vmatmul.f32.gmra.mxu0 %v1336
        %v2785 = vpop.f32.mrf.mxu0
        %v2786 = vadd.f32 %v1935, %v2785
        %2787 = vmatmul.f32.gmra.mxu0 %v1342
        %v2788 = vpop.f32.mrf.mxu0
        %v2789 = vadd.f32 %v1935, %v2788
        %2790 = vmatmul.f32.gmra.mxu0 %v1348
        %v2791 = vpop.f32.mrf.mxu0
        %v2792 = vadd.f32 %v1935, %v2791
        %2793 = vmatmul.f32.gmra.mxu0 %v1354
        %v2794 = vpop.f32.mrf.mxu0
        %v2795 = vadd.f32 %v1935, %v2794
        %2796 = vmatmul.f32.gmra.mxu0 %v1360
        %v2797 = vpop.f32.mrf.mxu0
        %v2798 = vadd.f32 %v1935, %v2797
        %2799 = vmatmul.f32.gmra.mxu0 %v1366
        %v2800 = vpop.f32.mrf.mxu0
        %v2801 = vadd.f32 %v1935, %v2800
        %2802 = vmatmul.f32.gmra.mxu0 %v1372
        %v2803 = vpop.f32.mrf.mxu0
        %v2804 = vadd.f32 %v1935, %v2803
        %2805 = vmatmul.f32.gmra.mxu0 %v1378
        %v2806 = vpop.f32.mrf.mxu0
        %v2807 = vadd.f32 %v1935, %v2806
        %2808 = vmatmul.f32.gmra.mxu0 %v1384
        %v2809 = vpop.f32.mrf.mxu0
        %v2810 = vadd.f32 %v1935, %v2809
        %2811 = vmatmul.f32.gmra.mxu0 %v1390
        %v2812 = vpop.f32.mrf.mxu0
        %v2813 = vadd.f32 %v1935, %v2812
        %2814 = vmatmul.f32.gmra.mxu0 %v1396
        %v2815 = vpop.f32.mrf.mxu0
        %v2816 = vadd.f32 %v1935, %v2815
        %2817 = vmatmul.f32.gmra.mxu0 %v1402
        %v2818 = vpop.f32.mrf.mxu0
        %v2819 = vadd.f32 %v1935, %v2818
        %2820 = vmatmul.f32.gmra.mxu0 %v1408
        %v2821 = vpop.f32.mrf.mxu0
        %v2822 = vadd.f32 %v1935, %v2821
        %2823 = vmatmul.f32.gmra.mxu0 %v1414
        %v2824 = vpop.f32.mrf.mxu0
        %v2825 = vadd.f32 %v1935, %v2824
        %2826 = vmatmul.f32.gmra.mxu0 %v1420
        %v2827 = vpop.f32.mrf.mxu0
        %v2828 = vadd.f32 %v1935, %v2827
        %2829 = vmatmul.f32.gmra.mxu0 %v1426
        %v2830 = vpop.f32.mrf.mxu0
        %v2831 = vadd.f32 %v1935, %v2830
        %2832 = vmatmul.f32.gmra.mxu0 %v1432
        %v2833 = vpop.f32.mrf.mxu0
        %v2834 = vadd.f32 %v1935, %v2833
        %2835 = vmatmul.f32.gmra.mxu0 %v1438
        %v2836 = vpop.f32.mrf.mxu0
        %v2837 = vadd.f32 %v1935, %v2836
        %2838 = vmatmul.f32.gmra.mxu0 %v1444
        %v2839 = vpop.f32.mrf.mxu0
        %v2840 = vadd.f32 %v1935, %v2839
        %2841 = vmatmul.f32.gmra.mxu0 %v1450
        %v2842 = vpop.f32.mrf.mxu0
        %v2843 = vadd.f32 %v1935, %v2842
        %2844 = vmatmul.f32.gmra.mxu0 %v1456
        %v2845 = vpop.f32.mrf.mxu0
        %v2846 = vadd.f32 %v1935, %v2845
        %2847 = vdwg.mxu0
        %2848 = vmatpush.msra.mxu0 %v1618
        %2849 = vmatpush.msra.mxu0 %v1613
        %2850 = vmatpush.msra.mxu0 %v1608
        %2851 = vmatpush.msra.mxu0 %v1603
        %2852 = vmatpush.msra.mxu0 %v1598
        %2853 = vmatpush.msra.mxu0 %v1593
        %2854 = vmatpush.msra.mxu0 %v1588
        %2855 = vmatpush.msra.mxu0 %v1583
        %2856 = vmatpush.msra.mxu0 %v1578
        %2857 = vmatpush.msra.mxu0 %v1573
        %2858 = vmatpush.msra.mxu0 %v1568
        %2859 = vmatpush.msra.mxu0 %v1563
        %2860 = vmatpush.msra.mxu0 %v1558
        %2861 = vmatpush.msra.mxu0 %v1553
        %2862 = vmatpush.msra.mxu0 %v1548
        %2863 = vmatpush.msra.mxu0 %v1543
        %2864 = vmatmul.f32.gmra.mxu0 %v1271
        %v2865 = vpop.f32.mrf.mxu0
        %v2866 = vadd.f32 %v2753, %v2865
        %2867 = vmatmul.f32.gmra.mxu0 %v1277
        %v2868 = vpop.f32.mrf.mxu0
        %v2869 = vadd.f32 %v2756, %v2868
        %2870 = vmatmul.f32.gmra.mxu0 %v1283
        %v2871 = vpop.f32.mrf.mxu0
        %v2872 = vadd.f32 %v2759, %v2871
        %2873 = vmatmul.f32.gmra.mxu0 %v1289
        %v2874 = vpop.f32.mrf.mxu0
        %v2875 = vadd.f32 %v2762, %v2874
        %2876 = vmatmul.f32.gmra.mxu0 %v1295
        %v2877 = vpop.f32.mrf.mxu0
        %v2878 = vadd.f32 %v2765, %v2877
        %2879 = vmatmul.f32.gmra.mxu0 %v1301
        %v2880 = vpop.f32.mrf.mxu0
        %v2881 = vadd.f32 %v2768, %v2880
        %2882 = vmatmul.f32.gmra.mxu0 %v1307
        %v2883 = vpop.f32.mrf.mxu0
        %v2884 = vadd.f32 %v2771, %v2883
        %2885 = vmatmul.f32.gmra.mxu0 %v1313
        %v2886 = vpop.f32.mrf.mxu0
        %v2887 = vadd.f32 %v2774, %v2886
        %2888 = vmatmul.f32.gmra.mxu0 %v1319
        %v2889 = vpop.f32.mrf.mxu0
        %v2890 = vadd.f32 %v2777, %v2889
        %2891 = vmatmul.f32.gmra.mxu0 %v1325
        %v2892 = vpop.f32.mrf.mxu0
        %v2893 = vadd.f32 %v2780, %v2892
        %2894 = vmatmul.f32.gmra.mxu0 %v1331
        %v2895 = vpop.f32.mrf.mxu0
        %v2896 = vadd.f32 %v2783, %v2895
        %2897 = vmatmul.f32.gmra.mxu0 %v1337
        %v2898 = vpop.f32.mrf.mxu0
        %v2899 = vadd.f32 %v2786, %v2898
        %2900 = vmatmul.f32.gmra.mxu0 %v1343
        %v2901 = vpop.f32.mrf.mxu0
        %v2902 = vadd.f32 %v2789, %v2901
        %2903 = vmatmul.f32.gmra.mxu0 %v1349
        %v2904 = vpop.f32.mrf.mxu0
        %v2905 = vadd.f32 %v2792, %v2904
        %2906 = vmatmul.f32.gmra.mxu0 %v1355
        %v2907 = vpop.f32.mrf.mxu0
        %v2908 = vadd.f32 %v2795, %v2907
        %2909 = vmatmul.f32.gmra.mxu0 %v1361
        %v2910 = vpop.f32.mrf.mxu0
        %v2911 = vadd.f32 %v2798, %v2910
        %2912 = vmatmul.f32.gmra.mxu0 %v1367
        %v2913 = vpop.f32.mrf.mxu0
        %v2914 = vadd.f32 %v2801, %v2913
        %2915 = vmatmul.f32.gmra.mxu0 %v1373
        %v2916 = vpop.f32.mrf.mxu0
        %v2917 = vadd.f32 %v2804, %v2916
        %2918 = vmatmul.f32.gmra.mxu0 %v1379
        %v2919 = vpop.f32.mrf.mxu0
        %v2920 = vadd.f32 %v2807, %v2919
        %2921 = vmatmul.f32.gmra.mxu0 %v1385
        %v2922 = vpop.f32.mrf.mxu0
        %v2923 = vadd.f32 %v2810, %v2922
        %2924 = vmatmul.f32.gmra.mxu0 %v1391
        %v2925 = vpop.f32.mrf.mxu0
        %v2926 = vadd.f32 %v2813, %v2925
        %2927 = vmatmul.f32.gmra.mxu0 %v1397
        %v2928 = vpop.f32.mrf.mxu0
        %v2929 = vadd.f32 %v2816, %v2928
        %2930 = vmatmul.f32.gmra.mxu0 %v1403
        %v2931 = vpop.f32.mrf.mxu0
        %v2932 = vadd.f32 %v2819, %v2931
        %2933 = vmatmul.f32.gmra.mxu0 %v1409
        %v2934 = vpop.f32.mrf.mxu0
        %v2935 = vadd.f32 %v2822, %v2934
        %2936 = vmatmul.f32.gmra.mxu0 %v1415
        %v2937 = vpop.f32.mrf.mxu0
        %v2938 = vadd.f32 %v2825, %v2937
        %2939 = vmatmul.f32.gmra.mxu0 %v1421
        %v2940 = vpop.f32.mrf.mxu0
        %v2941 = vadd.f32 %v2828, %v2940
        %2942 = vmatmul.f32.gmra.mxu0 %v1427
        %v2943 = vpop.f32.mrf.mxu0
        %v2944 = vadd.f32 %v2831, %v2943
        %2945 = vmatmul.f32.gmra.mxu0 %v1433
        %v2946 = vpop.f32.mrf.mxu0
        %v2947 = vadd.f32 %v2834, %v2946
        %2948 = vmatmul.f32.gmra.mxu0 %v1439
        %v2949 = vpop.f32.mrf.mxu0
        %v2950 = vadd.f32 %v2837, %v2949
        %2951 = vmatmul.f32.gmra.mxu0 %v1445
        %v2952 = vpop.f32.mrf.mxu0
        %v2953 = vadd.f32 %v2840, %v2952
        %2954 = vmatmul.f32.gmra.mxu0 %v1451
        %v2955 = vpop.f32.mrf.mxu0
        %v2956 = vadd.f32 %v2843, %v2955
        %2957 = vmatmul.f32.gmra.mxu0 %v1457
        %v2958 = vpop.f32.mrf.mxu0
        %v2959 = vadd.f32 %v2846, %v2958
        %2960 = vdwg.mxu0
        %2961 = vmatpush.msra.mxu0 %v1698
        %2962 = vmatpush.msra.mxu0 %v1693
        %2963 = vmatpush.msra.mxu0 %v1688
        %2964 = vmatpush.msra.mxu0 %v1683
        %2965 = vmatpush.msra.mxu0 %v1678
        %2966 = vmatpush.msra.mxu0 %v1673
        %2967 = vmatpush.msra.mxu0 %v1668
        %2968 = vmatpush.msra.mxu0 %v1663
        %2969 = vmatpush.msra.mxu0 %v1658
        %2970 = vmatpush.msra.mxu0 %v1653
        %2971 = vmatpush.msra.mxu0 %v1648
        %2972 = vmatpush.msra.mxu0 %v1643
        %2973 = vmatpush.msra.mxu0 %v1638
        %2974 = vmatpush.msra.mxu0 %v1633
        %2975 = vmatpush.msra.mxu0 %v1628
        %2976 = vmatpush.msra.mxu0 %v1623
        %2977 = vmatmul.f32.gmra.mxu0 %v1272
        %v2978 = vpop.f32.mrf.mxu0
        %v2979 = vadd.f32 %v2866, %v2978
        %2980 = vmatmul.f32.gmra.mxu0 %v1278
        %v2981 = vpop.f32.mrf.mxu0
        %v2982 = vadd.f32 %v2869, %v2981
        %2983 = vmatmul.f32.gmra.mxu0 %v1284
        %v2984 = vpop.f32.mrf.mxu0
        %v2985 = vadd.f32 %v2872, %v2984
        %2986 = vmatmul.f32.gmra.mxu0 %v1290
        %v2987 = vpop.f32.mrf.mxu0
        %v2988 = vadd.f32 %v2875, %v2987
        %2989 = vmatmul.f32.gmra.mxu0 %v1296
        %v2990 = vpop.f32.mrf.mxu0
        %v2991 = vadd.f32 %v2878, %v2990
        %2992 = vmatmul.f32.gmra.mxu0 %v1302
        %v2993 = vpop.f32.mrf.mxu0
        %v2994 = vadd.f32 %v2881, %v2993
        %2995 = vmatmul.f32.gmra.mxu0 %v1308
        %v2996 = vpop.f32.mrf.mxu0
        %v2997 = vadd.f32 %v2884, %v2996
        %2998 = vmatmul.f32.gmra.mxu0 %v1314
        %v2999 = vpop.f32.mrf.mxu0
        %v3000 = vadd.f32 %v2887, %v2999
        %3001 = vmatmul.f32.gmra.mxu0 %v1320
        %v3002 = vpop.f32.mrf.mxu0
        %v3003 = vadd.f32 %v2890, %v3002
        %3004 = vmatmul.f32.gmra.mxu0 %v1326
        %v3005 = vpop.f32.mrf.mxu0
        %v3006 = vadd.f32 %v2893, %v3005
        %3007 = vmatmul.f32.gmra.mxu0 %v1332
        %v3008 = vpop.f32.mrf.mxu0
        %v3009 = vadd.f32 %v2896, %v3008
        %3010 = vmatmul.f32.gmra.mxu0 %v1338
        %v3011 = vpop.f32.mrf.mxu0
        %v3012 = vadd.f32 %v2899, %v3011
        %3013 = vmatmul.f32.gmra.mxu0 %v1344
        %v3014 = vpop.f32.mrf.mxu0
        %v3015 = vadd.f32 %v2902, %v3014
        %3016 = vmatmul.f32.gmra.mxu0 %v1350
        %v3017 = vpop.f32.mrf.mxu0
        %v3018 = vadd.f32 %v2905, %v3017
        %3019 = vmatmul.f32.gmra.mxu0 %v1356
        %v3020 = vpop.f32.mrf.mxu0
        %v3021 = vadd.f32 %v2908, %v3020
        %3022 = vmatmul.f32.gmra.mxu0 %v1362
        %v3023 = vpop.f32.mrf.mxu0
        %v3024 = vadd.f32 %v2911, %v3023
        %3025 = vmatmul.f32.gmra.mxu0 %v1368
        %v3026 = vpop.f32.mrf.mxu0
        %v3027 = vadd.f32 %v2914, %v3026
        %3028 = vmatmul.f32.gmra.mxu0 %v1374
        %v3029 = vpop.f32.mrf.mxu0
        %v3030 = vadd.f32 %v2917, %v3029
        %3031 = vmatmul.f32.gmra.mxu0 %v1380
        %v3032 = vpop.f32.mrf.mxu0
        %v3033 = vadd.f32 %v2920, %v3032
        %3034 = vmatmul.f32.gmra.mxu0 %v1386
        %v3035 = vpop.f32.mrf.mxu0
        %v3036 = vadd.f32 %v2923, %v3035
        %3037 = vmatmul.f32.gmra.mxu0 %v1392
        %v3038 = vpop.f32.mrf.mxu0
        %v3039 = vadd.f32 %v2926, %v3038
        %3040 = vmatmul.f32.gmra.mxu0 %v1398
        %v3041 = vpop.f32.mrf.mxu0
        %v3042 = vadd.f32 %v2929, %v3041
        %3043 = vmatmul.f32.gmra.mxu0 %v1404
        %v3044 = vpop.f32.mrf.mxu0
        %v3045 = vadd.f32 %v2932, %v3044
        %3046 = vmatmul.f32.gmra.mxu0 %v1410
        %v3047 = vpop.f32.mrf.mxu0
        %v3048 = vadd.f32 %v2935, %v3047
        %3049 = vmatmul.f32.gmra.mxu0 %v1416
        %v3050 = vpop.f32.mrf.mxu0
        %v3051 = vadd.f32 %v2938, %v3050
        %3052 = vmatmul.f32.gmra.mxu0 %v1422
        %v3053 = vpop.f32.mrf.mxu0
        %v3054 = vadd.f32 %v2941, %v3053
        %3055 = vmatmul.f32.gmra.mxu0 %v1428
        %v3056 = vpop.f32.mrf.mxu0
        %v3057 = vadd.f32 %v2944, %v3056
        %3058 = vmatmul.f32.gmra.mxu0 %v1434
        %v3059 = vpop.f32.mrf.mxu0
        %v3060 = vadd.f32 %v2947, %v3059
        %3061 = vmatmul.f32.gmra.mxu0 %v1440
        %v3062 = vpop.f32.mrf.mxu0
        %v3063 = vadd.f32 %v2950, %v3062
        %3064 = vmatmul.f32.gmra.mxu0 %v1446
        %v3065 = vpop.f32.mrf.mxu0
        %v3066 = vadd.f32 %v2953, %v3065
        %3067 = vmatmul.f32.gmra.mxu0 %v1452
        %v3068 = vpop.f32.mrf.mxu0
        %v3069 = vadd.f32 %v2956, %v3068
        %3070 = vmatmul.f32.gmra.mxu0 %v1458
        %v3071 = vpop.f32.mrf.mxu0
        %v3072 = vadd.f32 %v2959, %v3071
        %3073 = vdwg.mxu0
        %3074 = vmatpush.msra.mxu0 %v1778
        %3075 = vmatpush.msra.mxu0 %v1773
        %3076 = vmatpush.msra.mxu0 %v1768
        %3077 = vmatpush.msra.mxu0 %v1763
        %3078 = vmatpush.msra.mxu0 %v1758
        %3079 = vmatpush.msra.mxu0 %v1753
        %3080 = vmatpush.msra.mxu0 %v1748
        %3081 = vmatpush.msra.mxu0 %v1743
        %3082 = vmatpush.msra.mxu0 %v1738
        %3083 = vmatpush.msra.mxu0 %v1733
        %3084 = vmatpush.msra.mxu0 %v1728
        %3085 = vmatpush.msra.mxu0 %v1723
        %3086 = vmatpush.msra.mxu0 %v1718
        %3087 = vmatpush.msra.mxu0 %v1713
        %3088 = vmatpush.msra.mxu0 %v1708
        %3089 = vmatpush.msra.mxu0 %v1703
        %3090 = vmatmul.f32.gmra.mxu0 %v1273
        %v3091 = vpop.f32.mrf.mxu0
        %v3092 = vadd.f32 %v2979, %v3091
        %3093 = vmatmul.f32.gmra.mxu0 %v1279
        %v3094 = vpop.f32.mrf.mxu0
        %v3095 = vadd.f32 %v2982, %v3094
        %3096 = vmatmul.f32.gmra.mxu0 %v1285
        %v3097 = vpop.f32.mrf.mxu0
        %v3098 = vadd.f32 %v2985, %v3097
        %3099 = vmatmul.f32.gmra.mxu0 %v1291
        %v3100 = vpop.f32.mrf.mxu0
        %v3101 = vadd.f32 %v2988, %v3100
        %3102 = vmatmul.f32.gmra.mxu0 %v1297
        %v3103 = vpop.f32.mrf.mxu0
        %v3104 = vadd.f32 %v2991, %v3103
        %3105 = vmatmul.f32.gmra.mxu0 %v1303
        %v3106 = vpop.f32.mrf.mxu0
        %v3107 = vadd.f32 %v2994, %v3106
        %3108 = vmatmul.f32.gmra.mxu0 %v1309
        %v3109 = vpop.f32.mrf.mxu0
        %v3110 = vadd.f32 %v2997, %v3109
        %3111 = vmatmul.f32.gmra.mxu0 %v1315
        %v3112 = vpop.f32.mrf.mxu0
        %v3113 = vadd.f32 %v3000, %v3112
        %3114 = vmatmul.f32.gmra.mxu0 %v1321
        %v3115 = vpop.f32.mrf.mxu0
        %v3116 = vadd.f32 %v3003, %v3115
        %3117 = vmatmul.f32.gmra.mxu0 %v1327
        %v3118 = vpop.f32.mrf.mxu0
        %v3119 = vadd.f32 %v3006, %v3118
        %3120 = vmatmul.f32.gmra.mxu0 %v1333
        %v3121 = vpop.f32.mrf.mxu0
        %v3122 = vadd.f32 %v3009, %v3121
        %3123 = vmatmul.f32.gmra.mxu0 %v1339
        %v3124 = vpop.f32.mrf.mxu0
        %v3125 = vadd.f32 %v3012, %v3124
        %3126 = vmatmul.f32.gmra.mxu0 %v1345
        %v3127 = vpop.f32.mrf.mxu0
        %v3128 = vadd.f32 %v3015, %v3127
        %3129 = vmatmul.f32.gmra.mxu0 %v1351
        %v3130 = vpop.f32.mrf.mxu0
        %v3131 = vadd.f32 %v3018, %v3130
        %3132 = vmatmul.f32.gmra.mxu0 %v1357
        %v3133 = vpop.f32.mrf.mxu0
        %v3134 = vadd.f32 %v3021, %v3133
        %3135 = vmatmul.f32.gmra.mxu0 %v1363
        %v3136 = vpop.f32.mrf.mxu0
        %v3137 = vadd.f32 %v3024, %v3136
        %3138 = vmatmul.f32.gmra.mxu0 %v1369
        %v3139 = vpop.f32.mrf.mxu0
        %v3140 = vadd.f32 %v3027, %v3139
        %3141 = vmatmul.f32.gmra.mxu0 %v1375
        %v3142 = vpop.f32.mrf.mxu0
        %v3143 = vadd.f32 %v3030, %v3142
        %3144 = vmatmul.f32.gmra.mxu0 %v1381
        %v3145 = vpop.f32.mrf.mxu0
        %v3146 = vadd.f32 %v3033, %v3145
        %3147 = vmatmul.f32.gmra.mxu0 %v1387
        %v3148 = vpop.f32.mrf.mxu0
        %v3149 = vadd.f32 %v3036, %v3148
        %3150 = vmatmul.f32.gmra.mxu0 %v1393
        %v3151 = vpop.f32.mrf.mxu0
        %v3152 = vadd.f32 %v3039, %v3151
        %3153 = vmatmul.f32.gmra.mxu0 %v1399
        %v3154 = vpop.f32.mrf.mxu0
        %v3155 = vadd.f32 %v3042, %v3154
        %3156 = vmatmul.f32.gmra.mxu0 %v1405
        %v3157 = vpop.f32.mrf.mxu0
        %v3158 = vadd.f32 %v3045, %v3157
        %3159 = vmatmul.f32.gmra.mxu0 %v1411
        %v3160 = vpop.f32.mrf.mxu0
        %v3161 = vadd.f32 %v3048, %v3160
        %3162 = vmatmul.f32.gmra.mxu0 %v1417
        %v3163 = vpop.f32.mrf.mxu0
        %v3164 = vadd.f32 %v3051, %v3163
        %3165 = vmatmul.f32.gmra.mxu0 %v1423
        %v3166 = vpop.f32.mrf.mxu0
        %v3167 = vadd.f32 %v3054, %v3166
        %3168 = vmatmul.f32.gmra.mxu0 %v1429
        %v3169 = vpop.f32.mrf.mxu0
        %v3170 = vadd.f32 %v3057, %v3169
        %3171 = vmatmul.f32.gmra.mxu0 %v1435
        %v3172 = vpop.f32.mrf.mxu0
        %v3173 = vadd.f32 %v3060, %v3172
        %3174 = vmatmul.f32.gmra.mxu0 %v1441
        %v3175 = vpop.f32.mrf.mxu0
        %v3176 = vadd.f32 %v3063, %v3175
        %3177 = vmatmul.f32.gmra.mxu0 %v1447
        %v3178 = vpop.f32.mrf.mxu0
        %v3179 = vadd.f32 %v3066, %v3178
        %3180 = vmatmul.f32.gmra.mxu0 %v1453
        %v3181 = vpop.f32.mrf.mxu0
        %v3182 = vadd.f32 %v3069, %v3181
        %3183 = vmatmul.f32.gmra.mxu0 %v1459
        %v3184 = vpop.f32.mrf.mxu0
        %v3185 = vadd.f32 %v3072, %v3184
        %3186 = vdwg.mxu0
        %3187 = vmatpush.msra.mxu0 %v1858
        %3188 = vmatpush.msra.mxu0 %v1853
        %3189 = vmatpush.msra.mxu0 %v1848
        %3190 = vmatpush.msra.mxu0 %v1843
        %3191 = vmatpush.msra.mxu0 %v1838
        %3192 = vmatpush.msra.mxu0 %v1833
        %3193 = vmatpush.msra.mxu0 %v1828
        %3194 = vmatpush.msra.mxu0 %v1823
        %3195 = vmatpush.msra.mxu0 %v1818
        %3196 = vmatpush.msra.mxu0 %v1813
        %3197 = vmatpush.msra.mxu0 %v1808
        %3198 = vmatpush.msra.mxu0 %v1803
        %3199 = vmatpush.msra.mxu0 %v1798
        %3200 = vmatpush.msra.mxu0 %v1793
        %3201 = vmatpush.msra.mxu0 %v1788
        %3202 = vmatpush.msra.mxu0 %v1783
        %3203 = vmatmul.f32.gmra.mxu0 %v1274
        %v3204 = vpop.f32.mrf.mxu0
        %v3205 = vadd.f32 %v3092, %v3204
        %3206 = vmatmul.f32.gmra.mxu0 %v1280
        %v3207 = vpop.f32.mrf.mxu0
        %v3208 = vadd.f32 %v3095, %v3207
        %3209 = vmatmul.f32.gmra.mxu0 %v1286
        %v3210 = vpop.f32.mrf.mxu0
        %v3211 = vadd.f32 %v3098, %v3210
        %3212 = vmatmul.f32.gmra.mxu0 %v1292
        %v3213 = vpop.f32.mrf.mxu0
        %v3214 = vadd.f32 %v3101, %v3213
        %3215 = vmatmul.f32.gmra.mxu0 %v1298
        %v3216 = vpop.f32.mrf.mxu0
        %v3217 = vadd.f32 %v3104, %v3216
        %3218 = vmatmul.f32.gmra.mxu0 %v1304
        %v3219 = vpop.f32.mrf.mxu0
        %v3220 = vadd.f32 %v3107, %v3219
        %3221 = vmatmul.f32.gmra.mxu0 %v1310
        %v3222 = vpop.f32.mrf.mxu0
        %v3223 = vadd.f32 %v3110, %v3222
        %3224 = vmatmul.f32.gmra.mxu0 %v1316
        %v3225 = vpop.f32.mrf.mxu0
        %v3226 = vadd.f32 %v3113, %v3225
        %3227 = vmatmul.f32.gmra.mxu0 %v1322
        %v3228 = vpop.f32.mrf.mxu0
        %v3229 = vadd.f32 %v3116, %v3228
        %3230 = vmatmul.f32.gmra.mxu0 %v1328
        %v3231 = vpop.f32.mrf.mxu0
        %v3232 = vadd.f32 %v3119, %v3231
        %3233 = vmatmul.f32.gmra.mxu0 %v1334
        %v3234 = vpop.f32.mrf.mxu0
        %v3235 = vadd.f32 %v3122, %v3234
        %3236 = vmatmul.f32.gmra.mxu0 %v1340
        %v3237 = vpop.f32.mrf.mxu0
        %v3238 = vadd.f32 %v3125, %v3237
        %3239 = vmatmul.f32.gmra.mxu0 %v1346
        %v3240 = vpop.f32.mrf.mxu0
        %v3241 = vadd.f32 %v3128, %v3240
        %3242 = vmatmul.f32.gmra.mxu0 %v1352
        %v3243 = vpop.f32.mrf.mxu0
        %v3244 = vadd.f32 %v3131, %v3243
        %3245 = vmatmul.f32.gmra.mxu0 %v1358
        %v3246 = vpop.f32.mrf.mxu0
        %v3247 = vadd.f32 %v3134, %v3246
        %3248 = vmatmul.f32.gmra.mxu0 %v1364
        %v3249 = vpop.f32.mrf.mxu0
        %v3250 = vadd.f32 %v3137, %v3249
        %3251 = vmatmul.f32.gmra.mxu0 %v1370
        %v3252 = vpop.f32.mrf.mxu0
        %v3253 = vadd.f32 %v3140, %v3252
        %3254 = vmatmul.f32.gmra.mxu0 %v1376
        %v3255 = vpop.f32.mrf.mxu0
        %v3256 = vadd.f32 %v3143, %v3255
        %3257 = vmatmul.f32.gmra.mxu0 %v1382
        %v3258 = vpop.f32.mrf.mxu0
        %v3259 = vadd.f32 %v3146, %v3258
        %3260 = vmatmul.f32.gmra.mxu0 %v1388
        %v3261 = vpop.f32.mrf.mxu0
        %v3262 = vadd.f32 %v3149, %v3261
        %3263 = vmatmul.f32.gmra.mxu0 %v1394
        %v3264 = vpop.f32.mrf.mxu0
        %v3265 = vadd.f32 %v3152, %v3264
        %3266 = vmatmul.f32.gmra.mxu0 %v1400
        %v3267 = vpop.f32.mrf.mxu0
        %v3268 = vadd.f32 %v3155, %v3267
        %3269 = vmatmul.f32.gmra.mxu0 %v1406
        %v3270 = vpop.f32.mrf.mxu0
        %v3271 = vadd.f32 %v3158, %v3270
        %3272 = vmatmul.f32.gmra.mxu0 %v1412
        %v3273 = vpop.f32.mrf.mxu0
        %v3274 = vadd.f32 %v3161, %v3273
        %3275 = vmatmul.f32.gmra.mxu0 %v1418
        %v3276 = vpop.f32.mrf.mxu0
        %v3277 = vadd.f32 %v3164, %v3276
        %3278 = vmatmul.f32.gmra.mxu0 %v1424
        %v3279 = vpop.f32.mrf.mxu0
        %v3280 = vadd.f32 %v3167, %v3279
        %3281 = vmatmul.f32.gmra.mxu0 %v1430
        %v3282 = vpop.f32.mrf.mxu0
        %v3283 = vadd.f32 %v3170, %v3282
        %3284 = vmatmul.f32.gmra.mxu0 %v1436
        %v3285 = vpop.f32.mrf.mxu0
        %v3286 = vadd.f32 %v3173, %v3285
        %3287 = vmatmul.f32.gmra.mxu0 %v1442
        %v3288 = vpop.f32.mrf.mxu0
        %v3289 = vadd.f32 %v3176, %v3288
        %3290 = vmatmul.f32.gmra.mxu0 %v1448
        %v3291 = vpop.f32.mrf.mxu0
        %v3292 = vadd.f32 %v3179, %v3291
        %3293 = vmatmul.f32.gmra.mxu0 %v1454
        %v3294 = vpop.f32.mrf.mxu0
        %v3295 = vadd.f32 %v3182, %v3294
        %3296 = vmatmul.f32.gmra.mxu0 %v1460
        %v3297 = vpop.f32.mrf.mxu0
        %v3298 = vadd.f32 %v3185, %v3297
        %3299 = vdwg.mxu0
        %3300 = vmatpush.msra.mxu0 0.0
        %3301 = vmatpush.msra.mxu0 0.0
        %3302 = vmatpush.msra.mxu0 %v2046
        %3303 = vmatpush.msra.mxu0 %v1923
        %3304 = vmatpush.msra.mxu0 %v1918
        %3305 = vmatpush.msra.mxu0 %v1913
        %3306 = vmatpush.msra.mxu0 %v1908
        %3307 = vmatpush.msra.mxu0 %v1903
        %3308 = vmatpush.msra.mxu0 %v1898
        %3309 = vmatpush.msra.mxu0 %v1893
        %3310 = vmatpush.msra.mxu0 %v1888
        %3311 = vmatpush.msra.mxu0 %v1883
        %3312 = vmatpush.msra.mxu0 %v1878
        %3313 = vmatpush.msra.mxu0 %v1873
        %3314 = vmatpush.msra.mxu0 %v1868
        %3315 = vmatpush.msra.mxu0 %v1863
        %3316 = vmatmul.f32.gmra.mxu0 %v1946
        %v3317 = vpop.f32.mrf.mxu0
        %v3318 = vadd.f32 %v3205, %v3317
        %3319 = vmatmul.f32.gmra.mxu0 %v1949
        %v3320 = vpop.f32.mrf.mxu0
        %v3321 = vadd.f32 %v3208, %v3320
        %3322 = vmatmul.f32.gmra.mxu0 %v1952
        %v3323 = vpop.f32.mrf.mxu0
        %v3324 = vadd.f32 %v3211, %v3323
        %3325 = vmatmul.f32.gmra.mxu0 %v1955
        %v3326 = vpop.f32.mrf.mxu0
        %v3327 = vadd.f32 %v3214, %v3326
        %3328 = vmatmul.f32.gmra.mxu0 %v1958
        %v3329 = vpop.f32.mrf.mxu0
        %v3330 = vadd.f32 %v3217, %v3329
        %3331 = vmatmul.f32.gmra.mxu0 %v1961
        %v3332 = vpop.f32.mrf.mxu0
        %v3333 = vadd.f32 %v3220, %v3332
        %3334 = vmatmul.f32.gmra.mxu0 %v1964
        %v3335 = vpop.f32.mrf.mxu0
        %v3336 = vadd.f32 %v3223, %v3335
        %3337 = vmatmul.f32.gmra.mxu0 %v1967
        %v3338 = vpop.f32.mrf.mxu0
        %v3339 = vadd.f32 %v3226, %v3338
        %3340 = vmatmul.f32.gmra.mxu0 %v1970
        %v3341 = vpop.f32.mrf.mxu0
        %v3342 = vadd.f32 %v3229, %v3341
        %3343 = vmatmul.f32.gmra.mxu0 %v1973
        %v3344 = vpop.f32.mrf.mxu0
        %v3345 = vadd.f32 %v3232, %v3344
        %3346 = vmatmul.f32.gmra.mxu0 %v1976
        %v3347 = vpop.f32.mrf.mxu0
        %v3348 = vadd.f32 %v3235, %v3347
        %3349 = vmatmul.f32.gmra.mxu0 %v1979
        %v3350 = vpop.f32.mrf.mxu0
        %v3351 = vadd.f32 %v3238, %v3350
        %3352 = vmatmul.f32.gmra.mxu0 %v1982
        %v3353 = vpop.f32.mrf.mxu0
        %v3354 = vadd.f32 %v3241, %v3353
        %3355 = vmatmul.f32.gmra.mxu0 %v1985
        %v3356 = vpop.f32.mrf.mxu0
        %v3357 = vadd.f32 %v3244, %v3356
        %3358 = vmatmul.f32.gmra.mxu0 %v1988
        %v3359 = vpop.f32.mrf.mxu0
        %v3360 = vadd.f32 %v3247, %v3359
        %3361 = vmatmul.f32.gmra.mxu0 %v1991
        %v3362 = vpop.f32.mrf.mxu0
        %v3363 = vadd.f32 %v3250, %v3362
        %3364 = vmatmul.f32.gmra.mxu0 %v1994
        %v3365 = vpop.f32.mrf.mxu0
        %v3366 = vadd.f32 %v3253, %v3365
        %3367 = vmatmul.f32.gmra.mxu0 %v1997
        %v3368 = vpop.f32.mrf.mxu0
        %v3369 = vadd.f32 %v3256, %v3368
        %3370 = vmatmul.f32.gmra.mxu0 %v2000
        %v3371 = vpop.f32.mrf.mxu0
        %v3372 = vadd.f32 %v3259, %v3371
        %3373 = vmatmul.f32.gmra.mxu0 %v2003
        %v3374 = vpop.f32.mrf.mxu0
        %v3375 = vadd.f32 %v3262, %v3374
        %3376 = vmatmul.f32.gmra.mxu0 %v2006
        %v3377 = vpop.f32.mrf.mxu0
        %v3378 = vadd.f32 %v3265, %v3377
        %3379 = vmatmul.f32.gmra.mxu0 %v2009
        %v3380 = vpop.f32.mrf.mxu0
        %v3381 = vadd.f32 %v3268, %v3380
        %3382 = vmatmul.f32.gmra.mxu0 %v2012
        %v3383 = vpop.f32.mrf.mxu0
        %v3384 = vadd.f32 %v3271, %v3383
        %3385 = vmatmul.f32.gmra.mxu0 %v2015
        %v3386 = vpop.f32.mrf.mxu0
        %v3387 = vadd.f32 %v3274, %v3386
        %3388 = vmatmul.f32.gmra.mxu0 %v2018
        %v3389 = vpop.f32.mrf.mxu0
        %v3390 = vadd.f32 %v3277, %v3389
        %3391 = vmatmul.f32.gmra.mxu0 %v2021
        %v3392 = vpop.f32.mrf.mxu0
        %v3393 = vadd.f32 %v3280, %v3392
        %3394 = vmatmul.f32.gmra.mxu0 %v2024
        %v3395 = vpop.f32.mrf.mxu0
        %v3396 = vadd.f32 %v3283, %v3395
        %3397 = vmatmul.f32.gmra.mxu0 %v2027
        %v3398 = vpop.f32.mrf.mxu0
        %v3399 = vadd.f32 %v3286, %v3398
        %3400 = vmatmul.f32.gmra.mxu0 %v2030
        %v3401 = vpop.f32.mrf.mxu0
        %v3402 = vadd.f32 %v3289, %v3401
        %3403 = vmatmul.f32.gmra.mxu0 %v2033
        %v3404 = vpop.f32.mrf.mxu0
        %v3405 = vadd.f32 %v3292, %v3404
        %3406 = vmatmul.f32.gmra.mxu0 %v2036
        %v3407 = vpop.f32.mrf.mxu0
        %v3408 = vadd.f32 %v3295, %v3407
        %3409 = vmatmul.f32.gmra.mxu0 %v2039
        %v3410 = vpop.f32.mrf.mxu0
        %v3411 = vadd.f32 %v3298, %v3410
        %3412 = vdwg.mxu0
        %3413 = vmatpush.msra.mxu0 %v1539
        %3414 = vmatpush.msra.mxu0 %v1534
        %3415 = vmatpush.msra.mxu0 %v1529
        %3416 = vmatpush.msra.mxu0 %v1524
        %3417 = vmatpush.msra.mxu0 %v1519
        %3418 = vmatpush.msra.mxu0 %v1514
        %3419 = vmatpush.msra.mxu0 %v1509
        %3420 = vmatpush.msra.mxu0 %v1504
        %3421 = vmatpush.msra.mxu0 %v1499
        %3422 = vmatpush.msra.mxu0 %v1494
        %3423 = vmatpush.msra.mxu0 %v1489
        %3424 = vmatpush.msra.mxu0 %v1484
        %3425 = vmatpush.msra.mxu0 %v1479
        %3426 = vmatpush.msra.mxu0 %v1474
        %3427 = vmatpush.msra.mxu0 %v1469
        %3428 = vmatpush.msra.mxu0 %v1464
        %3429 = vmatmul.f32.gmra.mxu0 %v1270
        %v3430 = vpop.f32.mrf.mxu0
        %v3431 = vadd.f32 %v1936, %v3430
        %3432 = vmatmul.f32.gmra.mxu0 %v1276
        %v3433 = vpop.f32.mrf.mxu0
        %v3434 = vadd.f32 %v1936, %v3433
        %3435 = vmatmul.f32.gmra.mxu0 %v1282
        %v3436 = vpop.f32.mrf.mxu0
        %v3437 = vadd.f32 %v1936, %v3436
        %3438 = vmatmul.f32.gmra.mxu0 %v1288
        %v3439 = vpop.f32.mrf.mxu0
        %v3440 = vadd.f32 %v1936, %v3439
        %3441 = vmatmul.f32.gmra.mxu0 %v1294
        %v3442 = vpop.f32.mrf.mxu0
        %v3443 = vadd.f32 %v1936, %v3442
        %3444 = vmatmul.f32.gmra.mxu0 %v1300
        %v3445 = vpop.f32.mrf.mxu0
        %v3446 = vadd.f32 %v1936, %v3445
        %3447 = vmatmul.f32.gmra.mxu0 %v1306
        %v3448 = vpop.f32.mrf.mxu0
        %v3449 = vadd.f32 %v1936, %v3448
        %3450 = vmatmul.f32.gmra.mxu0 %v1312
        %v3451 = vpop.f32.mrf.mxu0
        %v3452 = vadd.f32 %v1936, %v3451
        %3453 = vmatmul.f32.gmra.mxu0 %v1318
        %v3454 = vpop.f32.mrf.mxu0
        %v3455 = vadd.f32 %v1936, %v3454
        %3456 = vmatmul.f32.gmra.mxu0 %v1324
        %v3457 = vpop.f32.mrf.mxu0
        %v3458 = vadd.f32 %v1936, %v3457
        %3459 = vmatmul.f32.gmra.mxu0 %v1330
        %v3460 = vpop.f32.mrf.mxu0
        %v3461 = vadd.f32 %v1936, %v3460
        %3462 = vmatmul.f32.gmra.mxu0 %v1336
        %v3463 = vpop.f32.mrf.mxu0
        %v3464 = vadd.f32 %v1936, %v3463
        %3465 = vmatmul.f32.gmra.mxu0 %v1342
        %v3466 = vpop.f32.mrf.mxu0
        %v3467 = vadd.f32 %v1936, %v3466
        %3468 = vmatmul.f32.gmra.mxu0 %v1348
        %v3469 = vpop.f32.mrf.mxu0
        %v3470 = vadd.f32 %v1936, %v3469
        %3471 = vmatmul.f32.gmra.mxu0 %v1354
        %v3472 = vpop.f32.mrf.mxu0
        %v3473 = vadd.f32 %v1936, %v3472
        %3474 = vmatmul.f32.gmra.mxu0 %v1360
        %v3475 = vpop.f32.mrf.mxu0
        %v3476 = vadd.f32 %v1936, %v3475
        %3477 = vmatmul.f32.gmra.mxu0 %v1366
        %v3478 = vpop.f32.mrf.mxu0
        %v3479 = vadd.f32 %v1936, %v3478
        %3480 = vmatmul.f32.gmra.mxu0 %v1372
        %v3481 = vpop.f32.mrf.mxu0
        %v3482 = vadd.f32 %v1936, %v3481
        %3483 = vmatmul.f32.gmra.mxu0 %v1378
        %v3484 = vpop.f32.mrf.mxu0
        %v3485 = vadd.f32 %v1936, %v3484
        %3486 = vmatmul.f32.gmra.mxu0 %v1384
        %v3487 = vpop.f32.mrf.mxu0
        %v3488 = vadd.f32 %v1936, %v3487
        %3489 = vmatmul.f32.gmra.mxu0 %v1390
        %v3490 = vpop.f32.mrf.mxu0
        %v3491 = vadd.f32 %v1936, %v3490
        %3492 = vmatmul.f32.gmra.mxu0 %v1396
        %v3493 = vpop.f32.mrf.mxu0
        %v3494 = vadd.f32 %v1936, %v3493
        %3495 = vmatmul.f32.gmra.mxu0 %v1402
        %v3496 = vpop.f32.mrf.mxu0
        %v3497 = vadd.f32 %v1936, %v3496
        %3498 = vmatmul.f32.gmra.mxu0 %v1408
        %v3499 = vpop.f32.mrf.mxu0
        %v3500 = vadd.f32 %v1936, %v3499
        %3501 = vmatmul.f32.gmra.mxu0 %v1414
        %v3502 = vpop.f32.mrf.mxu0
        %v3503 = vadd.f32 %v1936, %v3502
        %3504 = vmatmul.f32.gmra.mxu0 %v1420
        %v3505 = vpop.f32.mrf.mxu0
        %v3506 = vadd.f32 %v1936, %v3505
        %3507 = vmatmul.f32.gmra.mxu0 %v1426
        %v3508 = vpop.f32.mrf.mxu0
        %v3509 = vadd.f32 %v1936, %v3508
        %3510 = vmatmul.f32.gmra.mxu0 %v1432
        %v3511 = vpop.f32.mrf.mxu0
        %v3512 = vadd.f32 %v1936, %v3511
        %3513 = vmatmul.f32.gmra.mxu0 %v1438
        %v3514 = vpop.f32.mrf.mxu0
        %v3515 = vadd.f32 %v1936, %v3514
        %3516 = vmatmul.f32.gmra.mxu0 %v1444
        %v3517 = vpop.f32.mrf.mxu0
        %v3518 = vadd.f32 %v1936, %v3517
        %3519 = vmatmul.f32.gmra.mxu0 %v1450
        %v3520 = vpop.f32.mrf.mxu0
        %v3521 = vadd.f32 %v1936, %v3520
        %3522 = vmatmul.f32.gmra.mxu0 %v1456
        %v3523 = vpop.f32.mrf.mxu0
        %v3524 = vadd.f32 %v1936, %v3523
        %3525 = vdwg.mxu0
        %3526 = vmatpush.msra.mxu0 %v1619
        %3527 = vmatpush.msra.mxu0 %v1614
        %3528 = vmatpush.msra.mxu0 %v1609
        %3529 = vmatpush.msra.mxu0 %v1604
        %3530 = vmatpush.msra.mxu0 %v1599
        %3531 = vmatpush.msra.mxu0 %v1594
        %3532 = vmatpush.msra.mxu0 %v1589
        %3533 = vmatpush.msra.mxu0 %v1584
        %3534 = vmatpush.msra.mxu0 %v1579
        %3535 = vmatpush.msra.mxu0 %v1574
        %3536 = vmatpush.msra.mxu0 %v1569
        %3537 = vmatpush.msra.mxu0 %v1564
        %3538 = vmatpush.msra.mxu0 %v1559
        %3539 = vmatpush.msra.mxu0 %v1554
        %3540 = vmatpush.msra.mxu0 %v1549
        %3541 = vmatpush.msra.mxu0 %v1544
        %3542 = vmatmul.f32.gmra.mxu0 %v1271
        %v3543 = vpop.f32.mrf.mxu0
        %v3544 = vadd.f32 %v3431, %v3543
        %3545 = vmatmul.f32.gmra.mxu0 %v1277
        %v3546 = vpop.f32.mrf.mxu0
        %v3547 = vadd.f32 %v3434, %v3546
        %3548 = vmatmul.f32.gmra.mxu0 %v1283
        %v3549 = vpop.f32.mrf.mxu0
        %v3550 = vadd.f32 %v3437, %v3549
        %3551 = vmatmul.f32.gmra.mxu0 %v1289
        %v3552 = vpop.f32.mrf.mxu0
        %v3553 = vadd.f32 %v3440, %v3552
        %3554 = vmatmul.f32.gmra.mxu0 %v1295
        %v3555 = vpop.f32.mrf.mxu0
        %v3556 = vadd.f32 %v3443, %v3555
        %3557 = vmatmul.f32.gmra.mxu0 %v1301
        %v3558 = vpop.f32.mrf.mxu0
        %v3559 = vadd.f32 %v3446, %v3558
        %3560 = vmatmul.f32.gmra.mxu0 %v1307
        %v3561 = vpop.f32.mrf.mxu0
        %v3562 = vadd.f32 %v3449, %v3561
        %3563 = vmatmul.f32.gmra.mxu0 %v1313
        %v3564 = vpop.f32.mrf.mxu0
        %v3565 = vadd.f32 %v3452, %v3564
        %3566 = vmatmul.f32.gmra.mxu0 %v1319
        %v3567 = vpop.f32.mrf.mxu0
        %v3568 = vadd.f32 %v3455, %v3567
        %3569 = vmatmul.f32.gmra.mxu0 %v1325
        %v3570 = vpop.f32.mrf.mxu0
        %v3571 = vadd.f32 %v3458, %v3570
        %3572 = vmatmul.f32.gmra.mxu0 %v1331
        %v3573 = vpop.f32.mrf.mxu0
        %v3574 = vadd.f32 %v3461, %v3573
        %3575 = vmatmul.f32.gmra.mxu0 %v1337
        %v3576 = vpop.f32.mrf.mxu0
        %v3577 = vadd.f32 %v3464, %v3576
        %3578 = vmatmul.f32.gmra.mxu0 %v1343
        %v3579 = vpop.f32.mrf.mxu0
        %v3580 = vadd.f32 %v3467, %v3579
        %3581 = vmatmul.f32.gmra.mxu0 %v1349
        %v3582 = vpop.f32.mrf.mxu0
        %v3583 = vadd.f32 %v3470, %v3582
        %3584 = vmatmul.f32.gmra.mxu0 %v1355
        %v3585 = vpop.f32.mrf.mxu0
        %v3586 = vadd.f32 %v3473, %v3585
        %3587 = vmatmul.f32.gmra.mxu0 %v1361
        %v3588 = vpop.f32.mrf.mxu0
        %v3589 = vadd.f32 %v3476, %v3588
        %3590 = vmatmul.f32.gmra.mxu0 %v1367
        %v3591 = vpop.f32.mrf.mxu0
        %v3592 = vadd.f32 %v3479, %v3591
        %3593 = vmatmul.f32.gmra.mxu0 %v1373
        %v3594 = vpop.f32.mrf.mxu0
        %v3595 = vadd.f32 %v3482, %v3594
        %3596 = vmatmul.f32.gmra.mxu0 %v1379
        %v3597 = vpop.f32.mrf.mxu0
        %v3598 = vadd.f32 %v3485, %v3597
        %3599 = vmatmul.f32.gmra.mxu0 %v1385
        %v3600 = vpop.f32.mrf.mxu0
        %v3601 = vadd.f32 %v3488, %v3600
        %3602 = vmatmul.f32.gmra.mxu0 %v1391
        %v3603 = vpop.f32.mrf.mxu0
        %v3604 = vadd.f32 %v3491, %v3603
        %3605 = vmatmul.f32.gmra.mxu0 %v1397
        %v3606 = vpop.f32.mrf.mxu0
        %v3607 = vadd.f32 %v3494, %v3606
        %3608 = vmatmul.f32.gmra.mxu0 %v1403
        %v3609 = vpop.f32.mrf.mxu0
        %v3610 = vadd.f32 %v3497, %v3609
        %3611 = vmatmul.f32.gmra.mxu0 %v1409
        %v3612 = vpop.f32.mrf.mxu0
        %v3613 = vadd.f32 %v3500, %v3612
        %3614 = vmatmul.f32.gmra.mxu0 %v1415
        %v3615 = vpop.f32.mrf.mxu0
        %v3616 = vadd.f32 %v3503, %v3615
        %3617 = vmatmul.f32.gmra.mxu0 %v1421
        %v3618 = vpop.f32.mrf.mxu0
        %v3619 = vadd.f32 %v3506, %v3618
        %3620 = vmatmul.f32.gmra.mxu0 %v1427
        %v3621 = vpop.f32.mrf.mxu0
        %v3622 = vadd.f32 %v3509, %v3621
        %3623 = vmatmul.f32.gmra.mxu0 %v1433
        %v3624 = vpop.f32.mrf.mxu0
        %v3625 = vadd.f32 %v3512, %v3624
        %3626 = vmatmul.f32.gmra.mxu0 %v1439
        %v3627 = vpop.f32.mrf.mxu0
        %v3628 = vadd.f32 %v3515, %v3627
        %3629 = vmatmul.f32.gmra.mxu0 %v1445
        %v3630 = vpop.f32.mrf.mxu0
        %v3631 = vadd.f32 %v3518, %v3630
        %3632 = vmatmul.f32.gmra.mxu0 %v1451
        %v3633 = vpop.f32.mrf.mxu0
        %v3634 = vadd.f32 %v3521, %v3633
        %3635 = vmatmul.f32.gmra.mxu0 %v1457
        %v3636 = vpop.f32.mrf.mxu0
        %v3637 = vadd.f32 %v3524, %v3636
        %3638 = vdwg.mxu0
        %3639 = vmatpush.msra.mxu0 %v1699
        %3640 = vmatpush.msra.mxu0 %v1694
        %3641 = vmatpush.msra.mxu0 %v1689
        %3642 = vmatpush.msra.mxu0 %v1684
        %3643 = vmatpush.msra.mxu0 %v1679
        %3644 = vmatpush.msra.mxu0 %v1674
        %3645 = vmatpush.msra.mxu0 %v1669
        %3646 = vmatpush.msra.mxu0 %v1664
        %3647 = vmatpush.msra.mxu0 %v1659
        %3648 = vmatpush.msra.mxu0 %v1654
        %3649 = vmatpush.msra.mxu0 %v1649
        %3650 = vmatpush.msra.mxu0 %v1644
        %3651 = vmatpush.msra.mxu0 %v1639
        %3652 = vmatpush.msra.mxu0 %v1634
        %3653 = vmatpush.msra.mxu0 %v1629
        %3654 = vmatpush.msra.mxu0 %v1624
        %3655 = vmatmul.f32.gmra.mxu0 %v1272
        %v3656 = vpop.f32.mrf.mxu0
        %v3657 = vadd.f32 %v3544, %v3656
        %3658 = vmatmul.f32.gmra.mxu0 %v1278
        %v3659 = vpop.f32.mrf.mxu0
        %v3660 = vadd.f32 %v3547, %v3659
        %3661 = vmatmul.f32.gmra.mxu0 %v1284
        %v3662 = vpop.f32.mrf.mxu0
        %v3663 = vadd.f32 %v3550, %v3662
        %3664 = vmatmul.f32.gmra.mxu0 %v1290
        %v3665 = vpop.f32.mrf.mxu0
        %v3666 = vadd.f32 %v3553, %v3665
        %3667 = vmatmul.f32.gmra.mxu0 %v1296
        %v3668 = vpop.f32.mrf.mxu0
        %v3669 = vadd.f32 %v3556, %v3668
        %3670 = vmatmul.f32.gmra.mxu0 %v1302
        %v3671 = vpop.f32.mrf.mxu0
        %v3672 = vadd.f32 %v3559, %v3671
        %3673 = vmatmul.f32.gmra.mxu0 %v1308
        %v3674 = vpop.f32.mrf.mxu0
        %v3675 = vadd.f32 %v3562, %v3674
        %3676 = vmatmul.f32.gmra.mxu0 %v1314
        %v3677 = vpop.f32.mrf.mxu0
        %v3678 = vadd.f32 %v3565, %v3677
        %3679 = vmatmul.f32.gmra.mxu0 %v1320
        %v3680 = vpop.f32.mrf.mxu0
        %v3681 = vadd.f32 %v3568, %v3680
        %3682 = vmatmul.f32.gmra.mxu0 %v1326
        %v3683 = vpop.f32.mrf.mxu0
        %v3684 = vadd.f32 %v3571, %v3683
        %3685 = vmatmul.f32.gmra.mxu0 %v1332
        %v3686 = vpop.f32.mrf.mxu0
        %v3687 = vadd.f32 %v3574, %v3686
        %3688 = vmatmul.f32.gmra.mxu0 %v1338
        %v3689 = vpop.f32.mrf.mxu0
        %v3690 = vadd.f32 %v3577, %v3689
        %3691 = vmatmul.f32.gmra.mxu0 %v1344
        %v3692 = vpop.f32.mrf.mxu0
        %v3693 = vadd.f32 %v3580, %v3692
        %3694 = vmatmul.f32.gmra.mxu0 %v1350
        %v3695 = vpop.f32.mrf.mxu0
        %v3696 = vadd.f32 %v3583, %v3695
        %3697 = vmatmul.f32.gmra.mxu0 %v1356
        %v3698 = vpop.f32.mrf.mxu0
        %v3699 = vadd.f32 %v3586, %v3698
        %3700 = vmatmul.f32.gmra.mxu0 %v1362
        %v3701 = vpop.f32.mrf.mxu0
        %v3702 = vadd.f32 %v3589, %v3701
        %3703 = vmatmul.f32.gmra.mxu0 %v1368
        %v3704 = vpop.f32.mrf.mxu0
        %v3705 = vadd.f32 %v3592, %v3704
        %3706 = vmatmul.f32.gmra.mxu0 %v1374
        %v3707 = vpop.f32.mrf.mxu0
        %v3708 = vadd.f32 %v3595, %v3707
        %3709 = vmatmul.f32.gmra.mxu0 %v1380
        %v3710 = vpop.f32.mrf.mxu0
        %v3711 = vadd.f32 %v3598, %v3710
        %3712 = vmatmul.f32.gmra.mxu0 %v1386
        %v3713 = vpop.f32.mrf.mxu0
        %v3714 = vadd.f32 %v3601, %v3713
        %3715 = vmatmul.f32.gmra.mxu0 %v1392
        %v3716 = vpop.f32.mrf.mxu0
        %v3717 = vadd.f32 %v3604, %v3716
        %3718 = vmatmul.f32.gmra.mxu0 %v1398
        %v3719 = vpop.f32.mrf.mxu0
        %v3720 = vadd.f32 %v3607, %v3719
        %3721 = vmatmul.f32.gmra.mxu0 %v1404
        %v3722 = vpop.f32.mrf.mxu0
        %v3723 = vadd.f32 %v3610, %v3722
        %3724 = vmatmul.f32.gmra.mxu0 %v1410
        %v3725 = vpop.f32.mrf.mxu0
        %v3726 = vadd.f32 %v3613, %v3725
        %3727 = vmatmul.f32.gmra.mxu0 %v1416
        %v3728 = vpop.f32.mrf.mxu0
        %v3729 = vadd.f32 %v3616, %v3728
        %3730 = vmatmul.f32.gmra.mxu0 %v1422
        %v3731 = vpop.f32.mrf.mxu0
        %v3732 = vadd.f32 %v3619, %v3731
        %3733 = vmatmul.f32.gmra.mxu0 %v1428
        %v3734 = vpop.f32.mrf.mxu0
        %v3735 = vadd.f32 %v3622, %v3734
        %3736 = vmatmul.f32.gmra.mxu0 %v1434
        %v3737 = vpop.f32.mrf.mxu0
        %v3738 = vadd.f32 %v3625, %v3737
        %3739 = vmatmul.f32.gmra.mxu0 %v1440
        %v3740 = vpop.f32.mrf.mxu0
        %v3741 = vadd.f32 %v3628, %v3740
        %3742 = vmatmul.f32.gmra.mxu0 %v1446
        %v3743 = vpop.f32.mrf.mxu0
        %v3744 = vadd.f32 %v3631, %v3743
        %3745 = vmatmul.f32.gmra.mxu0 %v1452
        %v3746 = vpop.f32.mrf.mxu0
        %v3747 = vadd.f32 %v3634, %v3746
        %3748 = vmatmul.f32.gmra.mxu0 %v1458
        %v3749 = vpop.f32.mrf.mxu0
        %v3750 = vadd.f32 %v3637, %v3749
        %3751 = vdwg.mxu0
        %3752 = vmatpush.msra.mxu0 %v1779
        %3753 = vmatpush.msra.mxu0 %v1774
        %3754 = vmatpush.msra.mxu0 %v1769
        %3755 = vmatpush.msra.mxu0 %v1764
        %3756 = vmatpush.msra.mxu0 %v1759
        %3757 = vmatpush.msra.mxu0 %v1754
        %3758 = vmatpush.msra.mxu0 %v1749
        %3759 = vmatpush.msra.mxu0 %v1744
        %3760 = vmatpush.msra.mxu0 %v1739
        %3761 = vmatpush.msra.mxu0 %v1734
        %3762 = vmatpush.msra.mxu0 %v1729
        %3763 = vmatpush.msra.mxu0 %v1724
        %3764 = vmatpush.msra.mxu0 %v1719
        %3765 = vmatpush.msra.mxu0 %v1714
        %3766 = vmatpush.msra.mxu0 %v1709
        %3767 = vmatpush.msra.mxu0 %v1704
        %3768 = vmatmul.f32.gmra.mxu0 %v1273
        %v3769 = vpop.f32.mrf.mxu0
        %v3770 = vadd.f32 %v3657, %v3769
        %3771 = vmatmul.f32.gmra.mxu0 %v1279
        %v3772 = vpop.f32.mrf.mxu0
        %v3773 = vadd.f32 %v3660, %v3772
        %3774 = vmatmul.f32.gmra.mxu0 %v1285
        %v3775 = vpop.f32.mrf.mxu0
        %v3776 = vadd.f32 %v3663, %v3775
        %3777 = vmatmul.f32.gmra.mxu0 %v1291
        %v3778 = vpop.f32.mrf.mxu0
        %v3779 = vadd.f32 %v3666, %v3778
        %3780 = vmatmul.f32.gmra.mxu0 %v1297
        %v3781 = vpop.f32.mrf.mxu0
        %v3782 = vadd.f32 %v3669, %v3781
        %3783 = vmatmul.f32.gmra.mxu0 %v1303
        %v3784 = vpop.f32.mrf.mxu0
        %v3785 = vadd.f32 %v3672, %v3784
        %3786 = vmatmul.f32.gmra.mxu0 %v1309
        %v3787 = vpop.f32.mrf.mxu0
        %v3788 = vadd.f32 %v3675, %v3787
        %3789 = vmatmul.f32.gmra.mxu0 %v1315
        %v3790 = vpop.f32.mrf.mxu0
        %v3791 = vadd.f32 %v3678, %v3790
        %3792 = vmatmul.f32.gmra.mxu0 %v1321
        %v3793 = vpop.f32.mrf.mxu0
        %v3794 = vadd.f32 %v3681, %v3793
        %3795 = vmatmul.f32.gmra.mxu0 %v1327
        %v3796 = vpop.f32.mrf.mxu0
        %v3797 = vadd.f32 %v3684, %v3796
        %3798 = vmatmul.f32.gmra.mxu0 %v1333
        %v3799 = vpop.f32.mrf.mxu0
        %v3800 = vadd.f32 %v3687, %v3799
        %3801 = vmatmul.f32.gmra.mxu0 %v1339
        %v3802 = vpop.f32.mrf.mxu0
        %v3803 = vadd.f32 %v3690, %v3802
        %3804 = vmatmul.f32.gmra.mxu0 %v1345
        %v3805 = vpop.f32.mrf.mxu0
        %v3806 = vadd.f32 %v3693, %v3805
        %3807 = vmatmul.f32.gmra.mxu0 %v1351
        %v3808 = vpop.f32.mrf.mxu0
        %v3809 = vadd.f32 %v3696, %v3808
        %3810 = vmatmul.f32.gmra.mxu0 %v1357
        %v3811 = vpop.f32.mrf.mxu0
        %v3812 = vadd.f32 %v3699, %v3811
        %3813 = vmatmul.f32.gmra.mxu0 %v1363
        %v3814 = vpop.f32.mrf.mxu0
        %v3815 = vadd.f32 %v3702, %v3814
        %3816 = vmatmul.f32.gmra.mxu0 %v1369
        %v3817 = vpop.f32.mrf.mxu0
        %v3818 = vadd.f32 %v3705, %v3817
        %3819 = vmatmul.f32.gmra.mxu0 %v1375
        %v3820 = vpop.f32.mrf.mxu0
        %v3821 = vadd.f32 %v3708, %v3820
        %3822 = vmatmul.f32.gmra.mxu0 %v1381
        %v3823 = vpop.f32.mrf.mxu0
        %v3824 = vadd.f32 %v3711, %v3823
        %3825 = vmatmul.f32.gmra.mxu0 %v1387
        %v3826 = vpop.f32.mrf.mxu0
        %v3827 = vadd.f32 %v3714, %v3826
        %3828 = vmatmul.f32.gmra.mxu0 %v1393
        %v3829 = vpop.f32.mrf.mxu0
        %v3830 = vadd.f32 %v3717, %v3829
        %3831 = vmatmul.f32.gmra.mxu0 %v1399
        %v3832 = vpop.f32.mrf.mxu0
        %v3833 = vadd.f32 %v3720, %v3832
        %3834 = vmatmul.f32.gmra.mxu0 %v1405
        %v3835 = vpop.f32.mrf.mxu0
        %v3836 = vadd.f32 %v3723, %v3835
        %3837 = vmatmul.f32.gmra.mxu0 %v1411
        %v3838 = vpop.f32.mrf.mxu0
        %v3839 = vadd.f32 %v3726, %v3838
        %3840 = vmatmul.f32.gmra.mxu0 %v1417
        %v3841 = vpop.f32.mrf.mxu0
        %v3842 = vadd.f32 %v3729, %v3841
        %3843 = vmatmul.f32.gmra.mxu0 %v1423
        %v3844 = vpop.f32.mrf.mxu0
        %v3845 = vadd.f32 %v3732, %v3844
        %3846 = vmatmul.f32.gmra.mxu0 %v1429
        %v3847 = vpop.f32.mrf.mxu0
        %v3848 = vadd.f32 %v3735, %v3847
        %3849 = vmatmul.f32.gmra.mxu0 %v1435
        %v3850 = vpop.f32.mrf.mxu0
        %v3851 = vadd.f32 %v3738, %v3850
        %3852 = vmatmul.f32.gmra.mxu0 %v1441
        %v3853 = vpop.f32.mrf.mxu0
        %v3854 = vadd.f32 %v3741, %v3853
        %3855 = vmatmul.f32.gmra.mxu0 %v1447
        %v3856 = vpop.f32.mrf.mxu0
        %v3857 = vadd.f32 %v3744, %v3856
        %3858 = vmatmul.f32.gmra.mxu0 %v1453
        %v3859 = vpop.f32.mrf.mxu0
        %v3860 = vadd.f32 %v3747, %v3859
        %3861 = vmatmul.f32.gmra.mxu0 %v1459
        %v3862 = vpop.f32.mrf.mxu0
        %v3863 = vadd.f32 %v3750, %v3862
        %3864 = vdwg.mxu0
        %3865 = vmatpush.msra.mxu0 %v1859
        %3866 = vmatpush.msra.mxu0 %v1854
        %3867 = vmatpush.msra.mxu0 %v1849
        %3868 = vmatpush.msra.mxu0 %v1844
        %3869 = vmatpush.msra.mxu0 %v1839
        %3870 = vmatpush.msra.mxu0 %v1834
        %3871 = vmatpush.msra.mxu0 %v1829
        %3872 = vmatpush.msra.mxu0 %v1824
        %3873 = vmatpush.msra.mxu0 %v1819
        %3874 = vmatpush.msra.mxu0 %v1814
        %3875 = vmatpush.msra.mxu0 %v1809
        %3876 = vmatpush.msra.mxu0 %v1804
        %3877 = vmatpush.msra.mxu0 %v1799
        %3878 = vmatpush.msra.mxu0 %v1794
        %3879 = vmatpush.msra.mxu0 %v1789
        %3880 = vmatpush.msra.mxu0 %v1784
        %3881 = vmatmul.f32.gmra.mxu0 %v1274
        %v3882 = vpop.f32.mrf.mxu0
        %v3883 = vadd.f32 %v3770, %v3882
        %3884 = vmatmul.f32.gmra.mxu0 %v1280
        %v3885 = vpop.f32.mrf.mxu0
        %v3886 = vadd.f32 %v3773, %v3885
        %3887 = vmatmul.f32.gmra.mxu0 %v1286
        %v3888 = vpop.f32.mrf.mxu0
        %v3889 = vadd.f32 %v3776, %v3888
        %3890 = vmatmul.f32.gmra.mxu0 %v1292
        %v3891 = vpop.f32.mrf.mxu0
        %v3892 = vadd.f32 %v3779, %v3891
        %3893 = vmatmul.f32.gmra.mxu0 %v1298
        %v3894 = vpop.f32.mrf.mxu0
        %v3895 = vadd.f32 %v3782, %v3894
        %3896 = vmatmul.f32.gmra.mxu0 %v1304
        %v3897 = vpop.f32.mrf.mxu0
        %v3898 = vadd.f32 %v3785, %v3897
        %3899 = vmatmul.f32.gmra.mxu0 %v1310
        %v3900 = vpop.f32.mrf.mxu0
        %v3901 = vadd.f32 %v3788, %v3900
        %3902 = vmatmul.f32.gmra.mxu0 %v1316
        %v3903 = vpop.f32.mrf.mxu0
        %v3904 = vadd.f32 %v3791, %v3903
        %3905 = vmatmul.f32.gmra.mxu0 %v1322
        %v3906 = vpop.f32.mrf.mxu0
        %v3907 = vadd.f32 %v3794, %v3906
        %3908 = vmatmul.f32.gmra.mxu0 %v1328
        %v3909 = vpop.f32.mrf.mxu0
        %v3910 = vadd.f32 %v3797, %v3909
        %3911 = vmatmul.f32.gmra.mxu0 %v1334
        %v3912 = vpop.f32.mrf.mxu0
        %v3913 = vadd.f32 %v3800, %v3912
        %3914 = vmatmul.f32.gmra.mxu0 %v1340
        %v3915 = vpop.f32.mrf.mxu0
        %v3916 = vadd.f32 %v3803, %v3915
        %3917 = vmatmul.f32.gmra.mxu0 %v1346
        %v3918 = vpop.f32.mrf.mxu0
        %v3919 = vadd.f32 %v3806, %v3918
        %3920 = vmatmul.f32.gmra.mxu0 %v1352
        %v3921 = vpop.f32.mrf.mxu0
        %v3922 = vadd.f32 %v3809, %v3921
        %3923 = vmatmul.f32.gmra.mxu0 %v1358
        %v3924 = vpop.f32.mrf.mxu0
        %v3925 = vadd.f32 %v3812, %v3924
        %3926 = vmatmul.f32.gmra.mxu0 %v1364
        %v3927 = vpop.f32.mrf.mxu0
        %v3928 = vadd.f32 %v3815, %v3927
        %3929 = vmatmul.f32.gmra.mxu0 %v1370
        %v3930 = vpop.f32.mrf.mxu0
        %v3931 = vadd.f32 %v3818, %v3930
        %3932 = vmatmul.f32.gmra.mxu0 %v1376
        %v3933 = vpop.f32.mrf.mxu0
        %v3934 = vadd.f32 %v3821, %v3933
        %3935 = vmatmul.f32.gmra.mxu0 %v1382
        %v3936 = vpop.f32.mrf.mxu0
        %v3937 = vadd.f32 %v3824, %v3936
        %3938 = vmatmul.f32.gmra.mxu0 %v1388
        %v3939 = vpop.f32.mrf.mxu0
        %v3940 = vadd.f32 %v3827, %v3939
        %3941 = vmatmul.f32.gmra.mxu0 %v1394
        %v3942 = vpop.f32.mrf.mxu0
        %v3943 = vadd.f32 %v3830, %v3942
        %3944 = vmatmul.f32.gmra.mxu0 %v1400
        %v3945 = vpop.f32.mrf.mxu0
        %v3946 = vadd.f32 %v3833, %v3945
        %3947 = vmatmul.f32.gmra.mxu0 %v1406
        %v3948 = vpop.f32.mrf.mxu0
        %v3949 = vadd.f32 %v3836, %v3948
        %3950 = vmatmul.f32.gmra.mxu0 %v1412
        %v3951 = vpop.f32.mrf.mxu0
        %v3952 = vadd.f32 %v3839, %v3951
        %3953 = vmatmul.f32.gmra.mxu0 %v1418
        %v3954 = vpop.f32.mrf.mxu0
        %v3955 = vadd.f32 %v3842, %v3954
        %3956 = vmatmul.f32.gmra.mxu0 %v1424
        %v3957 = vpop.f32.mrf.mxu0
        %v3958 = vadd.f32 %v3845, %v3957
        %3959 = vmatmul.f32.gmra.mxu0 %v1430
        %v3960 = vpop.f32.mrf.mxu0
        %v3961 = vadd.f32 %v3848, %v3960
        %3962 = vmatmul.f32.gmra.mxu0 %v1436
        %v3963 = vpop.f32.mrf.mxu0
        %v3964 = vadd.f32 %v3851, %v3963
        %3965 = vmatmul.f32.gmra.mxu0 %v1442
        %v3966 = vpop.f32.mrf.mxu0
        %v3967 = vadd.f32 %v3854, %v3966
        %3968 = vmatmul.f32.gmra.mxu0 %v1448
        %v3969 = vpop.f32.mrf.mxu0
        %v3970 = vadd.f32 %v3857, %v3969
        %3971 = vmatmul.f32.gmra.mxu0 %v1454
        %v3972 = vpop.f32.mrf.mxu0
        %v3973 = vadd.f32 %v3860, %v3972
        %3974 = vmatmul.f32.gmra.mxu0 %v1460
        %v3975 = vpop.f32.mrf.mxu0
        %v3976 = vadd.f32 %v3863, %v3975
        %3977 = vdwg.mxu0
        %3978 = vmatpush.msra.mxu0 0.0
        %3979 = vmatpush.msra.mxu0 0.0
        %3980 = vmatpush.msra.mxu0 %v2049
        %3981 = vmatpush.msra.mxu0 %v1924
        %3982 = vmatpush.msra.mxu0 %v1919
        %3983 = vmatpush.msra.mxu0 %v1914
        %3984 = vmatpush.msra.mxu0 %v1909
        %3985 = vmatpush.msra.mxu0 %v1904
        %3986 = vmatpush.msra.mxu0 %v1899
        %3987 = vmatpush.msra.mxu0 %v1894
        %3988 = vmatpush.msra.mxu0 %v1889
        %3989 = vmatpush.msra.mxu0 %v1884
        %3990 = vmatpush.msra.mxu0 %v1879
        %3991 = vmatpush.msra.mxu0 %v1874
        %3992 = vmatpush.msra.mxu0 %v1869
        %3993 = vmatpush.msra.mxu0 %v1864
        %3994 = vmatmul.f32.gmra.mxu0 %v1946
        %v3995 = vpop.f32.mrf.mxu0
        %v3996 = vadd.f32 %v3883, %v3995
        %3997 = vmatmul.f32.gmra.mxu0 %v1949
        %v3998 = vpop.f32.mrf.mxu0
        %v3999 = vadd.f32 %v3886, %v3998
        %4000 = vmatmul.f32.gmra.mxu0 %v1952
        %v4001 = vpop.f32.mrf.mxu0
        %v4002 = vadd.f32 %v3889, %v4001
        %4003 = vmatmul.f32.gmra.mxu0 %v1955
        %v4004 = vpop.f32.mrf.mxu0
        %v4005 = vadd.f32 %v3892, %v4004
        %4006 = vmatmul.f32.gmra.mxu0 %v1958
        %v4007 = vpop.f32.mrf.mxu0
        %v4008 = vadd.f32 %v3895, %v4007
        %4009 = vmatmul.f32.gmra.mxu0 %v1961
        %v4010 = vpop.f32.mrf.mxu0
        %v4011 = vadd.f32 %v3898, %v4010
        %4012 = vmatmul.f32.gmra.mxu0 %v1964
        %v4013 = vpop.f32.mrf.mxu0
        %v4014 = vadd.f32 %v3901, %v4013
        %4015 = vmatmul.f32.gmra.mxu0 %v1967
        %v4016 = vpop.f32.mrf.mxu0
        %v4017 = vadd.f32 %v3904, %v4016
        %4018 = vmatmul.f32.gmra.mxu0 %v1970
        %v4019 = vpop.f32.mrf.mxu0
        %v4020 = vadd.f32 %v3907, %v4019
        %4021 = vmatmul.f32.gmra.mxu0 %v1973
        %v4022 = vpop.f32.mrf.mxu0
        %v4023 = vadd.f32 %v3910, %v4022
        %4024 = vmatmul.f32.gmra.mxu0 %v1976
        %v4025 = vpop.f32.mrf.mxu0
        %v4026 = vadd.f32 %v3913, %v4025
        %4027 = vmatmul.f32.gmra.mxu0 %v1979
        %v4028 = vpop.f32.mrf.mxu0
        %v4029 = vadd.f32 %v3916, %v4028
        %4030 = vmatmul.f32.gmra.mxu0 %v1982
        %v4031 = vpop.f32.mrf.mxu0
        %v4032 = vadd.f32 %v3919, %v4031
        %4033 = vmatmul.f32.gmra.mxu0 %v1985
        %v4034 = vpop.f32.mrf.mxu0
        %v4035 = vadd.f32 %v3922, %v4034
        %4036 = vmatmul.f32.gmra.mxu0 %v1988
        %v4037 = vpop.f32.mrf.mxu0
        %v4038 = vadd.f32 %v3925, %v4037
        %4039 = vmatmul.f32.gmra.mxu0 %v1991
        %v4040 = vpop.f32.mrf.mxu0
        %v4041 = vadd.f32 %v3928, %v4040
        %4042 = vmatmul.f32.gmra.mxu0 %v1994
        %v4043 = vpop.f32.mrf.mxu0
        %v4044 = vadd.f32 %v3931, %v4043
        %4045 = vmatmul.f32.gmra.mxu0 %v1997
        %v4046 = vpop.f32.mrf.mxu0
        %v4047 = vadd.f32 %v3934, %v4046
        %4048 = vmatmul.f32.gmra.mxu0 %v2000
        %v4049 = vpop.f32.mrf.mxu0
        %v4050 = vadd.f32 %v3937, %v4049
        %4051 = vmatmul.f32.gmra.mxu0 %v2003
        %v4052 = vpop.f32.mrf.mxu0
        %v4053 = vadd.f32 %v3940, %v4052
        %4054 = vmatmul.f32.gmra.mxu0 %v2006
        %v4055 = vpop.f32.mrf.mxu0
        %v4056 = vadd.f32 %v3943, %v4055
        %4057 = vmatmul.f32.gmra.mxu0 %v2009
        %v4058 = vpop.f32.mrf.mxu0
        %v4059 = vadd.f32 %v3946, %v4058
        %4060 = vmatmul.f32.gmra.mxu0 %v2012
        %v4061 = vpop.f32.mrf.mxu0
        %v4062 = vadd.f32 %v3949, %v4061
        %4063 = vmatmul.f32.gmra.mxu0 %v2015
        %v4064 = vpop.f32.mrf.mxu0
        %v4065 = vadd.f32 %v3952, %v4064
        %4066 = vmatmul.f32.gmra.mxu0 %v2018
        %v4067 = vpop.f32.mrf.mxu0
        %v4068 = vadd.f32 %v3955, %v4067
        %4069 = vmatmul.f32.gmra.mxu0 %v2021
        %v4070 = vpop.f32.mrf.mxu0
        %v4071 = vadd.f32 %v3958, %v4070
        %4072 = vmatmul.f32.gmra.mxu0 %v2024
        %v4073 = vpop.f32.mrf.mxu0
        %v4074 = vadd.f32 %v3961, %v4073
        %4075 = vmatmul.f32.gmra.mxu0 %v2027
        %v4076 = vpop.f32.mrf.mxu0
        %v4077 = vadd.f32 %v3964, %v4076
        %4078 = vmatmul.f32.gmra.mxu0 %v2030
        %v4079 = vpop.f32.mrf.mxu0
        %v4080 = vadd.f32 %v3967, %v4079
        %4081 = vmatmul.f32.gmra.mxu0 %v2033
        %v4082 = vpop.f32.mrf.mxu0
        %v4083 = vadd.f32 %v3970, %v4082
        %4084 = vmatmul.f32.gmra.mxu0 %v2036
        %v4085 = vpop.f32.mrf.mxu0
        %v4086 = vadd.f32 %v3973, %v4085
        %4087 = vmatmul.f32.gmra.mxu0 %v2039
        %v4088 = vpop.f32.mrf.mxu0
        %v4089 = vadd.f32 %v3976, %v4088
        %4090 = vdwg.mxu0
        %4091 = vmatpush.msra.mxu0 %v1540
        %4092 = vmatpush.msra.mxu0 %v1535
        %4093 = vmatpush.msra.mxu0 %v1530
        %4094 = vmatpush.msra.mxu0 %v1525
        %4095 = vmatpush.msra.mxu0 %v1520
        %4096 = vmatpush.msra.mxu0 %v1515
        %4097 = vmatpush.msra.mxu0 %v1510
        %4098 = vmatpush.msra.mxu0 %v1505
        %4099 = vmatpush.msra.mxu0 %v1500
        %4100 = vmatpush.msra.mxu0 %v1495
        %4101 = vmatpush.msra.mxu0 %v1490
        %4102 = vmatpush.msra.mxu0 %v1485
        %4103 = vmatpush.msra.mxu0 %v1480
        %4104 = vmatpush.msra.mxu0 %v1475
        %4105 = vmatpush.msra.mxu0 %v1470
        %4106 = vmatpush.msra.mxu0 %v1465
        %4107 = vmatmul.f32.gmra.mxu0 %v1270
        %v4108 = vpop.f32.mrf.mxu0
        %v4109 = vadd.f32 %v1937, %v4108
        %4110 = vmatmul.f32.gmra.mxu0 %v1276
        %v4111 = vpop.f32.mrf.mxu0
        %v4112 = vadd.f32 %v1937, %v4111
        %4113 = vmatmul.f32.gmra.mxu0 %v1282
        %v4114 = vpop.f32.mrf.mxu0
        %v4115 = vadd.f32 %v1937, %v4114
        %4116 = vmatmul.f32.gmra.mxu0 %v1288
        %v4117 = vpop.f32.mrf.mxu0
        %v4118 = vadd.f32 %v1937, %v4117
        %4119 = vmatmul.f32.gmra.mxu0 %v1294
        %v4120 = vpop.f32.mrf.mxu0
        %v4121 = vadd.f32 %v1937, %v4120
        %4122 = vmatmul.f32.gmra.mxu0 %v1300
        %v4123 = vpop.f32.mrf.mxu0
        %v4124 = vadd.f32 %v1937, %v4123
        %4125 = vmatmul.f32.gmra.mxu0 %v1306
        %v4126 = vpop.f32.mrf.mxu0
        %v4127 = vadd.f32 %v1937, %v4126
        %4128 = vmatmul.f32.gmra.mxu0 %v1312
        %v4129 = vpop.f32.mrf.mxu0
        %v4130 = vadd.f32 %v1937, %v4129
        %4131 = vmatmul.f32.gmra.mxu0 %v1318
        %v4132 = vpop.f32.mrf.mxu0
        %v4133 = vadd.f32 %v1937, %v4132
        %4134 = vmatmul.f32.gmra.mxu0 %v1324
        %v4135 = vpop.f32.mrf.mxu0
        %v4136 = vadd.f32 %v1937, %v4135
        %4137 = vmatmul.f32.gmra.mxu0 %v1330
        %v4138 = vpop.f32.mrf.mxu0
        %v4139 = vadd.f32 %v1937, %v4138
        %4140 = vmatmul.f32.gmra.mxu0 %v1336
        %v4141 = vpop.f32.mrf.mxu0
        %v4142 = vadd.f32 %v1937, %v4141
        %4143 = vmatmul.f32.gmra.mxu0 %v1342
        %v4144 = vpop.f32.mrf.mxu0
        %v4145 = vadd.f32 %v1937, %v4144
        %4146 = vmatmul.f32.gmra.mxu0 %v1348
        %v4147 = vpop.f32.mrf.mxu0
        %v4148 = vadd.f32 %v1937, %v4147
        %4149 = vmatmul.f32.gmra.mxu0 %v1354
        %v4150 = vpop.f32.mrf.mxu0
        %v4151 = vadd.f32 %v1937, %v4150
        %4152 = vmatmul.f32.gmra.mxu0 %v1360
        %v4153 = vpop.f32.mrf.mxu0
        %v4154 = vadd.f32 %v1937, %v4153
        %4155 = vmatmul.f32.gmra.mxu0 %v1366
        %v4156 = vpop.f32.mrf.mxu0
        %v4157 = vadd.f32 %v1937, %v4156
        %4158 = vmatmul.f32.gmra.mxu0 %v1372
        %v4159 = vpop.f32.mrf.mxu0
        %v4160 = vadd.f32 %v1937, %v4159
        %4161 = vmatmul.f32.gmra.mxu0 %v1378
        %v4162 = vpop.f32.mrf.mxu0
        %v4163 = vadd.f32 %v1937, %v4162
        %4164 = vmatmul.f32.gmra.mxu0 %v1384
        %v4165 = vpop.f32.mrf.mxu0
        %v4166 = vadd.f32 %v1937, %v4165
        %4167 = vmatmul.f32.gmra.mxu0 %v1390
        %v4168 = vpop.f32.mrf.mxu0
        %v4169 = vadd.f32 %v1937, %v4168
        %4170 = vmatmul.f32.gmra.mxu0 %v1396
        %v4171 = vpop.f32.mrf.mxu0
        %v4172 = vadd.f32 %v1937, %v4171
        %4173 = vmatmul.f32.gmra.mxu0 %v1402
        %v4174 = vpop.f32.mrf.mxu0
        %v4175 = vadd.f32 %v1937, %v4174
        %4176 = vmatmul.f32.gmra.mxu0 %v1408
        %v4177 = vpop.f32.mrf.mxu0
        %v4178 = vadd.f32 %v1937, %v4177
        %4179 = vmatmul.f32.gmra.mxu0 %v1414
        %v4180 = vpop.f32.mrf.mxu0
        %v4181 = vadd.f32 %v1937, %v4180
        %4182 = vmatmul.f32.gmra.mxu0 %v1420
        %v4183 = vpop.f32.mrf.mxu0
        %v4184 = vadd.f32 %v1937, %v4183
        %4185 = vmatmul.f32.gmra.mxu0 %v1426
        %v4186 = vpop.f32.mrf.mxu0
        %v4187 = vadd.f32 %v1937, %v4186
        %4188 = vmatmul.f32.gmra.mxu0 %v1432
        %v4189 = vpop.f32.mrf.mxu0
        %v4190 = vadd.f32 %v1937, %v4189
        %4191 = vmatmul.f32.gmra.mxu0 %v1438
        %v4192 = vpop.f32.mrf.mxu0
        %v4193 = vadd.f32 %v1937, %v4192
        %4194 = vmatmul.f32.gmra.mxu0 %v1444
        %v4195 = vpop.f32.mrf.mxu0
        %v4196 = vadd.f32 %v1937, %v4195
        %4197 = vmatmul.f32.gmra.mxu0 %v1450
        %v4198 = vpop.f32.mrf.mxu0
        %v4199 = vadd.f32 %v1937, %v4198
        %4200 = vmatmul.f32.gmra.mxu0 %v1456
        %v4201 = vpop.f32.mrf.mxu0
        %v4202 = vadd.f32 %v1937, %v4201
        %4203 = vdwg.mxu0
        %4204 = vmatpush.msra.mxu0 %v1620
        %4205 = vmatpush.msra.mxu0 %v1615
        %4206 = vmatpush.msra.mxu0 %v1610
        %4207 = vmatpush.msra.mxu0 %v1605
        %4208 = vmatpush.msra.mxu0 %v1600
        %4209 = vmatpush.msra.mxu0 %v1595
        %4210 = vmatpush.msra.mxu0 %v1590
        %4211 = vmatpush.msra.mxu0 %v1585
        %4212 = vmatpush.msra.mxu0 %v1580
        %4213 = vmatpush.msra.mxu0 %v1575
        %4214 = vmatpush.msra.mxu0 %v1570
        %4215 = vmatpush.msra.mxu0 %v1565
        %4216 = vmatpush.msra.mxu0 %v1560
        %4217 = vmatpush.msra.mxu0 %v1555
        %4218 = vmatpush.msra.mxu0 %v1550
        %4219 = vmatpush.msra.mxu0 %v1545
        %4220 = vmatmul.f32.gmra.mxu0 %v1271
        %v4221 = vpop.f32.mrf.mxu0
        %v4222 = vadd.f32 %v4109, %v4221
        %4223 = vmatmul.f32.gmra.mxu0 %v1277
        %v4224 = vpop.f32.mrf.mxu0
        %v4225 = vadd.f32 %v4112, %v4224
        %4226 = vmatmul.f32.gmra.mxu0 %v1283
        %v4227 = vpop.f32.mrf.mxu0
        %v4228 = vadd.f32 %v4115, %v4227
        %4229 = vmatmul.f32.gmra.mxu0 %v1289
        %v4230 = vpop.f32.mrf.mxu0
        %v4231 = vadd.f32 %v4118, %v4230
        %4232 = vmatmul.f32.gmra.mxu0 %v1295
        %v4233 = vpop.f32.mrf.mxu0
        %v4234 = vadd.f32 %v4121, %v4233
        %4235 = vmatmul.f32.gmra.mxu0 %v1301
        %v4236 = vpop.f32.mrf.mxu0
        %v4237 = vadd.f32 %v4124, %v4236
        %4238 = vmatmul.f32.gmra.mxu0 %v1307
        %v4239 = vpop.f32.mrf.mxu0
        %v4240 = vadd.f32 %v4127, %v4239
        %4241 = vmatmul.f32.gmra.mxu0 %v1313
        %v4242 = vpop.f32.mrf.mxu0
        %v4243 = vadd.f32 %v4130, %v4242
        %4244 = vmatmul.f32.gmra.mxu0 %v1319
        %v4245 = vpop.f32.mrf.mxu0
        %v4246 = vadd.f32 %v4133, %v4245
        %4247 = vmatmul.f32.gmra.mxu0 %v1325
        %v4248 = vpop.f32.mrf.mxu0
        %v4249 = vadd.f32 %v4136, %v4248
        %4250 = vmatmul.f32.gmra.mxu0 %v1331
        %v4251 = vpop.f32.mrf.mxu0
        %v4252 = vadd.f32 %v4139, %v4251
        %4253 = vmatmul.f32.gmra.mxu0 %v1337
        %v4254 = vpop.f32.mrf.mxu0
        %v4255 = vadd.f32 %v4142, %v4254
        %4256 = vmatmul.f32.gmra.mxu0 %v1343
        %v4257 = vpop.f32.mrf.mxu0
        %v4258 = vadd.f32 %v4145, %v4257
        %4259 = vmatmul.f32.gmra.mxu0 %v1349
        %v4260 = vpop.f32.mrf.mxu0
        %v4261 = vadd.f32 %v4148, %v4260
        %4262 = vmatmul.f32.gmra.mxu0 %v1355
        %v4263 = vpop.f32.mrf.mxu0
        %v4264 = vadd.f32 %v4151, %v4263
        %4265 = vmatmul.f32.gmra.mxu0 %v1361
        %v4266 = vpop.f32.mrf.mxu0
        %v4267 = vadd.f32 %v4154, %v4266
        %4268 = vmatmul.f32.gmra.mxu0 %v1367
        %v4269 = vpop.f32.mrf.mxu0
        %v4270 = vadd.f32 %v4157, %v4269
        %4271 = vmatmul.f32.gmra.mxu0 %v1373
        %v4272 = vpop.f32.mrf.mxu0
        %v4273 = vadd.f32 %v4160, %v4272
        %4274 = vmatmul.f32.gmra.mxu0 %v1379
        %v4275 = vpop.f32.mrf.mxu0
        %v4276 = vadd.f32 %v4163, %v4275
        %4277 = vmatmul.f32.gmra.mxu0 %v1385
        %v4278 = vpop.f32.mrf.mxu0
        %v4279 = vadd.f32 %v4166, %v4278
        %4280 = vmatmul.f32.gmra.mxu0 %v1391
        %v4281 = vpop.f32.mrf.mxu0
        %v4282 = vadd.f32 %v4169, %v4281
        %4283 = vmatmul.f32.gmra.mxu0 %v1397
        %v4284 = vpop.f32.mrf.mxu0
        %v4285 = vadd.f32 %v4172, %v4284
        %4286 = vmatmul.f32.gmra.mxu0 %v1403
        %v4287 = vpop.f32.mrf.mxu0
        %v4288 = vadd.f32 %v4175, %v4287
        %4289 = vmatmul.f32.gmra.mxu0 %v1409
        %v4290 = vpop.f32.mrf.mxu0
        %v4291 = vadd.f32 %v4178, %v4290
        %4292 = vmatmul.f32.gmra.mxu0 %v1415
        %v4293 = vpop.f32.mrf.mxu0
        %v4294 = vadd.f32 %v4181, %v4293
        %4295 = vmatmul.f32.gmra.mxu0 %v1421
        %v4296 = vpop.f32.mrf.mxu0
        %v4297 = vadd.f32 %v4184, %v4296
        %4298 = vmatmul.f32.gmra.mxu0 %v1427
        %v4299 = vpop.f32.mrf.mxu0
        %v4300 = vadd.f32 %v4187, %v4299
        %4301 = vmatmul.f32.gmra.mxu0 %v1433
        %v4302 = vpop.f32.mrf.mxu0
        %v4303 = vadd.f32 %v4190, %v4302
        %4304 = vmatmul.f32.gmra.mxu0 %v1439
        %v4305 = vpop.f32.mrf.mxu0
        %v4306 = vadd.f32 %v4193, %v4305
        %4307 = vmatmul.f32.gmra.mxu0 %v1445
        %v4308 = vpop.f32.mrf.mxu0
        %v4309 = vadd.f32 %v4196, %v4308
        %4310 = vmatmul.f32.gmra.mxu0 %v1451
        %v4311 = vpop.f32.mrf.mxu0
        %v4312 = vadd.f32 %v4199, %v4311
        %4313 = vmatmul.f32.gmra.mxu0 %v1457
        %v4314 = vpop.f32.mrf.mxu0
        %v4315 = vadd.f32 %v4202, %v4314
        %4316 = vdwg.mxu0
        %4317 = vmatpush.msra.mxu0 %v1700
        %4318 = vmatpush.msra.mxu0 %v1695
        %4319 = vmatpush.msra.mxu0 %v1690
        %4320 = vmatpush.msra.mxu0 %v1685
        %4321 = vmatpush.msra.mxu0 %v1680
        %4322 = vmatpush.msra.mxu0 %v1675
        %4323 = vmatpush.msra.mxu0 %v1670
        %4324 = vmatpush.msra.mxu0 %v1665
        %4325 = vmatpush.msra.mxu0 %v1660
        %4326 = vmatpush.msra.mxu0 %v1655
        %4327 = vmatpush.msra.mxu0 %v1650
        %4328 = vmatpush.msra.mxu0 %v1645
        %4329 = vmatpush.msra.mxu0 %v1640
        %4330 = vmatpush.msra.mxu0 %v1635
        %4331 = vmatpush.msra.mxu0 %v1630
        %4332 = vmatpush.msra.mxu0 %v1625
        %4333 = vmatmul.f32.gmra.mxu0 %v1272
        %v4334 = vpop.f32.mrf.mxu0
        %v4335 = vadd.f32 %v4222, %v4334
        %4336 = vmatmul.f32.gmra.mxu0 %v1278
        %v4337 = vpop.f32.mrf.mxu0
        %v4338 = vadd.f32 %v4225, %v4337
        %4339 = vmatmul.f32.gmra.mxu0 %v1284
        %v4340 = vpop.f32.mrf.mxu0
        %v4341 = vadd.f32 %v4228, %v4340
        %4342 = vmatmul.f32.gmra.mxu0 %v1290
        %v4343 = vpop.f32.mrf.mxu0
        %v4344 = vadd.f32 %v4231, %v4343
        %4345 = vmatmul.f32.gmra.mxu0 %v1296
        %v4346 = vpop.f32.mrf.mxu0
        %v4347 = vadd.f32 %v4234, %v4346
        %4348 = vmatmul.f32.gmra.mxu0 %v1302
        %v4349 = vpop.f32.mrf.mxu0
        %v4350 = vadd.f32 %v4237, %v4349
        %4351 = vmatmul.f32.gmra.mxu0 %v1308
        %v4352 = vpop.f32.mrf.mxu0
        %v4353 = vadd.f32 %v4240, %v4352
        %4354 = vmatmul.f32.gmra.mxu0 %v1314
        %v4355 = vpop.f32.mrf.mxu0
        %v4356 = vadd.f32 %v4243, %v4355
        %4357 = vmatmul.f32.gmra.mxu0 %v1320
        %v4358 = vpop.f32.mrf.mxu0
        %v4359 = vadd.f32 %v4246, %v4358
        %4360 = vmatmul.f32.gmra.mxu0 %v1326
        %v4361 = vpop.f32.mrf.mxu0
        %v4362 = vadd.f32 %v4249, %v4361
        %4363 = vmatmul.f32.gmra.mxu0 %v1332
        %v4364 = vpop.f32.mrf.mxu0
        %v4365 = vadd.f32 %v4252, %v4364
        %4366 = vmatmul.f32.gmra.mxu0 %v1338
        %v4367 = vpop.f32.mrf.mxu0
        %v4368 = vadd.f32 %v4255, %v4367
        %4369 = vmatmul.f32.gmra.mxu0 %v1344
        %v4370 = vpop.f32.mrf.mxu0
        %v4371 = vadd.f32 %v4258, %v4370
        %4372 = vmatmul.f32.gmra.mxu0 %v1350
        %v4373 = vpop.f32.mrf.mxu0
        %v4374 = vadd.f32 %v4261, %v4373
        %4375 = vmatmul.f32.gmra.mxu0 %v1356
        %v4376 = vpop.f32.mrf.mxu0
        %v4377 = vadd.f32 %v4264, %v4376
        %4378 = vmatmul.f32.gmra.mxu0 %v1362
        %v4379 = vpop.f32.mrf.mxu0
        %v4380 = vadd.f32 %v4267, %v4379
        %4381 = vmatmul.f32.gmra.mxu0 %v1368
        %v4382 = vpop.f32.mrf.mxu0
        %v4383 = vadd.f32 %v4270, %v4382
        %4384 = vmatmul.f32.gmra.mxu0 %v1374
        %v4385 = vpop.f32.mrf.mxu0
        %v4386 = vadd.f32 %v4273, %v4385
        %4387 = vmatmul.f32.gmra.mxu0 %v1380
        %v4388 = vpop.f32.mrf.mxu0
        %v4389 = vadd.f32 %v4276, %v4388
        %4390 = vmatmul.f32.gmra.mxu0 %v1386
        %v4391 = vpop.f32.mrf.mxu0
        %v4392 = vadd.f32 %v4279, %v4391
        %4393 = vmatmul.f32.gmra.mxu0 %v1392
        %v4394 = vpop.f32.mrf.mxu0
        %v4395 = vadd.f32 %v4282, %v4394
        %4396 = vmatmul.f32.gmra.mxu0 %v1398
        %v4397 = vpop.f32.mrf.mxu0
        %v4398 = vadd.f32 %v4285, %v4397
        %4399 = vmatmul.f32.gmra.mxu0 %v1404
        %v4400 = vpop.f32.mrf.mxu0
        %v4401 = vadd.f32 %v4288, %v4400
        %4402 = vmatmul.f32.gmra.mxu0 %v1410
        %v4403 = vpop.f32.mrf.mxu0
        %v4404 = vadd.f32 %v4291, %v4403
        %4405 = vmatmul.f32.gmra.mxu0 %v1416
        %v4406 = vpop.f32.mrf.mxu0
        %v4407 = vadd.f32 %v4294, %v4406
        %4408 = vmatmul.f32.gmra.mxu0 %v1422
        %v4409 = vpop.f32.mrf.mxu0
        %v4410 = vadd.f32 %v4297, %v4409
        %4411 = vmatmul.f32.gmra.mxu0 %v1428
        %v4412 = vpop.f32.mrf.mxu0
        %v4413 = vadd.f32 %v4300, %v4412
        %4414 = vmatmul.f32.gmra.mxu0 %v1434
        %v4415 = vpop.f32.mrf.mxu0
        %v4416 = vadd.f32 %v4303, %v4415
        %4417 = vmatmul.f32.gmra.mxu0 %v1440
        %v4418 = vpop.f32.mrf.mxu0
        %v4419 = vadd.f32 %v4306, %v4418
        %4420 = vmatmul.f32.gmra.mxu0 %v1446
        %v4421 = vpop.f32.mrf.mxu0
        %v4422 = vadd.f32 %v4309, %v4421
        %4423 = vmatmul.f32.gmra.mxu0 %v1452
        %v4424 = vpop.f32.mrf.mxu0
        %v4425 = vadd.f32 %v4312, %v4424
        %4426 = vmatmul.f32.gmra.mxu0 %v1458
        %v4427 = vpop.f32.mrf.mxu0
        %v4428 = vadd.f32 %v4315, %v4427
        %4429 = vdwg.mxu0
        %4430 = vmatpush.msra.mxu0 %v1780
        %4431 = vmatpush.msra.mxu0 %v1775
        %4432 = vmatpush.msra.mxu0 %v1770
        %4433 = vmatpush.msra.mxu0 %v1765
        %4434 = vmatpush.msra.mxu0 %v1760
        %4435 = vmatpush.msra.mxu0 %v1755
        %4436 = vmatpush.msra.mxu0 %v1750
        %4437 = vmatpush.msra.mxu0 %v1745
        %4438 = vmatpush.msra.mxu0 %v1740
        %4439 = vmatpush.msra.mxu0 %v1735
        %4440 = vmatpush.msra.mxu0 %v1730
        %4441 = vmatpush.msra.mxu0 %v1725
        %4442 = vmatpush.msra.mxu0 %v1720
        %4443 = vmatpush.msra.mxu0 %v1715
        %4444 = vmatpush.msra.mxu0 %v1710
        %4445 = vmatpush.msra.mxu0 %v1705
        %4446 = vmatmul.f32.gmra.mxu0 %v1273
        %v4447 = vpop.f32.mrf.mxu0
        %v4448 = vadd.f32 %v4335, %v4447
        %4449 = vmatmul.f32.gmra.mxu0 %v1279
        %v4450 = vpop.f32.mrf.mxu0
        %v4451 = vadd.f32 %v4338, %v4450
        %4452 = vmatmul.f32.gmra.mxu0 %v1285
        %v4453 = vpop.f32.mrf.mxu0
        %v4454 = vadd.f32 %v4341, %v4453
        %4455 = vmatmul.f32.gmra.mxu0 %v1291
        %v4456 = vpop.f32.mrf.mxu0
        %v4457 = vadd.f32 %v4344, %v4456
        %4458 = vmatmul.f32.gmra.mxu0 %v1297
        %v4459 = vpop.f32.mrf.mxu0
        %v4460 = vadd.f32 %v4347, %v4459
        %4461 = vmatmul.f32.gmra.mxu0 %v1303
        %v4462 = vpop.f32.mrf.mxu0
        %v4463 = vadd.f32 %v4350, %v4462
        %4464 = vmatmul.f32.gmra.mxu0 %v1309
        %v4465 = vpop.f32.mrf.mxu0
        %v4466 = vadd.f32 %v4353, %v4465
        %4467 = vmatmul.f32.gmra.mxu0 %v1315
        %v4468 = vpop.f32.mrf.mxu0
        %v4469 = vadd.f32 %v4356, %v4468
        %4470 = vmatmul.f32.gmra.mxu0 %v1321
        %v4471 = vpop.f32.mrf.mxu0
        %v4472 = vadd.f32 %v4359, %v4471
        %4473 = vmatmul.f32.gmra.mxu0 %v1327
        %v4474 = vpop.f32.mrf.mxu0
        %v4475 = vadd.f32 %v4362, %v4474
        %4476 = vmatmul.f32.gmra.mxu0 %v1333
        %v4477 = vpop.f32.mrf.mxu0
        %v4478 = vadd.f32 %v4365, %v4477
        %4479 = vmatmul.f32.gmra.mxu0 %v1339
        %v4480 = vpop.f32.mrf.mxu0
        %v4481 = vadd.f32 %v4368, %v4480
        %4482 = vmatmul.f32.gmra.mxu0 %v1345
        %v4483 = vpop.f32.mrf.mxu0
        %v4484 = vadd.f32 %v4371, %v4483
        %4485 = vmatmul.f32.gmra.mxu0 %v1351
        %v4486 = vpop.f32.mrf.mxu0
        %v4487 = vadd.f32 %v4374, %v4486
        %4488 = vmatmul.f32.gmra.mxu0 %v1357
        %v4489 = vpop.f32.mrf.mxu0
        %v4490 = vadd.f32 %v4377, %v4489
        %4491 = vmatmul.f32.gmra.mxu0 %v1363
        %v4492 = vpop.f32.mrf.mxu0
        %v4493 = vadd.f32 %v4380, %v4492
        %4494 = vmatmul.f32.gmra.mxu0 %v1369
        %v4495 = vpop.f32.mrf.mxu0
        %v4496 = vadd.f32 %v4383, %v4495
        %4497 = vmatmul.f32.gmra.mxu0 %v1375
        %v4498 = vpop.f32.mrf.mxu0
        %v4499 = vadd.f32 %v4386, %v4498
        %4500 = vmatmul.f32.gmra.mxu0 %v1381
        %v4501 = vpop.f32.mrf.mxu0
        %v4502 = vadd.f32 %v4389, %v4501
        %4503 = vmatmul.f32.gmra.mxu0 %v1387
        %v4504 = vpop.f32.mrf.mxu0
        %v4505 = vadd.f32 %v4392, %v4504
        %4506 = vmatmul.f32.gmra.mxu0 %v1393
        %v4507 = vpop.f32.mrf.mxu0
        %v4508 = vadd.f32 %v4395, %v4507
        %4509 = vmatmul.f32.gmra.mxu0 %v1399
        %v4510 = vpop.f32.mrf.mxu0
        %v4511 = vadd.f32 %v4398, %v4510
        %4512 = vmatmul.f32.gmra.mxu0 %v1405
        %v4513 = vpop.f32.mrf.mxu0
        %v4514 = vadd.f32 %v4401, %v4513
        %4515 = vmatmul.f32.gmra.mxu0 %v1411
        %v4516 = vpop.f32.mrf.mxu0
        %v4517 = vadd.f32 %v4404, %v4516
        %4518 = vmatmul.f32.gmra.mxu0 %v1417
        %v4519 = vpop.f32.mrf.mxu0
        %v4520 = vadd.f32 %v4407, %v4519
        %4521 = vmatmul.f32.gmra.mxu0 %v1423
        %v4522 = vpop.f32.mrf.mxu0
        %v4523 = vadd.f32 %v4410, %v4522
        %4524 = vmatmul.f32.gmra.mxu0 %v1429
        %v4525 = vpop.f32.mrf.mxu0
        %v4526 = vadd.f32 %v4413, %v4525
        %4527 = vmatmul.f32.gmra.mxu0 %v1435
        %v4528 = vpop.f32.mrf.mxu0
        %v4529 = vadd.f32 %v4416, %v4528
        %4530 = vmatmul.f32.gmra.mxu0 %v1441
        %v4531 = vpop.f32.mrf.mxu0
        %v4532 = vadd.f32 %v4419, %v4531
        %4533 = vmatmul.f32.gmra.mxu0 %v1447
        %v4534 = vpop.f32.mrf.mxu0
        %v4535 = vadd.f32 %v4422, %v4534
        %4536 = vmatmul.f32.gmra.mxu0 %v1453
        %v4537 = vpop.f32.mrf.mxu0
        %v4538 = vadd.f32 %v4425, %v4537
        %4539 = vmatmul.f32.gmra.mxu0 %v1459
        %v4540 = vpop.f32.mrf.mxu0
        %v4541 = vadd.f32 %v4428, %v4540
        %4542 = vdwg.mxu0
        %4543 = vmatpush.msra.mxu0 %v1860
        %4544 = vmatpush.msra.mxu0 %v1855
        %4545 = vmatpush.msra.mxu0 %v1850
        %4546 = vmatpush.msra.mxu0 %v1845
        %4547 = vmatpush.msra.mxu0 %v1840
        %4548 = vmatpush.msra.mxu0 %v1835
        %4549 = vmatpush.msra.mxu0 %v1830
        %4550 = vmatpush.msra.mxu0 %v1825
        %4551 = vmatpush.msra.mxu0 %v1820
        %4552 = vmatpush.msra.mxu0 %v1815
        %4553 = vmatpush.msra.mxu0 %v1810
        %4554 = vmatpush.msra.mxu0 %v1805
        %4555 = vmatpush.msra.mxu0 %v1800
        %4556 = vmatpush.msra.mxu0 %v1795
        %4557 = vmatpush.msra.mxu0 %v1790
        %4558 = vmatpush.msra.mxu0 %v1785
        %4559 = vmatmul.f32.gmra.mxu0 %v1274
        %v4560 = vpop.f32.mrf.mxu0
        %v4561 = vadd.f32 %v4448, %v4560
        %4562 = vmatmul.f32.gmra.mxu0 %v1280
        %v4563 = vpop.f32.mrf.mxu0
        %v4564 = vadd.f32 %v4451, %v4563
        %4565 = vmatmul.f32.gmra.mxu0 %v1286
        %v4566 = vpop.f32.mrf.mxu0
        %v4567 = vadd.f32 %v4454, %v4566
        %4568 = vmatmul.f32.gmra.mxu0 %v1292
        %v4569 = vpop.f32.mrf.mxu0
        %v4570 = vadd.f32 %v4457, %v4569
        %4571 = vmatmul.f32.gmra.mxu0 %v1298
        %v4572 = vpop.f32.mrf.mxu0
        %v4573 = vadd.f32 %v4460, %v4572
        %4574 = vmatmul.f32.gmra.mxu0 %v1304
        %v4575 = vpop.f32.mrf.mxu0
        %v4576 = vadd.f32 %v4463, %v4575
        %4577 = vmatmul.f32.gmra.mxu0 %v1310
        %v4578 = vpop.f32.mrf.mxu0
        %v4579 = vadd.f32 %v4466, %v4578
        %4580 = vmatmul.f32.gmra.mxu0 %v1316
        %v4581 = vpop.f32.mrf.mxu0
        %v4582 = vadd.f32 %v4469, %v4581
        %4583 = vmatmul.f32.gmra.mxu0 %v1322
        %v4584 = vpop.f32.mrf.mxu0
        %v4585 = vadd.f32 %v4472, %v4584
        %4586 = vmatmul.f32.gmra.mxu0 %v1328
        %v4587 = vpop.f32.mrf.mxu0
        %v4588 = vadd.f32 %v4475, %v4587
        %4589 = vmatmul.f32.gmra.mxu0 %v1334
        %v4590 = vpop.f32.mrf.mxu0
        %v4591 = vadd.f32 %v4478, %v4590
        %4592 = vmatmul.f32.gmra.mxu0 %v1340
        %v4593 = vpop.f32.mrf.mxu0
        %v4594 = vadd.f32 %v4481, %v4593
        %4595 = vmatmul.f32.gmra.mxu0 %v1346
        %v4596 = vpop.f32.mrf.mxu0
        %v4597 = vadd.f32 %v4484, %v4596
        %4598 = vmatmul.f32.gmra.mxu0 %v1352
        %v4599 = vpop.f32.mrf.mxu0
        %v4600 = vadd.f32 %v4487, %v4599
        %4601 = vmatmul.f32.gmra.mxu0 %v1358
        %v4602 = vpop.f32.mrf.mxu0
        %v4603 = vadd.f32 %v4490, %v4602
        %4604 = vmatmul.f32.gmra.mxu0 %v1364
        %v4605 = vpop.f32.mrf.mxu0
        %v4606 = vadd.f32 %v4493, %v4605
        %4607 = vmatmul.f32.gmra.mxu0 %v1370
        %v4608 = vpop.f32.mrf.mxu0
        %v4609 = vadd.f32 %v4496, %v4608
        %4610 = vmatmul.f32.gmra.mxu0 %v1376
        %v4611 = vpop.f32.mrf.mxu0
        %v4612 = vadd.f32 %v4499, %v4611
        %4613 = vmatmul.f32.gmra.mxu0 %v1382
        %v4614 = vpop.f32.mrf.mxu0
        %v4615 = vadd.f32 %v4502, %v4614
        %4616 = vmatmul.f32.gmra.mxu0 %v1388
        %v4617 = vpop.f32.mrf.mxu0
        %v4618 = vadd.f32 %v4505, %v4617
        %4619 = vmatmul.f32.gmra.mxu0 %v1394
        %v4620 = vpop.f32.mrf.mxu0
        %v4621 = vadd.f32 %v4508, %v4620
        %4622 = vmatmul.f32.gmra.mxu0 %v1400
        %v4623 = vpop.f32.mrf.mxu0
        %v4624 = vadd.f32 %v4511, %v4623
        %4625 = vmatmul.f32.gmra.mxu0 %v1406
        %v4626 = vpop.f32.mrf.mxu0
        %v4627 = vadd.f32 %v4514, %v4626
        %4628 = vmatmul.f32.gmra.mxu0 %v1412
        %v4629 = vpop.f32.mrf.mxu0
        %v4630 = vadd.f32 %v4517, %v4629
        %4631 = vmatmul.f32.gmra.mxu0 %v1418
        %v4632 = vpop.f32.mrf.mxu0
        %v4633 = vadd.f32 %v4520, %v4632
        %4634 = vmatmul.f32.gmra.mxu0 %v1424
        %v4635 = vpop.f32.mrf.mxu0
        %v4636 = vadd.f32 %v4523, %v4635
        %4637 = vmatmul.f32.gmra.mxu0 %v1430
        %v4638 = vpop.f32.mrf.mxu0
        %v4639 = vadd.f32 %v4526, %v4638
        %4640 = vmatmul.f32.gmra.mxu0 %v1436
        %v4641 = vpop.f32.mrf.mxu0
        %v4642 = vadd.f32 %v4529, %v4641
        %4643 = vmatmul.f32.gmra.mxu0 %v1442
        %v4644 = vpop.f32.mrf.mxu0
        %v4645 = vadd.f32 %v4532, %v4644
        %4646 = vmatmul.f32.gmra.mxu0 %v1448
        %v4647 = vpop.f32.mrf.mxu0
        %v4648 = vadd.f32 %v4535, %v4647
        %4649 = vmatmul.f32.gmra.mxu0 %v1454
        %v4650 = vpop.f32.mrf.mxu0
        %v4651 = vadd.f32 %v4538, %v4650
        %4652 = vmatmul.f32.gmra.mxu0 %v1460
        %v4653 = vpop.f32.mrf.mxu0
        %v4654 = vadd.f32 %v4541, %v4653
        %4655 = vdwg.mxu0
        %4656 = vmatpush.msra.mxu0 0.0
        %4657 = vmatpush.msra.mxu0 0.0
        %4658 = vmatpush.msra.mxu0 %v2052
        %4659 = vmatpush.msra.mxu0 %v1925
        %4660 = vmatpush.msra.mxu0 %v1920
        %4661 = vmatpush.msra.mxu0 %v1915
        %4662 = vmatpush.msra.mxu0 %v1910
        %4663 = vmatpush.msra.mxu0 %v1905
        %4664 = vmatpush.msra.mxu0 %v1900
        %4665 = vmatpush.msra.mxu0 %v1895
        %4666 = vmatpush.msra.mxu0 %v1890
        %4667 = vmatpush.msra.mxu0 %v1885
        %4668 = vmatpush.msra.mxu0 %v1880
        %4669 = vmatpush.msra.mxu0 %v1875
        %4670 = vmatpush.msra.mxu0 %v1870
        %4671 = vmatpush.msra.mxu0 %v1865
        %4672 = vmatmul.f32.gmra.mxu0 %v1946
        %v4673 = vpop.f32.mrf.mxu0
        %v4674 = vadd.f32 %v4561, %v4673
        %4675 = vmatmul.f32.gmra.mxu0 %v1949
        %v4676 = vpop.f32.mrf.mxu0
        %v4677 = vadd.f32 %v4564, %v4676
        %4678 = vmatmul.f32.gmra.mxu0 %v1952
        %v4679 = vpop.f32.mrf.mxu0
        %v4680 = vadd.f32 %v4567, %v4679
        %4681 = vmatmul.f32.gmra.mxu0 %v1955
        %v4682 = vpop.f32.mrf.mxu0
        %v4683 = vadd.f32 %v4570, %v4682
        %4684 = vmatmul.f32.gmra.mxu0 %v1958
        %v4685 = vpop.f32.mrf.mxu0
        %v4686 = vadd.f32 %v4573, %v4685
        %4687 = vmatmul.f32.gmra.mxu0 %v1961
        %v4688 = vpop.f32.mrf.mxu0
        %v4689 = vadd.f32 %v4576, %v4688
        %4690 = vmatmul.f32.gmra.mxu0 %v1964
        %v4691 = vpop.f32.mrf.mxu0
        %v4692 = vadd.f32 %v4579, %v4691
        %4693 = vmatmul.f32.gmra.mxu0 %v1967
        %v4694 = vpop.f32.mrf.mxu0
        %v4695 = vadd.f32 %v4582, %v4694
        %4696 = vmatmul.f32.gmra.mxu0 %v1970
        %v4697 = vpop.f32.mrf.mxu0
        %v4698 = vadd.f32 %v4585, %v4697
        %4699 = vmatmul.f32.gmra.mxu0 %v1973
        %v4700 = vpop.f32.mrf.mxu0
        %v4701 = vadd.f32 %v4588, %v4700
        %4702 = vmatmul.f32.gmra.mxu0 %v1976
        %v4703 = vpop.f32.mrf.mxu0
        %v4704 = vadd.f32 %v4591, %v4703
        %4705 = vmatmul.f32.gmra.mxu0 %v1979
        %v4706 = vpop.f32.mrf.mxu0
        %v4707 = vadd.f32 %v4594, %v4706
        %4708 = vmatmul.f32.gmra.mxu0 %v1982
        %v4709 = vpop.f32.mrf.mxu0
        %v4710 = vadd.f32 %v4597, %v4709
        %4711 = vmatmul.f32.gmra.mxu0 %v1985
        %v4712 = vpop.f32.mrf.mxu0
        %v4713 = vadd.f32 %v4600, %v4712
        %4714 = vmatmul.f32.gmra.mxu0 %v1988
        %v4715 = vpop.f32.mrf.mxu0
        %v4716 = vadd.f32 %v4603, %v4715
        %4717 = vmatmul.f32.gmra.mxu0 %v1991
        %v4718 = vpop.f32.mrf.mxu0
        %v4719 = vadd.f32 %v4606, %v4718
        %4720 = vmatmul.f32.gmra.mxu0 %v1994
        %v4721 = vpop.f32.mrf.mxu0
        %v4722 = vadd.f32 %v4609, %v4721
        %4723 = vmatmul.f32.gmra.mxu0 %v1997
        %v4724 = vpop.f32.mrf.mxu0
        %v4725 = vadd.f32 %v4612, %v4724
        %4726 = vmatmul.f32.gmra.mxu0 %v2000
        %v4727 = vpop.f32.mrf.mxu0
        %v4728 = vadd.f32 %v4615, %v4727
        %4729 = vmatmul.f32.gmra.mxu0 %v2003
        %v4730 = vpop.f32.mrf.mxu0
        %v4731 = vadd.f32 %v4618, %v4730
        %4732 = vmatmul.f32.gmra.mxu0 %v2006
        %v4733 = vpop.f32.mrf.mxu0
        %v4734 = vadd.f32 %v4621, %v4733
        %4735 = vmatmul.f32.gmra.mxu0 %v2009
        %v4736 = vpop.f32.mrf.mxu0
        %v4737 = vadd.f32 %v4624, %v4736
        %4738 = vmatmul.f32.gmra.mxu0 %v2012
        %v4739 = vpop.f32.mrf.mxu0
        %v4740 = vadd.f32 %v4627, %v4739
        %4741 = vmatmul.f32.gmra.mxu0 %v2015
        %v4742 = vpop.f32.mrf.mxu0
        %v4743 = vadd.f32 %v4630, %v4742
        %4744 = vmatmul.f32.gmra.mxu0 %v2018
        %v4745 = vpop.f32.mrf.mxu0
        %v4746 = vadd.f32 %v4633, %v4745
        %4747 = vmatmul.f32.gmra.mxu0 %v2021
        %v4748 = vpop.f32.mrf.mxu0
        %v4749 = vadd.f32 %v4636, %v4748
        %4750 = vmatmul.f32.gmra.mxu0 %v2024
        %v4751 = vpop.f32.mrf.mxu0
        %v4752 = vadd.f32 %v4639, %v4751
        %4753 = vmatmul.f32.gmra.mxu0 %v2027
        %v4754 = vpop.f32.mrf.mxu0
        %v4755 = vadd.f32 %v4642, %v4754
        %4756 = vmatmul.f32.gmra.mxu0 %v2030
        %v4757 = vpop.f32.mrf.mxu0
        %v4758 = vadd.f32 %v4645, %v4757
        %4759 = vmatmul.f32.gmra.mxu0 %v2033
        %v4760 = vpop.f32.mrf.mxu0
        %v4761 = vadd.f32 %v4648, %v4760
        %4762 = vmatmul.f32.gmra.mxu0 %v2036
        %v4763 = vpop.f32.mrf.mxu0
        %v4764 = vadd.f32 %v4651, %v4763
        %4765 = vmatmul.f32.gmra.mxu0 %v2039
        %v4766 = vpop.f32.mrf.mxu0
        %v4767 = vadd.f32 %v4654, %v4766
        %4768 = vdwg.mxu0
        %4769 = vmatpush.msra.mxu0 %v1541
        %4770 = vmatpush.msra.mxu0 %v1536
        %4771 = vmatpush.msra.mxu0 %v1531
        %4772 = vmatpush.msra.mxu0 %v1526
        %4773 = vmatpush.msra.mxu0 %v1521
        %4774 = vmatpush.msra.mxu0 %v1516
        %4775 = vmatpush.msra.mxu0 %v1511
        %4776 = vmatpush.msra.mxu0 %v1506
        %4777 = vmatpush.msra.mxu0 %v1501
        %4778 = vmatpush.msra.mxu0 %v1496
        %4779 = vmatpush.msra.mxu0 %v1491
        %4780 = vmatpush.msra.mxu0 %v1486
        %4781 = vmatpush.msra.mxu0 %v1481
        %4782 = vmatpush.msra.mxu0 %v1476
        %4783 = vmatpush.msra.mxu0 %v1471
        %4784 = vmatpush.msra.mxu0 %v1466
        %4785 = vmatmul.f32.gmra.mxu0 %v1270
        %v4786 = vpop.f32.mrf.mxu0
        %v4787 = vadd.f32 %v1938, %v4786
        %4788 = vmatmul.f32.gmra.mxu0 %v1276
        %v4789 = vpop.f32.mrf.mxu0
        %v4790 = vadd.f32 %v1938, %v4789
        %4791 = vmatmul.f32.gmra.mxu0 %v1282
        %v4792 = vpop.f32.mrf.mxu0
        %v4793 = vadd.f32 %v1938, %v4792
        %4794 = vmatmul.f32.gmra.mxu0 %v1288
        %v4795 = vpop.f32.mrf.mxu0
        %v4796 = vadd.f32 %v1938, %v4795
        %4797 = vmatmul.f32.gmra.mxu0 %v1294
        %v4798 = vpop.f32.mrf.mxu0
        %v4799 = vadd.f32 %v1938, %v4798
        %4800 = vmatmul.f32.gmra.mxu0 %v1300
        %v4801 = vpop.f32.mrf.mxu0
        %v4802 = vadd.f32 %v1938, %v4801
        %4803 = vmatmul.f32.gmra.mxu0 %v1306
        %v4804 = vpop.f32.mrf.mxu0
        %v4805 = vadd.f32 %v1938, %v4804
        %4806 = vmatmul.f32.gmra.mxu0 %v1312
        %v4807 = vpop.f32.mrf.mxu0
        %v4808 = vadd.f32 %v1938, %v4807
        %4809 = vmatmul.f32.gmra.mxu0 %v1318
        %v4810 = vpop.f32.mrf.mxu0
        %v4811 = vadd.f32 %v1938, %v4810
        %4812 = vmatmul.f32.gmra.mxu0 %v1324
        %v4813 = vpop.f32.mrf.mxu0
        %v4814 = vadd.f32 %v1938, %v4813
        %4815 = vmatmul.f32.gmra.mxu0 %v1330
        %v4816 = vpop.f32.mrf.mxu0
        %v4817 = vadd.f32 %v1938, %v4816
        %4818 = vmatmul.f32.gmra.mxu0 %v1336
        %v4819 = vpop.f32.mrf.mxu0
        %v4820 = vadd.f32 %v1938, %v4819
        %4821 = vmatmul.f32.gmra.mxu0 %v1342
        %v4822 = vpop.f32.mrf.mxu0
        %v4823 = vadd.f32 %v1938, %v4822
        %4824 = vmatmul.f32.gmra.mxu0 %v1348
        %v4825 = vpop.f32.mrf.mxu0
        %v4826 = vadd.f32 %v1938, %v4825
        %4827 = vmatmul.f32.gmra.mxu0 %v1354
        %v4828 = vpop.f32.mrf.mxu0
        %v4829 = vadd.f32 %v1938, %v4828
        %4830 = vmatmul.f32.gmra.mxu0 %v1360
        %v4831 = vpop.f32.mrf.mxu0
        %v4832 = vadd.f32 %v1938, %v4831
        %4833 = vmatmul.f32.gmra.mxu0 %v1366
        %v4834 = vpop.f32.mrf.mxu0
        %v4835 = vadd.f32 %v1938, %v4834
        %4836 = vmatmul.f32.gmra.mxu0 %v1372
        %v4837 = vpop.f32.mrf.mxu0
        %v4838 = vadd.f32 %v1938, %v4837
        %4839 = vmatmul.f32.gmra.mxu0 %v1378
        %v4840 = vpop.f32.mrf.mxu0
        %v4841 = vadd.f32 %v1938, %v4840
        %4842 = vmatmul.f32.gmra.mxu0 %v1384
        %v4843 = vpop.f32.mrf.mxu0
        %v4844 = vadd.f32 %v1938, %v4843
        %4845 = vmatmul.f32.gmra.mxu0 %v1390
        %v4846 = vpop.f32.mrf.mxu0
        %v4847 = vadd.f32 %v1938, %v4846
        %4848 = vmatmul.f32.gmra.mxu0 %v1396
        %v4849 = vpop.f32.mrf.mxu0
        %v4850 = vadd.f32 %v1938, %v4849
        %4851 = vmatmul.f32.gmra.mxu0 %v1402
        %v4852 = vpop.f32.mrf.mxu0
        %v4853 = vadd.f32 %v1938, %v4852
        %4854 = vmatmul.f32.gmra.mxu0 %v1408
        %v4855 = vpop.f32.mrf.mxu0
        %v4856 = vadd.f32 %v1938, %v4855
        %4857 = vmatmul.f32.gmra.mxu0 %v1414
        %v4858 = vpop.f32.mrf.mxu0
        %v4859 = vadd.f32 %v1938, %v4858
        %4860 = vmatmul.f32.gmra.mxu0 %v1420
        %v4861 = vpop.f32.mrf.mxu0
        %v4862 = vadd.f32 %v1938, %v4861
        %4863 = vmatmul.f32.gmra.mxu0 %v1426
        %v4864 = vpop.f32.mrf.mxu0
        %v4865 = vadd.f32 %v1938, %v4864
        %4866 = vmatmul.f32.gmra.mxu0 %v1432
        %v4867 = vpop.f32.mrf.mxu0
        %v4868 = vadd.f32 %v1938, %v4867
        %4869 = vmatmul.f32.gmra.mxu0 %v1438
        %v4870 = vpop.f32.mrf.mxu0
        %v4871 = vadd.f32 %v1938, %v4870
        %4872 = vmatmul.f32.gmra.mxu0 %v1444
        %v4873 = vpop.f32.mrf.mxu0
        %v4874 = vadd.f32 %v1938, %v4873
        %4875 = vmatmul.f32.gmra.mxu0 %v1450
        %v4876 = vpop.f32.mrf.mxu0
        %v4877 = vadd.f32 %v1938, %v4876
        %4878 = vmatmul.f32.gmra.mxu0 %v1456
        %v4879 = vpop.f32.mrf.mxu0
        %v4880 = vadd.f32 %v1938, %v4879
        %4881 = vdwg.mxu0
        %4882 = vmatpush.msra.mxu0 %v1621
        %4883 = vmatpush.msra.mxu0 %v1616
        %4884 = vmatpush.msra.mxu0 %v1611
        %4885 = vmatpush.msra.mxu0 %v1606
        %4886 = vmatpush.msra.mxu0 %v1601
        %4887 = vmatpush.msra.mxu0 %v1596
        %4888 = vmatpush.msra.mxu0 %v1591
        %4889 = vmatpush.msra.mxu0 %v1586
        %4890 = vmatpush.msra.mxu0 %v1581
        %4891 = vmatpush.msra.mxu0 %v1576
        %4892 = vmatpush.msra.mxu0 %v1571
        %4893 = vmatpush.msra.mxu0 %v1566
        %4894 = vmatpush.msra.mxu0 %v1561
        %4895 = vmatpush.msra.mxu0 %v1556
        %4896 = vmatpush.msra.mxu0 %v1551
        %4897 = vmatpush.msra.mxu0 %v1546
        %4898 = vmatmul.f32.gmra.mxu0 %v1271
        %v4899 = vpop.f32.mrf.mxu0
        %v4900 = vadd.f32 %v4787, %v4899
        %4901 = vmatmul.f32.gmra.mxu0 %v1277
        %v4902 = vpop.f32.mrf.mxu0
        %v4903 = vadd.f32 %v4790, %v4902
        %4904 = vmatmul.f32.gmra.mxu0 %v1283
        %v4905 = vpop.f32.mrf.mxu0
        %v4906 = vadd.f32 %v4793, %v4905
        %4907 = vmatmul.f32.gmra.mxu0 %v1289
        %v4908 = vpop.f32.mrf.mxu0
        %v4909 = vadd.f32 %v4796, %v4908
        %4910 = vmatmul.f32.gmra.mxu0 %v1295
        %v4911 = vpop.f32.mrf.mxu0
        %v4912 = vadd.f32 %v4799, %v4911
        %4913 = vmatmul.f32.gmra.mxu0 %v1301
        %v4914 = vpop.f32.mrf.mxu0
        %v4915 = vadd.f32 %v4802, %v4914
        %4916 = vmatmul.f32.gmra.mxu0 %v1307
        %v4917 = vpop.f32.mrf.mxu0
        %v4918 = vadd.f32 %v4805, %v4917
        %4919 = vmatmul.f32.gmra.mxu0 %v1313
        %v4920 = vpop.f32.mrf.mxu0
        %v4921 = vadd.f32 %v4808, %v4920
        %4922 = vmatmul.f32.gmra.mxu0 %v1319
        %v4923 = vpop.f32.mrf.mxu0
        %v4924 = vadd.f32 %v4811, %v4923
        %4925 = vmatmul.f32.gmra.mxu0 %v1325
        %v4926 = vpop.f32.mrf.mxu0
        %v4927 = vadd.f32 %v4814, %v4926
        %4928 = vmatmul.f32.gmra.mxu0 %v1331
        %v4929 = vpop.f32.mrf.mxu0
        %v4930 = vadd.f32 %v4817, %v4929
        %4931 = vmatmul.f32.gmra.mxu0 %v1337
        %v4932 = vpop.f32.mrf.mxu0
        %v4933 = vadd.f32 %v4820, %v4932
        %4934 = vmatmul.f32.gmra.mxu0 %v1343
        %v4935 = vpop.f32.mrf.mxu0
        %v4936 = vadd.f32 %v4823, %v4935
        %4937 = vmatmul.f32.gmra.mxu0 %v1349
        %v4938 = vpop.f32.mrf.mxu0
        %v4939 = vadd.f32 %v4826, %v4938
        %4940 = vmatmul.f32.gmra.mxu0 %v1355
        %v4941 = vpop.f32.mrf.mxu0
        %v4942 = vadd.f32 %v4829, %v4941
        %4943 = vmatmul.f32.gmra.mxu0 %v1361
        %v4944 = vpop.f32.mrf.mxu0
        %v4945 = vadd.f32 %v4832, %v4944
        %4946 = vmatmul.f32.gmra.mxu0 %v1367
        %v4947 = vpop.f32.mrf.mxu0
        %v4948 = vadd.f32 %v4835, %v4947
        %4949 = vmatmul.f32.gmra.mxu0 %v1373
        %v4950 = vpop.f32.mrf.mxu0
        %v4951 = vadd.f32 %v4838, %v4950
        %4952 = vmatmul.f32.gmra.mxu0 %v1379
        %v4953 = vpop.f32.mrf.mxu0
        %v4954 = vadd.f32 %v4841, %v4953
        %4955 = vmatmul.f32.gmra.mxu0 %v1385
        %v4956 = vpop.f32.mrf.mxu0
        %v4957 = vadd.f32 %v4844, %v4956
        %4958 = vmatmul.f32.gmra.mxu0 %v1391
        %v4959 = vpop.f32.mrf.mxu0
        %v4960 = vadd.f32 %v4847, %v4959
        %4961 = vmatmul.f32.gmra.mxu0 %v1397
        %v4962 = vpop.f32.mrf.mxu0
        %v4963 = vadd.f32 %v4850, %v4962
        %4964 = vmatmul.f32.gmra.mxu0 %v1403
        %v4965 = vpop.f32.mrf.mxu0
        %v4966 = vadd.f32 %v4853, %v4965
        %4967 = vmatmul.f32.gmra.mxu0 %v1409
        %v4968 = vpop.f32.mrf.mxu0
        %v4969 = vadd.f32 %v4856, %v4968
        %4970 = vmatmul.f32.gmra.mxu0 %v1415
        %v4971 = vpop.f32.mrf.mxu0
        %v4972 = vadd.f32 %v4859, %v4971
        %4973 = vmatmul.f32.gmra.mxu0 %v1421
        %v4974 = vpop.f32.mrf.mxu0
        %v4975 = vadd.f32 %v4862, %v4974
        %4976 = vmatmul.f32.gmra.mxu0 %v1427
        %v4977 = vpop.f32.mrf.mxu0
        %v4978 = vadd.f32 %v4865, %v4977
        %4979 = vmatmul.f32.gmra.mxu0 %v1433
        %v4980 = vpop.f32.mrf.mxu0
        %v4981 = vadd.f32 %v4868, %v4980
        %4982 = vmatmul.f32.gmra.mxu0 %v1439
        %v4983 = vpop.f32.mrf.mxu0
        %v4984 = vadd.f32 %v4871, %v4983
        %4985 = vmatmul.f32.gmra.mxu0 %v1445
        %v4986 = vpop.f32.mrf.mxu0
        %v4987 = vadd.f32 %v4874, %v4986
        %4988 = vmatmul.f32.gmra.mxu0 %v1451
        %v4989 = vpop.f32.mrf.mxu0
        %v4990 = vadd.f32 %v4877, %v4989
        %4991 = vmatmul.f32.gmra.mxu0 %v1457
        %v4992 = vpop.f32.mrf.mxu0
        %v4993 = vadd.f32 %v4880, %v4992
        %4994 = vdwg.mxu0
        %4995 = vmatpush.msra.mxu0 %v1701
        %4996 = vmatpush.msra.mxu0 %v1696
        %4997 = vmatpush.msra.mxu0 %v1691
        %4998 = vmatpush.msra.mxu0 %v1686
        %4999 = vmatpush.msra.mxu0 %v1681
        %5000 = vmatpush.msra.mxu0 %v1676
        %5001 = vmatpush.msra.mxu0 %v1671
        %5002 = vmatpush.msra.mxu0 %v1666
        %5003 = vmatpush.msra.mxu0 %v1661
        %5004 = vmatpush.msra.mxu0 %v1656
        %5005 = vmatpush.msra.mxu0 %v1651
        %5006 = vmatpush.msra.mxu0 %v1646
        %5007 = vmatpush.msra.mxu0 %v1641
        %5008 = vmatpush.msra.mxu0 %v1636
        %5009 = vmatpush.msra.mxu0 %v1631
        %5010 = vmatpush.msra.mxu0 %v1626
        %5011 = vmatmul.f32.gmra.mxu0 %v1272
        %v5012 = vpop.f32.mrf.mxu0
        %v5013 = vadd.f32 %v4900, %v5012
        %5014 = vmatmul.f32.gmra.mxu0 %v1278
        %v5015 = vpop.f32.mrf.mxu0
        %v5016 = vadd.f32 %v4903, %v5015
        %5017 = vmatmul.f32.gmra.mxu0 %v1284
        %v5018 = vpop.f32.mrf.mxu0
        %v5019 = vadd.f32 %v4906, %v5018
        %5020 = vmatmul.f32.gmra.mxu0 %v1290
        %v5021 = vpop.f32.mrf.mxu0
        %v5022 = vadd.f32 %v4909, %v5021
        %5023 = vmatmul.f32.gmra.mxu0 %v1296
        %v5024 = vpop.f32.mrf.mxu0
        %v5025 = vadd.f32 %v4912, %v5024
        %5026 = vmatmul.f32.gmra.mxu0 %v1302
        %v5027 = vpop.f32.mrf.mxu0
        %v5028 = vadd.f32 %v4915, %v5027
        %5029 = vmatmul.f32.gmra.mxu0 %v1308
        %v5030 = vpop.f32.mrf.mxu0
        %v5031 = vadd.f32 %v4918, %v5030
        %5032 = vmatmul.f32.gmra.mxu0 %v1314
        %v5033 = vpop.f32.mrf.mxu0
        %v5034 = vadd.f32 %v4921, %v5033
        %5035 = vmatmul.f32.gmra.mxu0 %v1320
        %v5036 = vpop.f32.mrf.mxu0
        %v5037 = vadd.f32 %v4924, %v5036
        %5038 = vmatmul.f32.gmra.mxu0 %v1326
        %v5039 = vpop.f32.mrf.mxu0
        %v5040 = vadd.f32 %v4927, %v5039
        %5041 = vmatmul.f32.gmra.mxu0 %v1332
        %v5042 = vpop.f32.mrf.mxu0
        %v5043 = vadd.f32 %v4930, %v5042
        %5044 = vmatmul.f32.gmra.mxu0 %v1338
        %v5045 = vpop.f32.mrf.mxu0
        %v5046 = vadd.f32 %v4933, %v5045
        %5047 = vmatmul.f32.gmra.mxu0 %v1344
        %v5048 = vpop.f32.mrf.mxu0
        %v5049 = vadd.f32 %v4936, %v5048
        %5050 = vmatmul.f32.gmra.mxu0 %v1350
        %v5051 = vpop.f32.mrf.mxu0
        %v5052 = vadd.f32 %v4939, %v5051
        %5053 = vmatmul.f32.gmra.mxu0 %v1356
        %v5054 = vpop.f32.mrf.mxu0
        %v5055 = vadd.f32 %v4942, %v5054
        %5056 = vmatmul.f32.gmra.mxu0 %v1362
        %v5057 = vpop.f32.mrf.mxu0
        %v5058 = vadd.f32 %v4945, %v5057
        %5059 = vmatmul.f32.gmra.mxu0 %v1368
        %v5060 = vpop.f32.mrf.mxu0
        %v5061 = vadd.f32 %v4948, %v5060
        %5062 = vmatmul.f32.gmra.mxu0 %v1374
        %v5063 = vpop.f32.mrf.mxu0
        %v5064 = vadd.f32 %v4951, %v5063
        %5065 = vmatmul.f32.gmra.mxu0 %v1380
        %v5066 = vpop.f32.mrf.mxu0
        %v5067 = vadd.f32 %v4954, %v5066
        %5068 = vmatmul.f32.gmra.mxu0 %v1386
        %v5069 = vpop.f32.mrf.mxu0
        %v5070 = vadd.f32 %v4957, %v5069
        %5071 = vmatmul.f32.gmra.mxu0 %v1392
        %v5072 = vpop.f32.mrf.mxu0
        %v5073 = vadd.f32 %v4960, %v5072
        %5074 = vmatmul.f32.gmra.mxu0 %v1398
        %v5075 = vpop.f32.mrf.mxu0
        %v5076 = vadd.f32 %v4963, %v5075
        %5077 = vmatmul.f32.gmra.mxu0 %v1404
        %v5078 = vpop.f32.mrf.mxu0
        %v5079 = vadd.f32 %v4966, %v5078
        %5080 = vmatmul.f32.gmra.mxu0 %v1410
        %v5081 = vpop.f32.mrf.mxu0
        %v5082 = vadd.f32 %v4969, %v5081
        %5083 = vmatmul.f32.gmra.mxu0 %v1416
        %v5084 = vpop.f32.mrf.mxu0
        %v5085 = vadd.f32 %v4972, %v5084
        %5086 = vmatmul.f32.gmra.mxu0 %v1422
        %v5087 = vpop.f32.mrf.mxu0
        %v5088 = vadd.f32 %v4975, %v5087
        %5089 = vmatmul.f32.gmra.mxu0 %v1428
        %v5090 = vpop.f32.mrf.mxu0
        %v5091 = vadd.f32 %v4978, %v5090
        %5092 = vmatmul.f32.gmra.mxu0 %v1434
        %v5093 = vpop.f32.mrf.mxu0
        %v5094 = vadd.f32 %v4981, %v5093
        %5095 = vmatmul.f32.gmra.mxu0 %v1440
        %v5096 = vpop.f32.mrf.mxu0
        %v5097 = vadd.f32 %v4984, %v5096
        %5098 = vmatmul.f32.gmra.mxu0 %v1446
        %v5099 = vpop.f32.mrf.mxu0
        %v5100 = vadd.f32 %v4987, %v5099
        %5101 = vmatmul.f32.gmra.mxu0 %v1452
        %v5102 = vpop.f32.mrf.mxu0
        %v5103 = vadd.f32 %v4990, %v5102
        %5104 = vmatmul.f32.gmra.mxu0 %v1458
        %v5105 = vpop.f32.mrf.mxu0
        %v5106 = vadd.f32 %v4993, %v5105
        %5107 = vdwg.mxu0
        %5108 = vmatpush.msra.mxu0 %v1781
        %5109 = vmatpush.msra.mxu0 %v1776
        %5110 = vmatpush.msra.mxu0 %v1771
        %5111 = vmatpush.msra.mxu0 %v1766
        %5112 = vmatpush.msra.mxu0 %v1761
        %5113 = vmatpush.msra.mxu0 %v1756
        %5114 = vmatpush.msra.mxu0 %v1751
        %5115 = vmatpush.msra.mxu0 %v1746
        %5116 = vmatpush.msra.mxu0 %v1741
        %5117 = vmatpush.msra.mxu0 %v1736
        %5118 = vmatpush.msra.mxu0 %v1731
        %5119 = vmatpush.msra.mxu0 %v1726
        %5120 = vmatpush.msra.mxu0 %v1721
        %5121 = vmatpush.msra.mxu0 %v1716
        %5122 = vmatpush.msra.mxu0 %v1711
        %5123 = vmatpush.msra.mxu0 %v1706
        %5124 = vmatmul.f32.gmra.mxu0 %v1273
        %v5125 = vpop.f32.mrf.mxu0
        %v5126 = vadd.f32 %v5013, %v5125
        %5127 = vmatmul.f32.gmra.mxu0 %v1279
        %v5128 = vpop.f32.mrf.mxu0
        %v5129 = vadd.f32 %v5016, %v5128
        %5130 = vmatmul.f32.gmra.mxu0 %v1285
        %v5131 = vpop.f32.mrf.mxu0
        %v5132 = vadd.f32 %v5019, %v5131
        %5133 = vmatmul.f32.gmra.mxu0 %v1291
        %v5134 = vpop.f32.mrf.mxu0
        %v5135 = vadd.f32 %v5022, %v5134
        %5136 = vmatmul.f32.gmra.mxu0 %v1297
        %v5137 = vpop.f32.mrf.mxu0
        %v5138 = vadd.f32 %v5025, %v5137
        %5139 = vmatmul.f32.gmra.mxu0 %v1303
        %v5140 = vpop.f32.mrf.mxu0
        %v5141 = vadd.f32 %v5028, %v5140
        %5142 = vmatmul.f32.gmra.mxu0 %v1309
        %v5143 = vpop.f32.mrf.mxu0
        %v5144 = vadd.f32 %v5031, %v5143
        %5145 = vmatmul.f32.gmra.mxu0 %v1315
        %v5146 = vpop.f32.mrf.mxu0
        %v5147 = vadd.f32 %v5034, %v5146
        %5148 = vmatmul.f32.gmra.mxu0 %v1321
        %v5149 = vpop.f32.mrf.mxu0
        %v5150 = vadd.f32 %v5037, %v5149
        %5151 = vmatmul.f32.gmra.mxu0 %v1327
        %v5152 = vpop.f32.mrf.mxu0
        %v5153 = vadd.f32 %v5040, %v5152
        %5154 = vmatmul.f32.gmra.mxu0 %v1333
        %v5155 = vpop.f32.mrf.mxu0
        %v5156 = vadd.f32 %v5043, %v5155
        %5157 = vmatmul.f32.gmra.mxu0 %v1339
        %v5158 = vpop.f32.mrf.mxu0
        %v5159 = vadd.f32 %v5046, %v5158
        %5160 = vmatmul.f32.gmra.mxu0 %v1345
        %v5161 = vpop.f32.mrf.mxu0
        %v5162 = vadd.f32 %v5049, %v5161
        %5163 = vmatmul.f32.gmra.mxu0 %v1351
        %v5164 = vpop.f32.mrf.mxu0
        %v5165 = vadd.f32 %v5052, %v5164
        %5166 = vmatmul.f32.gmra.mxu0 %v1357
        %v5167 = vpop.f32.mrf.mxu0
        %v5168 = vadd.f32 %v5055, %v5167
        %5169 = vmatmul.f32.gmra.mxu0 %v1363
        %v5170 = vpop.f32.mrf.mxu0
        %v5171 = vadd.f32 %v5058, %v5170
        %5172 = vmatmul.f32.gmra.mxu0 %v1369
        %v5173 = vpop.f32.mrf.mxu0
        %v5174 = vadd.f32 %v5061, %v5173
        %5175 = vmatmul.f32.gmra.mxu0 %v1375
        %v5176 = vpop.f32.mrf.mxu0
        %v5177 = vadd.f32 %v5064, %v5176
        %5178 = vmatmul.f32.gmra.mxu0 %v1381
        %v5179 = vpop.f32.mrf.mxu0
        %v5180 = vadd.f32 %v5067, %v5179
        %5181 = vmatmul.f32.gmra.mxu0 %v1387
        %v5182 = vpop.f32.mrf.mxu0
        %v5183 = vadd.f32 %v5070, %v5182
        %5184 = vmatmul.f32.gmra.mxu0 %v1393
        %v5185 = vpop.f32.mrf.mxu0
        %v5186 = vadd.f32 %v5073, %v5185
        %5187 = vmatmul.f32.gmra.mxu0 %v1399
        %v5188 = vpop.f32.mrf.mxu0
        %v5189 = vadd.f32 %v5076, %v5188
        %5190 = vmatmul.f32.gmra.mxu0 %v1405
        %v5191 = vpop.f32.mrf.mxu0
        %v5192 = vadd.f32 %v5079, %v5191
        %5193 = vmatmul.f32.gmra.mxu0 %v1411
        %v5194 = vpop.f32.mrf.mxu0
        %v5195 = vadd.f32 %v5082, %v5194
        %5196 = vmatmul.f32.gmra.mxu0 %v1417
        %v5197 = vpop.f32.mrf.mxu0
        %v5198 = vadd.f32 %v5085, %v5197
        %5199 = vmatmul.f32.gmra.mxu0 %v1423
        %v5200 = vpop.f32.mrf.mxu0
        %v5201 = vadd.f32 %v5088, %v5200
        %5202 = vmatmul.f32.gmra.mxu0 %v1429
        %v5203 = vpop.f32.mrf.mxu0
        %v5204 = vadd.f32 %v5091, %v5203
        %5205 = vmatmul.f32.gmra.mxu0 %v1435
        %v5206 = vpop.f32.mrf.mxu0
        %v5207 = vadd.f32 %v5094, %v5206
        %5208 = vmatmul.f32.gmra.mxu0 %v1441
        %v5209 = vpop.f32.mrf.mxu0
        %v5210 = vadd.f32 %v5097, %v5209
        %5211 = vmatmul.f32.gmra.mxu0 %v1447
        %v5212 = vpop.f32.mrf.mxu0
        %v5213 = vadd.f32 %v5100, %v5212
        %5214 = vmatmul.f32.gmra.mxu0 %v1453
        %v5215 = vpop.f32.mrf.mxu0
        %v5216 = vadd.f32 %v5103, %v5215
        %5217 = vmatmul.f32.gmra.mxu0 %v1459
        %v5218 = vpop.f32.mrf.mxu0
        %v5219 = vadd.f32 %v5106, %v5218
        %5220 = vdwg.mxu0
        %5221 = vmatpush.msra.mxu0 %v1861
        %5222 = vmatpush.msra.mxu0 %v1856
        %5223 = vmatpush.msra.mxu0 %v1851
        %5224 = vmatpush.msra.mxu0 %v1846
        %5225 = vmatpush.msra.mxu0 %v1841
        %5226 = vmatpush.msra.mxu0 %v1836
        %5227 = vmatpush.msra.mxu0 %v1831
        %5228 = vmatpush.msra.mxu0 %v1826
        %5229 = vmatpush.msra.mxu0 %v1821
        %5230 = vmatpush.msra.mxu0 %v1816
        %5231 = vmatpush.msra.mxu0 %v1811
        %5232 = vmatpush.msra.mxu0 %v1806
        %5233 = vmatpush.msra.mxu0 %v1801
        %5234 = vmatpush.msra.mxu0 %v1796
        %5235 = vmatpush.msra.mxu0 %v1791
        %5236 = vmatpush.msra.mxu0 %v1786
        %5237 = vmatmul.f32.gmra.mxu0 %v1274
        %v5238 = vpop.f32.mrf.mxu0
        %v5239 = vadd.f32 %v5126, %v5238
        %5240 = vmatmul.f32.gmra.mxu0 %v1280
        %v5241 = vpop.f32.mrf.mxu0
        %v5242 = vadd.f32 %v5129, %v5241
        %5243 = vmatmul.f32.gmra.mxu0 %v1286
        %v5244 = vpop.f32.mrf.mxu0
        %v5245 = vadd.f32 %v5132, %v5244
        %5246 = vmatmul.f32.gmra.mxu0 %v1292
        %v5247 = vpop.f32.mrf.mxu0
        %v5248 = vadd.f32 %v5135, %v5247
        %5249 = vmatmul.f32.gmra.mxu0 %v1298
        %v5250 = vpop.f32.mrf.mxu0
        %v5251 = vadd.f32 %v5138, %v5250
        %5252 = vmatmul.f32.gmra.mxu0 %v1304
        %v5253 = vpop.f32.mrf.mxu0
        %v5254 = vadd.f32 %v5141, %v5253
        %5255 = vmatmul.f32.gmra.mxu0 %v1310
        %v5256 = vpop.f32.mrf.mxu0
        %v5257 = vadd.f32 %v5144, %v5256
        %5258 = vmatmul.f32.gmra.mxu0 %v1316
        %v5259 = vpop.f32.mrf.mxu0
        %v5260 = vadd.f32 %v5147, %v5259
        %5261 = vmatmul.f32.gmra.mxu0 %v1322
        %v5262 = vpop.f32.mrf.mxu0
        %v5263 = vadd.f32 %v5150, %v5262
        %5264 = vmatmul.f32.gmra.mxu0 %v1328
        %v5265 = vpop.f32.mrf.mxu0
        %v5266 = vadd.f32 %v5153, %v5265
        %5267 = vmatmul.f32.gmra.mxu0 %v1334
        %v5268 = vpop.f32.mrf.mxu0
        %v5269 = vadd.f32 %v5156, %v5268
        %5270 = vmatmul.f32.gmra.mxu0 %v1340
        %v5271 = vpop.f32.mrf.mxu0
        %v5272 = vadd.f32 %v5159, %v5271
        %5273 = vmatmul.f32.gmra.mxu0 %v1346
        %v5274 = vpop.f32.mrf.mxu0
        %v5275 = vadd.f32 %v5162, %v5274
        %5276 = vmatmul.f32.gmra.mxu0 %v1352
        %v5277 = vpop.f32.mrf.mxu0
        %v5278 = vadd.f32 %v5165, %v5277
        %5279 = vmatmul.f32.gmra.mxu0 %v1358
        %v5280 = vpop.f32.mrf.mxu0
        %v5281 = vadd.f32 %v5168, %v5280
        %5282 = vmatmul.f32.gmra.mxu0 %v1364
        %v5283 = vpop.f32.mrf.mxu0
        %v5284 = vadd.f32 %v5171, %v5283
        %5285 = vmatmul.f32.gmra.mxu0 %v1370
        %v5286 = vpop.f32.mrf.mxu0
        %v5287 = vadd.f32 %v5174, %v5286
        %5288 = vmatmul.f32.gmra.mxu0 %v1376
        %v5289 = vpop.f32.mrf.mxu0
        %v5290 = vadd.f32 %v5177, %v5289
        %5291 = vmatmul.f32.gmra.mxu0 %v1382
        %v5292 = vpop.f32.mrf.mxu0
        %v5293 = vadd.f32 %v5180, %v5292
        %5294 = vmatmul.f32.gmra.mxu0 %v1388
        %v5295 = vpop.f32.mrf.mxu0
        %v5296 = vadd.f32 %v5183, %v5295
        %5297 = vmatmul.f32.gmra.mxu0 %v1394
        %v5298 = vpop.f32.mrf.mxu0
        %v5299 = vadd.f32 %v5186, %v5298
        %5300 = vmatmul.f32.gmra.mxu0 %v1400
        %v5301 = vpop.f32.mrf.mxu0
        %v5302 = vadd.f32 %v5189, %v5301
        %5303 = vmatmul.f32.gmra.mxu0 %v1406
        %v5304 = vpop.f32.mrf.mxu0
        %v5305 = vadd.f32 %v5192, %v5304
        %5306 = vmatmul.f32.gmra.mxu0 %v1412
        %v5307 = vpop.f32.mrf.mxu0
        %v5308 = vadd.f32 %v5195, %v5307
        %5309 = vmatmul.f32.gmra.mxu0 %v1418
        %v5310 = vpop.f32.mrf.mxu0
        %v5311 = vadd.f32 %v5198, %v5310
        %5312 = vmatmul.f32.gmra.mxu0 %v1424
        %v5313 = vpop.f32.mrf.mxu0
        %v5314 = vadd.f32 %v5201, %v5313
        %5315 = vmatmul.f32.gmra.mxu0 %v1430
        %v5316 = vpop.f32.mrf.mxu0
        %v5317 = vadd.f32 %v5204, %v5316
        %5318 = vmatmul.f32.gmra.mxu0 %v1436
        %v5319 = vpop.f32.mrf.mxu0
        %v5320 = vadd.f32 %v5207, %v5319
        %5321 = vmatmul.f32.gmra.mxu0 %v1442
        %v5322 = vpop.f32.mrf.mxu0
        %v5323 = vadd.f32 %v5210, %v5322
        %5324 = vmatmul.f32.gmra.mxu0 %v1448
        %v5325 = vpop.f32.mrf.mxu0
        %v5326 = vadd.f32 %v5213, %v5325
        %5327 = vmatmul.f32.gmra.mxu0 %v1454
        %v5328 = vpop.f32.mrf.mxu0
        %v5329 = vadd.f32 %v5216, %v5328
        %5330 = vmatmul.f32.gmra.mxu0 %v1460
        %v5331 = vpop.f32.mrf.mxu0
        %v5332 = vadd.f32 %v5219, %v5331
        %5333 = vdwg.mxu0
        %5334 = vmatpush.msra.mxu0 0.0
        %5335 = vmatpush.msra.mxu0 0.0
        %5336 = vmatpush.msra.mxu0 %v2055
        %5337 = vmatpush.msra.mxu0 %v1926
        %5338 = vmatpush.msra.mxu0 %v1921
        %5339 = vmatpush.msra.mxu0 %v1916
        %5340 = vmatpush.msra.mxu0 %v1911
        %5341 = vmatpush.msra.mxu0 %v1906
        %5342 = vmatpush.msra.mxu0 %v1901
        %5343 = vmatpush.msra.mxu0 %v1896
        %5344 = vmatpush.msra.mxu0 %v1891
        %5345 = vmatpush.msra.mxu0 %v1886
        %5346 = vmatpush.msra.mxu0 %v1881
        %5347 = vmatpush.msra.mxu0 %v1876
        %5348 = vmatpush.msra.mxu0 %v1871
        %5349 = vmatpush.msra.mxu0 %v1866
        %5350 = vmatmul.f32.gmra.mxu0 %v1946
        %v5351 = vpop.f32.mrf.mxu0
        %v5352 = vadd.f32 %v5239, %v5351
        %5353 = vmatmul.f32.gmra.mxu0 %v1949
        %v5354 = vpop.f32.mrf.mxu0
        %v5355 = vadd.f32 %v5242, %v5354
        %5356 = vmatmul.f32.gmra.mxu0 %v1952
        %v5357 = vpop.f32.mrf.mxu0
        %v5358 = vadd.f32 %v5245, %v5357
        %5359 = vmatmul.f32.gmra.mxu0 %v1955
        %v5360 = vpop.f32.mrf.mxu0
        %v5361 = vadd.f32 %v5248, %v5360
        %5362 = vmatmul.f32.gmra.mxu0 %v1958
        %v5363 = vpop.f32.mrf.mxu0
        %v5364 = vadd.f32 %v5251, %v5363
        %5365 = vmatmul.f32.gmra.mxu0 %v1961
        %v5366 = vpop.f32.mrf.mxu0
        %v5367 = vadd.f32 %v5254, %v5366
        %5368 = vmatmul.f32.gmra.mxu0 %v1964
        %v5369 = vpop.f32.mrf.mxu0
        %v5370 = vadd.f32 %v5257, %v5369
        %5371 = vmatmul.f32.gmra.mxu0 %v1967
        %v5372 = vpop.f32.mrf.mxu0
        %v5373 = vadd.f32 %v5260, %v5372
        %5374 = vmatmul.f32.gmra.mxu0 %v1970
        %v5375 = vpop.f32.mrf.mxu0
        %v5376 = vadd.f32 %v5263, %v5375
        %5377 = vmatmul.f32.gmra.mxu0 %v1973
        %v5378 = vpop.f32.mrf.mxu0
        %v5379 = vadd.f32 %v5266, %v5378
        %5380 = vmatmul.f32.gmra.mxu0 %v1976
        %v5381 = vpop.f32.mrf.mxu0
        %v5382 = vadd.f32 %v5269, %v5381
        %5383 = vmatmul.f32.gmra.mxu0 %v1979
        %v5384 = vpop.f32.mrf.mxu0
        %v5385 = vadd.f32 %v5272, %v5384
        %5386 = vmatmul.f32.gmra.mxu0 %v1982
        %v5387 = vpop.f32.mrf.mxu0
        %v5388 = vadd.f32 %v5275, %v5387
        %5389 = vmatmul.f32.gmra.mxu0 %v1985
        %v5390 = vpop.f32.mrf.mxu0
        %v5391 = vadd.f32 %v5278, %v5390
        %5392 = vmatmul.f32.gmra.mxu0 %v1988
        %v5393 = vpop.f32.mrf.mxu0
        %v5394 = vadd.f32 %v5281, %v5393
        %5395 = vmatmul.f32.gmra.mxu0 %v1991
        %v5396 = vpop.f32.mrf.mxu0
        %v5397 = vadd.f32 %v5284, %v5396
        %5398 = vmatmul.f32.gmra.mxu0 %v1994
        %v5399 = vpop.f32.mrf.mxu0
        %v5400 = vadd.f32 %v5287, %v5399
        %5401 = vmatmul.f32.gmra.mxu0 %v1997
        %v5402 = vpop.f32.mrf.mxu0
        %v5403 = vadd.f32 %v5290, %v5402
        %5404 = vmatmul.f32.gmra.mxu0 %v2000
        %v5405 = vpop.f32.mrf.mxu0
        %v5406 = vadd.f32 %v5293, %v5405
        %5407 = vmatmul.f32.gmra.mxu0 %v2003
        %v5408 = vpop.f32.mrf.mxu0
        %v5409 = vadd.f32 %v5296, %v5408
        %5410 = vmatmul.f32.gmra.mxu0 %v2006
        %v5411 = vpop.f32.mrf.mxu0
        %v5412 = vadd.f32 %v5299, %v5411
        %5413 = vmatmul.f32.gmra.mxu0 %v2009
        %v5414 = vpop.f32.mrf.mxu0
        %v5415 = vadd.f32 %v5302, %v5414
        %5416 = vmatmul.f32.gmra.mxu0 %v2012
        %v5417 = vpop.f32.mrf.mxu0
        %v5418 = vadd.f32 %v5305, %v5417
        %5419 = vmatmul.f32.gmra.mxu0 %v2015
        %v5420 = vpop.f32.mrf.mxu0
        %v5421 = vadd.f32 %v5308, %v5420
        %5422 = vmatmul.f32.gmra.mxu0 %v2018
        %v5423 = vpop.f32.mrf.mxu0
        %v5424 = vadd.f32 %v5311, %v5423
        %5425 = vmatmul.f32.gmra.mxu0 %v2021
        %v5426 = vpop.f32.mrf.mxu0
        %v5427 = vadd.f32 %v5314, %v5426
        %5428 = vmatmul.f32.gmra.mxu0 %v2024
        %v5429 = vpop.f32.mrf.mxu0
        %v5430 = vadd.f32 %v5317, %v5429
        %5431 = vmatmul.f32.gmra.mxu0 %v2027
        %v5432 = vpop.f32.mrf.mxu0
        %v5433 = vadd.f32 %v5320, %v5432
        %5434 = vmatmul.f32.gmra.mxu0 %v2030
        %v5435 = vpop.f32.mrf.mxu0
        %v5436 = vadd.f32 %v5323, %v5435
        %5437 = vmatmul.f32.gmra.mxu0 %v2033
        %v5438 = vpop.f32.mrf.mxu0
        %v5439 = vadd.f32 %v5326, %v5438
        %5440 = vmatmul.f32.gmra.mxu0 %v2036
        %v5441 = vpop.f32.mrf.mxu0
        %v5442 = vadd.f32 %v5329, %v5441
        %5443 = vmatmul.f32.gmra.mxu0 %v2039
        %v5444 = vpop.f32.mrf.mxu0
        %v5445 = vadd.f32 %v5332, %v5444
        %5446 = vdwg.mxu0
        %v5447 = vmax.f32 %v2640, 0.0
        %v5448 = vmax.f32 %v3318, 0.0
        %v5449 = vmax.f32 %v3996, 0.0
        %v5450 = vmax.f32 %v4674, 0.0
        %v5451 = vmax.f32 %v5352, 0.0
        %v5452 = vmax.f32 %v2643, 0.0
        %v5453 = vmax.f32 %v3321, 0.0
        %v5454 = vmax.f32 %v3999, 0.0
        %v5455 = vmax.f32 %v4677, 0.0
        %v5456 = vmax.f32 %v5355, 0.0
        %v5457 = vmax.f32 %v2646, 0.0
        %v5458 = vmax.f32 %v3324, 0.0
        %v5459 = vmax.f32 %v4002, 0.0
        %v5460 = vmax.f32 %v4680, 0.0
        %v5461 = vmax.f32 %v5358, 0.0
        %v5462 = vmax.f32 %v2649, 0.0
        %v5463 = vmax.f32 %v3327, 0.0
        %v5464 = vmax.f32 %v4005, 0.0
        %v5465 = vmax.f32 %v4683, 0.0
        %v5466 = vmax.f32 %v5361, 0.0
        %v5467 = vmax.f32 %v2652, 0.0
        %v5468 = vmax.f32 %v3330, 0.0
        %v5469 = vmax.f32 %v4008, 0.0
        %v5470 = vmax.f32 %v4686, 0.0
        %v5471 = vmax.f32 %v5364, 0.0
        %v5472 = vmax.f32 %v2655, 0.0
        %v5473 = vmax.f32 %v3333, 0.0
        %v5474 = vmax.f32 %v4011, 0.0
        %v5475 = vmax.f32 %v4689, 0.0
        %v5476 = vmax.f32 %v5367, 0.0
        %v5477 = vmax.f32 %v2658, 0.0
        %v5478 = vmax.f32 %v3336, 0.0
        %v5479 = vmax.f32 %v4014, 0.0
        %v5480 = vmax.f32 %v4692, 0.0
        %v5481 = vmax.f32 %v5370, 0.0
        %v5482 = vmax.f32 %v2661, 0.0
        %v5483 = vmax.f32 %v3339, 0.0
        %v5484 = vmax.f32 %v4017, 0.0
        %v5485 = vmax.f32 %v4695, 0.0
        %v5486 = vmax.f32 %v5373, 0.0
        %v5487 = vmax.f32 %v2664, 0.0
        %v5488 = vmax.f32 %v3342, 0.0
        %v5489 = vmax.f32 %v4020, 0.0
        %v5490 = vmax.f32 %v4698, 0.0
        %v5491 = vmax.f32 %v5376, 0.0
        %v5492 = vmax.f32 %v2667, 0.0
        %v5493 = vmax.f32 %v3345, 0.0
        %v5494 = vmax.f32 %v4023, 0.0
        %v5495 = vmax.f32 %v4701, 0.0
        %v5496 = vmax.f32 %v5379, 0.0
        %v5497 = vmax.f32 %v2670, 0.0
        %v5498 = vmax.f32 %v3348, 0.0
        %v5499 = vmax.f32 %v4026, 0.0
        %v5500 = vmax.f32 %v4704, 0.0
        %v5501 = vmax.f32 %v5382, 0.0
        %v5502 = vmax.f32 %v2673, 0.0
        %v5503 = vmax.f32 %v3351, 0.0
        %v5504 = vmax.f32 %v4029, 0.0
        %v5505 = vmax.f32 %v4707, 0.0
        %v5506 = vmax.f32 %v5385, 0.0
        %v5507 = vmax.f32 %v2676, 0.0
        %v5508 = vmax.f32 %v3354, 0.0
        %v5509 = vmax.f32 %v4032, 0.0
        %v5510 = vmax.f32 %v4710, 0.0
        %v5511 = vmax.f32 %v5388, 0.0
        %v5512 = vmax.f32 %v2679, 0.0
        %v5513 = vmax.f32 %v3357, 0.0
        %v5514 = vmax.f32 %v4035, 0.0
        %v5515 = vmax.f32 %v4713, 0.0
        %v5516 = vmax.f32 %v5391, 0.0
        %v5517 = vmax.f32 %v2682, 0.0
        %v5518 = vmax.f32 %v3360, 0.0
        %v5519 = vmax.f32 %v4038, 0.0
        %v5520 = vmax.f32 %v4716, 0.0
        %v5521 = vmax.f32 %v5394, 0.0
        %v5522 = vmax.f32 %v2685, 0.0
        %v5523 = vmax.f32 %v3363, 0.0
        %v5524 = vmax.f32 %v4041, 0.0
        %v5525 = vmax.f32 %v4719, 0.0
        %v5526 = vmax.f32 %v5397, 0.0
        %v5527 = vmax.f32 %v2688, 0.0
        %v5528 = vmax.f32 %v3366, 0.0
        %v5529 = vmax.f32 %v4044, 0.0
        %v5530 = vmax.f32 %v4722, 0.0
        %v5531 = vmax.f32 %v5400, 0.0
        %v5532 = vmax.f32 %v2691, 0.0
        %v5533 = vmax.f32 %v3369, 0.0
        %v5534 = vmax.f32 %v4047, 0.0
        %v5535 = vmax.f32 %v4725, 0.0
        %v5536 = vmax.f32 %v5403, 0.0
        %v5537 = vmax.f32 %v2694, 0.0
        %v5538 = vmax.f32 %v3372, 0.0
        %v5539 = vmax.f32 %v4050, 0.0
        %v5540 = vmax.f32 %v4728, 0.0
        %v5541 = vmax.f32 %v5406, 0.0
        %v5542 = vmax.f32 %v2697, 0.0
        %v5543 = vmax.f32 %v3375, 0.0
        %v5544 = vmax.f32 %v4053, 0.0
        %v5545 = vmax.f32 %v4731, 0.0
        %v5546 = vmax.f32 %v5409, 0.0
        %v5547 = vmax.f32 %v2700, 0.0
        %v5548 = vmax.f32 %v3378, 0.0
        %v5549 = vmax.f32 %v4056, 0.0
        %v5550 = vmax.f32 %v4734, 0.0
        %v5551 = vmax.f32 %v5412, 0.0
        %v5552 = vmax.f32 %v2703, 0.0
        %v5553 = vmax.f32 %v3381, 0.0
        %v5554 = vmax.f32 %v4059, 0.0
        %v5555 = vmax.f32 %v4737, 0.0
        %v5556 = vmax.f32 %v5415, 0.0
        %v5557 = vmax.f32 %v2706, 0.0
        %v5558 = vmax.f32 %v3384, 0.0
        %v5559 = vmax.f32 %v4062, 0.0
        %v5560 = vmax.f32 %v4740, 0.0
        %v5561 = vmax.f32 %v5418, 0.0
        %v5562 = vmax.f32 %v2709, 0.0
        %v5563 = vmax.f32 %v3387, 0.0
        %v5564 = vmax.f32 %v4065, 0.0
        %v5565 = vmax.f32 %v4743, 0.0
        %v5566 = vmax.f32 %v5421, 0.0
        %v5567 = vmax.f32 %v2712, 0.0
        %v5568 = vmax.f32 %v3390, 0.0
        %v5569 = vmax.f32 %v4068, 0.0
        %v5570 = vmax.f32 %v4746, 0.0
        %v5571 = vmax.f32 %v5424, 0.0
        %v5572 = vmax.f32 %v2715, 0.0
        %v5573 = vmax.f32 %v3393, 0.0
        %v5574 = vmax.f32 %v4071, 0.0
        %v5575 = vmax.f32 %v4749, 0.0
        %v5576 = vmax.f32 %v5427, 0.0
        %v5577 = vmax.f32 %v2718, 0.0
        %v5578 = vmax.f32 %v3396, 0.0
        %v5579 = vmax.f32 %v4074, 0.0
        %v5580 = vmax.f32 %v4752, 0.0
        %v5581 = vmax.f32 %v5430, 0.0
        %v5582 = vmax.f32 %v2721, 0.0
        %v5583 = vmax.f32 %v3399, 0.0
        %v5584 = vmax.f32 %v4077, 0.0
        %v5585 = vmax.f32 %v4755, 0.0
        %v5586 = vmax.f32 %v5433, 0.0
        %v5587 = vmax.f32 %v2724, 0.0
        %v5588 = vmax.f32 %v3402, 0.0
        %v5589 = vmax.f32 %v4080, 0.0
        %v5590 = vmax.f32 %v4758, 0.0
        %v5591 = vmax.f32 %v5436, 0.0
        %v5592 = vmax.f32 %v2727, 0.0
        %v5593 = vmax.f32 %v3405, 0.0
        %v5594 = vmax.f32 %v4083, 0.0
        %v5595 = vmax.f32 %v4761, 0.0
        %v5596 = vmax.f32 %v5439, 0.0
        %v5597 = vmax.f32 %v2730, 0.0
        %v5598 = vmax.f32 %v3408, 0.0
        %v5599 = vmax.f32 %v4086, 0.0
        %v5600 = vmax.f32 %v4764, 0.0
        %v5601 = vmax.f32 %v5442, 0.0
        %v5602 = vmax.f32 %v2733, 0.0
        %v5603 = vmax.f32 %v3411, 0.0
        %v5604 = vmax.f32 %v4089, 0.0
        %v5605 = vmax.f32 %v4767, 0.0
        %v5606 = vmax.f32 %v5445, 0.0
        %v5607 = vld [vmem:[%s5] sm:$0xff]
        %v5608 = vld [vmem:[%s5 + $0x8] sm:$0xff]
        %v5609 = vld [vmem:[%s5 + $0x10] sm:$0xff]
        %v5610 = vld [vmem:[%s5 + $0x18] sm:$0xff]
        %v5611 = vld [vmem:[%s5 + $0x20] sm:$0xff]
        %v5612 = vld [vmem:[%s5 + $0x28] sm:$0xff]
        %v5613 = vld [vmem:[%s5 + $0x30] sm:$0xff]
        %v5614 = vld [vmem:[%s5 + $0x38] sm:$0xff]
        %v5615 = vld [vmem:[%s5 + $0x40] sm:$0xff]
        %v5616 = vld [vmem:[%s5 + $0x48] sm:$0xff]
        %v5617 = vld [vmem:[%s5 + $0x50] sm:$0xff]
        %v5618 = vld [vmem:[%s5 + $0x58] sm:$0xff]
        %v5619 = vld [vmem:[%s5 + $0x60] sm:$0xff]
        %v5620 = vld [vmem:[%s5 + $0x68] sm:$0xff]
        %v5621 = vld [vmem:[%s5 + $0x70] sm:$0xff]
        %v5622 = vld [vmem:[%s5 + $0x78] sm:$0xff]
        %v5623 = vld [vmem:[%s5 + $0x80] sm:$0xff]
        %v5624 = vld [vmem:[%s5 + $0x88] sm:$0xff]
        %v5625 = vld [vmem:[%s5 + $0x90] sm:$0xff]
        %v5626 = vld [vmem:[%s5 + $0x98] sm:$0xff]
        %v5627 = vld [vmem:[%s5 + $0xa0] sm:$0xff]
        %v5628 = vld [vmem:[%s5 + $0xa8] sm:$0xff]
        %v5629 = vld [vmem:[%s5 + $0xb0] sm:$0xff]
        %v5630 = vld [vmem:[%s5 + $0xb8] sm:$0xff]
        %v5631 = vld [vmem:[%s5 + $0xc0] sm:$0xff]
        %v5632 = vld [vmem:[%s5 + $0xc8] sm:$0xff]
        %v5633 = vld [vmem:[%s5 + $0xd0] sm:$0xff]
        %v5634 = vld [vmem:[%s5 + $0xd8] sm:$0xff]
        %v5635 = vld [vmem:[%s5 + $0xe0] sm:$0xff]
        %v5636 = vld [vmem:[%s5 + $0xe8] sm:$0xff]
        %v5637 = vld [vmem:[%s5 + $0xf0] sm:$0xff]
        %v5638 = vld [vmem:[%s5 + $0xf8] sm:$0xff]
        %v5639 = vld [vmem:[%s5 + $0x100] sm:$0xff]
        %v5640 = vld [vmem:[%s5 + $0x108] sm:$0xff]
        %v5641 = vld [vmem:[%s5 + $0x110] sm:$0xff]
        %v5642 = vld [vmem:[%s5 + $0x118] sm:$0xff]
        %v5643 = vld [vmem:[%s5 + $0x120] sm:$0xff]
        %v5644 = vld [vmem:[%s5 + $0x128] sm:$0xff]
        %v5645 = vld [vmem:[%s5 + $0x130] sm:$0xff]
        %v5646 = vld [vmem:[%s5 + $0x138] sm:$0xff]
        %v5647 = vld [vmem:[%s5 + $0x140] sm:$0xff]
        %v5648 = vld [vmem:[%s5 + $0x148] sm:$0xff]
        %v5649 = vld [vmem:[%s5 + $0x150] sm:$0xff]
        %v5650 = vld [vmem:[%s5 + $0x158] sm:$0xff]
        %v5651 = vld [vmem:[%s5 + $0x160] sm:$0xff]
        %v5652 = vld [vmem:[%s5 + $0x168] sm:$0xff]
        %v5653 = vld [vmem:[%s5 + $0x170] sm:$0xff]
        %v5654 = vld [vmem:[%s5 + $0x178] sm:$0xff]
        %v5655 = vld [vmem:[%s5 + $0x180] sm:$0xff]
        %v5656 = vld [vmem:[%s5 + $0x188] sm:$0xff]
        %v5657 = vld [vmem:[%s5 + $0x190] sm:$0xff]
        %v5658 = vld [vmem:[%s5 + $0x198] sm:$0xff]
        %v5659 = vld [vmem:[%s5 + $0x1a0] sm:$0xff]
        %v5660 = vld [vmem:[%s5 + $0x1a8] sm:$0xff]
        %v5661 = vld [vmem:[%s5 + $0x1b0] sm:$0xff]
        %v5662 = vld [vmem:[%s5 + $0x1b8] sm:$0xff]
        %v5663 = vld [vmem:[%s5 + $0x1c0] sm:$0xff]
        %v5664 = vld [vmem:[%s5 + $0x1c8] sm:$0xff]
        %v5665 = vld [vmem:[%s5 + $0x1d0] sm:$0xff]
        %v5666 = vld [vmem:[%s5 + $0x1d8] sm:$0xff]
        %v5667 = vld [vmem:[%s5 + $0x1e0] sm:$0xff]
        %v5668 = vld [vmem:[%s5 + $0x1e8] sm:$0xff]
        %v5669 = vld [vmem:[%s5 + $0x1f0] sm:$0xff]
        %v5670 = vld [vmem:[%s5 + $0x1f8] sm:$0xff]
        %v5671 = vld [vmem:[%s5 + $0x200] sm:$0xff]
        %v5672 = vld [vmem:[%s5 + $0x208] sm:$0xff]
        %v5673 = vld [vmem:[%s5 + $0x210] sm:$0xff]
        %v5674 = vld [vmem:[%s5 + $0x218] sm:$0xf]
        %v5675 = vld [vmem:[%s6] sm:$0x1]
        %v5677 = vperm.slane %v5675, 0
        %vm5679 = vcmask 228352
        %v5681 = vsel %vm5679, %v5451, 0
        %v5684 = vsel %vm5679, %v5456, 0
        %v5687 = vsel %vm5679, %v5461, 0
        %v5690 = vsel %vm5679, %v5466, 0
        %v5693 = vsel %vm5679, %v5471, 0
        %v5696 = vsel %vm5679, %v5476, 0
        %v5699 = vsel %vm5679, %v5481, 0
        %v5702 = vsel %vm5679, %v5486, 0
        %v5705 = vsel %vm5679, %v5491, 0
        %v5708 = vsel %vm5679, %v5496, 0
        %v5711 = vsel %vm5679, %v5501, 0
        %v5714 = vsel %vm5679, %v5506, 0
        %v5717 = vsel %vm5679, %v5511, 0
        %v5720 = vsel %vm5679, %v5516, 0
        %v5723 = vsel %vm5679, %v5521, 0
        %v5726 = vsel %vm5679, %v5526, 0
        %v5729 = vsel %vm5679, %v5531, 0
        %v5732 = vsel %vm5679, %v5536, 0
        %v5735 = vsel %vm5679, %v5541, 0
        %v5738 = vsel %vm5679, %v5546, 0
        %v5741 = vsel %vm5679, %v5551, 0
        %v5744 = vsel %vm5679, %v5556, 0
        %v5747 = vsel %vm5679, %v5561, 0
        %v5750 = vsel %vm5679, %v5566, 0
        %v5753 = vsel %vm5679, %v5571, 0
        %v5756 = vsel %vm5679, %v5576, 0
        %v5759 = vsel %vm5679, %v5581, 0
        %v5762 = vsel %vm5679, %v5586, 0
        %v5765 = vsel %vm5679, %v5591, 0
        %v5768 = vsel %vm5679, %v5596, 0
        %v5771 = vsel %vm5679, %v5601, 0
        %v5774 = vsel %vm5679, %v5606, 0
        %vm5776 = vcmask 1043456
        %v5778 = vsel %vm5776, %v5674, 0
        %5780 = vmatpush.msra.mxu0 %v5622
        %5781 = vmatpush.msra.mxu0 %v5621
        %5782 = vmatpush.msra.mxu0 %v5620
        %5783 = vmatpush.msra.mxu0 %v5619
        %5784 = vmatpush.msra.mxu0 %v5618
        %5785 = vmatpush.msra.mxu0 %v5617
        %5786 = vmatpush.msra.mxu0 %v5616
        %5787 = vmatpush.msra.mxu0 %v5615
        %5788 = vmatpush.msra.mxu0 %v5614
        %5789 = vmatpush.msra.mxu0 %v5613
        %5790 = vmatpush.msra.mxu0 %v5612
        %5791 = vmatpush.msra.mxu0 %v5611
        %5792 = vmatpush.msra.mxu0 %v5610
        %5793 = vmatpush.msra.mxu0 %v5609
        %5794 = vmatpush.msra.mxu0 %v5608
        %5795 = vmatpush.msra.mxu0 %v5607
        %5796 = vmatmul.f32.gmra.mxu0 %v5447
        %v5797 = vpop.f32.mrf.mxu0
        %v5798 = vadd.f32 %v5677, %v5797
        %5799 = vmatmul.f32.gmra.mxu0 %v5452
        %v5800 = vpop.f32.mrf.mxu0
        %v5801 = vadd.f32 %v5677, %v5800
        %5802 = vmatmul.f32.gmra.mxu0 %v5457
        %v5803 = vpop.f32.mrf.mxu0
        %v5804 = vadd.f32 %v5677, %v5803
        %5805 = vmatmul.f32.gmra.mxu0 %v5462
        %v5806 = vpop.f32.mrf.mxu0
        %v5807 = vadd.f32 %v5677, %v5806
        %5808 = vmatmul.f32.gmra.mxu0 %v5467
        %v5809 = vpop.f32.mrf.mxu0
        %v5810 = vadd.f32 %v5677, %v5809
        %5811 = vmatmul.f32.gmra.mxu0 %v5472
        %v5812 = vpop.f32.mrf.mxu0
        %v5813 = vadd.f32 %v5677, %v5812
        %5814 = vmatmul.f32.gmra.mxu0 %v5477
        %v5815 = vpop.f32.mrf.mxu0
        %v5816 = vadd.f32 %v5677, %v5815
        %5817 = vmatmul.f32.gmra.mxu0 %v5482
        %v5818 = vpop.f32.mrf.mxu0
        %v5819 = vadd.f32 %v5677, %v5818
        %5820 = vmatmul.f32.gmra.mxu0 %v5487
        %v5821 = vpop.f32.mrf.mxu0
        %v5822 = vadd.f32 %v5677, %v5821
        %5823 = vmatmul.f32.gmra.mxu0 %v5492
        %v5824 = vpop.f32.mrf.mxu0
        %v5825 = vadd.f32 %v5677, %v5824
        %5826 = vmatmul.f32.gmra.mxu0 %v5497
        %v5827 = vpop.f32.mrf.mxu0
        %v5828 = vadd.f32 %v5677, %v5827
        %5829 = vmatmul.f32.gmra.mxu0 %v5502
        %v5830 = vpop.f32.mrf.mxu0
        %v5831 = vadd.f32 %v5677, %v5830
        %5832 = vmatmul.f32.gmra.mxu0 %v5507
        %v5833 = vpop.f32.mrf.mxu0
        %v5834 = vadd.f32 %v5677, %v5833
        %5835 = vmatmul.f32.gmra.mxu0 %v5512
        %v5836 = vpop.f32.mrf.mxu0
        %v5837 = vadd.f32 %v5677, %v5836
        %5838 = vmatmul.f32.gmra.mxu0 %v5517
        %v5839 = vpop.f32.mrf.mxu0
        %v5840 = vadd.f32 %v5677, %v5839
        %5841 = vmatmul.f32.gmra.mxu0 %v5522
        %v5842 = vpop.f32.mrf.mxu0
        %v5843 = vadd.f32 %v5677, %v5842
        %5844 = vmatmul.f32.gmra.mxu0 %v5527
        %v5845 = vpop.f32.mrf.mxu0
        %v5846 = vadd.f32 %v5677, %v5845
        %5847 = vmatmul.f32.gmra.mxu0 %v5532
        %v5848 = vpop.f32.mrf.mxu0
        %v5849 = vadd.f32 %v5677, %v5848
        %5850 = vmatmul.f32.gmra.mxu0 %v5537
        %v5851 = vpop.f32.mrf.mxu0
        %v5852 = vadd.f32 %v5677, %v5851
        %5853 = vmatmul.f32.gmra.mxu0 %v5542
        %v5854 = vpop.f32.mrf.mxu0
        %v5855 = vadd.f32 %v5677, %v5854
        %5856 = vmatmul.f32.gmra.mxu0 %v5547
        %v5857 = vpop.f32.mrf.mxu0
        %v5858 = vadd.f32 %v5677, %v5857
        %5859 = vmatmul.f32.gmra.mxu0 %v5552
        %v5860 = vpop.f32.mrf.mxu0
        %v5861 = vadd.f32 %v5677, %v5860
        %5862 = vmatmul.f32.gmra.mxu0 %v5557
        %v5863 = vpop.f32.mrf.mxu0
        %v5864 = vadd.f32 %v5677, %v5863
        %5865 = vmatmul.f32.gmra.mxu0 %v5562
        %v5866 = vpop.f32.mrf.mxu0
        %v5867 = vadd.f32 %v5677, %v5866
        %5868 = vmatmul.f32.gmra.mxu0 %v5567
        %v5869 = vpop.f32.mrf.mxu0
        %v5870 = vadd.f32 %v5677, %v5869
        %5871 = vmatmul.f32.gmra.mxu0 %v5572
        %v5872 = vpop.f32.mrf.mxu0
        %v5873 = vadd.f32 %v5677, %v5872
        %5874 = vmatmul.f32.gmra.mxu0 %v5577
        %v5875 = vpop.f32.mrf.mxu0
        %v5876 = vadd.f32 %v5677, %v5875
        %5877 = vmatmul.f32.gmra.mxu0 %v5582
        %v5878 = vpop.f32.mrf.mxu0
        %v5879 = vadd.f32 %v5677, %v5878
        %5880 = vmatmul.f32.gmra.mxu0 %v5587
        %v5881 = vpop.f32.mrf.mxu0
        %v5882 = vadd.f32 %v5677, %v5881
        %5883 = vmatmul.f32.gmra.mxu0 %v5592
        %v5884 = vpop.f32.mrf.mxu0
        %v5885 = vadd.f32 %v5677, %v5884
        %5886 = vmatmul.f32.gmra.mxu0 %v5597
        %v5887 = vpop.f32.mrf.mxu0
        %v5888 = vadd.f32 %v5677, %v5887
        %5889 = vmatmul.f32.gmra.mxu0 %v5602
        %v5890 = vpop.f32.mrf.mxu0
        %v5891 = vadd.f32 %v5677, %v5890
        %5892 = vdwg.mxu0
        %5893 = vmatpush.msra.mxu0 %v5638
        %5894 = vmatpush.msra.mxu0 %v5637
        %5895 = vmatpush.msra.mxu0 %v5636
        %5896 = vmatpush.msra.mxu0 %v5635
        %5897 = vmatpush.msra.mxu0 %v5634
        %5898 = vmatpush.msra.mxu0 %v5633
        %5899 = vmatpush.msra.mxu0 %v5632
        %5900 = vmatpush.msra.mxu0 %v5631
        %5901 = vmatpush.msra.mxu0 %v5630
        %5902 = vmatpush.msra.mxu0 %v5629
        %5903 = vmatpush.msra.mxu0 %v5628
        %5904 = vmatpush.msra.mxu0 %v5627
        %5905 = vmatpush.msra.mxu0 %v5626
        %5906 = vmatpush.msra.mxu0 %v5625
        %5907 = vmatpush.msra.mxu0 %v5624
        %5908 = vmatpush.msra.mxu0 %v5623
        %5909 = vmatmul.f32.gmra.mxu0 %v5448
        %v5910 = vpop.f32.mrf.mxu0
        %v5911 = vadd.f32 %v5798, %v5910
        %5912 = vmatmul.f32.gmra.mxu0 %v5453
        %v5913 = vpop.f32.mrf.mxu0
        %v5914 = vadd.f32 %v5801, %v5913
        %5915 = vmatmul.f32.gmra.mxu0 %v5458
        %v5916 = vpop.f32.mrf.mxu0
        %v5917 = vadd.f32 %v5804, %v5916
        %5918 = vmatmul.f32.gmra.mxu0 %v5463
        %v5919 = vpop.f32.mrf.mxu0
        %v5920 = vadd.f32 %v5807, %v5919
        %5921 = vmatmul.f32.gmra.mxu0 %v5468
        %v5922 = vpop.f32.mrf.mxu0
        %v5923 = vadd.f32 %v5810, %v5922
        %5924 = vmatmul.f32.gmra.mxu0 %v5473
        %v5925 = vpop.f32.mrf.mxu0
        %v5926 = vadd.f32 %v5813, %v5925
        %5927 = vmatmul.f32.gmra.mxu0 %v5478
        %v5928 = vpop.f32.mrf.mxu0
        %v5929 = vadd.f32 %v5816, %v5928
        %5930 = vmatmul.f32.gmra.mxu0 %v5483
        %v5931 = vpop.f32.mrf.mxu0
        %v5932 = vadd.f32 %v5819, %v5931
        %5933 = vmatmul.f32.gmra.mxu0 %v5488
        %v5934 = vpop.f32.mrf.mxu0
        %v5935 = vadd.f32 %v5822, %v5934
        %5936 = vmatmul.f32.gmra.mxu0 %v5493
        %v5937 = vpop.f32.mrf.mxu0
        %v5938 = vadd.f32 %v5825, %v5937
        %5939 = vmatmul.f32.gmra.mxu0 %v5498
        %v5940 = vpop.f32.mrf.mxu0
        %v5941 = vadd.f32 %v5828, %v5940
        %5942 = vmatmul.f32.gmra.mxu0 %v5503
        %v5943 = vpop.f32.mrf.mxu0
        %v5944 = vadd.f32 %v5831, %v5943
        %5945 = vmatmul.f32.gmra.mxu0 %v5508
        %v5946 = vpop.f32.mrf.mxu0
        %v5947 = vadd.f32 %v5834, %v5946
        %5948 = vmatmul.f32.gmra.mxu0 %v5513
        %v5949 = vpop.f32.mrf.mxu0
        %v5950 = vadd.f32 %v5837, %v5949
        %5951 = vmatmul.f32.gmra.mxu0 %v5518
        %v5952 = vpop.f32.mrf.mxu0
        %v5953 = vadd.f32 %v5840, %v5952
        %5954 = vmatmul.f32.gmra.mxu0 %v5523
        %v5955 = vpop.f32.mrf.mxu0
        %v5956 = vadd.f32 %v5843, %v5955
        %5957 = vmatmul.f32.gmra.mxu0 %v5528
        %v5958 = vpop.f32.mrf.mxu0
        %v5959 = vadd.f32 %v5846, %v5958
        %5960 = vmatmul.f32.gmra.mxu0 %v5533
        %v5961 = vpop.f32.mrf.mxu0
        %v5962 = vadd.f32 %v5849, %v5961
        %5963 = vmatmul.f32.gmra.mxu0 %v5538
        %v5964 = vpop.f32.mrf.mxu0
        %v5965 = vadd.f32 %v5852, %v5964
        %5966 = vmatmul.f32.gmra.mxu0 %v5543
        %v5967 = vpop.f32.mrf.mxu0
        %v5968 = vadd.f32 %v5855, %v5967
        %5969 = vmatmul.f32.gmra.mxu0 %v5548
        %v5970 = vpop.f32.mrf.mxu0
        %v5971 = vadd.f32 %v5858, %v5970
        %5972 = vmatmul.f32.gmra.mxu0 %v5553
        %v5973 = vpop.f32.mrf.mxu0
        %v5974 = vadd.f32 %v5861, %v5973
        %5975 = vmatmul.f32.gmra.mxu0 %v5558
        %v5976 = vpop.f32.mrf.mxu0
        %v5977 = vadd.f32 %v5864, %v5976
        %5978 = vmatmul.f32.gmra.mxu0 %v5563
        %v5979 = vpop.f32.mrf.mxu0
        %v5980 = vadd.f32 %v5867, %v5979
        %5981 = vmatmul.f32.gmra.mxu0 %v5568
        %v5982 = vpop.f32.mrf.mxu0
        %v5983 = vadd.f32 %v5870, %v5982
        %5984 = vmatmul.f32.gmra.mxu0 %v5573
        %v5985 = vpop.f32.mrf.mxu0
        %v5986 = vadd.f32 %v5873, %v5985
        %5987 = vmatmul.f32.gmra.mxu0 %v5578
        %v5988 = vpop.f32.mrf.mxu0
        %v5989 = vadd.f32 %v5876, %v5988
        %5990 = vmatmul.f32.gmra.mxu0 %v5583
        %v5991 = vpop.f32.mrf.mxu0
        %v5992 = vadd.f32 %v5879, %v5991
        %5993 = vmatmul.f32.gmra.mxu0 %v5588
        %v5994 = vpop.f32.mrf.mxu0
        %v5995 = vadd.f32 %v5882, %v5994
        %5996 = vmatmul.f32.gmra.mxu0 %v5593
        %v5997 = vpop.f32.mrf.mxu0
        %v5998 = vadd.f32 %v5885, %v5997
        %5999 = vmatmul.f32.gmra.mxu0 %v5598
        %v6000 = vpop.f32.mrf.mxu0
        %v6001 = vadd.f32 %v5888, %v6000
        %6002 = vmatmul.f32.gmra.mxu0 %v5603
        %v6003 = vpop.f32.mrf.mxu0
        %v6004 = vadd.f32 %v5891, %v6003
        %6005 = vdwg.mxu0
        %6006 = vmatpush.msra.mxu0 %v5654
        %6007 = vmatpush.msra.mxu0 %v5653
        %6008 = vmatpush.msra.mxu0 %v5652
        %6009 = vmatpush.msra.mxu0 %v5651
        %6010 = vmatpush.msra.mxu0 %v5650
        %6011 = vmatpush.msra.mxu0 %v5649
        %6012 = vmatpush.msra.mxu0 %v5648
        %6013 = vmatpush.msra.mxu0 %v5647
        %6014 = vmatpush.msra.mxu0 %v5646
        %6015 = vmatpush.msra.mxu0 %v5645
        %6016 = vmatpush.msra.mxu0 %v5644
        %6017 = vmatpush.msra.mxu0 %v5643
        %6018 = vmatpush.msra.mxu0 %v5642
        %6019 = vmatpush.msra.mxu0 %v5641
        %6020 = vmatpush.msra.mxu0 %v5640
        %6021 = vmatpush.msra.mxu0 %v5639
        %6022 = vmatmul.f32.gmra.mxu0 %v5449
        %v6023 = vpop.f32.mrf.mxu0
        %v6024 = vadd.f32 %v5911, %v6023
        %6025 = vmatmul.f32.gmra.mxu0 %v5454
        %v6026 = vpop.f32.mrf.mxu0
        %v6027 = vadd.f32 %v5914, %v6026
        %6028 = vmatmul.f32.gmra.mxu0 %v5459
        %v6029 = vpop.f32.mrf.mxu0
        %v6030 = vadd.f32 %v5917, %v6029
        %6031 = vmatmul.f32.gmra.mxu0 %v5464
        %v6032 = vpop.f32.mrf.mxu0
        %v6033 = vadd.f32 %v5920, %v6032
        %6034 = vmatmul.f32.gmra.mxu0 %v5469
        %v6035 = vpop.f32.mrf.mxu0
        %v6036 = vadd.f32 %v5923, %v6035
        %6037 = vmatmul.f32.gmra.mxu0 %v5474
        %v6038 = vpop.f32.mrf.mxu0
        %v6039 = vadd.f32 %v5926, %v6038
        %6040 = vmatmul.f32.gmra.mxu0 %v5479
        %v6041 = vpop.f32.mrf.mxu0
        %v6042 = vadd.f32 %v5929, %v6041
        %6043 = vmatmul.f32.gmra.mxu0 %v5484
        %v6044 = vpop.f32.mrf.mxu0
        %v6045 = vadd.f32 %v5932, %v6044
        %6046 = vmatmul.f32.gmra.mxu0 %v5489
        %v6047 = vpop.f32.mrf.mxu0
        %v6048 = vadd.f32 %v5935, %v6047
        %6049 = vmatmul.f32.gmra.mxu0 %v5494
        %v6050 = vpop.f32.mrf.mxu0
        %v6051 = vadd.f32 %v5938, %v6050
        %6052 = vmatmul.f32.gmra.mxu0 %v5499
        %v6053 = vpop.f32.mrf.mxu0
        %v6054 = vadd.f32 %v5941, %v6053
        %6055 = vmatmul.f32.gmra.mxu0 %v5504
        %v6056 = vpop.f32.mrf.mxu0
        %v6057 = vadd.f32 %v5944, %v6056
        %6058 = vmatmul.f32.gmra.mxu0 %v5509
        %v6059 = vpop.f32.mrf.mxu0
        %v6060 = vadd.f32 %v5947, %v6059
        %6061 = vmatmul.f32.gmra.mxu0 %v5514
        %v6062 = vpop.f32.mrf.mxu0
        %v6063 = vadd.f32 %v5950, %v6062
        %6064 = vmatmul.f32.gmra.mxu0 %v5519
        %v6065 = vpop.f32.mrf.mxu0
        %v6066 = vadd.f32 %v5953, %v6065
        %6067 = vmatmul.f32.gmra.mxu0 %v5524
        %v6068 = vpop.f32.mrf.mxu0
        %v6069 = vadd.f32 %v5956, %v6068
        %6070 = vmatmul.f32.gmra.mxu0 %v5529
        %v6071 = vpop.f32.mrf.mxu0
        %v6072 = vadd.f32 %v5959, %v6071
        %6073 = vmatmul.f32.gmra.mxu0 %v5534
        %v6074 = vpop.f32.mrf.mxu0
        %v6075 = vadd.f32 %v5962, %v6074
        %6076 = vmatmul.f32.gmra.mxu0 %v5539
        %v6077 = vpop.f32.mrf.mxu0
        %v6078 = vadd.f32 %v5965, %v6077
        %6079 = vmatmul.f32.gmra.mxu0 %v5544
        %v6080 = vpop.f32.mrf.mxu0
        %v6081 = vadd.f32 %v5968, %v6080
        %6082 = vmatmul.f32.gmra.mxu0 %v5549
        %v6083 = vpop.f32.mrf.mxu0
        %v6084 = vadd.f32 %v5971, %v6083
        %6085 = vmatmul.f32.gmra.mxu0 %v5554
        %v6086 = vpop.f32.mrf.mxu0
        %v6087 = vadd.f32 %v5974, %v6086
        %6088 = vmatmul.f32.gmra.mxu0 %v5559
        %v6089 = vpop.f32.mrf.mxu0
        %v6090 = vadd.f32 %v5977, %v6089
        %6091 = vmatmul.f32.gmra.mxu0 %v5564
        %v6092 = vpop.f32.mrf.mxu0
        %v6093 = vadd.f32 %v5980, %v6092
        %6094 = vmatmul.f32.gmra.mxu0 %v5569
        %v6095 = vpop.f32.mrf.mxu0
        %v6096 = vadd.f32 %v5983, %v6095
        %6097 = vmatmul.f32.gmra.mxu0 %v5574
        %v6098 = vpop.f32.mrf.mxu0
        %v6099 = vadd.f32 %v5986, %v6098
        %6100 = vmatmul.f32.gmra.mxu0 %v5579
        %v6101 = vpop.f32.mrf.mxu0
        %v6102 = vadd.f32 %v5989, %v6101
        %6103 = vmatmul.f32.gmra.mxu0 %v5584
        %v6104 = vpop.f32.mrf.mxu0
        %v6105 = vadd.f32 %v5992, %v6104
        %6106 = vmatmul.f32.gmra.mxu0 %v5589
        %v6107 = vpop.f32.mrf.mxu0
        %v6108 = vadd.f32 %v5995, %v6107
        %6109 = vmatmul.f32.gmra.mxu0 %v5594
        %v6110 = vpop.f32.mrf.mxu0
        %v6111 = vadd.f32 %v5998, %v6110
        %6112 = vmatmul.f32.gmra.mxu0 %v5599
        %v6113 = vpop.f32.mrf.mxu0
        %v6114 = vadd.f32 %v6001, %v6113
        %6115 = vmatmul.f32.gmra.mxu0 %v5604
        %v6116 = vpop.f32.mrf.mxu0
        %v6117 = vadd.f32 %v6004, %v6116
        %6118 = vdwg.mxu0
        %6119 = vmatpush.msra.mxu0 %v5670
        %6120 = vmatpush.msra.mxu0 %v5669
        %6121 = vmatpush.msra.mxu0 %v5668
        %6122 = vmatpush.msra.mxu0 %v5667
        %6123 = vmatpush.msra.mxu0 %v5666
        %6124 = vmatpush.msra.mxu0 %v5665
        %6125 = vmatpush.msra.mxu0 %v5664
        %6126 = vmatpush.msra.mxu0 %v5663
        %6127 = vmatpush.msra.mxu0 %v5662
        %6128 = vmatpush.msra.mxu0 %v5661
        %6129 = vmatpush.msra.mxu0 %v5660
        %6130 = vmatpush.msra.mxu0 %v5659
        %6131 = vmatpush.msra.mxu0 %v5658
        %6132 = vmatpush.msra.mxu0 %v5657
        %6133 = vmatpush.msra.mxu0 %v5656
        %6134 = vmatpush.msra.mxu0 %v5655
        %6135 = vmatmul.f32.gmra.mxu0 %v5450
        %v6136 = vpop.f32.mrf.mxu0
        %v6137 = vadd.f32 %v6024, %v6136
        %6138 = vmatmul.f32.gmra.mxu0 %v5455
        %v6139 = vpop.f32.mrf.mxu0
        %v6140 = vadd.f32 %v6027, %v6139
        %6141 = vmatmul.f32.gmra.mxu0 %v5460
        %v6142 = vpop.f32.mrf.mxu0
        %v6143 = vadd.f32 %v6030, %v6142
        %6144 = vmatmul.f32.gmra.mxu0 %v5465
        %v6145 = vpop.f32.mrf.mxu0
        %v6146 = vadd.f32 %v6033, %v6145
        %6147 = vmatmul.f32.gmra.mxu0 %v5470
        %v6148 = vpop.f32.mrf.mxu0
        %v6149 = vadd.f32 %v6036, %v6148
        %6150 = vmatmul.f32.gmra.mxu0 %v5475
        %v6151 = vpop.f32.mrf.mxu0
        %v6152 = vadd.f32 %v6039, %v6151
        %6153 = vmatmul.f32.gmra.mxu0 %v5480
        %v6154 = vpop.f32.mrf.mxu0
        %v6155 = vadd.f32 %v6042, %v6154
        %6156 = vmatmul.f32.gmra.mxu0 %v5485
        %v6157 = vpop.f32.mrf.mxu0
        %v6158 = vadd.f32 %v6045, %v6157
        %6159 = vmatmul.f32.gmra.mxu0 %v5490
        %v6160 = vpop.f32.mrf.mxu0
        %v6161 = vadd.f32 %v6048, %v6160
        %6162 = vmatmul.f32.gmra.mxu0 %v5495
        %v6163 = vpop.f32.mrf.mxu0
        %v6164 = vadd.f32 %v6051, %v6163
        %6165 = vmatmul.f32.gmra.mxu0 %v5500
        %v6166 = vpop.f32.mrf.mxu0
        %v6167 = vadd.f32 %v6054, %v6166
        %6168 = vmatmul.f32.gmra.mxu0 %v5505
        %v6169 = vpop.f32.mrf.mxu0
        %v6170 = vadd.f32 %v6057, %v6169
        %6171 = vmatmul.f32.gmra.mxu0 %v5510
        %v6172 = vpop.f32.mrf.mxu0
        %v6173 = vadd.f32 %v6060, %v6172
        %6174 = vmatmul.f32.gmra.mxu0 %v5515
        %v6175 = vpop.f32.mrf.mxu0
        %v6176 = vadd.f32 %v6063, %v6175
        %6177 = vmatmul.f32.gmra.mxu0 %v5520
        %v6178 = vpop.f32.mrf.mxu0
        %v6179 = vadd.f32 %v6066, %v6178
        %6180 = vmatmul.f32.gmra.mxu0 %v5525
        %v6181 = vpop.f32.mrf.mxu0
        %v6182 = vadd.f32 %v6069, %v6181
        %6183 = vmatmul.f32.gmra.mxu0 %v5530
        %v6184 = vpop.f32.mrf.mxu0
        %v6185 = vadd.f32 %v6072, %v6184
        %6186 = vmatmul.f32.gmra.mxu0 %v5535
        %v6187 = vpop.f32.mrf.mxu0
        %v6188 = vadd.f32 %v6075, %v6187
        %6189 = vmatmul.f32.gmra.mxu0 %v5540
        %v6190 = vpop.f32.mrf.mxu0
        %v6191 = vadd.f32 %v6078, %v6190
        %6192 = vmatmul.f32.gmra.mxu0 %v5545
        %v6193 = vpop.f32.mrf.mxu0
        %v6194 = vadd.f32 %v6081, %v6193
        %6195 = vmatmul.f32.gmra.mxu0 %v5550
        %v6196 = vpop.f32.mrf.mxu0
        %v6197 = vadd.f32 %v6084, %v6196
        %6198 = vmatmul.f32.gmra.mxu0 %v5555
        %v6199 = vpop.f32.mrf.mxu0
        %v6200 = vadd.f32 %v6087, %v6199
        %6201 = vmatmul.f32.gmra.mxu0 %v5560
        %v6202 = vpop.f32.mrf.mxu0
        %v6203 = vadd.f32 %v6090, %v6202
        %6204 = vmatmul.f32.gmra.mxu0 %v5565
        %v6205 = vpop.f32.mrf.mxu0
        %v6206 = vadd.f32 %v6093, %v6205
        %6207 = vmatmul.f32.gmra.mxu0 %v5570
        %v6208 = vpop.f32.mrf.mxu0
        %v6209 = vadd.f32 %v6096, %v6208
        %6210 = vmatmul.f32.gmra.mxu0 %v5575
        %v6211 = vpop.f32.mrf.mxu0
        %v6212 = vadd.f32 %v6099, %v6211
        %6213 = vmatmul.f32.gmra.mxu0 %v5580
        %v6214 = vpop.f32.mrf.mxu0
        %v6215 = vadd.f32 %v6102, %v6214
        %6216 = vmatmul.f32.gmra.mxu0 %v5585
        %v6217 = vpop.f32.mrf.mxu0
        %v6218 = vadd.f32 %v6105, %v6217
        %6219 = vmatmul.f32.gmra.mxu0 %v5590
        %v6220 = vpop.f32.mrf.mxu0
        %v6221 = vadd.f32 %v6108, %v6220
        %6222 = vmatmul.f32.gmra.mxu0 %v5595
        %v6223 = vpop.f32.mrf.mxu0
        %v6224 = vadd.f32 %v6111, %v6223
        %6225 = vmatmul.f32.gmra.mxu0 %v5600
        %v6226 = vpop.f32.mrf.mxu0
        %v6227 = vadd.f32 %v6114, %v6226
        %6228 = vmatmul.f32.gmra.mxu0 %v5605
        %v6229 = vpop.f32.mrf.mxu0
        %v6230 = vadd.f32 %v6117, %v6229
        %6231 = vdwg.mxu0
        %6232 = vmatpush.msra.mxu0 0.0
        %6233 = vmatpush.msra.mxu0 0.0
        %6234 = vmatpush.msra.mxu0 0.0
        %6235 = vmatpush.msra.mxu0 0.0
        %6236 = vmatpush.msra.mxu0 0.0
        %6237 = vmatpush.msra.mxu0 0.0
        %6238 = vmatpush.msra.mxu0 0.0
        %6239 = vmatpush.msra.mxu0 0.0
        %6240 = vmatpush.msra.mxu0 0.0
        %6241 = vmatpush.msra.mxu0 0.0
        %6242 = vmatpush.msra.mxu0 0.0
        %6243 = vmatpush.msra.mxu0 0.0
        %6244 = vmatpush.msra.mxu0 %v5778
        %6245 = vmatpush.msra.mxu0 %v5673
        %6246 = vmatpush.msra.mxu0 %v5672
        %6247 = vmatpush.msra.mxu0 %v5671
        %6248 = vmatmul.f32.gmra.mxu0 %v5681
        %v6249 = vpop.f32.mrf.mxu0
        %v6250 = vadd.f32 %v6137, %v6249
        %6251 = vmatmul.f32.gmra.mxu0 %v5684
        %v6252 = vpop.f32.mrf.mxu0
        %v6253 = vadd.f32 %v6140, %v6252
        %6254 = vmatmul.f32.gmra.mxu0 %v5687
        %v6255 = vpop.f32.mrf.mxu0
        %v6256 = vadd.f32 %v6143, %v6255
        %6257 = vmatmul.f32.gmra.mxu0 %v5690
        %v6258 = vpop.f32.mrf.mxu0
        %v6259 = vadd.f32 %v6146, %v6258
        %6260 = vmatmul.f32.gmra.mxu0 %v5693
        %v6261 = vpop.f32.mrf.mxu0
        %v6262 = vadd.f32 %v6149, %v6261
        %6263 = vmatmul.f32.gmra.mxu0 %v5696
        %v6264 = vpop.f32.mrf.mxu0
        %v6265 = vadd.f32 %v6152, %v6264
        %6266 = vmatmul.f32.gmra.mxu0 %v5699
        %v6267 = vpop.f32.mrf.mxu0
        %v6268 = vadd.f32 %v6155, %v6267
        %6269 = vmatmul.f32.gmra.mxu0 %v5702
        %v6270 = vpop.f32.mrf.mxu0
        %v6271 = vadd.f32 %v6158, %v6270
        %6272 = vmatmul.f32.gmra.mxu0 %v5705
        %v6273 = vpop.f32.mrf.mxu0
        %v6274 = vadd.f32 %v6161, %v6273
        %6275 = vmatmul.f32.gmra.mxu0 %v5708
        %v6276 = vpop.f32.mrf.mxu0
        %v6277 = vadd.f32 %v6164, %v6276
        %6278 = vmatmul.f32.gmra.mxu0 %v5711
        %v6279 = vpop.f32.mrf.mxu0
        %v6280 = vadd.f32 %v6167, %v6279
        %6281 = vmatmul.f32.gmra.mxu0 %v5714
        %v6282 = vpop.f32.mrf.mxu0
        %v6283 = vadd.f32 %v6170, %v6282
        %6284 = vmatmul.f32.gmra.mxu0 %v5717
        %v6285 = vpop.f32.mrf.mxu0
        %v6286 = vadd.f32 %v6173, %v6285
        %6287 = vmatmul.f32.gmra.mxu0 %v5720
        %v6288 = vpop.f32.mrf.mxu0
        %v6289 = vadd.f32 %v6176, %v6288
        %6290 = vmatmul.f32.gmra.mxu0 %v5723
        %v6291 = vpop.f32.mrf.mxu0
        %v6292 = vadd.f32 %v6179, %v6291
        %6293 = vmatmul.f32.gmra.mxu0 %v5726
        %v6294 = vpop.f32.mrf.mxu0
        %v6295 = vadd.f32 %v6182, %v6294
        %6296 = vmatmul.f32.gmra.mxu0 %v5729
        %v6297 = vpop.f32.mrf.mxu0
        %v6298 = vadd.f32 %v6185, %v6297
        %6299 = vmatmul.f32.gmra.mxu0 %v5732
        %v6300 = vpop.f32.mrf.mxu0
        %v6301 = vadd.f32 %v6188, %v6300
        %6302 = vmatmul.f32.gmra.mxu0 %v5735
        %v6303 = vpop.f32.mrf.mxu0
        %v6304 = vadd.f32 %v6191, %v6303
        %6305 = vmatmul.f32.gmra.mxu0 %v5738
        %v6306 = vpop.f32.mrf.mxu0
        %v6307 = vadd.f32 %v6194, %v6306
        %6308 = vmatmul.f32.gmra.mxu0 %v5741
        %v6309 = vpop.f32.mrf.mxu0
        %v6310 = vadd.f32 %v6197, %v6309
        %6311 = vmatmul.f32.gmra.mxu0 %v5744
        %v6312 = vpop.f32.mrf.mxu0
        %v6313 = vadd.f32 %v6200, %v6312
        %6314 = vmatmul.f32.gmra.mxu0 %v5747
        %v6315 = vpop.f32.mrf.mxu0
        %v6316 = vadd.f32 %v6203, %v6315
        %6317 = vmatmul.f32.gmra.mxu0 %v5750
        %v6318 = vpop.f32.mrf.mxu0
        %v6319 = vadd.f32 %v6206, %v6318
        %6320 = vmatmul.f32.gmra.mxu0 %v5753
        %v6321 = vpop.f32.mrf.mxu0
        %v6322 = vadd.f32 %v6209, %v6321
        %6323 = vmatmul.f32.gmra.mxu0 %v5756
        %v6324 = vpop.f32.mrf.mxu0
        %v6325 = vadd.f32 %v6212, %v6324
        %6326 = vmatmul.f32.gmra.mxu0 %v5759
        %v6327 = vpop.f32.mrf.mxu0
        %v6328 = vadd.f32 %v6215, %v6327
        %6329 = vmatmul.f32.gmra.mxu0 %v5762
        %v6330 = vpop.f32.mrf.mxu0
        %v6331 = vadd.f32 %v6218, %v6330
        %6332 = vmatmul.f32.gmra.mxu0 %v5765
        %v6333 = vpop.f32.mrf.mxu0
        %v6334 = vadd.f32 %v6221, %v6333
        %6335 = vmatmul.f32.gmra.mxu0 %v5768
        %v6336 = vpop.f32.mrf.mxu0
        %v6337 = vadd.f32 %v6224, %v6336
        %6338 = vmatmul.f32.gmra.mxu0 %v5771
        %v6339 = vpop.f32.mrf.mxu0
        %v6340 = vadd.f32 %v6227, %v6339
        %6341 = vmatmul.f32.gmra.mxu0 %v5774
        %v6342 = vpop.f32.mrf.mxu0
        %v6343 = vadd.f32 %v6230, %v6342
        %6344 = vdwg.mxu0
        %v6345 = vmax.f32 %v6250, 0.0
        %v6346 = vmax.f32 %v6253, 0.0
        %v6347 = vmax.f32 %v6256, 0.0
        %v6348 = vmax.f32 %v6259, 0.0
        %v6349 = vmax.f32 %v6262, 0.0
        %v6350 = vmax.f32 %v6265, 0.0
        %v6351 = vmax.f32 %v6268, 0.0
        %v6352 = vmax.f32 %v6271, 0.0
        %v6353 = vmax.f32 %v6274, 0.0
        %v6354 = vmax.f32 %v6277, 0.0
        %v6355 = vmax.f32 %v6280, 0.0
        %v6356 = vmax.f32 %v6283, 0.0
        %v6357 = vmax.f32 %v6286, 0.0
        %v6358 = vmax.f32 %v6289, 0.0
        %v6359 = vmax.f32 %v6292, 0.0
        %v6360 = vmax.f32 %v6295, 0.0
        %v6361 = vmax.f32 %v6298, 0.0
        %v6362 = vmax.f32 %v6301, 0.0
        %v6363 = vmax.f32 %v6304, 0.0
        %v6364 = vmax.f32 %v6307, 0.0
        %v6365 = vmax.f32 %v6310, 0.0
        %v6366 = vmax.f32 %v6313, 0.0
        %v6367 = vmax.f32 %v6316, 0.0
        %v6368 = vmax.f32 %v6319, 0.0
        %v6369 = vmax.f32 %v6322, 0.0
        %v6370 = vmax.f32 %v6325, 0.0
        %v6371 = vmax.f32 %v6328, 0.0
        %v6372 = vmax.f32 %v6331, 0.0
        %v6373 = vmax.f32 %v6334, 0.0
        %v6374 = vmax.f32 %v6337, 0.0
        %v6375 = vmax.f32 %v6340, 0.0
        %v6376 = vmax.f32 %v6343, 0.0
        %v6377 = vld [vmem:[%s7] sm:$0xff]
        %v6378 = vld [vmem:[%s7 + $0x8] sm:$0xf]
        %v6379 = vld [vmem:[%s8] sm:$0x1]
        %v6381 = vperm.slane %v6379, 0
        %vm6383 = vcmask 97280
        %v6385 = vsel %vm6383, %v6345, 0
        %v6388 = vsel %vm6383, %v6346, 0
        %v6391 = vsel %vm6383, %v6347, 0
        %v6394 = vsel %vm6383, %v6348, 0
        %v6397 = vsel %vm6383, %v6349, 0
        %v6400 = vsel %vm6383, %v6350, 0
        %v6403 = vsel %vm6383, %v6351, 0
        %v6406 = vsel %vm6383, %v6352, 0
        %v6409 = vsel %vm6383, %v6353, 0
        %v6412 = vsel %vm6383, %v6354, 0
        %v6415 = vsel %vm6383, %v6355, 0
        %v6418 = vsel %vm6383, %v6356, 0
        %v6421 = vsel %vm6383, %v6357, 0
        %v6424 = vsel %vm6383, %v6358, 0
        %v6427 = vsel %vm6383, %v6359, 0
        %v6430 = vsel %vm6383, %v6360, 0
        %v6433 = vsel %vm6383, %v6361, 0
        %v6436 = vsel %vm6383, %v6362, 0
        %v6439 = vsel %vm6383, %v6363, 0
        %v6442 = vsel %vm6383, %v6364, 0
        %v6445 = vsel %vm6383, %v6365, 0
        %v6448 = vsel %vm6383, %v6366, 0
        %v6451 = vsel %vm6383, %v6367, 0
        %v6454 = vsel %vm6383, %v6368, 0
        %v6457 = vsel %vm6383, %v6369, 0
        %v6460 = vsel %vm6383, %v6370, 0
        %v6463 = vsel %vm6383, %v6371, 0
        %v6466 = vsel %vm6383, %v6372, 0
        %v6469 = vsel %vm6383, %v6373, 0
        %v6472 = vsel %vm6383, %v6374, 0
        %v6475 = vsel %vm6383, %v6375, 0
        %v6478 = vsel %vm6383, %v6376, 0
        %v6481 = vsel %vm5776, %v6378, 0
        %6483 = vmatpush.msra.mxu0 0.0
        %6484 = vmatpush.msra.mxu0 0.0
        %6485 = vmatpush.msra.mxu0 0.0
        %6486 = vmatpush.msra.mxu0 0.0
        %6487 = vmatpush.msra.mxu0 0.0
        %6488 = vmatpush.msra.mxu0 0.0
        %6489 = vmatpush.msra.mxu0 0.0
        %6490 = vmatpush.msra.mxu0 0.0
        %6491 = vmatpush.msra.mxu0 0.0
        %6492 = vmatpush.msra.mxu0 0.0
        %6493 = vmatpush.msra.mxu0 0.0
        %6494 = vmatpush.msra.mxu0 0.0
        %6495 = vmatpush.msra.mxu0 0.0
        %6496 = vmatpush.msra.mxu0 0.0
        %6497 = vmatpush.msra.mxu0 %v6481
        %6498 = vmatpush.msra.mxu0 %v6377
        %6499 = vmatmul.f32.gmra.mxu0 %v6385
        %v6500 = vpop.f32.mrf.mxu0
        %v6501 = vadd.f32 %v6381, %v6500
        %6502 = vmatmul.f32.gmra.mxu0 %v6388
        %v6503 = vpop.f32.mrf.mxu0
        %v6504 = vadd.f32 %v6381, %v6503
        %6505 = vmatmul.f32.gmra.mxu0 %v6391
        %v6506 = vpop.f32.mrf.mxu0
        %v6507 = vadd.f32 %v6381, %v6506
        %6508 = vmatmul.f32.gmra.mxu0 %v6394
        %v6509 = vpop.f32.mrf.mxu0
        %v6510 = vadd.f32 %v6381, %v6509
        %6511 = vmatmul.f32.gmra.mxu0 %v6397
        %v6512 = vpop.f32.mrf.mxu0
        %v6513 = vadd.f32 %v6381, %v6512
        %6514 = vmatmul.f32.gmra.mxu0 %v6400
        %v6515 = vpop.f32.mrf.mxu0
        %v6516 = vadd.f32 %v6381, %v6515
        %6517 = vmatmul.f32.gmra.mxu0 %v6403
        %v6518 = vpop.f32.mrf.mxu0
        %v6519 = vadd.f32 %v6381, %v6518
        %6520 = vmatmul.f32.gmra.mxu0 %v6406
        %v6521 = vpop.f32.mrf.mxu0
        %v6522 = vadd.f32 %v6381, %v6521
        %6523 = vmatmul.f32.gmra.mxu0 %v6409
        %v6524 = vpop.f32.mrf.mxu0
        %v6525 = vadd.f32 %v6381, %v6524
        %6526 = vmatmul.f32.gmra.mxu0 %v6412
        %v6527 = vpop.f32.mrf.mxu0
        %v6528 = vadd.f32 %v6381, %v6527
        %6529 = vmatmul.f32.gmra.mxu0 %v6415
        %v6530 = vpop.f32.mrf.mxu0
        %v6531 = vadd.f32 %v6381, %v6530
        %6532 = vmatmul.f32.gmra.mxu0 %v6418
        %v6533 = vpop.f32.mrf.mxu0
        %v6534 = vadd.f32 %v6381, %v6533
        %6535 = vmatmul.f32.gmra.mxu0 %v6421
        %v6536 = vpop.f32.mrf.mxu0
        %v6537 = vadd.f32 %v6381, %v6536
        %6538 = vmatmul.f32.gmra.mxu0 %v6424
        %v6539 = vpop.f32.mrf.mxu0
        %v6540 = vadd.f32 %v6381, %v6539
        %6541 = vmatmul.f32.gmra.mxu0 %v6427
        %v6542 = vpop.f32.mrf.mxu0
        %v6543 = vadd.f32 %v6381, %v6542
        %6544 = vmatmul.f32.gmra.mxu0 %v6430
        %v6545 = vpop.f32.mrf.mxu0
        %v6546 = vadd.f32 %v6381, %v6545
        %6547 = vmatmul.f32.gmra.mxu0 %v6433
        %v6548 = vpop.f32.mrf.mxu0
        %v6549 = vadd.f32 %v6381, %v6548
        %6550 = vmatmul.f32.gmra.mxu0 %v6436
        %v6551 = vpop.f32.mrf.mxu0
        %v6552 = vadd.f32 %v6381, %v6551
        %6553 = vmatmul.f32.gmra.mxu0 %v6439
        %v6554 = vpop.f32.mrf.mxu0
        %v6555 = vadd.f32 %v6381, %v6554
        %6556 = vmatmul.f32.gmra.mxu0 %v6442
        %v6557 = vpop.f32.mrf.mxu0
        %v6558 = vadd.f32 %v6381, %v6557
        %6559 = vmatmul.f32.gmra.mxu0 %v6445
        %v6560 = vpop.f32.mrf.mxu0
        %v6561 = vadd.f32 %v6381, %v6560
        %6562 = vmatmul.f32.gmra.mxu0 %v6448
        %v6563 = vpop.f32.mrf.mxu0
        %v6564 = vadd.f32 %v6381, %v6563
        %6565 = vmatmul.f32.gmra.mxu0 %v6451
        %v6566 = vpop.f32.mrf.mxu0
        %v6567 = vadd.f32 %v6381, %v6566
        %6568 = vmatmul.f32.gmra.mxu0 %v6454
        %v6569 = vpop.f32.mrf.mxu0
        %v6570 = vadd.f32 %v6381, %v6569
        %6571 = vmatmul.f32.gmra.mxu0 %v6457
        %v6572 = vpop.f32.mrf.mxu0
        %v6573 = vadd.f32 %v6381, %v6572
        %6574 = vmatmul.f32.gmra.mxu0 %v6460
        %v6575 = vpop.f32.mrf.mxu0
        %v6576 = vadd.f32 %v6381, %v6575
        %6577 = vmatmul.f32.gmra.mxu0 %v6463
        %v6578 = vpop.f32.mrf.mxu0
        %v6579 = vadd.f32 %v6381, %v6578
        %6580 = vmatmul.f32.gmra.mxu0 %v6466
        %v6581 = vpop.f32.mrf.mxu0
        %v6582 = vadd.f32 %v6381, %v6581
        %6583 = vmatmul.f32.gmra.mxu0 %v6469
        %v6584 = vpop.f32.mrf.mxu0
        %v6585 = vadd.f32 %v6381, %v6584
        %6586 = vmatmul.f32.gmra.mxu0 %v6472
        %v6587 = vpop.f32.mrf.mxu0
        %v6588 = vadd.f32 %v6381, %v6587
        %6589 = vmatmul.f32.gmra.mxu0 %v6475
        %v6590 = vpop.f32.mrf.mxu0
        %v6591 = vadd.f32 %v6381, %v6590
        %6592 = vmatmul.f32.gmra.mxu0 %v6478
        %v6593 = vpop.f32.mrf.mxu0
        %v6594 = vadd.f32 %v6381, %v6593
        %6595 = vdwg.mxu0
        %v6596 = vmax.f32 %v6501, 0.0
        %v6597 = vmax.f32 %v6504, 0.0
        %v6598 = vmax.f32 %v6507, 0.0
        %v6599 = vmax.f32 %v6510, 0.0
        %v6600 = vmax.f32 %v6513, 0.0
        %v6601 = vmax.f32 %v6516, 0.0
        %v6602 = vmax.f32 %v6519, 0.0
        %v6603 = vmax.f32 %v6522, 0.0
        %v6604 = vmax.f32 %v6525, 0.0
        %v6605 = vmax.f32 %v6528, 0.0
        %v6606 = vmax.f32 %v6531, 0.0
        %v6607 = vmax.f32 %v6534, 0.0
        %v6608 = vmax.f32 %v6537, 0.0
        %v6609 = vmax.f32 %v6540, 0.0
        %v6610 = vmax.f32 %v6543, 0.0
        %v6611 = vmax.f32 %v6546, 0.0
        %v6612 = vmax.f32 %v6549, 0.0
        %v6613 = vmax.f32 %v6552, 0.0
        %v6614 = vmax.f32 %v6555, 0.0
        %v6615 = vmax.f32 %v6558, 0.0
        %v6616 = vmax.f32 %v6561, 0.0
        %v6617 = vmax.f32 %v6564, 0.0
        %v6618 = vmax.f32 %v6567, 0.0
        %v6619 = vmax.f32 %v6570, 0.0
        %v6620 = vmax.f32 %v6573, 0.0
        %v6621 = vmax.f32 %v6576, 0.0
        %v6622 = vmax.f32 %v6579, 0.0
        %v6623 = vmax.f32 %v6582, 0.0
        %v6624 = vmax.f32 %v6585, 0.0
        %v6625 = vmax.f32 %v6588, 0.0
        %v6626 = vmax.f32 %v6591, 0.0
        %v6627 = vmax.f32 %v6594, 0.0
        %v6628 = vld [vmem:[%s9] sm:$0xff]
        %v6629 = vld [vmem:[%s9 + $0x8] sm:$0xff]
        %v6630 = vld [vmem:[%s9 + $0x10] sm:$0xff]
        %v6631 = vld [vmem:[%s9 + $0x18] sm:$0xff]
        %v6632 = vld [vmem:[%s9 + $0x20] sm:$0xff]
        %v6633 = vld [vmem:[%s9 + $0x28] sm:$0xff]
        %v6634 = vld [vmem:[%s9 + $0x30] sm:$0xff]
        %v6635 = vld [vmem:[%s9 + $0x38] sm:$0xff]
        %v6636 = vld [vmem:[%s9 + $0x40] sm:$0xff]
        %v6637 = vld [vmem:[%s9 + $0x48] sm:$0xff]
        %v6638 = vld [vmem:[%s9 + $0x50] sm:$0xff]
        %v6639 = vld [vmem:[%s9 + $0x58] sm:$0xff]
        %v6640 = vld [vmem:[%s10] sm:$0x1]
        %v6642 = vperm.slane %v6640, 0
        %vm6644 = vcmask 785408
        %v6646 = vsel %vm6644, %v6596, 0
        %v6649 = vsel %vm6644, %v6597, 0
        %v6652 = vsel %vm6644, %v6598, 0
        %v6655 = vsel %vm6644, %v6599, 0
        %v6658 = vsel %vm6644, %v6600, 0
        %v6661 = vsel %vm6644, %v6601, 0
        %v6664 = vsel %vm6644, %v6602, 0
        %v6667 = vsel %vm6644, %v6603, 0
        %v6670 = vsel %vm6644, %v6604, 0
        %v6673 = vsel %vm6644, %v6605, 0
        %v6676 = vsel %vm6644, %v6606, 0
        %v6679 = vsel %vm6644, %v6607, 0
        %v6682 = vsel %vm6644, %v6608, 0
        %v6685 = vsel %vm6644, %v6609, 0
        %v6688 = vsel %vm6644, %v6610, 0
        %v6691 = vsel %vm6644, %v6611, 0
        %v6694 = vsel %vm6644, %v6612, 0
        %v6697 = vsel %vm6644, %v6613, 0
        %v6700 = vsel %vm6644, %v6614, 0
        %v6703 = vsel %vm6644, %v6615, 0
        %v6706 = vsel %vm6644, %v6616, 0
        %v6709 = vsel %vm6644, %v6617, 0
        %v6712 = vsel %vm6644, %v6618, 0
        %v6715 = vsel %vm6644, %v6619, 0
        %v6718 = vsel %vm6644, %v6620, 0
        %v6721 = vsel %vm6644, %v6621, 0
        %v6724 = vsel %vm6644, %v6622, 0
        %v6727 = vsel %vm6644, %v6623, 0
        %v6730 = vsel %vm6644, %v6624, 0
        %v6733 = vsel %vm6644, %v6625, 0
        %v6736 = vsel %vm6644, %v6626, 0
        %v6739 = vsel %vm6644, %v6627, 0
        %6741 = vmatpush.msra.mxu0 0.0
        %6742 = vmatpush.msra.mxu0 0.0
        %6743 = vmatpush.msra.mxu0 0.0
        %6744 = vmatpush.msra.mxu0 0.0
        %6745 = vmatpush.msra.mxu0 %v6639
        %6746 = vmatpush.msra.mxu0 %v6638
        %6747 = vmatpush.msra.mxu0 %v6637
        %6748 = vmatpush.msra.mxu0 %v6636
        %6749 = vmatpush.msra.mxu0 %v6635
        %6750 = vmatpush.msra.mxu0 %v6634
        %6751 = vmatpush.msra.mxu0 %v6633
        %6752 = vmatpush.msra.mxu0 %v6632
        %6753 = vmatpush.msra.mxu0 %v6631
        %6754 = vmatpush.msra.mxu0 %v6630
        %6755 = vmatpush.msra.mxu0 %v6629
        %6756 = vmatpush.msra.mxu0 %v6628
        %6757 = vmatmul.f32.gmra.mxu0 %v6646
        %v6758 = vpop.f32.mrf.mxu0
        %v6759 = vadd.f32 %v6642, %v6758
        %6760 = vmatmul.f32.gmra.mxu0 %v6649
        %v6761 = vpop.f32.mrf.mxu0
        %v6762 = vadd.f32 %v6642, %v6761
        %6763 = vmatmul.f32.gmra.mxu0 %v6652
        %v6764 = vpop.f32.mrf.mxu0
        %v6765 = vadd.f32 %v6642, %v6764
        %6766 = vmatmul.f32.gmra.mxu0 %v6655
        %v6767 = vpop.f32.mrf.mxu0
        %v6768 = vadd.f32 %v6642, %v6767
        %6769 = vmatmul.f32.gmra.mxu0 %v6658
        %v6770 = vpop.f32.mrf.mxu0
        %v6771 = vadd.f32 %v6642, %v6770
        %6772 = vmatmul.f32.gmra.mxu0 %v6661
        %v6773 = vpop.f32.mrf.mxu0
        %v6774 = vadd.f32 %v6642, %v6773
        %6775 = vmatmul.f32.gmra.mxu0 %v6664
        %v6776 = vpop.f32.mrf.mxu0
        %v6777 = vadd.f32 %v6642, %v6776
        %6778 = vmatmul.f32.gmra.mxu0 %v6667
        %v6779 = vpop.f32.mrf.mxu0
        %v6780 = vadd.f32 %v6642, %v6779
        %6781 = vmatmul.f32.gmra.mxu0 %v6670
        %v6782 = vpop.f32.mrf.mxu0
        %v6783 = vadd.f32 %v6642, %v6782
        %6784 = vmatmul.f32.gmra.mxu0 %v6673
        %v6785 = vpop.f32.mrf.mxu0
        %v6786 = vadd.f32 %v6642, %v6785
        %6787 = vmatmul.f32.gmra.mxu0 %v6676
        %v6788 = vpop.f32.mrf.mxu0
        %v6789 = vadd.f32 %v6642, %v6788
        %6790 = vmatmul.f32.gmra.mxu0 %v6679
        %v6791 = vpop.f32.mrf.mxu0
        %v6792 = vadd.f32 %v6642, %v6791
        %6793 = vmatmul.f32.gmra.mxu0 %v6682
        %v6794 = vpop.f32.mrf.mxu0
        %v6795 = vadd.f32 %v6642, %v6794
        %6796 = vmatmul.f32.gmra.mxu0 %v6685
        %v6797 = vpop.f32.mrf.mxu0
        %v6798 = vadd.f32 %v6642, %v6797
        %6799 = vmatmul.f32.gmra.mxu0 %v6688
        %v6800 = vpop.f32.mrf.mxu0
        %v6801 = vadd.f32 %v6642, %v6800
        %6802 = vmatmul.f32.gmra.mxu0 %v6691
        %v6803 = vpop.f32.mrf.mxu0
        %v6804 = vadd.f32 %v6642, %v6803
        %6805 = vmatmul.f32.gmra.mxu0 %v6694
        %v6806 = vpop.f32.mrf.mxu0
        %v6807 = vadd.f32 %v6642, %v6806
        %6808 = vmatmul.f32.gmra.mxu0 %v6697
        %v6809 = vpop.f32.mrf.mxu0
        %v6810 = vadd.f32 %v6642, %v6809
        %6811 = vmatmul.f32.gmra.mxu0 %v6700
        %v6812 = vpop.f32.mrf.mxu0
        %v6813 = vadd.f32 %v6642, %v6812
        %6814 = vmatmul.f32.gmra.mxu0 %v6703
        %v6815 = vpop.f32.mrf.mxu0
        %v6816 = vadd.f32 %v6642, %v6815
        %6817 = vmatmul.f32.gmra.mxu0 %v6706
        %v6818 = vpop.f32.mrf.mxu0
        %v6819 = vadd.f32 %v6642, %v6818
        %6820 = vmatmul.f32.gmra.mxu0 %v6709
        %v6821 = vpop.f32.mrf.mxu0
        %v6822 = vadd.f32 %v6642, %v6821
        %6823 = vmatmul.f32.gmra.mxu0 %v6712
        %v6824 = vpop.f32.mrf.mxu0
        %v6825 = vadd.f32 %v6642, %v6824
        %6826 = vmatmul.f32.gmra.mxu0 %v6715
        %v6827 = vpop.f32.mrf.mxu0
        %v6828 = vadd.f32 %v6642, %v6827
        %6829 = vmatmul.f32.gmra.mxu0 %v6718
        %v6830 = vpop.f32.mrf.mxu0
        %v6831 = vadd.f32 %v6642, %v6830
        %6832 = vmatmul.f32.gmra.mxu0 %v6721
        %v6833 = vpop.f32.mrf.mxu0
        %v6834 = vadd.f32 %v6642, %v6833
        %6835 = vmatmul.f32.gmra.mxu0 %v6724
        %v6836 = vpop.f32.mrf.mxu0
        %v6837 = vadd.f32 %v6642, %v6836
        %6838 = vmatmul.f32.gmra.mxu0 %v6727
        %v6839 = vpop.f32.mrf.mxu0
        %v6840 = vadd.f32 %v6642, %v6839
        %6841 = vmatmul.f32.gmra.mxu0 %v6730
        %v6842 = vpop.f32.mrf.mxu0
        %v6843 = vadd.f32 %v6642, %v6842
        %6844 = vmatmul.f32.gmra.mxu0 %v6733
        %v6845 = vpop.f32.mrf.mxu0
        %v6846 = vadd.f32 %v6642, %v6845
        %6847 = vmatmul.f32.gmra.mxu0 %v6736
        %v6848 = vpop.f32.mrf.mxu0
        %v6849 = vadd.f32 %v6642, %v6848
        %6850 = vmatmul.f32.gmra.mxu0 %v6739
        %v6851 = vpop.f32.mrf.mxu0
        %v6852 = vadd.f32 %v6642, %v6851
        %6853 = vdwg.mxu0
        %6854 = vxpose.xlu0.b32.start [1/16] %v6759, 128
        %6855 = vxpose.xlu0.b32.cont [2/16] %v6762, 128
        %6856 = vxpose.xlu0.b32.cont [3/16] %v6765, 128
        %6857 = vxpose.xlu0.b32.cont [4/16] %v6768, 128
        %6858 = vxpose.xlu0.b32.cont [5/16] %v6771, 128
        %6859 = vxpose.xlu0.b32.cont [6/16] %v6774, 128
        %6860 = vxpose.xlu0.b32.cont [7/16] %v6777, 128
        %6861 = vxpose.xlu0.b32.cont [8/16] %v6780, 128
        %6862 = vxpose.xlu0.b32.cont [9/16] %v6783, 128
        %6863 = vxpose.xlu0.b32.cont [10/16] %v6786, 128
        %6864 = vxpose.xlu0.b32.cont [11/16] %v6789, 128
        %6865 = vxpose.xlu0.b32.cont [12/16] %v6792, 128
        %6866 = vxpose.xlu0.b32.cont [13/16] %v6795, 128
        %6867 = vxpose.xlu0.b32.cont [14/16] %v6798, 128
        %6868 = vxpose.xlu0.b32.cont [15/16] %v6801, 128
        %6869 = vxpose.xlu0.b32.end [16/16] %v6804, 128
        %v6870 = vpop.trf.xlu0
        %v6871 = vpop.trf.xlu0
        %v6872 = vpop.trf.xlu0
        %v6873 = vpop.trf.xlu0
        %v6874 = vpop.trf.xlu0
        %v6875 = vpop.trf.xlu0
        %v6876 = vpop.trf.xlu0
        %v6877 = vpop.trf.xlu0
        %v6878 = vpop.trf.xlu0
        %v6879 = vpop.trf.xlu0
        %v6880 = vpop.trf.xlu0
        %v6881 = vpop.trf.xlu0
        %v6882 = vpop.trf.xlu0
        %v6883 = vpop.trf.xlu0
        %v6884 = vpop.trf.xlu0
        %v6885 = vpop.trf.xlu0
        %6886 = vxpose.xlu0.b32.start [1/16] %v6807, 128
        %6887 = vxpose.xlu0.b32.cont [2/16] %v6810, 128
        %6888 = vxpose.xlu0.b32.cont [3/16] %v6813, 128
        %6889 = vxpose.xlu0.b32.cont [4/16] %v6816, 128
        %6890 = vxpose.xlu0.b32.cont [5/16] %v6819, 128
        %6891 = vxpose.xlu0.b32.cont [6/16] %v6822, 128
        %6892 = vxpose.xlu0.b32.cont [7/16] %v6825, 128
        %6893 = vxpose.xlu0.b32.cont [8/16] %v6828, 128
        %6894 = vxpose.xlu0.b32.cont [9/16] %v6831, 128
        %6895 = vxpose.xlu0.b32.cont [10/16] %v6834, 128
        %6896 = vxpose.xlu0.b32.cont [11/16] %v6837, 128
        %6897 = vxpose.xlu0.b32.cont [12/16] %v6840, 128
        %6898 = vxpose.xlu0.b32.cont [13/16] %v6843, 128
        %6899 = vxpose.xlu0.b32.cont [14/16] %v6846, 128
        %6900 = vxpose.xlu0.b32.cont [15/16] %v6849, 128
        %6901 = vxpose.xlu0.b32.end [16/16] %v6852, 128
        %v6902 = vpop.trf.xlu0
        %v6903 = vpop.trf.xlu0
        %v6904 = vpop.trf.xlu0
        %v6905 = vpop.trf.xlu0
        %v6906 = vpop.trf.xlu0
        %v6907 = vpop.trf.xlu0
        %v6908 = vpop.trf.xlu0
        %v6909 = vpop.trf.xlu0
        %v6910 = vpop.trf.xlu0
        %v6911 = vpop.trf.xlu0
        %v6912 = vpop.trf.xlu0
        %v6913 = vpop.trf.xlu0
        %v6914 = vpop.trf.xlu0
        %v6915 = vpop.trf.xlu0
        %v6916 = vpop.trf.xlu0
        %v6917 = vpop.trf.xlu0
        %v6920 = vrot.slane %v6902, 4
        %v6921 = vsel %vm5776, %v6870, %v6920
        %6923 = vst [vmem:[%s380] sm:$0xff] %v6921
        %s6924 = sand.u32 %s269, 1
        %s6925 = scalar_lea.sflag [#allocation3], %s6924
        %s6926 = sand.u32 %s269, 1
        %s6927 = smul.addr %s6926, 8
        %s6928 = scalar_lea.vmem [#allocation2], %s6927
        // Predicated region
        $region65: #{tpu_custom_call.1} parent=63 // pred_check
          %p6929 = pneg %p279
        $region66: #{tpu_custom_call.1} parent=63 // pred_check_branch
          %6931 = sbr.rel (%p6929) target = $region68
        $region67: #{tpu_custom_call.1} parent=63 // pred_region
          %s6932 = smul.u32 2, %s25
          %6934 = vsyncadd %s6925, 0
          %s6935 = smul.addr %s6932, 4
          %s6936 = scalar_lea.hbm %s11, %s6935
          %s6938 = sshll.u32 %s6928, 4
          %s6939 = int_to_ptr.vmem [resolvable:$true] %s6938
          %s6940 = sshll.u32 %s6936, 4
          %s6941 = int_to_ptr.hbm [resolvable:$true] %s6940
          %6943 = dma.vmem_to_hbm [thread:$0]  %s6939, 128, %s6941, %s6925
        $region68: #{tpu_custom_call.1} parent=63 // pred_fallthru
          _
      $region64: #{tpu_custom_call.1} parent=5 // pred_fallthru
        _
      %p6944 = scmp.le.s32.totalorder 2, %s20
      // Predicated region
      $region69: #{tpu_custom_call.1} parent=5 // pred_check
        %p6945 = pneg %p6944
      $region70: #{tpu_custom_call.1} parent=5 // pred_check_branch
        %6947 = sbr.rel (%p6945) target = $region72
      $region71: #{tpu_custom_call.1} parent=5 // pred_region
        %s6948 = ssub.s32 %s20, 2
        // Predicated region
        $region73: #{tpu_custom_call.1} parent=71 // pred_check
          %p6949 = pneg %p285
        $region74: #{tpu_custom_call.1} parent=71 // pred_check_branch
          %6951 = sbr.rel (%p6949) target = $region76
        $region75: #{tpu_custom_call.1} parent=71 // pred_region
          %s6952 = sand.u32 %s270, 1
          %s6953 = scalar_lea.sflag [#allocation3], %s6952
          %s6954 = sand.u32 %s270, 1
          %s6955 = smul.addr %s6954, 8
          %s6956 = scalar_lea.vmem [#allocation2], %s6955
          %6958 = dma.done %s6953, 128
        $region76: #{tpu_custom_call.1} parent=71 // pred_fallthru
          _
      $region72: #{tpu_custom_call.1} parent=5 // pred_fallthru
        _
    $region6: #{tpu_custom_call.1} parent=1 // loop_footer
      %s24 = sadd.s32 1, %s20
    $region7: #{tpu_custom_call.1} parent=1 // loop_footer_branch
      %19 = sbr.rel target = $region3
    $region8: #{tpu_custom_call.1} parent=1 // loop_exit
      _
    %6959 = vsyncpa [#allocation3], 1
    %s6960 = scalar_lea.sflag [#allocation3], 1
    %6961 = vsyncpa %s6960, 1

</llo_original>
